<compile_context>
chip_gen: v5e
topology: v5e:2x2
jax: 0.10.0
libtpu: 0.0.40
codegen_flags: <defaults>
</compile_context>

<pallas_src>
import functools

import jax
import jax.numpy as jnp
from jax.experimental import pallas as pl


# ----------------------------------------------------------------------------
# Pallas kernels
# ----------------------------------------------------------------------------
def _stable_sigmoid(v):
    e = jnp.exp(-jnp.abs(v))                      # exp on EUP, never overflows
    return jnp.where(v >= 0, 1.0 / (1.0 + e), e / (1.0 + e))


def _gemm_bias_act_kernel(x_ref, w_ref, b_ref, o_ref, *, act):
    """o = act(x @ w + b); x/w bf16, accumulate f32."""
    acc = jnp.dot(x_ref[...], w_ref[...], preferred_element_type=jnp.float32)
    acc = acc + b_ref[...]
    if act == "relu":
        acc = jnp.maximum(acc, 0.0)
    elif act == "sigmoid":
        acc = _stable_sigmoid(acc)
    o_ref[...] = acc.astype(o_ref.dtype)


def _gemm_kernel(x_ref, w_ref, o_ref):
    """o = x @ w (no bias / activation)."""
    o_ref[...] = jnp.dot(x_ref[...], w_ref[...],
                         preferred_element_type=jnp.float32)


def _prelu_gemm_kernel(x_ref, pb_ref, w_ref, o_ref):
    """o = relu(x + pb) @ w  -- previous ConvT layer's bias+ReLU fused as prologue."""
    x = jnp.maximum(x_ref[...] + pb_ref[...], 0.0).astype(jnp.bfloat16)
    o_ref[...] = jnp.dot(x, w_ref[...], preferred_element_type=jnp.float32)


def _bias_act_kernel(x_ref, b_ref, o_ref, *, act):
    v = x_ref[...] + b_ref[...]
    if act == "relu":
        v = jnp.maximum(v, 0.0)
    elif act == "sigmoid":
        v = _stable_sigmoid(v)
    o_ref[...] = v


def _mu_logvar_reparam_kernel(x_ref, wmu_ref, bmu_ref, wlv_ref, blv_ref,
                              eps_ref, mu_ref, lv_ref, z_ref):
    """Fused: mu = x@Wmu+bmu, logvar = x@Wlv+blv, z = mu + eps*exp(0.5*logvar)."""
    x = x_ref[...]
    mu = jnp.dot(x, wmu_ref[...], preferred_element_type=jnp.float32) + bmu_ref[...]
    lv = jnp.dot(x, wlv_ref[...], preferred_element_type=jnp.float32) + blv_ref[...]
    mu_ref[...] = mu
    lv_ref[...] = lv
    z_ref[...] = mu + eps_ref[...] * jnp.exp(0.5 * lv)


# ----------------------------------------------------------------------------
# Thin pallas_call wrappers (full-array blocks, grid=(1,), no padding/slicing)
# ----------------------------------------------------------------------------
def _full_spec(shape):
    return pl.BlockSpec(shape, lambda i: tuple(0 for _ in shape))


def gemm_bias_act(x, w, b, act=None):
    M, K = x.shape
    _, N = w.shape
    return pl.pallas_call(
        functools.partial(_gemm_bias_act_kernel, act=act),
        out_shape=jax.ShapeDtypeStruct((M, N), jnp.float32),
        grid=(1,),
        in_specs=[_full_spec((M, K)), _full_spec((K, N)), _full_spec((1, N))],
        out_specs=_full_spec((M, N)),
    )(x, w, b)


def gemm(x, w):
    M, K = x.shape
    _, N = w.shape
    return pl.pallas_call(
        _gemm_kernel,
        out_shape=jax.ShapeDtypeStruct((M, N), jnp.float32),
        grid=(1,),
        in_specs=[_full_spec((M, K)), _full_spec((K, N))],
        out_specs=_full_spec((M, N)),
    )(x, w)


def prelu_gemm(x, pre_bias, w):
    M, C = x.shape
    _, N = w.shape
    return pl.pallas_call(
        _prelu_gemm_kernel,
        out_shape=jax.ShapeDtypeStruct((M, N), jnp.float32),
        grid=(1,),
        in_specs=[_full_spec((M, C)), _full_spec((1, C)), _full_spec((C, N))],
        out_specs=_full_spec((M, N)),
    )(x, pre_bias, w)


def bias_act(x, b, act):
    M, N = x.shape
    return pl.pallas_call(
        functools.partial(_bias_act_kernel, act=act),
        out_shape=jax.ShapeDtypeStruct((M, N), jnp.float32),
        grid=(1,),
        in_specs=[_full_spec((M, N)), _full_spec(b.shape)],
        out_specs=_full_spec((M, N)),
    )(x, b)


def mu_logvar_reparam(x, w_mu, b_mu, w_lv, b_lv, eps):
    M, K = x.shape
    _, L = w_mu.shape
    out_sd = jax.ShapeDtypeStruct((M, L), jnp.float32)
    return pl.pallas_call(
        _mu_logvar_reparam_kernel,
        out_shape=(out_sd, out_sd, out_sd),
        grid=(1,),
        in_specs=[_full_spec((M, K)),
                  _full_spec((K, L)), _full_spec((1, L)),
                  _full_spec((K, L)), _full_spec((1, L)),
                  _full_spec((M, L))],
        out_specs=(_full_spec((M, L)),) * 3,
    )(x, w_mu, b_mu, w_lv, b_lv, eps)


# ----------------------------------------------------------------------------
# Convolution lowerings (data movement in XLA glue, compute in Pallas)
# ----------------------------------------------------------------------------
def conv2d(x, w_mat, b, *, stride, pad, act, kh=4, kw=4):
    """x: NHWC f32; w_mat: pre-built im2col matrix (KH*KW*Cin, Cout) bf16."""
    B, H, W, Cin = x.shape
    xp = jnp.pad(x, ((0, 0), (pad, pad), (pad, pad), (0, 0)))
    OH = (H + 2 * pad - kh) // stride + 1
    OW = (W + 2 * pad - kw) // stride + 1
    taps = []
    for i in range(kh):
        for j in range(kw):
            taps.append(xp[:, i:i + stride * OH:stride, j:j + stride * OW:stride, :])
    patches = jnp.stack(taps, axis=3).reshape(B * OH * OW, kh * kw * Cin)
    out = gemm_bias_act(patches.astype(jnp.bfloat16), w_mat, b, act=act)
    return out.reshape(B, OH, OW, -1)


def _col2im_add(cols, kh, kw, stride, pad, out_pad):
    """cols: (B,H,W,KH,KW,Cout) f32 -> transposed-conv output (B,OH,OW,Cout)."""
    B, H, W, _, _, C = cols.shape
    FH = (H - 1) * stride + kh
    FW = (W - 1) * stride + kw
    out = jnp.zeros((B, FH, FW, C), cols.dtype)
    for i in range(kh):
        for j in range(kw):
            out = out.at[:, i:i + stride * H:stride,
                            j:j + stride * W:stride, :].add(cols[:, :, :, i, j, :])
    OH = (H - 1) * stride - 2 * pad + kh + out_pad
    OW = (W - 1) * stride - 2 * pad + kw + out_pad
    return out[:, pad:pad + OH, pad:pad + OW, :]


def conv_transpose2d(x, w_mat, *, stride, pad, out_pad, pre_bias=None, kh=4, kw=4):
    """Transposed conv as dense GEMM + col2im.

    x: NHWC f32 (bias/activation of the previous ConvT NOT yet applied when
    pre_bias is given — it is fused into this GEMM's prologue as relu(x+b)).
    w_mat: pre-built (Cin, KH*KW*Cout) bf16 matrix.  Bias of THIS layer is NOT
    added here (it belongs to the final output pixels, applied downstream).
    """
    B, H, W, Cin = x.shape
    Cout = w_mat.shape[1] // (kh * kw)
    x2d = x.reshape(B * H * W, Cin)
    if pre_bias is None:
        cols = gemm(x2d.astype(jnp.bfloat16), w_mat)
    else:
        cols = prelu_gemm(x2d, pre_bias, w_mat)
    cols = cols.reshape(B, H, W, kh, kw, Cout)
    return _col2im_add(cols, kh, kw, stride, pad, out_pad)


# ----------------------------------------------------------------------------
# Parameters: raw (PyTorch layout) init, then one-time transform to kernel layout
# ----------------------------------------------------------------------------
def init_params(key, latent_dim):
    def u(k, shape, fan_in):
        bound = 1.0 / float(fan_in) ** 0.5
        return jax.random.uniform(k, shape, jnp.float32, -bound, bound)

    ks = jax.random.split(key, 18)
    L = latent_dim
    return {
        "enc1_w": u(ks[0], (32, 1, 4, 4), 1 * 16),   "enc1_b": u(ks[1], (32,), 1 * 16),
        "enc2_w": u(ks[2], (32, 32, 4, 4), 32 * 16), "enc2_b": u(ks[3], (32,), 32 * 16),
        "enc3_w": u(ks[4], (64, 32, 4, 4), 32 * 16), "enc3_b": u(ks[5], (64,), 32 * 16),
        "mu_w": u(ks[6], (L, 3136), 3136),           "mu_b": u(ks[7], (L,), 3136),
        "logvar_w": u(ks[8], (L, 3136), 3136),       "logvar_b": u(ks[9], (L,), 3136),
        "up_w": u(ks[10], (3136, L), L),             "up_b": u(ks[11], (3136,), L),
        "dec1_w": u(ks[12], (64, 32, 4, 4), 32 * 16), "dec1_b": u(ks[13], (32,), 32 * 16),
        "dec2_w": u(ks[14], (32, 32, 4, 4), 32 * 16), "dec2_b": u(ks[15], (32,), 32 * 16),
        "dec3_w": u(ks[16], (32, 1, 4, 4), 1 * 16),   "dec3_b": u(ks[17], (1,), 1 * 16),
    }


def prepare_params(raw, latent_dim):
    """One-time (outside jit) transform of PyTorch-layout weights into the
    bf16 GEMM matrices the kernels consume."""
    bf16 = jnp.bfloat16
    L = latent_dim

    def conv_mat(w):            # (Cout,Cin,KH,KW) -> (KH*KW*Cin, Cout)
        Cout, Cin, KH, KW = w.shape
        return jnp.transpose(w, (2, 3, 1, 0)).reshape(KH * KW * Cin, Cout).astype(bf16)

    def convT_mat(w):           # (Cin,Cout,KH,KW) -> (Cin, KH*KW*Cout)
        Cin, Cout, KH, KW = w.shape
        return jnp.transpose(w, (0, 2, 3, 1)).reshape(Cin, KH * KW * Cout).astype(bf16)

    def row_bias(b):
        return b.reshape(1, -1).astype(jnp.float32)

    return {
        "enc1_w": conv_mat(raw["enc1_w"]), "enc1_b": row_bias(raw["enc1_b"]),
        "enc2_w": conv_mat(raw["enc2_w"]), "enc2_b": row_bias(raw["enc2_b"]),
        "enc3_w": conv_mat(raw["enc3_w"]), "enc3_b": row_bias(raw["enc3_b"]),
        # mu / logvar: 3136 axis re-ordered from PyTorch's (c,h,w) flatten to
        # the NHWC (h,w,c) flatten used by the kernels.
        "mu_w": raw["mu_w"].reshape(L, 64, 7, 7).transpose(2, 3, 1, 0)
                           .reshape(3136, L).astype(bf16),
        "mu_b": row_bias(raw["mu_b"]),
        "logvar_w": raw["logvar_w"].reshape(L, 64, 7, 7).transpose(2, 3, 1, 0)
                                   .reshape(3136, L).astype(bf16),
        "logvar_b": row_bias(raw["logvar_b"]),
        # upsample: output columns re-ordered the same way so .view(-1,64,7,7)
        # (NCHW) becomes a plain reshape to NHWC.
        "up_w": raw["up_w"].reshape(64, 7, 7, L).transpose(3, 1, 2, 0)
                           .reshape(L, 3136).astype(bf16),
        "up_b": raw["up_b"].reshape(64, 7, 7).transpose(1, 2, 0)
                           .reshape(1, 3136).astype(jnp.float32),
        "dec1_w": convT_mat(raw["dec1_w"]), "dec1_b": row_bias(raw["dec1_b"]),
        "dec2_w": convT_mat(raw["dec2_w"]), "dec2_b": row_bias(raw["dec2_b"]),
        "dec3_w": convT_mat(raw["dec3_w"]), "dec3_b": row_bias(raw["dec3_b"]),
    }


# ----------------------------------------------------------------------------
# Forward pass (mirrors Model.forward)
# ----------------------------------------------------------------------------
def vae_forward(params, x_nchw, eps):
    B = x_nchw.shape[0]
    x = jnp.transpose(x_nchw, (0, 2, 3, 1))                       # NCHW -> NHWC

    # encoder: Conv2d(1,32,4,1,2)+ReLU, Conv2d(32,32,4,2,1)+ReLU, Conv2d(32,64,4,2,1)
    h = conv2d(x, params["enc1_w"], params["enc1_b"], stride=1, pad=2, act="relu")   # (B,29,29,32)
    h = conv2d(h, params["enc2_w"], params["enc2_b"], stride=2, pad=1, act="relu")   # (B,14,14,32)
    h = conv2d(h, params["enc3_w"], params["enc3_b"], stride=2, pad=1, act=None)     # (B,7,7,64)

    # fused mu / logvar / reparameterize (eps ~ U[0,1) as in torch.rand_like)
    h_flat = h.reshape(B, 7 * 7 * 64).astype(jnp.bfloat16)
    mu, logvar, z = mu_logvar_reparam(h_flat, params["mu_w"], params["mu_b"],
                                      params["logvar_w"], params["logvar_b"], eps)

    # upsample Linear -> (B,7,7,64) NHWC (column permutation baked into up_w/up_b)
    up = gemm_bias_act(z.astype(jnp.bfloat16), params["up_w"], params["up_b"], act=None)
    d = up.reshape(B, 7, 7, 64)

    # decoder: ConvT(64,32,4,2,1)+ReLU, ConvT(32,32,4,2,1,1)+ReLU, ConvT(32,1,4,1,2)+Sigmoid
    # (each layer's bias+activation is fused into the NEXT layer's GEMM prologue)
    d = conv_transpose2d(d, params["dec1_w"], stride=2, pad=1, out_pad=0)                           # (B,14,14,32)
    d = conv_transpose2d(d, params["dec2_w"], stride=2, pad=1, out_pad=1, pre_bias=params["dec1_b"])  # (B,29,29,32)
    d = conv_transpose2d(d, params["dec3_w"], stride=1, pad=2, out_pad=0, pre_bias=params["dec2_b"])  # (B,28,28,1)

    # final bias + sigmoid (lane-dense (B, 784) layout; Cout == 1)
    recon = bias_act(d.reshape(B, 28 * 28), params["dec3_b"], act="sigmoid")
    recon = recon.reshape(B, 1, 28, 28)                           # NCHW output
    return recon, mu, logvar


if __name__ == "__main__":
    latent_dim = 16
    B = 2
    key = jax.random.PRNGKey(0)
    pkey, xkey, ekey = jax.random.split(key, 3)

    raw = init_params(pkey, latent_dim)
    params = prepare_params(raw, latent_dim)     # one-time weight transforms

    # input must be 28x28 (Model hard-codes 64*7*7 features)
    x = jax.random.uniform(xkey, (B, 1, 28, 28), jnp.float32)
    eps = jax.random.uniform(ekey, (B, latent_dim), jnp.float32)  # torch.rand_like

    fwd = jax.jit(vae_forward)
    recon, mu, logvar = fwd(params, x, eps)
    jax.block_until_ready((recon, mu, logvar))

    assert recon.shape == (B, 1, 28, 28)
    assert mu.shape == (B, latent_dim)
    assert logvar.shape == (B, latent_dim)
    assert bool(jnp.all(jnp.isfinite(recon)))
    assert bool(jnp.all((recon >= 0.0) & (recon <= 1.0)))
    print("KERNEL_OK")
</pallas_src>

<mosaic_0001>
module attributes {stable_mosaic.version = 11 : i64} {
  func.func @_gemm_bias_act_kernel(%arg0: i32, %arg1: memref<1682x16xbf16, #tpu.memory_space<vmem>>, %arg2: memref<16x32xbf16, #tpu.memory_space<vmem>>, %arg3: memref<1x32xf32, #tpu.memory_space<vmem>>, %arg4: memref<1682x32xf32, #tpu.memory_space<vmem>>) attributes {dimension_semantics = [#tpu.dimension_semantics<arbitrary>], iteration_bounds = array<i64: 1>, scalar_prefetch = 0 : i64, scratch_operands = 0 : i64, tpu.core_type = #tpu.core_type<tc>, window_params = [{pipeline_mode = #tpu.pipeline_mode<synchronous>, transform_indices = @transform_0, window_bounds = array<i64: 1682, 16>}, {pipeline_mode = #tpu.pipeline_mode<synchronous>, transform_indices = @transform_1, window_bounds = array<i64: 16, 32>}, {pipeline_mode = #tpu.pipeline_mode<synchronous>, transform_indices = @transform_2, window_bounds = array<i64: 1, 32>}, {pipeline_mode = #tpu.pipeline_mode<synchronous>, transform_indices = @transform_3, window_bounds = array<i64: 1682, 32>}]} {
    %c0 = arith.constant 0 : index
    %c0_0 = arith.constant 0 : index
    %0 = vector.load %arg1[%c0, %c0_0] : memref<1682x16xbf16, #tpu.memory_space<vmem>>, vector<1682x16xbf16>
    %c0_1 = arith.constant 0 : index
    %c0_2 = arith.constant 0 : index
    %1 = vector.load %arg2[%c0_1, %c0_2] : memref<16x32xbf16, #tpu.memory_space<vmem>>, vector<16x32xbf16>
    %cst = arith.constant dense<0.000000e+00> : vector<1682x32xf32>
    %2 = tpu.matmul %0, %1, %cst {dimension_numbers = #tpu.dot_dimension_numbers<[1], [0], [0], [1], [0, 0, 1, 1], [], []>} : vector<1682x16xbf16>, vector<16x32xbf16>, vector<1682x32xf32> -> vector<1682x32xf32>
    %c0_3 = arith.constant 0 : index
    %c0_4 = arith.constant 0 : index
    %3 = vector.load %arg3[%c0_3, %c0_4] : memref<1x32xf32, #tpu.memory_space<vmem>>, vector<1x32xf32>
    %4 = vector.broadcast %3 : vector<1x32xf32> to vector<1682x32xf32>
    %5 = arith.addf %2, %4 : vector<1682x32xf32>
    %cst_5 = arith.constant 0.000000e+00 : f32
    %6 = vector.broadcast %cst_5 : f32 to vector<1682x32xf32>
    %7 = arith.maximumf %5, %6 : vector<1682x32xf32>
    %c0_6 = arith.constant 0 : index
    %c0_7 = arith.constant 0 : index
    %8 = vector.load %arg4[%c0_6, %c0_7] : memref<1682x32xf32, #tpu.memory_space<vmem>>, vector<1682x32xf32>
    tpu.vector_store %arg4[%c0_6, %c0_7], %7 {strides = array<i32>} : memref<1682x32xf32, #tpu.memory_space<vmem>>, vector<1682x32xf32>,
    return
  }
  func.func @transform_0(%arg0: i32) -> (i32, i32) {
    %c0_i32 = arith.constant 0 : i32
    %c0_i32_0 = arith.constant 0 : i32
    %c0_i32_1 = arith.constant 0 : i32
    return %c0_i32, %c0_i32_0 : i32, i32
  }
  func.func @transform_1(%arg0: i32) -> (i32, i32) {
    %c0_i32 = arith.constant 0 : i32
    %c0_i32_0 = arith.constant 0 : i32
    %c0_i32_1 = arith.constant 0 : i32
    return %c0_i32, %c0_i32_0 : i32, i32
  }
  func.func @transform_2(%arg0: i32) -> (i32, i32) {
    %c0_i32 = arith.constant 0 : i32
    %c0_i32_0 = arith.constant 0 : i32
    %c0_i32_1 = arith.constant 0 : i32
    return %c0_i32, %c0_i32_0 : i32, i32
  }
  func.func @transform_3(%arg0: i32) -> (i32, i32) {
    %c0_i32 = arith.constant 0 : i32
    %c0_i32_0 = arith.constant 0 : i32
    %c0_i32_1 = arith.constant 0 : i32
    return %c0_i32, %c0_i32_0 : i32, i32
  }
}

module attributes {stable_mosaic.version = 11 : i64} {
  func.func @_gemm_bias_act_kernel(%arg0: i32, %arg1: memref<392x512xbf16, #tpu.memory_space<vmem>>, %arg2: memref<512x32xbf16, #tpu.memory_space<vmem>>, %arg3: memref<1x32xf32, #tpu.memory_space<vmem>>, %arg4: memref<392x32xf32, #tpu.memory_space<vmem>>) attributes {dimension_semantics = [#tpu.dimension_semantics<arbitrary>], iteration_bounds = array<i64: 1>, scalar_prefetch = 0 : i64, scratch_operands = 0 : i64, tpu.core_type = #tpu.core_type<tc>, window_params = [{pipeline_mode = #tpu.pipeline_mode<synchronous>, transform_indices = @transform_0, window_bounds = array<i64: 392, 512>}, {pipeline_mode = #tpu.pipeline_mode<synchronous>, transform_indices = @transform_1, window_bounds = array<i64: 512, 32>}, {pipeline_mode = #tpu.pipeline_mode<synchronous>, transform_indices = @transform_2, window_bounds = array<i64: 1, 32>}, {pipeline_mode = #tpu.pipeline_mode<synchronous>, transform_indices = @transform_3, window_bounds = array<i64: 392, 32>}]} {
    %c0 = arith.constant 0 : index
    %c0_0 = arith.constant 0 : index
    %0 = vector.load %arg1[%c0, %c0_0] : memref<392x512xbf16, #tpu.memory_space<vmem>>, vector<392x512xbf16>
    %c0_1 = arith.constant 0 : index
    %c0_2 = arith.constant 0 : index
    %1 = vector.load %arg2[%c0_1, %c0_2] : memref<512x32xbf16, #tpu.memory_space<vmem>>, vector<512x32xbf16>
    %cst = arith.constant dense<0.000000e+00> : vector<392x32xf32>
    %2 = tpu.matmul %0, %1, %cst {dimension_numbers = #tpu.dot_dimension_numbers<[1], [0], [0], [1], [0, 0, 1, 1], [], []>} : vector<392x512xbf16>, vector<512x32xbf16>, vector<392x32xf32> -> vector<392x32xf32>
    %c0_3 = arith.constant 0 : index
    %c0_4 = arith.constant 0 : index
    %3 = vector.load %arg3[%c0_3, %c0_4] : memref<1x32xf32, #tpu.memory_space<vmem>>, vector<1x32xf32>
    %4 = vector.broadcast %3 : vector<1x32xf32> to vector<392x32xf32>
    %5 = arith.addf %2, %4 : vector<392x32xf32>
    %cst_5 = arith.constant 0.000000e+00 : f32
    %6 = vector.broadcast %cst_5 : f32 to vector<392x32xf32>
    %7 = arith.maximumf %5, %6 : vector<392x32xf32>
    %c0_6 = arith.constant 0 : index
    %c0_7 = arith.constant 0 : index
    %8 = vector.load %arg4[%c0_6, %c0_7] : memref<392x32xf32, #tpu.memory_space<vmem>>, vector<392x32xf32>
    tpu.vector_store %arg4[%c0_6, %c0_7], %7 {strides = array<i32>} : memref<392x32xf32, #tpu.memory_space<vmem>>, vector<392x32xf32>,
    return
  }
  func.func @transform_0(%arg0: i32) -> (i32, i32) {
    %c0_i32 = arith.constant 0 : i32
    %c0_i32_0 = arith.constant 0 : i32
    %c0_i32_1 = arith.constant 0 : i32
    return %c0_i32, %c0_i32_0 : i32, i32
  }
  func.func @transform_1(%arg0: i32) -> (i32, i32) {
    %c0_i32 = arith.constant 0 : i32
    %c0_i32_0 = arith.constant 0 : i32
    %c0_i32_1 = arith.constant 0 : i32
    return %c0_i32, %c0_i32_0 : i32, i32
  }
  func.func @transform_2(%arg0: i32) -> (i32, i32) {
    %c0_i32 = arith.constant 0 : i32
    %c0_i32_0 = arith.constant 0 : i32
    %c0_i32_1 = arith.constant 0 : i32
    return %c0_i32, %c0_i32_0 : i32, i32
  }
  func.func @transform_3(%arg0: i32) -> (i32, i32) {
    %c0_i32 = arith.constant 0 : i32
    %c0_i32_0 = arith.constant 0 : i32
    %c0_i32_1 = arith.constant 0 : i32
    return %c0_i32, %c0_i32_0 : i32, i32
  }
}

module attributes {stable_mosaic.version = 11 : i64} {
  func.func @_gemm_bias_act_kernel(%arg0: i32, %arg1: memref<98x512xbf16, #tpu.memory_space<vmem>>, %arg2: memref<512x64xbf16, #tpu.memory_space<vmem>>, %arg3: memref<1x64xf32, #tpu.memory_space<vmem>>, %arg4: memref<98x64xf32, #tpu.memory_space<vmem>>) attributes {dimension_semantics = [#tpu.dimension_semantics<arbitrary>], iteration_bounds = array<i64: 1>, scalar_prefetch = 0 : i64, scratch_operands = 0 : i64, tpu.core_type = #tpu.core_type<tc>, window_params = [{pipeline_mode = #tpu.pipeline_mode<synchronous>, transform_indices = @transform_0, window_bounds = array<i64: 98, 512>}, {pipeline_mode = #tpu.pipeline_mode<synchronous>, transform_indices = @transform_1, window_bounds = array<i64: 512, 64>}, {pipeline_mode = #tpu.pipeline_mode<synchronous>, transform_indices = @transform_2, window_bounds = array<i64: 1, 64>}, {pipeline_mode = #tpu.pipeline_mode<synchronous>, transform_indices = @transform_3, window_bounds = array<i64: 98, 64>}]} {
    %c0 = arith.constant 0 : index
    %c0_0 = arith.constant 0 : index
    %0 = vector.load %arg1[%c0, %c0_0] : memref<98x512xbf16, #tpu.memory_space<vmem>>, vector<98x512xbf16>
    %c0_1 = arith.constant 0 : index
    %c0_2 = arith.constant 0 : index
    %1 = vector.load %arg2[%c0_1, %c0_2] : memref<512x64xbf16, #tpu.memory_space<vmem>>, vector<512x64xbf16>
    %cst = arith.constant dense<0.000000e+00> : vector<98x64xf32>
    %2 = tpu.matmul %0, %1, %cst {dimension_numbers = #tpu.dot_dimension_numbers<[1], [0], [0], [1], [0, 0, 1, 1], [], []>} : vector<98x512xbf16>, vector<512x64xbf16>, vector<98x64xf32> -> vector<98x64xf32>
    %c0_3 = arith.constant 0 : index
    %c0_4 = arith.constant 0 : index
    %3 = vector.load %arg3[%c0_3, %c0_4] : memref<1x64xf32, #tpu.memory_space<vmem>>, vector<1x64xf32>
    %4 = vector.broadcast %3 : vector<1x64xf32> to vector<98x64xf32>
    %5 = arith.addf %2, %4 : vector<98x64xf32>
    %c0_5 = arith.constant 0 : index
    %c0_6 = arith.constant 0 : index
    %6 = vector.load %arg4[%c0_5, %c0_6] : memref<98x64xf32, #tpu.memory_space<vmem>>, vector<98x64xf32>
    tpu.vector_store %arg4[%c0_5, %c0_6], %5 {strides = array<i32>} : memref<98x64xf32, #tpu.memory_space<vmem>>, vector<98x64xf32>,
    return
  }
  func.func @transform_0(%arg0: i32) -> (i32, i32) {
    %c0_i32 = arith.constant 0 : i32
    %c0_i32_0 = arith.constant 0 : i32
    %c0_i32_1 = arith.constant 0 : i32
    return %c0_i32, %c0_i32_0 : i32, i32
  }
  func.func @transform_1(%arg0: i32) -> (i32, i32) {
    %c0_i32 = arith.constant 0 : i32
    %c0_i32_0 = arith.constant 0 : i32
    %c0_i32_1 = arith.constant 0 : i32
    return %c0_i32, %c0_i32_0 : i32, i32
  }
  func.func @transform_2(%arg0: i32) -> (i32, i32) {
    %c0_i32 = arith.constant 0 : i32
    %c0_i32_0 = arith.constant 0 : i32
    %c0_i32_1 = arith.constant 0 : i32
    return %c0_i32, %c0_i32_0 : i32, i32
  }
  func.func @transform_3(%arg0: i32) -> (i32, i32) {
    %c0_i32 = arith.constant 0 : i32
    %c0_i32_0 = arith.constant 0 : i32
    %c0_i32_1 = arith.constant 0 : i32
    return %c0_i32, %c0_i32_0 : i32, i32
  }
}

module attributes {stable_mosaic.version = 11 : i64} {
  func.func @_mu_logvar_reparam_kernel(%arg0: i32, %arg1: memref<2x3136xbf16, #tpu.memory_space<vmem>>, %arg2: memref<3136x16xbf16, #tpu.memory_space<vmem>>, %arg3: memref<1x16xf32, #tpu.memory_space<vmem>>, %arg4: memref<3136x16xbf16, #tpu.memory_space<vmem>>, %arg5: memref<1x16xf32, #tpu.memory_space<vmem>>, %arg6: memref<2x16xf32, #tpu.memory_space<vmem>>, %arg7: memref<2x16xf32, #tpu.memory_space<vmem>>, %arg8: memref<2x16xf32, #tpu.memory_space<vmem>>, %arg9: memref<2x16xf32, #tpu.memory_space<vmem>>) attributes {dimension_semantics = [#tpu.dimension_semantics<arbitrary>], iteration_bounds = array<i64: 1>, scalar_prefetch = 0 : i64, scratch_operands = 0 : i64, tpu.core_type = #tpu.core_type<tc>, window_params = [{pipeline_mode = #tpu.pipeline_mode<synchronous>, transform_indices = @transform_0, window_bounds = array<i64: 2, 3136>}, {pipeline_mode = #tpu.pipeline_mode<synchronous>, transform_indices = @transform_1, window_bounds = array<i64: 3136, 16>}, {pipeline_mode = #tpu.pipeline_mode<synchronous>, transform_indices = @transform_2, window_bounds = array<i64: 1, 16>}, {pipeline_mode = #tpu.pipeline_mode<synchronous>, transform_indices = @transform_3, window_bounds = array<i64: 3136, 16>}, {pipeline_mode = #tpu.pipeline_mode<synchronous>, transform_indices = @transform_4, window_bounds = array<i64: 1, 16>}, {pipeline_mode = #tpu.pipeline_mode<synchronous>, transform_indices = @transform_5, window_bounds = array<i64: 2, 16>}, {pipeline_mode = #tpu.pipeline_mode<synchronous>, transform_indices = @transform_6, window_bounds = array<i64: 2, 16>}, {pipeline_mode = #tpu.pipeline_mode<synchronous>, transform_indices = @transform_7, window_bounds = array<i64: 2, 16>}, {pipeline_mode = #tpu.pipeline_mode<synchronous>, transform_indices = @transform_8, window_bounds = array<i64: 2, 16>}]} {
    %c0 = arith.constant 0 : index
    %c0_0 = arith.constant 0 : index
    %0 = vector.load %arg1[%c0, %c0_0] : memref<2x3136xbf16, #tpu.memory_space<vmem>>, vector<2x3136xbf16>
    %c0_1 = arith.constant 0 : index
    %c0_2 = arith.constant 0 : index
    %1 = vector.load %arg2[%c0_1, %c0_2] : memref<3136x16xbf16, #tpu.memory_space<vmem>>, vector<3136x16xbf16>
    %cst = arith.constant dense<0.000000e+00> : vector<2x16xf32>
    %2 = tpu.matmul %0, %1, %cst {dimension_numbers = #tpu.dot_dimension_numbers<[1], [0], [0], [1], [0, 0, 1, 1], [], []>} : vector<2x3136xbf16>, vector<3136x16xbf16>, vector<2x16xf32> -> vector<2x16xf32>
    %c0_3 = arith.constant 0 : index
    %c0_4 = arith.constant 0 : index
    %3 = vector.load %arg3[%c0_3, %c0_4] : memref<1x16xf32, #tpu.memory_space<vmem>>, vector<1x16xf32>
    %4 = vector.broadcast %3 : vector<1x16xf32> to vector<2x16xf32>
    %5 = arith.addf %2, %4 : vector<2x16xf32>
    %c0_5 = arith.constant 0 : index
    %c0_6 = arith.constant 0 : index
    %6 = vector.load %arg4[%c0_5, %c0_6] : memref<3136x16xbf16, #tpu.memory_space<vmem>>, vector<3136x16xbf16>
    %cst_7 = arith.constant dense<0.000000e+00> : vector<2x16xf32>
    %7 = tpu.matmul %0, %6, %cst_7 {dimension_numbers = #tpu.dot_dimension_numbers<[1], [0], [0], [1], [0, 0, 1, 1], [], []>} : vector<2x3136xbf16>, vector<3136x16xbf16>, vector<2x16xf32> -> vector<2x16xf32>
    %c0_8 = arith.constant 0 : index
    %c0_9 = arith.constant 0 : index
    %8 = vector.load %arg5[%c0_8, %c0_9] : memref<1x16xf32, #tpu.memory_space<vmem>>, vector<1x16xf32>
    %9 = vector.broadcast %8 : vector<1x16xf32> to vector<2x16xf32>
    %10 = arith.addf %7, %9 : vector<2x16xf32>
    %c0_10 = arith.constant 0 : index
    %c0_11 = arith.constant 0 : index
    %11 = vector.load %arg7[%c0_10, %c0_11] : memref<2x16xf32, #tpu.memory_space<vmem>>, vector<2x16xf32>
    tpu.vector_store %arg7[%c0_10, %c0_11], %5 {strides = array<i32>} : memref<2x16xf32, #tpu.memory_space<vmem>>, vector<2x16xf32>,
    %c0_12 = arith.constant 0 : index
    %c0_13 = arith.constant 0 : index
    %12 = vector.load %arg8[%c0_12, %c0_13] : memref<2x16xf32, #tpu.memory_space<vmem>>, vector<2x16xf32>
    tpu.vector_store %arg8[%c0_12, %c0_13], %10 {strides = array<i32>} : memref<2x16xf32, #tpu.memory_space<vmem>>, vector<2x16xf32>,
    %c0_14 = arith.constant 0 : index
    %c0_15 = arith.constant 0 : index
    %13 = vector.load %arg6[%c0_14, %c0_15] : memref<2x16xf32, #tpu.memory_space<vmem>>, vector<2x16xf32>
    %cst_16 = arith.constant 5.000000e-01 : f32
    %14 = vector.broadcast %cst_16 : f32 to vector<2x16xf32>
    %15 = arith.mulf %14, %10 : vector<2x16xf32>
    %16 = math.exp %15 : vector<2x16xf32>
    %17 = arith.mulf %13, %16 : vector<2x16xf32>
    %18 = arith.addf %5, %17 : vector<2x16xf32>
    %c0_17 = arith.constant 0 : index
    %c0_18 = arith.constant 0 : index
    %19 = vector.load %arg9[%c0_17, %c0_18] : memref<2x16xf32, #tpu.memory_space<vmem>>, vector<2x16xf32>
    tpu.vector_store %arg9[%c0_17, %c0_18], %18 {strides = array<i32>} : memref<2x16xf32, #tpu.memory_space<vmem>>, vector<2x16xf32>,
    return
  }
  func.func @transform_0(%arg0: i32) -> (i32, i32) {
    %c0_i32 = arith.constant 0 : i32
    %c0_i32_0 = arith.constant 0 : i32
    %c0_i32_1 = arith.constant 0 : i32
    return %c0_i32, %c0_i32_0 : i32, i32
  }
  func.func @transform_1(%arg0: i32) -> (i32, i32) {
    %c0_i32 = arith.constant 0 : i32
    %c0_i32_0 = arith.constant 0 : i32
    %c0_i32_1 = arith.constant 0 : i32
    return %c0_i32, %c0_i32_0 : i32, i32
  }
  func.func @transform_2(%arg0: i32) -> (i32, i32) {
    %c0_i32 = arith.constant 0 : i32
    %c0_i32_0 = arith.constant 0 : i32
    %c0_i32_1 = arith.constant 0 : i32
    return %c0_i32, %c0_i32_0 : i32, i32
  }
  func.func @transform_3(%arg0: i32) -> (i32, i32) {
    %c0_i32 = arith.constant 0 : i32
    %c0_i32_0 = arith.constant 0 : i32
    %c0_i32_1 = arith.constant 0 : i32
    return %c0_i32, %c0_i32_0 : i32, i32
  }
  func.func @transform_4(%arg0: i32) -> (i32, i32) {
    %c0_i32 = arith.constant 0 : i32
    %c0_i32_0 = arith.constant 0 : i32
    %c0_i32_1 = arith.constant 0 : i32
    return %c0_i32, %c0_i32_0 : i32, i32
  }
  func.func @transform_5(%arg0: i32) -> (i32, i32) {
    %c0_i32 = arith.constant 0 : i32
    %c0_i32_0 = arith.constant 0 : i32
    %c0_i32_1 = arith.constant 0 : i32
    return %c0_i32, %c0_i32_0 : i32, i32
  }
  func.func @transform_6(%arg0: i32) -> (i32, i32) {
    %c0_i32 = arith.constant 0 : i32
    %c0_i32_0 = arith.constant 0 : i32
    %c0_i32_1 = arith.constant 0 : i32
    return %c0_i32, %c0_i32_0 : i32, i32
  }
  func.func @transform_7(%arg0: i32) -> (i32, i32) {
    %c0_i32 = arith.constant 0 : i32
    %c0_i32_0 = arith.constant 0 : i32
    %c0_i32_1 = arith.constant 0 : i32
    return %c0_i32, %c0_i32_0 : i32, i32
  }
  func.func @transform_8(%arg0: i32) -> (i32, i32) {
    %c0_i32 = arith.constant 0 : i32
    %c0_i32_0 = arith.constant 0 : i32
    %c0_i32_1 = arith.constant 0 : i32
    return %c0_i32, %c0_i32_0 : i32, i32
  }
}

module attributes {stable_mosaic.version = 11 : i64} {
  func.func @_gemm_bias_act_kernel(%arg0: i32, %arg1: memref<2x16xbf16, #tpu.memory_space<vmem>>, %arg2: memref<16x3136xbf16, #tpu.memory_space<vmem>>, %arg3: memref<1x3136xf32, #tpu.memory_space<vmem>>, %arg4: memref<2x3136xf32, #tpu.memory_space<vmem>>) attributes {dimension_semantics = [#tpu.dimension_semantics<arbitrary>], iteration_bounds = array<i64: 1>, scalar_prefetch = 0 : i64, scratch_operands = 0 : i64, tpu.core_type = #tpu.core_type<tc>, window_params = [{pipeline_mode = #tpu.pipeline_mode<synchronous>, transform_indices = @transform_0, window_bounds = array<i64: 2, 16>}, {pipeline_mode = #tpu.pipeline_mode<synchronous>, transform_indices = @transform_1, window_bounds = array<i64: 16, 3136>}, {pipeline_mode = #tpu.pipeline_mode<synchronous>, transform_indices = @transform_2, window_bounds = array<i64: 1, 3136>}, {pipeline_mode = #tpu.pipeline_mode<synchronous>, transform_indices = @transform_3, window_bounds = array<i64: 2, 3136>}]} {
    %c0 = arith.constant 0 : index
    %c0_0 = arith.constant 0 : index
    %0 = vector.load %arg1[%c0, %c0_0] : memref<2x16xbf16, #tpu.memory_space<vmem>>, vector<2x16xbf16>
    %c0_1 = arith.constant 0 : index
    %c0_2 = arith.constant 0 : index
    %1 = vector.load %arg2[%c0_1, %c0_2] : memref<16x3136xbf16, #tpu.memory_space<vmem>>, vector<16x3136xbf16>
    %cst = arith.constant dense<0.000000e+00> : vector<2x3136xf32>
    %2 = tpu.matmul %0, %1, %cst {dimension_numbers = #tpu.dot_dimension_numbers<[1], [0], [0], [1], [0, 0, 1, 1], [], []>} : vector<2x16xbf16>, vector<16x3136xbf16>, vector<2x3136xf32> -> vector<2x3136xf32>
    %c0_3 = arith.constant 0 : index
    %c0_4 = arith.constant 0 : index
    %3 = vector.load %arg3[%c0_3, %c0_4] : memref<1x3136xf32, #tpu.memory_space<vmem>>, vector<1x3136xf32>
    %4 = vector.broadcast %3 : vector<1x3136xf32> to vector<2x3136xf32>
    %5 = arith.addf %2, %4 : vector<2x3136xf32>
    %c0_5 = arith.constant 0 : index
    %c0_6 = arith.constant 0 : index
    %6 = vector.load %arg4[%c0_5, %c0_6] : memref<2x3136xf32, #tpu.memory_space<vmem>>, vector<2x3136xf32>
    tpu.vector_store %arg4[%c0_5, %c0_6], %5 {strides = array<i32>} : memref<2x3136xf32, #tpu.memory_space<vmem>>, vector<2x3136xf32>,
    return
  }
  func.func @transform_0(%arg0: i32) -> (i32, i32) {
    %c0_i32 = arith.constant 0 : i32
    %c0_i32_0 = arith.constant 0 : i32
    %c0_i32_1 = arith.constant 0 : i32
    return %c0_i32, %c0_i32_0 : i32, i32
  }
  func.func @transform_1(%arg0: i32) -> (i32, i32) {
    %c0_i32 = arith.constant 0 : i32
    %c0_i32_0 = arith.constant 0 : i32
    %c0_i32_1 = arith.constant 0 : i32
    return %c0_i32, %c0_i32_0 : i32, i32
  }
  func.func @transform_2(%arg0: i32) -> (i32, i32) {
    %c0_i32 = arith.constant 0 : i32
    %c0_i32_0 = arith.constant 0 : i32
    %c0_i32_1 = arith.constant 0 : i32
    return %c0_i32, %c0_i32_0 : i32, i32
  }
  func.func @transform_3(%arg0: i32) -> (i32, i32) {
    %c0_i32 = arith.constant 0 : i32
    %c0_i32_0 = arith.constant 0 : i32
    %c0_i32_1 = arith.constant 0 : i32
    return %c0_i32, %c0_i32_0 : i32, i32
  }
}

module attributes {stable_mosaic.version = 11 : i64} {
  func.func @_gemm_kernel(%arg0: i32, %arg1: memref<98x64xbf16, #tpu.memory_space<vmem>>, %arg2: memref<64x512xbf16, #tpu.memory_space<vmem>>, %arg3: memref<98x512xf32, #tpu.memory_space<vmem>>) attributes {dimension_semantics = [#tpu.dimension_semantics<arbitrary>], iteration_bounds = array<i64: 1>, scalar_prefetch = 0 : i64, scratch_operands = 0 : i64, tpu.core_type = #tpu.core_type<tc>, window_params = [{pipeline_mode = #tpu.pipeline_mode<synchronous>, transform_indices = @transform_0, window_bounds = array<i64: 98, 64>}, {pipeline_mode = #tpu.pipeline_mode<synchronous>, transform_indices = @transform_1, window_bounds = array<i64: 64, 512>}, {pipeline_mode = #tpu.pipeline_mode<synchronous>, transform_indices = @transform_2, window_bounds = array<i64: 98, 512>}]} {
    %c0 = arith.constant 0 : index
    %c0_0 = arith.constant 0 : index
    %0 = vector.load %arg1[%c0, %c0_0] : memref<98x64xbf16, #tpu.memory_space<vmem>>, vector<98x64xbf16>
    %c0_1 = arith.constant 0 : index
    %c0_2 = arith.constant 0 : index
    %1 = vector.load %arg2[%c0_1, %c0_2] : memref<64x512xbf16, #tpu.memory_space<vmem>>, vector<64x512xbf16>
    %cst = arith.constant dense<0.000000e+00> : vector<98x512xf32>
    %2 = tpu.matmul %0, %1, %cst {dimension_numbers = #tpu.dot_dimension_numbers<[1], [0], [0], [1], [0, 0, 1, 1], [], []>} : vector<98x64xbf16>, vector<64x512xbf16>, vector<98x512xf32> -> vector<98x512xf32>
    %c0_3 = arith.constant 0 : index
    %c0_4 = arith.constant 0 : index
    %3 = vector.load %arg3[%c0_3, %c0_4] : memref<98x512xf32, #tpu.memory_space<vmem>>, vector<98x512xf32>
    tpu.vector_store %arg3[%c0_3, %c0_4], %2 {strides = array<i32>} : memref<98x512xf32, #tpu.memory_space<vmem>>, vector<98x512xf32>,
    return
  }
  func.func @transform_0(%arg0: i32) -> (i32, i32) {
    %c0_i32 = arith.constant 0 : i32
    %c0_i32_0 = arith.constant 0 : i32
    %c0_i32_1 = arith.constant 0 : i32
    return %c0_i32, %c0_i32_0 : i32, i32
  }
  func.func @transform_1(%arg0: i32) -> (i32, i32) {
    %c0_i32 = arith.constant 0 : i32
    %c0_i32_0 = arith.constant 0 : i32
    %c0_i32_1 = arith.constant 0 : i32
    return %c0_i32, %c0_i32_0 : i32, i32
  }
  func.func @transform_2(%arg0: i32) -> (i32, i32) {
    %c0_i32 = arith.constant 0 : i32
    %c0_i32_0 = arith.constant 0 : i32
    %c0_i32_1 = arith.constant 0 : i32
    return %c0_i32, %c0_i32_0 : i32, i32
  }
}

module attributes {stable_mosaic.version = 11 : i64} {
  func.func @_prelu_gemm_kernel(%arg0: i32, %arg1: memref<392x32xf32, #tpu.memory_space<vmem>>, %arg2: memref<1x32xf32, #tpu.memory_space<vmem>>, %arg3: memref<32x512xbf16, #tpu.memory_space<vmem>>, %arg4: memref<392x512xf32, #tpu.memory_space<vmem>>) attributes {dimension_semantics = [#tpu.dimension_semantics<arbitrary>], iteration_bounds = array<i64: 1>, scalar_prefetch = 0 : i64, scratch_operands = 0 : i64, tpu.core_type = #tpu.core_type<tc>, window_params = [{pipeline_mode = #tpu.pipeline_mode<synchronous>, transform_indices = @transform_0, window_bounds = array<i64: 392, 32>}, {pipeline_mode = #tpu.pipeline_mode<synchronous>, transform_indices = @transform_1, window_bounds = array<i64: 1, 32>}, {pipeline_mode = #tpu.pipeline_mode<synchronous>, transform_indices = @transform_2, window_bounds = array<i64: 32, 512>}, {pipeline_mode = #tpu.pipeline_mode<synchronous>, transform_indices = @transform_3, window_bounds = array<i64: 392, 512>}]} {
    %c0 = arith.constant 0 : index
    %c0_0 = arith.constant 0 : index
    %0 = vector.load %arg1[%c0, %c0_0] : memref<392x32xf32, #tpu.memory_space<vmem>>, vector<392x32xf32>
    %c0_1 = arith.constant 0 : index
    %c0_2 = arith.constant 0 : index
    %1 = vector.load %arg2[%c0_1, %c0_2] : memref<1x32xf32, #tpu.memory_space<vmem>>, vector<1x32xf32>
    %2 = vector.broadcast %1 : vector<1x32xf32> to vector<392x32xf32>
    %3 = arith.addf %0, %2 : vector<392x32xf32>
    %cst = arith.constant 0.000000e+00 : f32
    %4 = vector.broadcast %cst : f32 to vector<392x32xf32>
    %5 = arith.maximumf %3, %4 : vector<392x32xf32>
    %6 = arith.truncf %5 : vector<392x32xf32> to vector<392x32xbf16>
    %c0_3 = arith.constant 0 : index
    %c0_4 = arith.constant 0 : index
    %7 = vector.load %arg3[%c0_3, %c0_4] : memref<32x512xbf16, #tpu.memory_space<vmem>>, vector<32x512xbf16>
    %cst_5 = arith.constant dense<0.000000e+00> : vector<392x512xf32>
    %8 = tpu.matmul %6, %7, %cst_5 {dimension_numbers = #tpu.dot_dimension_numbers<[1], [0], [0], [1], [0, 0, 1, 1], [], []>} : vector<392x32xbf16>, vector<32x512xbf16>, vector<392x512xf32> -> vector<392x512xf32>
    %c0_6 = arith.constant 0 : index
    %c0_7 = arith.constant 0 : index
    %9 = vector.load %arg4[%c0_6, %c0_7] : memref<392x512xf32, #tpu.memory_space<vmem>>, vector<392x512xf32>
    tpu.vector_store %arg4[%c0_6, %c0_7], %8 {strides = array<i32>} : memref<392x512xf32, #tpu.memory_space<vmem>>, vector<392x512xf32>,
    return
  }
  func.func @transform_0(%arg0: i32) -> (i32, i32) {
    %c0_i32 = arith.constant 0 : i32
    %c0_i32_0 = arith.constant 0 : i32
    %c0_i32_1 = arith.constant 0 : i32
    return %c0_i32, %c0_i32_0 : i32, i32
  }
  func.func @transform_1(%arg0: i32) -> (i32, i32) {
    %c0_i32 = arith.constant 0 : i32
    %c0_i32_0 = arith.constant 0 : i32
    %c0_i32_1 = arith.constant 0 : i32
    return %c0_i32, %c0_i32_0 : i32, i32
  }
  func.func @transform_2(%arg0: i32) -> (i32, i32) {
    %c0_i32 = arith.constant 0 : i32
    %c0_i32_0 = arith.constant 0 : i32
    %c0_i32_1 = arith.constant 0 : i32
    return %c0_i32, %c0_i32_0 : i32, i32
  }
  func.func @transform_3(%arg0: i32) -> (i32, i32) {
    %c0_i32 = arith.constant 0 : i32
    %c0_i32_0 = arith.constant 0 : i32
    %c0_i32_1 = arith.constant 0 : i32
    return %c0_i32, %c0_i32_0 : i32, i32
  }
}

module attributes {stable_mosaic.version = 11 : i64} {
  func.func @_prelu_gemm_kernel(%arg0: i32, %arg1: memref<1682x32xf32, #tpu.memory_space<vmem>>, %arg2: memref<1x32xf32, #tpu.memory_space<vmem>>, %arg3: memref<32x16xbf16, #tpu.memory_space<vmem>>, %arg4: memref<1682x16xf32, #tpu.memory_space<vmem>>) attributes {dimension_semantics = [#tpu.dimension_semantics<arbitrary>], iteration_bounds = array<i64: 1>, scalar_prefetch = 0 : i64, scratch_operands = 0 : i64, tpu.core_type = #tpu.core_type<tc>, window_params = [{pipeline_mode = #tpu.pipeline_mode<synchronous>, transform_indices = @transform_0, window_bounds = array<i64: 1682, 32>}, {pipeline_mode = #tpu.pipeline_mode<synchronous>, transform_indices = @transform_1, window_bounds = array<i64: 1, 32>}, {pipeline_mode = #tpu.pipeline_mode<synchronous>, transform_indices = @transform_2, window_bounds = array<i64: 32, 16>}, {pipeline_mode = #tpu.pipeline_mode<synchronous>, transform_indices = @transform_3, window_bounds = array<i64: 1682, 16>}]} {
    %c0 = arith.constant 0 : index
    %c0_0 = arith.constant 0 : index
    %0 = vector.load %arg1[%c0, %c0_0] : memref<1682x32xf32, #tpu.memory_space<vmem>>, vector<1682x32xf32>
    %c0_1 = arith.constant 0 : index
    %c0_2 = arith.constant 0 : index
    %1 = vector.load %arg2[%c0_1, %c0_2] : memref<1x32xf32, #tpu.memory_space<vmem>>, vector<1x32xf32>
    %2 = vector.broadcast %1 : vector<1x32xf32> to vector<1682x32xf32>
    %3 = arith.addf %0, %2 : vector<1682x32xf32>
    %cst = arith.constant 0.000000e+00 : f32
    %4 = vector.broadcast %cst : f32 to vector<1682x32xf32>
    %5 = arith.maximumf %3, %4 : vector<1682x32xf32>
    %6 = arith.truncf %5 : vector<1682x32xf32> to vector<1682x32xbf16>
    %c0_3 = arith.constant 0 : index
    %c0_4 = arith.constant 0 : index
    %7 = vector.load %arg3[%c0_3, %c0_4] : memref<32x16xbf16, #tpu.memory_space<vmem>>, vector<32x16xbf16>
    %cst_5 = arith.constant dense<0.000000e+00> : vector<1682x16xf32>
    %8 = tpu.matmul %6, %7, %cst_5 {dimension_numbers = #tpu.dot_dimension_numbers<[1], [0], [0], [1], [0, 0, 1, 1], [], []>} : vector<1682x32xbf16>, vector<32x16xbf16>, vector<1682x16xf32> -> vector<1682x16xf32>
    %c0_6 = arith.constant 0 : index
    %c0_7 = arith.constant 0 : index
    %9 = vector.load %arg4[%c0_6, %c0_7] : memref<1682x16xf32, #tpu.memory_space<vmem>>, vector<1682x16xf32>
    tpu.vector_store %arg4[%c0_6, %c0_7], %8 {strides = array<i32>} : memref<1682x16xf32, #tpu.memory_space<vmem>>, vector<1682x16xf32>,
    return
  }
  func.func @transform_0(%arg0: i32) -> (i32, i32) {
    %c0_i32 = arith.constant 0 : i32
    %c0_i32_0 = arith.constant 0 : i32
    %c0_i32_1 = arith.constant 0 : i32
    return %c0_i32, %c0_i32_0 : i32, i32
  }
  func.func @transform_1(%arg0: i32) -> (i32, i32) {
    %c0_i32 = arith.constant 0 : i32
    %c0_i32_0 = arith.constant 0 : i32
    %c0_i32_1 = arith.constant 0 : i32
    return %c0_i32, %c0_i32_0 : i32, i32
  }
  func.func @transform_2(%arg0: i32) -> (i32, i32) {
    %c0_i32 = arith.constant 0 : i32
    %c0_i32_0 = arith.constant 0 : i32
    %c0_i32_1 = arith.constant 0 : i32
    return %c0_i32, %c0_i32_0 : i32, i32
  }
  func.func @transform_3(%arg0: i32) -> (i32, i32) {
    %c0_i32 = arith.constant 0 : i32
    %c0_i32_0 = arith.constant 0 : i32
    %c0_i32_1 = arith.constant 0 : i32
    return %c0_i32, %c0_i32_0 : i32, i32
  }
}

module attributes {stable_mosaic.version = 11 : i64} {
  func.func @_bias_act_kernel(%arg0: i32, %arg1: memref<2x784xf32, #tpu.memory_space<vmem>>, %arg2: memref<1x1xf32, #tpu.memory_space<vmem>>, %arg3: memref<2x784xf32, #tpu.memory_space<vmem>>) attributes {dimension_semantics = [#tpu.dimension_semantics<arbitrary>], iteration_bounds = array<i64: 1>, scalar_prefetch = 0 : i64, scratch_operands = 0 : i64, tpu.core_type = #tpu.core_type<tc>, window_params = [{pipeline_mode = #tpu.pipeline_mode<synchronous>, transform_indices = @transform_0, window_bounds = array<i64: 2, 784>}, {pipeline_mode = #tpu.pipeline_mode<synchronous>, transform_indices = @transform_1, window_bounds = array<i64: 1, 1>}, {pipeline_mode = #tpu.pipeline_mode<synchronous>, transform_indices = @transform_2, window_bounds = array<i64: 2, 784>}]} {
    %c0 = arith.constant 0 : index
    %c0_0 = arith.constant 0 : index
    %0 = vector.load %arg1[%c0, %c0_0] : memref<2x784xf32, #tpu.memory_space<vmem>>, vector<2x784xf32>
    %c0_1 = arith.constant 0 : index
    %c0_2 = arith.constant 0 : index
    %1 = vector.load %arg2[%c0_1, %c0_2] : memref<1x1xf32, #tpu.memory_space<vmem>>, vector<1x1xf32>
    %2 = vector.broadcast %1 : vector<1x1xf32> to vector<2x784xf32>
    %3 = arith.addf %0, %2 : vector<2x784xf32>
    %4 = math.absf %3 : vector<2x784xf32>
    %cst = arith.constant 0.000000e+00 : f32
    %5 = vector.broadcast %cst : f32 to vector<2x784xf32>
    %6 = arith.subf %5, %4 : vector<2x784xf32>
    %7 = math.exp %6 : vector<2x784xf32>
    %cst_3 = arith.constant 0.000000e+00 : f32
    %8 = vector.broadcast %cst_3 : f32 to vector<2x784xf32>
    %9 = arith.cmpf oge, %3, %8 : vector<2x784xf32>
    %cst_4 = arith.constant 1.000000e+00 : f32
    %10 = vector.broadcast %cst_4 : f32 to vector<2x784xf32>
    %11 = arith.addf %10, %7 : vector<2x784xf32>
    %cst_5 = arith.constant 1.000000e+00 : f32
    %12 = vector.broadcast %cst_5 : f32 to vector<2x784xf32>
    %13 = arith.divf %12, %11 : vector<2x784xf32>
    %cst_6 = arith.constant 1.000000e+00 : f32
    %14 = vector.broadcast %cst_6 : f32 to vector<2x784xf32>
    %15 = arith.addf %14, %7 : vector<2x784xf32>
    %16 = arith.divf %7, %15 : vector<2x784xf32>
    %17 = arith.select %9, %13, %16 : vector<2x784xi1>, vector<2x784xf32>
    %c0_7 = arith.constant 0 : index
    %c0_8 = arith.constant 0 : index
    %18 = vector.load %arg3[%c0_7, %c0_8] : memref<2x784xf32, #tpu.memory_space<vmem>>, vector<2x784xf32>
    tpu.vector_store %arg3[%c0_7, %c0_8], %17 {strides = array<i32>} : memref<2x784xf32, #tpu.memory_space<vmem>>, vector<2x784xf32>,
    return
  }
  func.func @transform_0(%arg0: i32) -> (i32, i32) {
    %c0_i32 = arith.constant 0 : i32
    %c0_i32_0 = arith.constant 0 : i32
    %c0_i32_1 = arith.constant 0 : i32
    return %c0_i32, %c0_i32_0 : i32, i32
  }
  func.func @transform_1(%arg0: i32) -> (i32, i32) {
    %c0_i32 = arith.constant 0 : i32
    %c0_i32_0 = arith.constant 0 : i32
    %c0_i32_1 = arith.constant 0 : i32
    return %c0_i32, %c0_i32_0 : i32, i32
  }
  func.func @transform_2(%arg0: i32) -> (i32, i32) {
    %c0_i32 = arith.constant 0 : i32
    %c0_i32_0 = arith.constant 0 : i32
    %c0_i32_1 = arith.constant 0 : i32
    return %c0_i32, %c0_i32_0 : i32, i32
  }
}

</mosaic_0001>

<llo_original>
// kernel: vae_forward.9
$region0: #{vae_forward.9}
  #allocation0 [shape = 'u32[]', space=smem, size = 0x4, offset = 0x4, fixed_abs, tag = 'smem constant byte address 0x4 - core index']
  #allocation1 [shape = 'u32[72,128]{1,0:T(1,128)}', space=vmem, size = 0x9000, scoped, tag = 'internal scratch']
  %s0 = inlined_call_operand.vmem [shape: bf16[1682,16], index: 0, kind: input, shape index: {}]
  %s1 = inlined_call_operand.hbm [shape: bf16[16,32], index: 1, kind: input, shape index: {}]
  %s2 = inlined_call_operand.hbm [shape: f32[1,32], index: 2, kind: input, shape index: {}]
  %s3 = inlined_call_operand.vmem [shape: f32[1682,32], index: 3, kind: output, shape index: {}]
  %s4 = sld [smem:[#allocation0]]
  $region30: #{vae_forward.9} parent=0
    _
  %s6 = ssub.s32 1, %s4
  %s7 = scalar_select 0, %s6, %s4
  $region1: #{vae_forward.9} parent=0
    #allocation2 [shape = 'u8[4096]{0}', space=vmem, size = 0x1000, scoped, tag = 'input window, operand 1, single buffered']
    #allocation3 [shape = 's32[1]{0}', space=sflag, size = 0x4, scoped, tag = 'scoped memory for vae_forward.9']
    #allocation4 [shape = 'u8[512]{0}', space=vmem, size = 0x400, scoped, tag = 'input window, operand 2, single buffered']
    #allocation5 [shape = 's32[1]{0}', space=sflag, size = 0x4, scoped, tag = 'scoped memory for vae_forward.9']
    %8 = vsyncpa [#allocation3], 0
    %9 = vsyncpa [#allocation5], 0
    // Predicated region
    $region2: #{vae_forward.9} parent=1 // pred_check
      _
    $region3: #{vae_forward.9} parent=1 // pred_check_branch
      %11 = sbr.rel (0) target = $region5
    $region4: #{vae_forward.9} parent=1 // pred_region
      _
    $region5: #{vae_forward.9} parent=1 // pred_fallthru
      _
    // Predicated region
    $region6: #{vae_forward.9} parent=1 // pred_check
      _
    $region7: #{vae_forward.9} parent=1 // pred_check_branch
      %13 = sbr.rel (0) target = $region9
    $region8: #{vae_forward.9} parent=1 // pred_region
      %15 = vsyncadd [#allocation3], 0
      %s16 = sshll.u32 %s1, 4
      %s17 = int_to_ptr.hbm [resolvable:$true] %s16
      %s18 = sshll.u32 [#allocation2], 4
      %s19 = int_to_ptr.vmem [resolvable:$true] %s18
      %24 = dma.hbm_to_vmem [thread:$0]  %s17, 128, %s19, [#allocation3], 64, 64, 4
    $region9: #{vae_forward.9} parent=1 // pred_fallthru
      _
    // Predicated region
    $region10: #{vae_forward.9} parent=1 // pred_check
      _
    $region11: #{vae_forward.9} parent=1 // pred_check_branch
      %26 = sbr.rel (0) target = $region13
    $region12: #{vae_forward.9} parent=1 // pred_region
      %28 = vsyncadd [#allocation5], 0
      %s30 = sshll.u32 %s2, 4
      %s31 = int_to_ptr.hbm [resolvable:$true] %s30
      %s32 = sshll.u32 [#allocation4], 4
      %s33 = int_to_ptr.vmem [resolvable:$true] %s32
      %35 = dma.hbm_to_vmem [thread:$0]  %s31, 16, %s33, [#allocation5]
    $region13: #{vae_forward.9} parent=1 // pred_fallthru
      _
    // Predicated region
    $region14: #{vae_forward.9} parent=1 // pred_check
      _
    $region15: #{vae_forward.9} parent=1 // pred_check_branch
      %37 = sbr.rel (0) target = $region17
    $region16: #{vae_forward.9} parent=1 // pred_region
      %39 = dma.done [#allocation3], 128
    $region17: #{vae_forward.9} parent=1 // pred_fallthru
      _
    // Predicated region
    $region18: #{vae_forward.9} parent=1 // pred_check
      _
    $region19: #{vae_forward.9} parent=1 // pred_check_branch
      %41 = sbr.rel (0) target = $region21
    $region20: #{vae_forward.9} parent=1 // pred_region
      %43 = dma.done [#allocation5], 16
    $region21: #{vae_forward.9} parent=1 // pred_fallthru
      _
    %v45 = vld [vmem:[%s0] sm:$0xf]
    %v46 = vld [vmem:[%s0 + $0x4] sm:$0xf]
    %v47 = vld [vmem:[%s0 + $0x8] sm:$0xf]
    %v48 = vld [vmem:[%s0 + $0xc] sm:$0xf]
    %v49 = vld [vmem:[%s0 + $0x10] sm:$0xf]
    %v50 = vld [vmem:[%s0 + $0x14] sm:$0xf]
    %v51 = vld [vmem:[%s0 + $0x18] sm:$0xf]
    %v52 = vld [vmem:[%s0 + $0x1c] sm:$0xf]
    %v53 = vld [vmem:[%s0 + $0x20] sm:$0xf]
    %v54 = vld [vmem:[%s0 + $0x24] sm:$0xf]
    %v55 = vld [vmem:[%s0 + $0x28] sm:$0xf]
    %v56 = vld [vmem:[%s0 + $0x2c] sm:$0xf]
    %v57 = vld [vmem:[%s0 + $0x30] sm:$0xf]
    %v58 = vld [vmem:[%s0 + $0x34] sm:$0xf]
    %v59 = vld [vmem:[%s0 + $0x38] sm:$0xf]
    %v60 = vld [vmem:[%s0 + $0x3c] sm:$0xf]
    %v61 = vld [vmem:[%s0 + $0x40] sm:$0xf]
    %v62 = vld [vmem:[%s0 + $0x44] sm:$0xf]
    %v63 = vld [vmem:[%s0 + $0x48] sm:$0xf]
    %v64 = vld [vmem:[%s0 + $0x4c] sm:$0xf]
    %v65 = vld [vmem:[%s0 + $0x50] sm:$0xf]
    %v66 = vld [vmem:[%s0 + $0x54] sm:$0xf]
    %v67 = vld [vmem:[%s0 + $0x58] sm:$0xf]
    %v68 = vld [vmem:[%s0 + $0x5c] sm:$0xf]
    %v69 = vld [vmem:[%s0 + $0x60] sm:$0xf]
    %v70 = vld [vmem:[%s0 + $0x64] sm:$0xf]
    %v71 = vld [vmem:[%s0 + $0x68] sm:$0xf]
    %v72 = vld [vmem:[%s0 + $0x6c] sm:$0xf]
    %v73 = vld [vmem:[%s0 + $0x70] sm:$0xf]
    %v74 = vld [vmem:[%s0 + $0x74] sm:$0xf]
    %v75 = vld [vmem:[%s0 + $0x78] sm:$0xf]
    %v76 = vld [vmem:[%s0 + $0x7c] sm:$0xf]
    %v77 = vld [vmem:[%s0 + $0x80] sm:$0xf]
    %v78 = vld [vmem:[%s0 + $0x84] sm:$0xf]
    %v79 = vld [vmem:[%s0 + $0x88] sm:$0xf]
    %v80 = vld [vmem:[%s0 + $0x8c] sm:$0xf]
    %v81 = vld [vmem:[%s0 + $0x90] sm:$0xf]
    %v82 = vld [vmem:[%s0 + $0x94] sm:$0xf]
    %v83 = vld [vmem:[%s0 + $0x98] sm:$0xf]
    %v84 = vld [vmem:[%s0 + $0x9c] sm:$0xf]
    %v85 = vld [vmem:[%s0 + $0xa0] sm:$0xf]
    %v86 = vld [vmem:[%s0 + $0xa4] sm:$0xf]
    %v87 = vld [vmem:[%s0 + $0xa8] sm:$0xf]
    %v88 = vld [vmem:[%s0 + $0xac] sm:$0xf]
    %v89 = vld [vmem:[%s0 + $0xb0] sm:$0xf]
    %v90 = vld [vmem:[%s0 + $0xb4] sm:$0xf]
    %v91 = vld [vmem:[%s0 + $0xb8] sm:$0xf]
    %v92 = vld [vmem:[%s0 + $0xbc] sm:$0xf]
    %v93 = vld [vmem:[%s0 + $0xc0] sm:$0xf]
    %v94 = vld [vmem:[%s0 + $0xc4] sm:$0xf]
    %v95 = vld [vmem:[%s0 + $0xc8] sm:$0xf]
    %v96 = vld [vmem:[%s0 + $0xcc] sm:$0xf]
    %v97 = vld [vmem:[%s0 + $0xd0] sm:$0xf]
    %v98 = vld [vmem:[%s0 + $0xd4] sm:$0xf]
    %v99 = vld [vmem:[%s0 + $0xd8] sm:$0xf]
    %v100 = vld [vmem:[%s0 + $0xdc] sm:$0xf]
    %v101 = vld [vmem:[%s0 + $0xe0] sm:$0xf]
    %v102 = vld [vmem:[%s0 + $0xe4] sm:$0xf]
    %v103 = vld [vmem:[%s0 + $0xe8] sm:$0xf]
    %v104 = vld [vmem:[%s0 + $0xec] sm:$0xf]
    %v105 = vld [vmem:[%s0 + $0xf0] sm:$0xf]
    %v106 = vld [vmem:[%s0 + $0xf4] sm:$0xf]
    %v107 = vld [vmem:[%s0 + $0xf8] sm:$0xf]
    %v108 = vld [vmem:[%s0 + $0xfc] sm:$0xf]
    %v109 = vld [vmem:[%s0 + $0x100] sm:$0xf]
    %v110 = vld [vmem:[%s0 + $0x104] sm:$0xf]
    %v111 = vld [vmem:[%s0 + $0x108] sm:$0xf]
    %v112 = vld [vmem:[%s0 + $0x10c] sm:$0xf]
    %v113 = vld [vmem:[%s0 + $0x110] sm:$0xf]
    %v114 = vld [vmem:[%s0 + $0x114] sm:$0xf]
    %v115 = vld [vmem:[%s0 + $0x118] sm:$0xf]
    %v116 = vld [vmem:[%s0 + $0x11c] sm:$0xf]
    %v117 = vld [vmem:[%s0 + $0x120] sm:$0xf]
    %v118 = vld [vmem:[%s0 + $0x124] sm:$0xf]
    %v119 = vld [vmem:[%s0 + $0x128] sm:$0xf]
    %v120 = vld [vmem:[%s0 + $0x12c] sm:$0xf]
    %v121 = vld [vmem:[%s0 + $0x130] sm:$0xf]
    %v122 = vld [vmem:[%s0 + $0x134] sm:$0xf]
    %v123 = vld [vmem:[%s0 + $0x138] sm:$0xf]
    %v124 = vld [vmem:[%s0 + $0x13c] sm:$0xf]
    %v125 = vld [vmem:[%s0 + $0x140] sm:$0xf]
    %v126 = vld [vmem:[%s0 + $0x144] sm:$0xf]
    %v127 = vld [vmem:[%s0 + $0x148] sm:$0xf]
    %v128 = vld [vmem:[%s0 + $0x14c] sm:$0xf]
    %v129 = vld [vmem:[%s0 + $0x150] sm:$0xf]
    %v130 = vld [vmem:[%s0 + $0x154] sm:$0xf]
    %v131 = vld [vmem:[%s0 + $0x158] sm:$0xf]
    %v132 = vld [vmem:[%s0 + $0x15c] sm:$0xf]
    %v133 = vld [vmem:[%s0 + $0x160] sm:$0xf]
    %v134 = vld [vmem:[%s0 + $0x164] sm:$0xf]
    %v135 = vld [vmem:[%s0 + $0x168] sm:$0xf]
    %v136 = vld [vmem:[%s0 + $0x16c] sm:$0xf]
    %v137 = vld [vmem:[%s0 + $0x170] sm:$0xf]
    %v138 = vld [vmem:[%s0 + $0x174] sm:$0xf]
    %v139 = vld [vmem:[%s0 + $0x178] sm:$0xf]
    %v140 = vld [vmem:[%s0 + $0x17c] sm:$0xf]
    %v141 = vld [vmem:[%s0 + $0x180] sm:$0xf]
    %v142 = vld [vmem:[%s0 + $0x184] sm:$0xf]
    %v143 = vld [vmem:[%s0 + $0x188] sm:$0xf]
    %v144 = vld [vmem:[%s0 + $0x18c] sm:$0xf]
    %v145 = vld [vmem:[%s0 + $0x190] sm:$0xf]
    %v146 = vld [vmem:[%s0 + $0x194] sm:$0xf]
    %v147 = vld [vmem:[%s0 + $0x198] sm:$0xf]
    %v148 = vld [vmem:[%s0 + $0x19c] sm:$0xf]
    %v149 = vld [vmem:[%s0 + $0x1a0] sm:$0xf]
    %v150 = vld [vmem:[%s0 + $0x1a4] sm:$0xf]
    %v151 = vld [vmem:[%s0 + $0x1a8] sm:$0xf]
    %v152 = vld [vmem:[%s0 + $0x1ac] sm:$0xf]
    %v153 = vld [vmem:[%s0 + $0x1b0] sm:$0xf]
    %v154 = vld [vmem:[%s0 + $0x1b4] sm:$0xf]
    %v155 = vld [vmem:[%s0 + $0x1b8] sm:$0xf]
    %v156 = vld [vmem:[%s0 + $0x1bc] sm:$0xf]
    %v157 = vld [vmem:[%s0 + $0x1c0] sm:$0xf]
    %v158 = vld [vmem:[%s0 + $0x1c4] sm:$0xf]
    %v159 = vld [vmem:[%s0 + $0x1c8] sm:$0xf]
    %v160 = vld [vmem:[%s0 + $0x1cc] sm:$0xf]
    %v161 = vld [vmem:[%s0 + $0x1d0] sm:$0xf]
    %v162 = vld [vmem:[%s0 + $0x1d4] sm:$0xf]
    %v163 = vld [vmem:[%s0 + $0x1d8] sm:$0xf]
    %v164 = vld [vmem:[%s0 + $0x1dc] sm:$0xf]
    %v165 = vld [vmem:[%s0 + $0x1e0] sm:$0xf]
    %v166 = vld [vmem:[%s0 + $0x1e4] sm:$0xf]
    %v167 = vld [vmem:[%s0 + $0x1e8] sm:$0xf]
    %v168 = vld [vmem:[%s0 + $0x1ec] sm:$0xf]
    %v169 = vld [vmem:[%s0 + $0x1f0] sm:$0xf]
    %v170 = vld [vmem:[%s0 + $0x1f4] sm:$0xf]
    %v171 = vld [vmem:[%s0 + $0x1f8] sm:$0xf]
    %v172 = vld [vmem:[%s0 + $0x1fc] sm:$0xf]
    %v173 = vld [vmem:[%s0 + $0x200] sm:$0xf]
    %v174 = vld [vmem:[%s0 + $0x204] sm:$0xf]
    %v175 = vld [vmem:[%s0 + $0x208] sm:$0xf]
    %v176 = vld [vmem:[%s0 + $0x20c] sm:$0xf]
    %v177 = vld [vmem:[%s0 + $0x210] sm:$0xf]
    %v178 = vld [vmem:[%s0 + $0x214] sm:$0xf]
    %v179 = vld [vmem:[%s0 + $0x218] sm:$0xf]
    %v180 = vld [vmem:[%s0 + $0x21c] sm:$0xf]
    %v181 = vld [vmem:[%s0 + $0x220] sm:$0xf]
    %v182 = vld [vmem:[%s0 + $0x224] sm:$0xf]
    %v183 = vld [vmem:[%s0 + $0x228] sm:$0xf]
    %v184 = vld [vmem:[%s0 + $0x22c] sm:$0xf]
    %v185 = vld [vmem:[%s0 + $0x230] sm:$0xf]
    %v186 = vld [vmem:[%s0 + $0x234] sm:$0xf]
    %v187 = vld [vmem:[%s0 + $0x238] sm:$0xf]
    %v188 = vld [vmem:[%s0 + $0x23c] sm:$0xf]
    %v189 = vld [vmem:[%s0 + $0x240] sm:$0xf]
    %v190 = vld [vmem:[%s0 + $0x244] sm:$0xf]
    %v191 = vld [vmem:[%s0 + $0x248] sm:$0xf]
    %v192 = vld [vmem:[%s0 + $0x24c] sm:$0xf]
    %v193 = vld [vmem:[%s0 + $0x250] sm:$0xf]
    %v194 = vld [vmem:[%s0 + $0x254] sm:$0xf]
    %v195 = vld [vmem:[%s0 + $0x258] sm:$0xf]
    %v196 = vld [vmem:[%s0 + $0x25c] sm:$0xf]
    %v197 = vld [vmem:[%s0 + $0x260] sm:$0xf]
    %v198 = vld [vmem:[%s0 + $0x264] sm:$0xf]
    %v199 = vld [vmem:[%s0 + $0x268] sm:$0xf]
    %v200 = vld [vmem:[%s0 + $0x26c] sm:$0xf]
    %v201 = vld [vmem:[%s0 + $0x270] sm:$0xf]
    %v202 = vld [vmem:[%s0 + $0x274] sm:$0xf]
    %v203 = vld [vmem:[%s0 + $0x278] sm:$0xf]
    %v204 = vld [vmem:[%s0 + $0x27c] sm:$0xf]
    %v205 = vld [vmem:[%s0 + $0x280] sm:$0xf]
    %v206 = vld [vmem:[%s0 + $0x284] sm:$0xf]
    %v207 = vld [vmem:[%s0 + $0x288] sm:$0xf]
    %v208 = vld [vmem:[%s0 + $0x28c] sm:$0xf]
    %v209 = vld [vmem:[%s0 + $0x290] sm:$0xf]
    %v210 = vld [vmem:[%s0 + $0x294] sm:$0xf]
    %v211 = vld [vmem:[%s0 + $0x298] sm:$0xf]
    %v212 = vld [vmem:[%s0 + $0x29c] sm:$0xf]
    %v213 = vld [vmem:[%s0 + $0x2a0] sm:$0xf]
    %v214 = vld [vmem:[%s0 + $0x2a4] sm:$0xf]
    %v215 = vld [vmem:[%s0 + $0x2a8] sm:$0xf]
    %v216 = vld [vmem:[%s0 + $0x2ac] sm:$0xf]
    %v217 = vld [vmem:[%s0 + $0x2b0] sm:$0xf]
    %v218 = vld [vmem:[%s0 + $0x2b4] sm:$0xf]
    %v219 = vld [vmem:[%s0 + $0x2b8] sm:$0xf]
    %v220 = vld [vmem:[%s0 + $0x2bc] sm:$0xf]
    %v221 = vld [vmem:[%s0 + $0x2c0] sm:$0xf]
    %v222 = vld [vmem:[%s0 + $0x2c4] sm:$0xf]
    %v223 = vld [vmem:[%s0 + $0x2c8] sm:$0xf]
    %v224 = vld [vmem:[%s0 + $0x2cc] sm:$0xf]
    %v225 = vld [vmem:[%s0 + $0x2d0] sm:$0xf]
    %v226 = vld [vmem:[%s0 + $0x2d4] sm:$0xf]
    %v227 = vld [vmem:[%s0 + $0x2d8] sm:$0xf]
    %v228 = vld [vmem:[%s0 + $0x2dc] sm:$0xf]
    %v229 = vld [vmem:[%s0 + $0x2e0] sm:$0xf]
    %v230 = vld [vmem:[%s0 + $0x2e4] sm:$0xf]
    %v231 = vld [vmem:[%s0 + $0x2e8] sm:$0xf]
    %v232 = vld [vmem:[%s0 + $0x2ec] sm:$0xf]
    %v233 = vld [vmem:[%s0 + $0x2f0] sm:$0xf]
    %v234 = vld [vmem:[%s0 + $0x2f4] sm:$0xf]
    %v235 = vld [vmem:[%s0 + $0x2f8] sm:$0xf]
    %v236 = vld [vmem:[%s0 + $0x2fc] sm:$0xf]
    %v237 = vld [vmem:[%s0 + $0x300] sm:$0xf]
    %v238 = vld [vmem:[%s0 + $0x304] sm:$0xf]
    %v239 = vld [vmem:[%s0 + $0x308] sm:$0xf]
    %v240 = vld [vmem:[%s0 + $0x30c] sm:$0xf]
    %v241 = vld [vmem:[%s0 + $0x310] sm:$0xf]
    %v242 = vld [vmem:[%s0 + $0x314] sm:$0xf]
    %v243 = vld [vmem:[%s0 + $0x318] sm:$0xf]
    %v244 = vld [vmem:[%s0 + $0x31c] sm:$0xf]
    %v245 = vld [vmem:[%s0 + $0x320] sm:$0xf]
    %v246 = vld [vmem:[%s0 + $0x324] sm:$0xf]
    %v247 = vld [vmem:[%s0 + $0x328] sm:$0xf]
    %v248 = vld [vmem:[%s0 + $0x32c] sm:$0xf]
    %v249 = vld [vmem:[%s0 + $0x330] sm:$0xf]
    %v250 = vld [vmem:[%s0 + $0x334] sm:$0xf]
    %v251 = vld [vmem:[%s0 + $0x338] sm:$0xf]
    %v252 = vld [vmem:[%s0 + $0x33c] sm:$0xf]
    %v253 = vld [vmem:[%s0 + $0x340] sm:$0xf]
    %v254 = vld [vmem:[%s0 + $0x344] sm:$0xf]
    %v255 = vld [vmem:[%s0 + $0x348] sm:$0x1]
    %v256 = vld [vmem:[#allocation2] sm:$0xf]
    %v257 = vld [vmem:[#allocation2 + $0x4] sm:$0xf]
    %v258 = vld [vmem:[#allocation4] sm:$0x1]
    %v260 = vperm.slane %v258, 0
    %v473 = vunpack.c.l.b16 %v45
    %v474 = vunpack.c.l.b16 %v46
    %v475 = vunpack.c.l.b16 %v47
    %v476 = vunpack.c.l.b16 %v48
    %v477 = vunpack.c.l.b16 %v49
    %v478 = vunpack.c.l.b16 %v50
    %v479 = vunpack.c.l.b16 %v51
    %v480 = vunpack.c.l.b16 %v52
    %v481 = vunpack.c.l.b16 %v53
    %v482 = vunpack.c.l.b16 %v54
    %v483 = vunpack.c.l.b16 %v55
    %v484 = vunpack.c.l.b16 %v56
    %v485 = vunpack.c.l.b16 %v57
    %v486 = vunpack.c.l.b16 %v58
    %v487 = vunpack.c.l.b16 %v59
    %v488 = vunpack.c.l.b16 %v60
    %v489 = vunpack.c.l.b16 %v61
    %v490 = vunpack.c.l.b16 %v62
    %v491 = vunpack.c.l.b16 %v63
    %v492 = vunpack.c.l.b16 %v64
    %v493 = vunpack.c.l.b16 %v65
    %v494 = vunpack.c.l.b16 %v66
    %v495 = vunpack.c.l.b16 %v67
    %v496 = vunpack.c.l.b16 %v68
    %v497 = vunpack.c.l.b16 %v69
    %v498 = vunpack.c.l.b16 %v70
    %v499 = vunpack.c.l.b16 %v71
    %v500 = vunpack.c.l.b16 %v72
    %v501 = vunpack.c.l.b16 %v73
    %v502 = vunpack.c.l.b16 %v74
    %v503 = vunpack.c.l.b16 %v75
    %v504 = vunpack.c.l.b16 %v76
    %v505 = vunpack.c.l.b16 %v77
    %v506 = vunpack.c.l.b16 %v78
    %v507 = vunpack.c.l.b16 %v79
    %v508 = vunpack.c.l.b16 %v80
    %v509 = vunpack.c.l.b16 %v81
    %v510 = vunpack.c.l.b16 %v82
    %v511 = vunpack.c.l.b16 %v83
    %v512 = vunpack.c.l.b16 %v84
    %v513 = vunpack.c.l.b16 %v85
    %v514 = vunpack.c.l.b16 %v86
    %v515 = vunpack.c.l.b16 %v87
    %v516 = vunpack.c.l.b16 %v88
    %v517 = vunpack.c.l.b16 %v89
    %v518 = vunpack.c.l.b16 %v90
    %v519 = vunpack.c.l.b16 %v91
    %v520 = vunpack.c.l.b16 %v92
    %v521 = vunpack.c.l.b16 %v93
    %v522 = vunpack.c.l.b16 %v94
    %v523 = vunpack.c.l.b16 %v95
    %v524 = vunpack.c.l.b16 %v96
    %v525 = vunpack.c.l.b16 %v97
    %v526 = vunpack.c.l.b16 %v98
    %v527 = vunpack.c.l.b16 %v99
    %v528 = vunpack.c.l.b16 %v100
    %v529 = vunpack.c.l.b16 %v101
    %v530 = vunpack.c.l.b16 %v102
    %v531 = vunpack.c.l.b16 %v103
    %v532 = vunpack.c.l.b16 %v104
    %v533 = vunpack.c.l.b16 %v105
    %v534 = vunpack.c.l.b16 %v106
    %v535 = vunpack.c.l.b16 %v107
    %v536 = vunpack.c.l.b16 %v108
    %v537 = vunpack.c.l.b16 %v109
    %v538 = vunpack.c.l.b16 %v110
    %v539 = vunpack.c.l.b16 %v111
    %v540 = vunpack.c.l.b16 %v112
    %v541 = vunpack.c.l.b16 %v113
    %v542 = vunpack.c.l.b16 %v114
    %v543 = vunpack.c.l.b16 %v115
    %v544 = vunpack.c.l.b16 %v116
    %v545 = vunpack.c.l.b16 %v117
    %v546 = vunpack.c.l.b16 %v118
    %v547 = vunpack.c.l.b16 %v119
    %v548 = vunpack.c.l.b16 %v120
    %v549 = vunpack.c.l.b16 %v121
    %v550 = vunpack.c.l.b16 %v122
    %v551 = vunpack.c.l.b16 %v123
    %v552 = vunpack.c.l.b16 %v124
    %v553 = vunpack.c.l.b16 %v125
    %v554 = vunpack.c.l.b16 %v126
    %v555 = vunpack.c.l.b16 %v127
    %v556 = vunpack.c.l.b16 %v128
    %v557 = vunpack.c.l.b16 %v129
    %v558 = vunpack.c.l.b16 %v130
    %v559 = vunpack.c.l.b16 %v131
    %v560 = vunpack.c.l.b16 %v132
    %v561 = vunpack.c.l.b16 %v133
    %v562 = vunpack.c.l.b16 %v134
    %v563 = vunpack.c.l.b16 %v135
    %v564 = vunpack.c.l.b16 %v136
    %v565 = vunpack.c.l.b16 %v137
    %v566 = vunpack.c.l.b16 %v138
    %v567 = vunpack.c.l.b16 %v139
    %v568 = vunpack.c.l.b16 %v140
    %v569 = vunpack.c.l.b16 %v141
    %v570 = vunpack.c.l.b16 %v142
    %v571 = vunpack.c.l.b16 %v143
    %v572 = vunpack.c.l.b16 %v144
    %v573 = vunpack.c.l.b16 %v145
    %v574 = vunpack.c.l.b16 %v146
    %v575 = vunpack.c.l.b16 %v147
    %v576 = vunpack.c.l.b16 %v148
    %v577 = vunpack.c.l.b16 %v149
    %v578 = vunpack.c.l.b16 %v150
    %v579 = vunpack.c.l.b16 %v151
    %v580 = vunpack.c.l.b16 %v152
    %v581 = vunpack.c.l.b16 %v153
    %v582 = vunpack.c.l.b16 %v154
    %v583 = vunpack.c.l.b16 %v155
    %v584 = vunpack.c.l.b16 %v156
    %v585 = vunpack.c.l.b16 %v157
    %v586 = vunpack.c.l.b16 %v158
    %v587 = vunpack.c.l.b16 %v159
    %v588 = vunpack.c.l.b16 %v160
    %v589 = vunpack.c.l.b16 %v161
    %v590 = vunpack.c.l.b16 %v162
    %v591 = vunpack.c.l.b16 %v163
    %v592 = vunpack.c.l.b16 %v164
    %v593 = vunpack.c.l.b16 %v165
    %v594 = vunpack.c.l.b16 %v166
    %v595 = vunpack.c.l.b16 %v167
    %v596 = vunpack.c.l.b16 %v168
    %v597 = vunpack.c.l.b16 %v169
    %v598 = vunpack.c.l.b16 %v170
    %v599 = vunpack.c.l.b16 %v171
    %v600 = vunpack.c.l.b16 %v172
    %v601 = vunpack.c.l.b16 %v173
    %v602 = vunpack.c.l.b16 %v174
    %v603 = vunpack.c.l.b16 %v175
    %v604 = vunpack.c.l.b16 %v176
    %v605 = vunpack.c.l.b16 %v177
    %v606 = vunpack.c.l.b16 %v178
    %v607 = vunpack.c.l.b16 %v179
    %v608 = vunpack.c.l.b16 %v180
    %v609 = vunpack.c.l.b16 %v181
    %v610 = vunpack.c.l.b16 %v182
    %v611 = vunpack.c.l.b16 %v183
    %v612 = vunpack.c.l.b16 %v184
    %v613 = vunpack.c.l.b16 %v185
    %v614 = vunpack.c.l.b16 %v186
    %v615 = vunpack.c.l.b16 %v187
    %v616 = vunpack.c.l.b16 %v188
    %v617 = vunpack.c.l.b16 %v189
    %v618 = vunpack.c.l.b16 %v190
    %v619 = vunpack.c.l.b16 %v191
    %v620 = vunpack.c.l.b16 %v192
    %v621 = vunpack.c.l.b16 %v193
    %v622 = vunpack.c.l.b16 %v194
    %v623 = vunpack.c.l.b16 %v195
    %v624 = vunpack.c.l.b16 %v196
    %v625 = vunpack.c.l.b16 %v197
    %v626 = vunpack.c.l.b16 %v198
    %v627 = vunpack.c.l.b16 %v199
    %v628 = vunpack.c.l.b16 %v200
    %v629 = vunpack.c.l.b16 %v201
    %v630 = vunpack.c.l.b16 %v202
    %v631 = vunpack.c.l.b16 %v203
    %v632 = vunpack.c.l.b16 %v204
    %v633 = vunpack.c.l.b16 %v205
    %v634 = vunpack.c.l.b16 %v206
    %v635 = vunpack.c.l.b16 %v207
    %v636 = vunpack.c.l.b16 %v208
    %v637 = vunpack.c.l.b16 %v209
    %v638 = vunpack.c.l.b16 %v210
    %v639 = vunpack.c.l.b16 %v211
    %v640 = vunpack.c.l.b16 %v212
    %v641 = vunpack.c.l.b16 %v213
    %v642 = vunpack.c.l.b16 %v214
    %v643 = vunpack.c.l.b16 %v215
    %v644 = vunpack.c.l.b16 %v216
    %v645 = vunpack.c.l.b16 %v217
    %v646 = vunpack.c.l.b16 %v218
    %v647 = vunpack.c.l.b16 %v219
    %v648 = vunpack.c.l.b16 %v220
    %v649 = vunpack.c.l.b16 %v221
    %v650 = vunpack.c.l.b16 %v222
    %v651 = vunpack.c.l.b16 %v223
    %v652 = vunpack.c.l.b16 %v224
    %v653 = vunpack.c.l.b16 %v225
    %v654 = vunpack.c.l.b16 %v226
    %v655 = vunpack.c.l.b16 %v227
    %v656 = vunpack.c.l.b16 %v228
    %v657 = vunpack.c.l.b16 %v229
    %v658 = vunpack.c.l.b16 %v230
    %v659 = vunpack.c.l.b16 %v231
    %v660 = vunpack.c.l.b16 %v232
    %v661 = vunpack.c.l.b16 %v233
    %v662 = vunpack.c.l.b16 %v234
    %v663 = vunpack.c.l.b16 %v235
    %v664 = vunpack.c.l.b16 %v236
    %v665 = vunpack.c.l.b16 %v237
    %v666 = vunpack.c.l.b16 %v238
    %v667 = vunpack.c.l.b16 %v239
    %v668 = vunpack.c.l.b16 %v240
    %v669 = vunpack.c.l.b16 %v241
    %v670 = vunpack.c.l.b16 %v242
    %v671 = vunpack.c.l.b16 %v243
    %v672 = vunpack.c.l.b16 %v244
    %v673 = vunpack.c.l.b16 %v245
    %v674 = vunpack.c.l.b16 %v246
    %v675 = vunpack.c.l.b16 %v247
    %v676 = vunpack.c.l.b16 %v248
    %v677 = vunpack.c.l.b16 %v249
    %v678 = vunpack.c.l.b16 %v250
    %v679 = vunpack.c.l.b16 %v251
    %v680 = vunpack.c.l.b16 %v252
    %v681 = vunpack.c.l.b16 %v253
    %v682 = vunpack.c.l.b16 %v254
    %v683 = vunpack.c.l.b16 %v255
    %v684 = vpack.c.b16 %v474, %v473
    %v685 = vpack.c.b16 %v476, %v475
    %v686 = vpack.c.b16 %v478, %v477
    %v687 = vpack.c.b16 %v480, %v479
    %v688 = vpack.c.b16 %v482, %v481
    %v689 = vpack.c.b16 %v484, %v483
    %v690 = vpack.c.b16 %v486, %v485
    %v691 = vpack.c.b16 %v488, %v487
    %v692 = vpack.c.b16 %v490, %v489
    %v693 = vpack.c.b16 %v492, %v491
    %v694 = vpack.c.b16 %v494, %v493
    %v695 = vpack.c.b16 %v496, %v495
    %v696 = vpack.c.b16 %v498, %v497
    %v697 = vpack.c.b16 %v500, %v499
    %v698 = vpack.c.b16 %v502, %v501
    %v699 = vpack.c.b16 %v504, %v503
    %v700 = vpack.c.b16 %v506, %v505
    %v701 = vpack.c.b16 %v508, %v507
    %v702 = vpack.c.b16 %v510, %v509
    %v703 = vpack.c.b16 %v512, %v511
    %v704 = vpack.c.b16 %v514, %v513
    %v705 = vpack.c.b16 %v516, %v515
    %v706 = vpack.c.b16 %v518, %v517
    %v707 = vpack.c.b16 %v520, %v519
    %v708 = vpack.c.b16 %v522, %v521
    %v709 = vpack.c.b16 %v524, %v523
    %v710 = vpack.c.b16 %v526, %v525
    %v711 = vpack.c.b16 %v528, %v527
    %v712 = vpack.c.b16 %v530, %v529
    %v713 = vpack.c.b16 %v532, %v531
    %v714 = vpack.c.b16 %v534, %v533
    %v715 = vpack.c.b16 %v536, %v535
    %v716 = vpack.c.b16 %v538, %v537
    %v717 = vpack.c.b16 %v540, %v539
    %v718 = vpack.c.b16 %v542, %v541
    %v719 = vpack.c.b16 %v544, %v543
    %v720 = vpack.c.b16 %v546, %v545
    %v721 = vpack.c.b16 %v548, %v547
    %v722 = vpack.c.b16 %v550, %v549
    %v723 = vpack.c.b16 %v552, %v551
    %v724 = vpack.c.b16 %v554, %v553
    %v725 = vpack.c.b16 %v556, %v555
    %v726 = vpack.c.b16 %v558, %v557
    %v727 = vpack.c.b16 %v560, %v559
    %v728 = vpack.c.b16 %v562, %v561
    %v729 = vpack.c.b16 %v564, %v563
    %v730 = vpack.c.b16 %v566, %v565
    %v731 = vpack.c.b16 %v568, %v567
    %v732 = vpack.c.b16 %v570, %v569
    %v733 = vpack.c.b16 %v572, %v571
    %v734 = vpack.c.b16 %v574, %v573
    %v735 = vpack.c.b16 %v576, %v575
    %v736 = vpack.c.b16 %v578, %v577
    %v737 = vpack.c.b16 %v580, %v579
    %v738 = vpack.c.b16 %v582, %v581
    %v739 = vpack.c.b16 %v584, %v583
    %v740 = vpack.c.b16 %v586, %v585
    %v741 = vpack.c.b16 %v588, %v587
    %v742 = vpack.c.b16 %v590, %v589
    %v743 = vpack.c.b16 %v592, %v591
    %v744 = vpack.c.b16 %v594, %v593
    %v745 = vpack.c.b16 %v596, %v595
    %v746 = vpack.c.b16 %v598, %v597
    %v747 = vpack.c.b16 %v600, %v599
    %v748 = vpack.c.b16 %v602, %v601
    %v749 = vpack.c.b16 %v604, %v603
    %v750 = vpack.c.b16 %v606, %v605
    %v751 = vpack.c.b16 %v608, %v607
    %v752 = vpack.c.b16 %v610, %v609
    %v753 = vpack.c.b16 %v612, %v611
    %v754 = vpack.c.b16 %v614, %v613
    %v755 = vpack.c.b16 %v616, %v615
    %v756 = vpack.c.b16 %v618, %v617
    %v757 = vpack.c.b16 %v620, %v619
    %v758 = vpack.c.b16 %v622, %v621
    %v759 = vpack.c.b16 %v624, %v623
    %v760 = vpack.c.b16 %v626, %v625
    %v761 = vpack.c.b16 %v628, %v627
    %v762 = vpack.c.b16 %v630, %v629
    %v763 = vpack.c.b16 %v632, %v631
    %v764 = vpack.c.b16 %v634, %v633
    %v765 = vpack.c.b16 %v636, %v635
    %v766 = vpack.c.b16 %v638, %v637
    %v767 = vpack.c.b16 %v640, %v639
    %v768 = vpack.c.b16 %v642, %v641
    %v769 = vpack.c.b16 %v644, %v643
    %v770 = vpack.c.b16 %v646, %v645
    %v771 = vpack.c.b16 %v648, %v647
    %v772 = vpack.c.b16 %v650, %v649
    %v773 = vpack.c.b16 %v652, %v651
    %v774 = vpack.c.b16 %v654, %v653
    %v775 = vpack.c.b16 %v656, %v655
    %v776 = vpack.c.b16 %v658, %v657
    %v777 = vpack.c.b16 %v660, %v659
    %v778 = vpack.c.b16 %v662, %v661
    %v779 = vpack.c.b16 %v664, %v663
    %v780 = vpack.c.b16 %v666, %v665
    %v781 = vpack.c.b16 %v668, %v667
    %v782 = vpack.c.b16 %v670, %v669
    %v783 = vpack.c.b16 %v672, %v671
    %v784 = vpack.c.b16 %v674, %v673
    %v785 = vpack.c.b16 %v676, %v675
    %v786 = vpack.c.b16 %v678, %v677
    %v787 = vpack.c.b16 %v680, %v679
    %v788 = vpack.c.b16 %v682, %v681
    %v789 = vpack.c.b16 %v683, %v683
    %v792 = vunpack.c.l.b16 %v256
    %v793 = vunpack.c.l.b16 %v257
    %v794 = vpack.c.b16 %v793, %v792
    %vm796 = vcmask 130048
    %v798 = vsel %vm796, %v684, 0
    %v801 = vsel %vm796, %v685, 0
    %v804 = vsel %vm796, %v686, 0
    %v807 = vsel %vm796, %v687, 0
    %v810 = vsel %vm796, %v688, 0
    %v813 = vsel %vm796, %v689, 0
    %v816 = vsel %vm796, %v690, 0
    %v819 = vsel %vm796, %v691, 0
    %v822 = vsel %vm796, %v692, 0
    %v825 = vsel %vm796, %v693, 0
    %v828 = vsel %vm796, %v694, 0
    %v831 = vsel %vm796, %v695, 0
    %v834 = vsel %vm796, %v696, 0
    %v837 = vsel %vm796, %v697, 0
    %v840 = vsel %vm796, %v698, 0
    %v843 = vsel %vm796, %v699, 0
    %v846 = vsel %vm796, %v700, 0
    %v849 = vsel %vm796, %v701, 0
    %v852 = vsel %vm796, %v702, 0
    %v855 = vsel %vm796, %v703, 0
    %v858 = vsel %vm796, %v704, 0
    %v861 = vsel %vm796, %v705, 0
    %v864 = vsel %vm796, %v706, 0
    %v867 = vsel %vm796, %v707, 0
    %v870 = vsel %vm796, %v708, 0
    %v873 = vsel %vm796, %v709, 0
    %v876 = vsel %vm796, %v710, 0
    %v879 = vsel %vm796, %v711, 0
    %v882 = vsel %vm796, %v712, 0
    %v885 = vsel %vm796, %v713, 0
    %v888 = vsel %vm796, %v714, 0
    %v891 = vsel %vm796, %v715, 0
    %v894 = vsel %vm796, %v716, 0
    %v897 = vsel %vm796, %v717, 0
    %v900 = vsel %vm796, %v718, 0
    %v903 = vsel %vm796, %v719, 0
    %v906 = vsel %vm796, %v720, 0
    %v909 = vsel %vm796, %v721, 0
    %v912 = vsel %vm796, %v722, 0
    %v915 = vsel %vm796, %v723, 0
    %v918 = vsel %vm796, %v724, 0
    %v921 = vsel %vm796, %v725, 0
    %v924 = vsel %vm796, %v726, 0
    %v927 = vsel %vm796, %v727, 0
    %v930 = vsel %vm796, %v728, 0
    %v933 = vsel %vm796, %v729, 0
    %v936 = vsel %vm796, %v730, 0
    %v939 = vsel %vm796, %v731, 0
    %v942 = vsel %vm796, %v732, 0
    %v945 = vsel %vm796, %v733, 0
    %v948 = vsel %vm796, %v734, 0
    %v951 = vsel %vm796, %v735, 0
    %v954 = vsel %vm796, %v736, 0
    %v957 = vsel %vm796, %v737, 0
    %v960 = vsel %vm796, %v738, 0
    %v963 = vsel %vm796, %v739, 0
    %v966 = vsel %vm796, %v740, 0
    %v969 = vsel %vm796, %v741, 0
    %v972 = vsel %vm796, %v742, 0
    %v975 = vsel %vm796, %v743, 0
    %v978 = vsel %vm796, %v744, 0
    %v981 = vsel %vm796, %v745, 0
    %v984 = vsel %vm796, %v746, 0
    %v987 = vsel %vm796, %v747, 0
    %v990 = vsel %vm796, %v748, 0
    %v993 = vsel %vm796, %v749, 0
    %v996 = vsel %vm796, %v750, 0
    %v999 = vsel %vm796, %v751, 0
    %v1002 = vsel %vm796, %v752, 0
    %v1005 = vsel %vm796, %v753, 0
    %v1008 = vsel %vm796, %v754, 0
    %v1011 = vsel %vm796, %v755, 0
    %v1014 = vsel %vm796, %v756, 0
    %v1017 = vsel %vm796, %v757, 0
    %v1020 = vsel %vm796, %v758, 0
    %v1023 = vsel %vm796, %v759, 0
    %v1026 = vsel %vm796, %v760, 0
    %v1029 = vsel %vm796, %v761, 0
    %v1032 = vsel %vm796, %v762, 0
    %v1035 = vsel %vm796, %v763, 0
    %v1038 = vsel %vm796, %v764, 0
    %v1041 = vsel %vm796, %v765, 0
    %v1044 = vsel %vm796, %v766, 0
    %v1047 = vsel %vm796, %v767, 0
    %v1050 = vsel %vm796, %v768, 0
    %v1053 = vsel %vm796, %v769, 0
    %v1056 = vsel %vm796, %v770, 0
    %v1059 = vsel %vm796, %v771, 0
    %v1062 = vsel %vm796, %v772, 0
    %v1065 = vsel %vm796, %v773, 0
    %v1068 = vsel %vm796, %v774, 0
    %v1071 = vsel %vm796, %v775, 0
    %v1074 = vsel %vm796, %v776, 0
    %v1077 = vsel %vm796, %v777, 0
    %v1080 = vsel %vm796, %v778, 0
    %v1083 = vsel %vm796, %v779, 0
    %v1086 = vsel %vm796, %v780, 0
    %v1089 = vsel %vm796, %v781, 0
    %v1092 = vsel %vm796, %v782, 0
    %v1095 = vsel %vm796, %v783, 0
    %v1098 = vsel %vm796, %v784, 0
    %v1101 = vsel %vm796, %v785, 0
    %v1104 = vsel %vm796, %v786, 0
    %v1107 = vsel %vm796, %v787, 0
    %v1110 = vsel %vm796, %v788, 0
    %v1113 = vsel %vm796, %v789, 0
    %1115 = vmatpush.bf16.msra.mxu0 0
    %1116 = vmatpush.bf16.msra.mxu0 0
    %1117 = vmatpush.bf16.msra.mxu0 0
    %1118 = vmatpush.bf16.msra.mxu0 0
    %1119 = vmatpush.bf16.msra.mxu0 0
    %1120 = vmatpush.bf16.msra.mxu0 0
    %1121 = vmatpush.bf16.msra.mxu0 0
    %1122 = vmatpush.bf16.msra.mxu0 %v794
    %1123 = vmatmul.bf16.gmra.mxu0 %v798
    %v1124 = vpop.f32.mrf.mxu0
    %v1125 = vadd.f32 %v260, %v1124
    %v1126 = vpop.f32.mrf.mxu0
    %v1127 = vadd.f32 %v260, %v1126
    %1128 = vmatmul.bf16.gmra.mxu0 %v801
    %v1129 = vpop.f32.mrf.mxu0
    %v1130 = vadd.f32 %v260, %v1129
    %v1131 = vpop.f32.mrf.mxu0
    %v1132 = vadd.f32 %v260, %v1131
    %1133 = vmatmul.bf16.gmra.mxu0 %v804
    %v1134 = vpop.f32.mrf.mxu0
    %v1135 = vadd.f32 %v260, %v1134
    %v1136 = vpop.f32.mrf.mxu0
    %v1137 = vadd.f32 %v260, %v1136
    %1138 = vmatmul.bf16.gmra.mxu0 %v807
    %v1139 = vpop.f32.mrf.mxu0
    %v1140 = vadd.f32 %v260, %v1139
    %v1141 = vpop.f32.mrf.mxu0
    %v1142 = vadd.f32 %v260, %v1141
    %1143 = vmatmul.bf16.gmra.mxu0 %v810
    %v1144 = vpop.f32.mrf.mxu0
    %v1145 = vadd.f32 %v260, %v1144
    %v1146 = vpop.f32.mrf.mxu0
    %v1147 = vadd.f32 %v260, %v1146
    %1148 = vmatmul.bf16.gmra.mxu0 %v813
    %v1149 = vpop.f32.mrf.mxu0
    %v1150 = vadd.f32 %v260, %v1149
    %v1151 = vpop.f32.mrf.mxu0
    %v1152 = vadd.f32 %v260, %v1151
    %1153 = vmatmul.bf16.gmra.mxu0 %v816
    %v1154 = vpop.f32.mrf.mxu0
    %v1155 = vadd.f32 %v260, %v1154
    %v1156 = vpop.f32.mrf.mxu0
    %v1157 = vadd.f32 %v260, %v1156
    %1158 = vmatmul.bf16.gmra.mxu0 %v819
    %v1159 = vpop.f32.mrf.mxu0
    %v1160 = vadd.f32 %v260, %v1159
    %v1161 = vpop.f32.mrf.mxu0
    %v1162 = vadd.f32 %v260, %v1161
    %1163 = vmatmul.bf16.gmra.mxu0 %v822
    %v1164 = vpop.f32.mrf.mxu0
    %v1165 = vadd.f32 %v260, %v1164
    %v1166 = vpop.f32.mrf.mxu0
    %v1167 = vadd.f32 %v260, %v1166
    %1168 = vmatmul.bf16.gmra.mxu0 %v825
    %v1169 = vpop.f32.mrf.mxu0
    %v1170 = vadd.f32 %v260, %v1169
    %v1171 = vpop.f32.mrf.mxu0
    %v1172 = vadd.f32 %v260, %v1171
    %1173 = vmatmul.bf16.gmra.mxu0 %v828
    %v1174 = vpop.f32.mrf.mxu0
    %v1175 = vadd.f32 %v260, %v1174
    %v1176 = vpop.f32.mrf.mxu0
    %v1177 = vadd.f32 %v260, %v1176
    %1178 = vmatmul.bf16.gmra.mxu0 %v831
    %v1179 = vpop.f32.mrf.mxu0
    %v1180 = vadd.f32 %v260, %v1179
    %v1181 = vpop.f32.mrf.mxu0
    %v1182 = vadd.f32 %v260, %v1181
    %1183 = vmatmul.bf16.gmra.mxu0 %v834
    %v1184 = vpop.f32.mrf.mxu0
    %v1185 = vadd.f32 %v260, %v1184
    %v1186 = vpop.f32.mrf.mxu0
    %v1187 = vadd.f32 %v260, %v1186
    %1188 = vmatmul.bf16.gmra.mxu0 %v837
    %v1189 = vpop.f32.mrf.mxu0
    %v1190 = vadd.f32 %v260, %v1189
    %v1191 = vpop.f32.mrf.mxu0
    %v1192 = vadd.f32 %v260, %v1191
    %1193 = vmatmul.bf16.gmra.mxu0 %v840
    %v1194 = vpop.f32.mrf.mxu0
    %v1195 = vadd.f32 %v260, %v1194
    %v1196 = vpop.f32.mrf.mxu0
    %v1197 = vadd.f32 %v260, %v1196
    %1198 = vmatmul.bf16.gmra.mxu0 %v843
    %v1199 = vpop.f32.mrf.mxu0
    %v1200 = vadd.f32 %v260, %v1199
    %v1201 = vpop.f32.mrf.mxu0
    %v1202 = vadd.f32 %v260, %v1201
    %1203 = vmatmul.bf16.gmra.mxu0 %v846
    %v1204 = vpop.f32.mrf.mxu0
    %v1205 = vadd.f32 %v260, %v1204
    %v1206 = vpop.f32.mrf.mxu0
    %v1207 = vadd.f32 %v260, %v1206
    %1208 = vmatmul.bf16.gmra.mxu0 %v849
    %v1209 = vpop.f32.mrf.mxu0
    %v1210 = vadd.f32 %v260, %v1209
    %v1211 = vpop.f32.mrf.mxu0
    %v1212 = vadd.f32 %v260, %v1211
    %1213 = vmatmul.bf16.gmra.mxu0 %v852
    %v1214 = vpop.f32.mrf.mxu0
    %v1215 = vadd.f32 %v260, %v1214
    %v1216 = vpop.f32.mrf.mxu0
    %v1217 = vadd.f32 %v260, %v1216
    %1218 = vmatmul.bf16.gmra.mxu0 %v855
    %v1219 = vpop.f32.mrf.mxu0
    %v1220 = vadd.f32 %v260, %v1219
    %v1221 = vpop.f32.mrf.mxu0
    %v1222 = vadd.f32 %v260, %v1221
    %1223 = vmatmul.bf16.gmra.mxu0 %v858
    %v1224 = vpop.f32.mrf.mxu0
    %v1225 = vadd.f32 %v260, %v1224
    %v1226 = vpop.f32.mrf.mxu0
    %v1227 = vadd.f32 %v260, %v1226
    %1228 = vmatmul.bf16.gmra.mxu0 %v861
    %v1229 = vpop.f32.mrf.mxu0
    %v1230 = vadd.f32 %v260, %v1229
    %v1231 = vpop.f32.mrf.mxu0
    %v1232 = vadd.f32 %v260, %v1231
    %1233 = vmatmul.bf16.gmra.mxu0 %v864
    %v1234 = vpop.f32.mrf.mxu0
    %v1235 = vadd.f32 %v260, %v1234
    %v1236 = vpop.f32.mrf.mxu0
    %v1237 = vadd.f32 %v260, %v1236
    %1238 = vmatmul.bf16.gmra.mxu0 %v867
    %v1239 = vpop.f32.mrf.mxu0
    %v1240 = vadd.f32 %v260, %v1239
    %v1241 = vpop.f32.mrf.mxu0
    %v1242 = vadd.f32 %v260, %v1241
    %1243 = vmatmul.bf16.gmra.mxu0 %v870
    %v1244 = vpop.f32.mrf.mxu0
    %v1245 = vadd.f32 %v260, %v1244
    %v1246 = vpop.f32.mrf.mxu0
    %v1247 = vadd.f32 %v260, %v1246
    %1248 = vmatmul.bf16.gmra.mxu0 %v873
    %v1249 = vpop.f32.mrf.mxu0
    %v1250 = vadd.f32 %v260, %v1249
    %v1251 = vpop.f32.mrf.mxu0
    %v1252 = vadd.f32 %v260, %v1251
    %1253 = vmatmul.bf16.gmra.mxu0 %v876
    %v1254 = vpop.f32.mrf.mxu0
    %v1255 = vadd.f32 %v260, %v1254
    %v1256 = vpop.f32.mrf.mxu0
    %v1257 = vadd.f32 %v260, %v1256
    %1258 = vmatmul.bf16.gmra.mxu0 %v879
    %v1259 = vpop.f32.mrf.mxu0
    %v1260 = vadd.f32 %v260, %v1259
    %v1261 = vpop.f32.mrf.mxu0
    %v1262 = vadd.f32 %v260, %v1261
    %1263 = vmatmul.bf16.gmra.mxu0 %v882
    %v1264 = vpop.f32.mrf.mxu0
    %v1265 = vadd.f32 %v260, %v1264
    %v1266 = vpop.f32.mrf.mxu0
    %v1267 = vadd.f32 %v260, %v1266
    %1268 = vmatmul.bf16.gmra.mxu0 %v885
    %v1269 = vpop.f32.mrf.mxu0
    %v1270 = vadd.f32 %v260, %v1269
    %v1271 = vpop.f32.mrf.mxu0
    %v1272 = vadd.f32 %v260, %v1271
    %1273 = vmatmul.bf16.gmra.mxu0 %v888
    %v1274 = vpop.f32.mrf.mxu0
    %v1275 = vadd.f32 %v260, %v1274
    %v1276 = vpop.f32.mrf.mxu0
    %v1277 = vadd.f32 %v260, %v1276
    %1278 = vmatmul.bf16.gmra.mxu0 %v891
    %v1279 = vpop.f32.mrf.mxu0
    %v1280 = vadd.f32 %v260, %v1279
    %v1281 = vpop.f32.mrf.mxu0
    %v1282 = vadd.f32 %v260, %v1281
    %1283 = vmatmul.bf16.gmra.mxu0 %v894
    %v1284 = vpop.f32.mrf.mxu0
    %v1285 = vadd.f32 %v260, %v1284
    %v1286 = vpop.f32.mrf.mxu0
    %v1287 = vadd.f32 %v260, %v1286
    %1288 = vmatmul.bf16.gmra.mxu0 %v897
    %v1289 = vpop.f32.mrf.mxu0
    %v1290 = vadd.f32 %v260, %v1289
    %v1291 = vpop.f32.mrf.mxu0
    %v1292 = vadd.f32 %v260, %v1291
    %1293 = vmatmul.bf16.gmra.mxu0 %v900
    %v1294 = vpop.f32.mrf.mxu0
    %v1295 = vadd.f32 %v260, %v1294
    %v1296 = vpop.f32.mrf.mxu0
    %v1297 = vadd.f32 %v260, %v1296
    %1298 = vmatmul.bf16.gmra.mxu0 %v903
    %v1299 = vpop.f32.mrf.mxu0
    %v1300 = vadd.f32 %v260, %v1299
    %v1301 = vpop.f32.mrf.mxu0
    %v1302 = vadd.f32 %v260, %v1301
    %1303 = vmatmul.bf16.gmra.mxu0 %v906
    %v1304 = vpop.f32.mrf.mxu0
    %v1305 = vadd.f32 %v260, %v1304
    %v1306 = vpop.f32.mrf.mxu0
    %v1307 = vadd.f32 %v260, %v1306
    %1308 = vmatmul.bf16.gmra.mxu0 %v909
    %v1309 = vpop.f32.mrf.mxu0
    %v1310 = vadd.f32 %v260, %v1309
    %v1311 = vpop.f32.mrf.mxu0
    %v1312 = vadd.f32 %v260, %v1311
    %1313 = vmatmul.bf16.gmra.mxu0 %v912
    %v1314 = vpop.f32.mrf.mxu0
    %v1315 = vadd.f32 %v260, %v1314
    %v1316 = vpop.f32.mrf.mxu0
    %v1317 = vadd.f32 %v260, %v1316
    %1318 = vmatmul.bf16.gmra.mxu0 %v915
    %v1319 = vpop.f32.mrf.mxu0
    %v1320 = vadd.f32 %v260, %v1319
    %v1321 = vpop.f32.mrf.mxu0
    %v1322 = vadd.f32 %v260, %v1321
    %1323 = vmatmul.bf16.gmra.mxu0 %v918
    %v1324 = vpop.f32.mrf.mxu0
    %v1325 = vadd.f32 %v260, %v1324
    %v1326 = vpop.f32.mrf.mxu0
    %v1327 = vadd.f32 %v260, %v1326
    %1328 = vmatmul.bf16.gmra.mxu0 %v921
    %v1329 = vpop.f32.mrf.mxu0
    %v1330 = vadd.f32 %v260, %v1329
    %v1331 = vpop.f32.mrf.mxu0
    %v1332 = vadd.f32 %v260, %v1331
    %1333 = vmatmul.bf16.gmra.mxu0 %v924
    %v1334 = vpop.f32.mrf.mxu0
    %v1335 = vadd.f32 %v260, %v1334
    %v1336 = vpop.f32.mrf.mxu0
    %v1337 = vadd.f32 %v260, %v1336
    %1338 = vmatmul.bf16.gmra.mxu0 %v927
    %v1339 = vpop.f32.mrf.mxu0
    %v1340 = vadd.f32 %v260, %v1339
    %v1341 = vpop.f32.mrf.mxu0
    %v1342 = vadd.f32 %v260, %v1341
    %1343 = vmatmul.bf16.gmra.mxu0 %v930
    %v1344 = vpop.f32.mrf.mxu0
    %v1345 = vadd.f32 %v260, %v1344
    %v1346 = vpop.f32.mrf.mxu0
    %v1347 = vadd.f32 %v260, %v1346
    %1348 = vmatmul.bf16.gmra.mxu0 %v933
    %v1349 = vpop.f32.mrf.mxu0
    %v1350 = vadd.f32 %v260, %v1349
    %v1351 = vpop.f32.mrf.mxu0
    %v1352 = vadd.f32 %v260, %v1351
    %1353 = vmatmul.bf16.gmra.mxu0 %v936
    %v1354 = vpop.f32.mrf.mxu0
    %v1355 = vadd.f32 %v260, %v1354
    %v1356 = vpop.f32.mrf.mxu0
    %v1357 = vadd.f32 %v260, %v1356
    %1358 = vmatmul.bf16.gmra.mxu0 %v939
    %v1359 = vpop.f32.mrf.mxu0
    %v1360 = vadd.f32 %v260, %v1359
    %v1361 = vpop.f32.mrf.mxu0
    %v1362 = vadd.f32 %v260, %v1361
    %1363 = vmatmul.bf16.gmra.mxu0 %v942
    %v1364 = vpop.f32.mrf.mxu0
    %v1365 = vadd.f32 %v260, %v1364
    %v1366 = vpop.f32.mrf.mxu0
    %v1367 = vadd.f32 %v260, %v1366
    %1368 = vmatmul.bf16.gmra.mxu0 %v945
    %v1369 = vpop.f32.mrf.mxu0
    %v1370 = vadd.f32 %v260, %v1369
    %v1371 = vpop.f32.mrf.mxu0
    %v1372 = vadd.f32 %v260, %v1371
    %1373 = vmatmul.bf16.gmra.mxu0 %v948
    %v1374 = vpop.f32.mrf.mxu0
    %v1375 = vadd.f32 %v260, %v1374
    %v1376 = vpop.f32.mrf.mxu0
    %v1377 = vadd.f32 %v260, %v1376
    %1378 = vmatmul.bf16.gmra.mxu0 %v951
    %v1379 = vpop.f32.mrf.mxu0
    %v1380 = vadd.f32 %v260, %v1379
    %v1381 = vpop.f32.mrf.mxu0
    %v1382 = vadd.f32 %v260, %v1381
    %1383 = vmatmul.bf16.gmra.mxu0 %v954
    %v1384 = vpop.f32.mrf.mxu0
    %v1385 = vadd.f32 %v260, %v1384
    %v1386 = vpop.f32.mrf.mxu0
    %v1387 = vadd.f32 %v260, %v1386
    %1388 = vmatmul.bf16.gmra.mxu0 %v957
    %v1389 = vpop.f32.mrf.mxu0
    %v1390 = vadd.f32 %v260, %v1389
    %v1391 = vpop.f32.mrf.mxu0
    %v1392 = vadd.f32 %v260, %v1391
    %1393 = vmatmul.bf16.gmra.mxu0 %v960
    %v1394 = vpop.f32.mrf.mxu0
    %v1395 = vadd.f32 %v260, %v1394
    %v1396 = vpop.f32.mrf.mxu0
    %v1397 = vadd.f32 %v260, %v1396
    %1398 = vmatmul.bf16.gmra.mxu0 %v963
    %v1399 = vpop.f32.mrf.mxu0
    %v1400 = vadd.f32 %v260, %v1399
    %v1401 = vpop.f32.mrf.mxu0
    %v1402 = vadd.f32 %v260, %v1401
    %1403 = vmatmul.bf16.gmra.mxu0 %v966
    %v1404 = vpop.f32.mrf.mxu0
    %v1405 = vadd.f32 %v260, %v1404
    %v1406 = vpop.f32.mrf.mxu0
    %v1407 = vadd.f32 %v260, %v1406
    %1408 = vmatmul.bf16.gmra.mxu0 %v969
    %v1409 = vpop.f32.mrf.mxu0
    %v1410 = vadd.f32 %v260, %v1409
    %v1411 = vpop.f32.mrf.mxu0
    %v1412 = vadd.f32 %v260, %v1411
    %1413 = vmatmul.bf16.gmra.mxu0 %v972
    %v1414 = vpop.f32.mrf.mxu0
    %v1415 = vadd.f32 %v260, %v1414
    %v1416 = vpop.f32.mrf.mxu0
    %v1417 = vadd.f32 %v260, %v1416
    %1418 = vmatmul.bf16.gmra.mxu0 %v975
    %v1419 = vpop.f32.mrf.mxu0
    %v1420 = vadd.f32 %v260, %v1419
    %v1421 = vpop.f32.mrf.mxu0
    %v1422 = vadd.f32 %v260, %v1421
    %1423 = vmatmul.bf16.gmra.mxu0 %v978
    %v1424 = vpop.f32.mrf.mxu0
    %v1425 = vadd.f32 %v260, %v1424
    %v1426 = vpop.f32.mrf.mxu0
    %v1427 = vadd.f32 %v260, %v1426
    %1428 = vmatmul.bf16.gmra.mxu0 %v981
    %v1429 = vpop.f32.mrf.mxu0
    %v1430 = vadd.f32 %v260, %v1429
    %v1431 = vpop.f32.mrf.mxu0
    %v1432 = vadd.f32 %v260, %v1431
    %1433 = vmatmul.bf16.gmra.mxu0 %v984
    %v1434 = vpop.f32.mrf.mxu0
    %v1435 = vadd.f32 %v260, %v1434
    %v1436 = vpop.f32.mrf.mxu0
    %v1437 = vadd.f32 %v260, %v1436
    %1438 = vmatmul.bf16.gmra.mxu0 %v987
    %v1439 = vpop.f32.mrf.mxu0
    %v1440 = vadd.f32 %v260, %v1439
    %v1441 = vpop.f32.mrf.mxu0
    %v1442 = vadd.f32 %v260, %v1441
    %1443 = vmatmul.bf16.gmra.mxu0 %v990
    %v1444 = vpop.f32.mrf.mxu0
    %v1445 = vadd.f32 %v260, %v1444
    %v1446 = vpop.f32.mrf.mxu0
    %v1447 = vadd.f32 %v260, %v1446
    %1448 = vmatmul.bf16.gmra.mxu0 %v993
    %v1449 = vpop.f32.mrf.mxu0
    %v1450 = vadd.f32 %v260, %v1449
    %v1451 = vpop.f32.mrf.mxu0
    %v1452 = vadd.f32 %v260, %v1451
    %1453 = vmatmul.bf16.gmra.mxu0 %v996
    %v1454 = vpop.f32.mrf.mxu0
    %v1455 = vadd.f32 %v260, %v1454
    %v1456 = vpop.f32.mrf.mxu0
    %v1457 = vadd.f32 %v260, %v1456
    %1458 = vmatmul.bf16.gmra.mxu0 %v999
    %v1459 = vpop.f32.mrf.mxu0
    %v1460 = vadd.f32 %v260, %v1459
    %v1461 = vpop.f32.mrf.mxu0
    %v1462 = vadd.f32 %v260, %v1461
    %1463 = vmatmul.bf16.gmra.mxu0 %v1002
    %v1464 = vpop.f32.mrf.mxu0
    %v1465 = vadd.f32 %v260, %v1464
    %v1466 = vpop.f32.mrf.mxu0
    %v1467 = vadd.f32 %v260, %v1466
    %1468 = vmatmul.bf16.gmra.mxu0 %v1005
    %v1469 = vpop.f32.mrf.mxu0
    %v1470 = vadd.f32 %v260, %v1469
    %v1471 = vpop.f32.mrf.mxu0
    %v1472 = vadd.f32 %v260, %v1471
    %1473 = vmatmul.bf16.gmra.mxu0 %v1008
    %v1474 = vpop.f32.mrf.mxu0
    %v1475 = vadd.f32 %v260, %v1474
    %v1476 = vpop.f32.mrf.mxu0
    %v1477 = vadd.f32 %v260, %v1476
    %1478 = vmatmul.bf16.gmra.mxu0 %v1011
    %v1479 = vpop.f32.mrf.mxu0
    %v1480 = vadd.f32 %v260, %v1479
    %v1481 = vpop.f32.mrf.mxu0
    %v1482 = vadd.f32 %v260, %v1481
    %1483 = vmatmul.bf16.gmra.mxu0 %v1014
    %v1484 = vpop.f32.mrf.mxu0
    %v1485 = vadd.f32 %v260, %v1484
    %v1486 = vpop.f32.mrf.mxu0
    %v1487 = vadd.f32 %v260, %v1486
    %1488 = vmatmul.bf16.gmra.mxu0 %v1017
    %v1489 = vpop.f32.mrf.mxu0
    %v1490 = vadd.f32 %v260, %v1489
    %v1491 = vpop.f32.mrf.mxu0
    %v1492 = vadd.f32 %v260, %v1491
    %1493 = vmatmul.bf16.gmra.mxu0 %v1020
    %v1494 = vpop.f32.mrf.mxu0
    %v1495 = vadd.f32 %v260, %v1494
    %v1496 = vpop.f32.mrf.mxu0
    %v1497 = vadd.f32 %v260, %v1496
    %1498 = vmatmul.bf16.gmra.mxu0 %v1023
    %v1499 = vpop.f32.mrf.mxu0
    %v1500 = vadd.f32 %v260, %v1499
    %v1501 = vpop.f32.mrf.mxu0
    %v1502 = vadd.f32 %v260, %v1501
    %1503 = vmatmul.bf16.gmra.mxu0 %v1026
    %v1504 = vpop.f32.mrf.mxu0
    %v1505 = vadd.f32 %v260, %v1504
    %v1506 = vpop.f32.mrf.mxu0
    %v1507 = vadd.f32 %v260, %v1506
    %1508 = vmatmul.bf16.gmra.mxu0 %v1029
    %v1509 = vpop.f32.mrf.mxu0
    %v1510 = vadd.f32 %v260, %v1509
    %v1511 = vpop.f32.mrf.mxu0
    %v1512 = vadd.f32 %v260, %v1511
    %1513 = vmatmul.bf16.gmra.mxu0 %v1032
    %v1514 = vpop.f32.mrf.mxu0
    %v1515 = vadd.f32 %v260, %v1514
    %v1516 = vpop.f32.mrf.mxu0
    %v1517 = vadd.f32 %v260, %v1516
    %1518 = vmatmul.bf16.gmra.mxu0 %v1035
    %v1519 = vpop.f32.mrf.mxu0
    %v1520 = vadd.f32 %v260, %v1519
    %v1521 = vpop.f32.mrf.mxu0
    %v1522 = vadd.f32 %v260, %v1521
    %1523 = vmatmul.bf16.gmra.mxu0 %v1038
    %v1524 = vpop.f32.mrf.mxu0
    %v1525 = vadd.f32 %v260, %v1524
    %v1526 = vpop.f32.mrf.mxu0
    %v1527 = vadd.f32 %v260, %v1526
    %1528 = vmatmul.bf16.gmra.mxu0 %v1041
    %v1529 = vpop.f32.mrf.mxu0
    %v1530 = vadd.f32 %v260, %v1529
    %v1531 = vpop.f32.mrf.mxu0
    %v1532 = vadd.f32 %v260, %v1531
    %1533 = vmatmul.bf16.gmra.mxu0 %v1044
    %v1534 = vpop.f32.mrf.mxu0
    %v1535 = vadd.f32 %v260, %v1534
    %v1536 = vpop.f32.mrf.mxu0
    %v1537 = vadd.f32 %v260, %v1536
    %1538 = vmatmul.bf16.gmra.mxu0 %v1047
    %v1539 = vpop.f32.mrf.mxu0
    %v1540 = vadd.f32 %v260, %v1539
    %v1541 = vpop.f32.mrf.mxu0
    %v1542 = vadd.f32 %v260, %v1541
    %1543 = vmatmul.bf16.gmra.mxu0 %v1050
    %v1544 = vpop.f32.mrf.mxu0
    %v1545 = vadd.f32 %v260, %v1544
    %v1546 = vpop.f32.mrf.mxu0
    %v1547 = vadd.f32 %v260, %v1546
    %1548 = vmatmul.bf16.gmra.mxu0 %v1053
    %v1549 = vpop.f32.mrf.mxu0
    %v1550 = vadd.f32 %v260, %v1549
    %v1551 = vpop.f32.mrf.mxu0
    %v1552 = vadd.f32 %v260, %v1551
    %1553 = vmatmul.bf16.gmra.mxu0 %v1056
    %v1554 = vpop.f32.mrf.mxu0
    %v1555 = vadd.f32 %v260, %v1554
    %v1556 = vpop.f32.mrf.mxu0
    %v1557 = vadd.f32 %v260, %v1556
    %1558 = vmatmul.bf16.gmra.mxu0 %v1059
    %v1559 = vpop.f32.mrf.mxu0
    %v1560 = vadd.f32 %v260, %v1559
    %v1561 = vpop.f32.mrf.mxu0
    %v1562 = vadd.f32 %v260, %v1561
    %1563 = vmatmul.bf16.gmra.mxu0 %v1062
    %v1564 = vpop.f32.mrf.mxu0
    %v1565 = vadd.f32 %v260, %v1564
    %v1566 = vpop.f32.mrf.mxu0
    %v1567 = vadd.f32 %v260, %v1566
    %1568 = vmatmul.bf16.gmra.mxu0 %v1065
    %v1569 = vpop.f32.mrf.mxu0
    %v1570 = vadd.f32 %v260, %v1569
    %v1571 = vpop.f32.mrf.mxu0
    %v1572 = vadd.f32 %v260, %v1571
    %1573 = vmatmul.bf16.gmra.mxu0 %v1068
    %v1574 = vpop.f32.mrf.mxu0
    %v1575 = vadd.f32 %v260, %v1574
    %v1576 = vpop.f32.mrf.mxu0
    %v1577 = vadd.f32 %v260, %v1576
    %1578 = vmatmul.bf16.gmra.mxu0 %v1071
    %v1579 = vpop.f32.mrf.mxu0
    %v1580 = vadd.f32 %v260, %v1579
    %v1581 = vpop.f32.mrf.mxu0
    %v1582 = vadd.f32 %v260, %v1581
    %1583 = vmatmul.bf16.gmra.mxu0 %v1074
    %v1584 = vpop.f32.mrf.mxu0
    %v1585 = vadd.f32 %v260, %v1584
    %v1586 = vpop.f32.mrf.mxu0
    %v1587 = vadd.f32 %v260, %v1586
    %1588 = vmatmul.bf16.gmra.mxu0 %v1077
    %v1589 = vpop.f32.mrf.mxu0
    %v1590 = vadd.f32 %v260, %v1589
    %v1591 = vpop.f32.mrf.mxu0
    %v1592 = vadd.f32 %v260, %v1591
    %1593 = vmatmul.bf16.gmra.mxu0 %v1080
    %v1594 = vpop.f32.mrf.mxu0
    %v1595 = vadd.f32 %v260, %v1594
    %v1596 = vpop.f32.mrf.mxu0
    %v1597 = vadd.f32 %v260, %v1596
    %1598 = vmatmul.bf16.gmra.mxu0 %v1083
    %v1599 = vpop.f32.mrf.mxu0
    %v1600 = vadd.f32 %v260, %v1599
    %v1601 = vpop.f32.mrf.mxu0
    %v1602 = vadd.f32 %v260, %v1601
    %1603 = vmatmul.bf16.gmra.mxu0 %v1086
    %v1604 = vpop.f32.mrf.mxu0
    %v1605 = vadd.f32 %v260, %v1604
    %v1606 = vpop.f32.mrf.mxu0
    %v1607 = vadd.f32 %v260, %v1606
    %1608 = vmatmul.bf16.gmra.mxu0 %v1089
    %v1609 = vpop.f32.mrf.mxu0
    %v1610 = vadd.f32 %v260, %v1609
    %v1611 = vpop.f32.mrf.mxu0
    %v1612 = vadd.f32 %v260, %v1611
    %1613 = vmatmul.bf16.gmra.mxu0 %v1092
    %v1614 = vpop.f32.mrf.mxu0
    %v1615 = vadd.f32 %v260, %v1614
    %v1616 = vpop.f32.mrf.mxu0
    %v1617 = vadd.f32 %v260, %v1616
    %1618 = vmatmul.bf16.gmra.mxu0 %v1095
    %v1619 = vpop.f32.mrf.mxu0
    %v1620 = vadd.f32 %v260, %v1619
    %v1621 = vpop.f32.mrf.mxu0
    %v1622 = vadd.f32 %v260, %v1621
    %1623 = vmatmul.bf16.gmra.mxu0 %v1098
    %v1624 = vpop.f32.mrf.mxu0
    %v1625 = vadd.f32 %v260, %v1624
    %v1626 = vpop.f32.mrf.mxu0
    %v1627 = vadd.f32 %v260, %v1626
    %1628 = vmatmul.bf16.gmra.mxu0 %v1101
    %v1629 = vpop.f32.mrf.mxu0
    %v1630 = vadd.f32 %v260, %v1629
    %v1631 = vpop.f32.mrf.mxu0
    %v1632 = vadd.f32 %v260, %v1631
    %1633 = vmatmul.bf16.gmra.mxu0 %v1104
    %v1634 = vpop.f32.mrf.mxu0
    %v1635 = vadd.f32 %v260, %v1634
    %v1636 = vpop.f32.mrf.mxu0
    %v1637 = vadd.f32 %v260, %v1636
    %1638 = vmatmul.bf16.gmra.mxu0 %v1107
    %v1639 = vpop.f32.mrf.mxu0
    %v1640 = vadd.f32 %v260, %v1639
    %v1641 = vpop.f32.mrf.mxu0
    %v1642 = vadd.f32 %v260, %v1641
    %1643 = vmatmul.bf16.gmra.mxu0 %v1110
    %v1644 = vpop.f32.mrf.mxu0
    %v1645 = vadd.f32 %v260, %v1644
    %v1646 = vpop.f32.mrf.mxu0
    %v1647 = vadd.f32 %v260, %v1646
    %1648 = vmatmul.bf16.gmra.mxu0 %v1113
    %v1649 = vpop.f32.mrf.mxu0
    %v1650 = vadd.f32 %v260, %v1649
    %v1651 = vpop.f32.mrf.mxu0
    %1652 = vdwg.mxu0
    %v1653 = vmax.f32 %v1125, 0.0
    %v1654 = vmax.f32 %v1127, 0.0
    %v1655 = vmax.f32 %v1130, 0.0
    %v1656 = vmax.f32 %v1132, 0.0
    %v1657 = vmax.f32 %v1135, 0.0
    %v1658 = vmax.f32 %v1137, 0.0
    %v1659 = vmax.f32 %v1140, 0.0
    %v1660 = vmax.f32 %v1142, 0.0
    %v1661 = vmax.f32 %v1145, 0.0
    %v1662 = vmax.f32 %v1147, 0.0
    %v1663 = vmax.f32 %v1150, 0.0
    %v1664 = vmax.f32 %v1152, 0.0
    %v1665 = vmax.f32 %v1155, 0.0
    %v1666 = vmax.f32 %v1157, 0.0
    %v1667 = vmax.f32 %v1160, 0.0
    %v1668 = vmax.f32 %v1162, 0.0
    %v1669 = vmax.f32 %v1165, 0.0
    %v1670 = vmax.f32 %v1167, 0.0
    %v1671 = vmax.f32 %v1170, 0.0
    %v1672 = vmax.f32 %v1172, 0.0
    %v1673 = vmax.f32 %v1175, 0.0
    %v1674 = vmax.f32 %v1177, 0.0
    %v1675 = vmax.f32 %v1180, 0.0
    %v1676 = vmax.f32 %v1182, 0.0
    %v1677 = vmax.f32 %v1185, 0.0
    %v1678 = vmax.f32 %v1187, 0.0
    %v1679 = vmax.f32 %v1190, 0.0
    %v1680 = vmax.f32 %v1192, 0.0
    %v1681 = vmax.f32 %v1195, 0.0
    %v1682 = vmax.f32 %v1197, 0.0
    %v1683 = vmax.f32 %v1200, 0.0
    %v1684 = vmax.f32 %v1202, 0.0
    %v1685 = vmax.f32 %v1205, 0.0
    %v1686 = vmax.f32 %v1207, 0.0
    %v1687 = vmax.f32 %v1210, 0.0
    %v1688 = vmax.f32 %v1212, 0.0
    %v1689 = vmax.f32 %v1215, 0.0
    %v1690 = vmax.f32 %v1217, 0.0
    %v1691 = vmax.f32 %v1220, 0.0
    %v1692 = vmax.f32 %v1222, 0.0
    %v1693 = vmax.f32 %v1225, 0.0
    %v1694 = vmax.f32 %v1227, 0.0
    %v1695 = vmax.f32 %v1230, 0.0
    %v1696 = vmax.f32 %v1232, 0.0
    %v1697 = vmax.f32 %v1235, 0.0
    %v1698 = vmax.f32 %v1237, 0.0
    %v1699 = vmax.f32 %v1240, 0.0
    %v1700 = vmax.f32 %v1242, 0.0
    %v1701 = vmax.f32 %v1245, 0.0
    %v1702 = vmax.f32 %v1247, 0.0
    %v1703 = vmax.f32 %v1250, 0.0
    %v1704 = vmax.f32 %v1252, 0.0
    %v1705 = vmax.f32 %v1255, 0.0
    %v1706 = vmax.f32 %v1257, 0.0
    %v1707 = vmax.f32 %v1260, 0.0
    %v1708 = vmax.f32 %v1262, 0.0
    %v1709 = vmax.f32 %v1265, 0.0
    %v1710 = vmax.f32 %v1267, 0.0
    %v1711 = vmax.f32 %v1270, 0.0
    %v1712 = vmax.f32 %v1272, 0.0
    %v1713 = vmax.f32 %v1275, 0.0
    %v1714 = vmax.f32 %v1277, 0.0
    %v1715 = vmax.f32 %v1280, 0.0
    %v1716 = vmax.f32 %v1282, 0.0
    %v1717 = vmax.f32 %v1285, 0.0
    %v1718 = vmax.f32 %v1287, 0.0
    %v1719 = vmax.f32 %v1290, 0.0
    %v1720 = vmax.f32 %v1292, 0.0
    %v1721 = vmax.f32 %v1295, 0.0
    %v1722 = vmax.f32 %v1297, 0.0
    %v1723 = vmax.f32 %v1300, 0.0
    %v1724 = vmax.f32 %v1302, 0.0
    %v1725 = vmax.f32 %v1305, 0.0
    %v1726 = vmax.f32 %v1307, 0.0
    %v1727 = vmax.f32 %v1310, 0.0
    %v1728 = vmax.f32 %v1312, 0.0
    %v1729 = vmax.f32 %v1315, 0.0
    %v1730 = vmax.f32 %v1317, 0.0
    %v1731 = vmax.f32 %v1320, 0.0
    %v1732 = vmax.f32 %v1322, 0.0
    %v1733 = vmax.f32 %v1325, 0.0
    %v1734 = vmax.f32 %v1327, 0.0
    %v1735 = vmax.f32 %v1330, 0.0
    %v1736 = vmax.f32 %v1332, 0.0
    %v1737 = vmax.f32 %v1335, 0.0
    %v1738 = vmax.f32 %v1337, 0.0
    %v1739 = vmax.f32 %v1340, 0.0
    %v1740 = vmax.f32 %v1342, 0.0
    %v1741 = vmax.f32 %v1345, 0.0
    %v1742 = vmax.f32 %v1347, 0.0
    %v1743 = vmax.f32 %v1350, 0.0
    %v1744 = vmax.f32 %v1352, 0.0
    %v1745 = vmax.f32 %v1355, 0.0
    %v1746 = vmax.f32 %v1357, 0.0
    %v1747 = vmax.f32 %v1360, 0.0
    %v1748 = vmax.f32 %v1362, 0.0
    %v1749 = vmax.f32 %v1365, 0.0
    %v1750 = vmax.f32 %v1367, 0.0
    %v1751 = vmax.f32 %v1370, 0.0
    %v1752 = vmax.f32 %v1372, 0.0
    %v1753 = vmax.f32 %v1375, 0.0
    %v1754 = vmax.f32 %v1377, 0.0
    %v1755 = vmax.f32 %v1380, 0.0
    %v1756 = vmax.f32 %v1382, 0.0
    %v1757 = vmax.f32 %v1385, 0.0
    %v1758 = vmax.f32 %v1387, 0.0
    %v1759 = vmax.f32 %v1390, 0.0
    %v1760 = vmax.f32 %v1392, 0.0
    %v1761 = vmax.f32 %v1395, 0.0
    %v1762 = vmax.f32 %v1397, 0.0
    %v1763 = vmax.f32 %v1400, 0.0
    %v1764 = vmax.f32 %v1402, 0.0
    %v1765 = vmax.f32 %v1405, 0.0
    %v1766 = vmax.f32 %v1407, 0.0
    %v1767 = vmax.f32 %v1410, 0.0
    %v1768 = vmax.f32 %v1412, 0.0
    %v1769 = vmax.f32 %v1415, 0.0
    %v1770 = vmax.f32 %v1417, 0.0
    %v1771 = vmax.f32 %v1420, 0.0
    %v1772 = vmax.f32 %v1422, 0.0
    %v1773 = vmax.f32 %v1425, 0.0
    %v1774 = vmax.f32 %v1427, 0.0
    %v1775 = vmax.f32 %v1430, 0.0
    %v1776 = vmax.f32 %v1432, 0.0
    %v1777 = vmax.f32 %v1435, 0.0
    %v1778 = vmax.f32 %v1437, 0.0
    %v1779 = vmax.f32 %v1440, 0.0
    %v1780 = vmax.f32 %v1442, 0.0
    %v1781 = vmax.f32 %v1445, 0.0
    %v1782 = vmax.f32 %v1447, 0.0
    %v1783 = vmax.f32 %v1450, 0.0
    %v1784 = vmax.f32 %v1452, 0.0
    %v1785 = vmax.f32 %v1455, 0.0
    %v1786 = vmax.f32 %v1457, 0.0
    %v1787 = vmax.f32 %v1460, 0.0
    %v1788 = vmax.f32 %v1462, 0.0
    %v1789 = vmax.f32 %v1465, 0.0
    %v1790 = vmax.f32 %v1467, 0.0
    %v1791 = vmax.f32 %v1470, 0.0
    %v1792 = vmax.f32 %v1472, 0.0
    %v1793 = vmax.f32 %v1475, 0.0
    %v1794 = vmax.f32 %v1477, 0.0
    %v1795 = vmax.f32 %v1480, 0.0
    %v1796 = vmax.f32 %v1482, 0.0
    %v1797 = vmax.f32 %v1485, 0.0
    %v1798 = vmax.f32 %v1487, 0.0
    %v1799 = vmax.f32 %v1490, 0.0
    %v1800 = vmax.f32 %v1492, 0.0
    %v1801 = vmax.f32 %v1495, 0.0
    %v1802 = vmax.f32 %v1497, 0.0
    %v1803 = vmax.f32 %v1500, 0.0
    %v1804 = vmax.f32 %v1502, 0.0
    %v1805 = vmax.f32 %v1505, 0.0
    %v1806 = vmax.f32 %v1507, 0.0
    %v1807 = vmax.f32 %v1510, 0.0
    %v1808 = vmax.f32 %v1512, 0.0
    %v1809 = vmax.f32 %v1515, 0.0
    %v1810 = vmax.f32 %v1517, 0.0
    %v1811 = vmax.f32 %v1520, 0.0
    %v1812 = vmax.f32 %v1522, 0.0
    %v1813 = vmax.f32 %v1525, 0.0
    %v1814 = vmax.f32 %v1527, 0.0
    %v1815 = vmax.f32 %v1530, 0.0
    %v1816 = vmax.f32 %v1532, 0.0
    %v1817 = vmax.f32 %v1535, 0.0
    %v1818 = vmax.f32 %v1537, 0.0
    %v1819 = vmax.f32 %v1540, 0.0
    %v1820 = vmax.f32 %v1542, 0.0
    %v1821 = vmax.f32 %v1545, 0.0
    %v1822 = vmax.f32 %v1547, 0.0
    %v1823 = vmax.f32 %v1550, 0.0
    %v1824 = vmax.f32 %v1552, 0.0
    %v1825 = vmax.f32 %v1555, 0.0
    %v1826 = vmax.f32 %v1557, 0.0
    %v1827 = vmax.f32 %v1560, 0.0
    %v1828 = vmax.f32 %v1562, 0.0
    %v1829 = vmax.f32 %v1565, 0.0
    %v1830 = vmax.f32 %v1567, 0.0
    %v1831 = vmax.f32 %v1570, 0.0
    %v1832 = vmax.f32 %v1572, 0.0
    %v1833 = vmax.f32 %v1575, 0.0
    %v1834 = vmax.f32 %v1577, 0.0
    %v1835 = vmax.f32 %v1580, 0.0
    %v1836 = vmax.f32 %v1582, 0.0
    %v1837 = vmax.f32 %v1585, 0.0
    %v1838 = vmax.f32 %v1587, 0.0
    %v1839 = vmax.f32 %v1590, 0.0
    %v1840 = vmax.f32 %v1592, 0.0
    %v1841 = vmax.f32 %v1595, 0.0
    %v1842 = vmax.f32 %v1597, 0.0
    %v1843 = vmax.f32 %v1600, 0.0
    %v1844 = vmax.f32 %v1602, 0.0
    %v1845 = vmax.f32 %v1605, 0.0
    %v1846 = vmax.f32 %v1607, 0.0
    %v1847 = vmax.f32 %v1610, 0.0
    %v1848 = vmax.f32 %v1612, 0.0
    %v1849 = vmax.f32 %v1615, 0.0
    %v1850 = vmax.f32 %v1617, 0.0
    %v1851 = vmax.f32 %v1620, 0.0
    %v1852 = vmax.f32 %v1622, 0.0
    %v1853 = vmax.f32 %v1625, 0.0
    %v1854 = vmax.f32 %v1627, 0.0
    %v1855 = vmax.f32 %v1630, 0.0
    %v1856 = vmax.f32 %v1632, 0.0
    %v1857 = vmax.f32 %v1635, 0.0
    %v1858 = vmax.f32 %v1637, 0.0
    %v1859 = vmax.f32 %v1640, 0.0
    %v1860 = vmax.f32 %v1642, 0.0
    %v1861 = vmax.f32 %v1645, 0.0
    %v1862 = vmax.f32 %v1647, 0.0
    %v1863 = vmax.f32 %v1650, 0.0
    %vm1864 = vcmask 261120
    %1865 = vst.msk [vmem:[%s3] sm:$0xff] %vm1864, %v1653
    %1866 = vst.msk [vmem:[%s3 + $0x8] sm:$0xff] %vm1864, %v1654
    %1867 = vst.msk [vmem:[%s3 + $0x10] sm:$0xff] %vm1864, %v1655
    %1868 = vst.msk [vmem:[%s3 + $0x18] sm:$0xff] %vm1864, %v1656
    %1869 = vst.msk [vmem:[%s3 + $0x20] sm:$0xff] %vm1864, %v1657
    %1870 = vst.msk [vmem:[%s3 + $0x28] sm:$0xff] %vm1864, %v1658
    %1871 = vst.msk [vmem:[%s3 + $0x30] sm:$0xff] %vm1864, %v1659
    %1872 = vst.msk [vmem:[%s3 + $0x38] sm:$0xff] %vm1864, %v1660
    %1873 = vst.msk [vmem:[%s3 + $0x40] sm:$0xff] %vm1864, %v1661
    %1874 = vst.msk [vmem:[%s3 + $0x48] sm:$0xff] %vm1864, %v1662
    %1875 = vst.msk [vmem:[%s3 + $0x50] sm:$0xff] %vm1864, %v1663
    %1876 = vst.msk [vmem:[%s3 + $0x58] sm:$0xff] %vm1864, %v1664
    %1877 = vst.msk [vmem:[%s3 + $0x60] sm:$0xff] %vm1864, %v1665
    %1878 = vst.msk [vmem:[%s3 + $0x68] sm:$0xff] %vm1864, %v1666
    %1879 = vst.msk [vmem:[%s3 + $0x70] sm:$0xff] %vm1864, %v1667
    %1880 = vst.msk [vmem:[%s3 + $0x78] sm:$0xff] %vm1864, %v1668
    %1881 = vst.msk [vmem:[%s3 + $0x80] sm:$0xff] %vm1864, %v1669
    %1882 = vst.msk [vmem:[%s3 + $0x88] sm:$0xff] %vm1864, %v1670
    %1883 = vst.msk [vmem:[%s3 + $0x90] sm:$0xff] %vm1864, %v1671
    %1884 = vst.msk [vmem:[%s3 + $0x98] sm:$0xff] %vm1864, %v1672
    %1885 = vst.msk [vmem:[%s3 + $0xa0] sm:$0xff] %vm1864, %v1673
    %1886 = vst.msk [vmem:[%s3 + $0xa8] sm:$0xff] %vm1864, %v1674
    %1887 = vst.msk [vmem:[%s3 + $0xb0] sm:$0xff] %vm1864, %v1675
    %1888 = vst.msk [vmem:[%s3 + $0xb8] sm:$0xff] %vm1864, %v1676
    %1889 = vst.msk [vmem:[%s3 + $0xc0] sm:$0xff] %vm1864, %v1677
    %1890 = vst.msk [vmem:[%s3 + $0xc8] sm:$0xff] %vm1864, %v1678
    %1891 = vst.msk [vmem:[%s3 + $0xd0] sm:$0xff] %vm1864, %v1679
    %1892 = vst.msk [vmem:[%s3 + $0xd8] sm:$0xff] %vm1864, %v1680
    %1893 = vst.msk [vmem:[%s3 + $0xe0] sm:$0xff] %vm1864, %v1681
    %1894 = vst.msk [vmem:[%s3 + $0xe8] sm:$0xff] %vm1864, %v1682
    %1895 = vst.msk [vmem:[%s3 + $0xf0] sm:$0xff] %vm1864, %v1683
    %1896 = vst.msk [vmem:[%s3 + $0xf8] sm:$0xff] %vm1864, %v1684
    %1897 = vst.msk [vmem:[%s3 + $0x100] sm:$0xff] %vm1864, %v1685
    %1898 = vst.msk [vmem:[%s3 + $0x108] sm:$0xff] %vm1864, %v1686
    %1899 = vst.msk [vmem:[%s3 + $0x110] sm:$0xff] %vm1864, %v1687
    %1900 = vst.msk [vmem:[%s3 + $0x118] sm:$0xff] %vm1864, %v1688
    %1901 = vst.msk [vmem:[%s3 + $0x120] sm:$0xff] %vm1864, %v1689
    %1902 = vst.msk [vmem:[%s3 + $0x128] sm:$0xff] %vm1864, %v1690
    %1903 = vst.msk [vmem:[%s3 + $0x130] sm:$0xff] %vm1864, %v1691
    %1904 = vst.msk [vmem:[%s3 + $0x138] sm:$0xff] %vm1864, %v1692
    %1905 = vst.msk [vmem:[%s3 + $0x140] sm:$0xff] %vm1864, %v1693
    %1906 = vst.msk [vmem:[%s3 + $0x148] sm:$0xff] %vm1864, %v1694
    %1907 = vst.msk [vmem:[%s3 + $0x150] sm:$0xff] %vm1864, %v1695
    %1908 = vst.msk [vmem:[%s3 + $0x158] sm:$0xff] %vm1864, %v1696
    %1909 = vst.msk [vmem:[%s3 + $0x160] sm:$0xff] %vm1864, %v1697
    %1910 = vst.msk [vmem:[%s3 + $0x168] sm:$0xff] %vm1864, %v1698
    %1911 = vst.msk [vmem:[%s3 + $0x170] sm:$0xff] %vm1864, %v1699
    %1912 = vst.msk [vmem:[%s3 + $0x178] sm:$0xff] %vm1864, %v1700
    %1913 = vst.msk [vmem:[%s3 + $0x180] sm:$0xff] %vm1864, %v1701
    %1914 = vst.msk [vmem:[%s3 + $0x188] sm:$0xff] %vm1864, %v1702
    %1915 = vst.msk [vmem:[%s3 + $0x190] sm:$0xff] %vm1864, %v1703
    %1916 = vst.msk [vmem:[%s3 + $0x198] sm:$0xff] %vm1864, %v1704
    %1917 = vst.msk [vmem:[%s3 + $0x1a0] sm:$0xff] %vm1864, %v1705
    %1918 = vst.msk [vmem:[%s3 + $0x1a8] sm:$0xff] %vm1864, %v1706
    %1919 = vst.msk [vmem:[%s3 + $0x1b0] sm:$0xff] %vm1864, %v1707
    %1920 = vst.msk [vmem:[%s3 + $0x1b8] sm:$0xff] %vm1864, %v1708
    %1921 = vst.msk [vmem:[%s3 + $0x1c0] sm:$0xff] %vm1864, %v1709
    %1922 = vst.msk [vmem:[%s3 + $0x1c8] sm:$0xff] %vm1864, %v1710
    %1923 = vst.msk [vmem:[%s3 + $0x1d0] sm:$0xff] %vm1864, %v1711
    %1924 = vst.msk [vmem:[%s3 + $0x1d8] sm:$0xff] %vm1864, %v1712
    %1925 = vst.msk [vmem:[%s3 + $0x1e0] sm:$0xff] %vm1864, %v1713
    %1926 = vst.msk [vmem:[%s3 + $0x1e8] sm:$0xff] %vm1864, %v1714
    %1927 = vst.msk [vmem:[%s3 + $0x1f0] sm:$0xff] %vm1864, %v1715
    %1928 = vst.msk [vmem:[%s3 + $0x1f8] sm:$0xff] %vm1864, %v1716
    %1929 = vst.msk [vmem:[%s3 + $0x200] sm:$0xff] %vm1864, %v1717
    %1930 = vst.msk [vmem:[%s3 + $0x208] sm:$0xff] %vm1864, %v1718
    %1931 = vst.msk [vmem:[%s3 + $0x210] sm:$0xff] %vm1864, %v1719
    %1932 = vst.msk [vmem:[%s3 + $0x218] sm:$0xff] %vm1864, %v1720
    %1933 = vst.msk [vmem:[%s3 + $0x220] sm:$0xff] %vm1864, %v1721
    %1934 = vst.msk [vmem:[%s3 + $0x228] sm:$0xff] %vm1864, %v1722
    %1935 = vst.msk [vmem:[%s3 + $0x230] sm:$0xff] %vm1864, %v1723
    %1936 = vst.msk [vmem:[%s3 + $0x238] sm:$0xff] %vm1864, %v1724
    %1937 = vst.msk [vmem:[%s3 + $0x240] sm:$0xff] %vm1864, %v1725
    %1938 = vst.msk [vmem:[%s3 + $0x248] sm:$0xff] %vm1864, %v1726
    %1939 = vst.msk [vmem:[%s3 + $0x250] sm:$0xff] %vm1864, %v1727
    %1940 = vst.msk [vmem:[%s3 + $0x258] sm:$0xff] %vm1864, %v1728
    %1941 = vst.msk [vmem:[%s3 + $0x260] sm:$0xff] %vm1864, %v1729
    %1942 = vst.msk [vmem:[%s3 + $0x268] sm:$0xff] %vm1864, %v1730
    %1943 = vst.msk [vmem:[%s3 + $0x270] sm:$0xff] %vm1864, %v1731
    %1944 = vst.msk [vmem:[%s3 + $0x278] sm:$0xff] %vm1864, %v1732
    %1945 = vst.msk [vmem:[%s3 + $0x280] sm:$0xff] %vm1864, %v1733
    %1946 = vst.msk [vmem:[%s3 + $0x288] sm:$0xff] %vm1864, %v1734
    %1947 = vst.msk [vmem:[%s3 + $0x290] sm:$0xff] %vm1864, %v1735
    %1948 = vst.msk [vmem:[%s3 + $0x298] sm:$0xff] %vm1864, %v1736
    %1949 = vst.msk [vmem:[%s3 + $0x2a0] sm:$0xff] %vm1864, %v1737
    %1950 = vst.msk [vmem:[%s3 + $0x2a8] sm:$0xff] %vm1864, %v1738
    %1951 = vst.msk [vmem:[%s3 + $0x2b0] sm:$0xff] %vm1864, %v1739
    %1952 = vst.msk [vmem:[%s3 + $0x2b8] sm:$0xff] %vm1864, %v1740
    %1953 = vst.msk [vmem:[%s3 + $0x2c0] sm:$0xff] %vm1864, %v1741
    %1954 = vst.msk [vmem:[%s3 + $0x2c8] sm:$0xff] %vm1864, %v1742
    %1955 = vst.msk [vmem:[%s3 + $0x2d0] sm:$0xff] %vm1864, %v1743
    %1956 = vst.msk [vmem:[%s3 + $0x2d8] sm:$0xff] %vm1864, %v1744
    %1957 = vst.msk [vmem:[%s3 + $0x2e0] sm:$0xff] %vm1864, %v1745
    %1958 = vst.msk [vmem:[%s3 + $0x2e8] sm:$0xff] %vm1864, %v1746
    %1959 = vst.msk [vmem:[%s3 + $0x2f0] sm:$0xff] %vm1864, %v1747
    %1960 = vst.msk [vmem:[%s3 + $0x2f8] sm:$0xff] %vm1864, %v1748
    %1961 = vst.msk [vmem:[%s3 + $0x300] sm:$0xff] %vm1864, %v1749
    %1962 = vst.msk [vmem:[%s3 + $0x308] sm:$0xff] %vm1864, %v1750
    %1963 = vst.msk [vmem:[%s3 + $0x310] sm:$0xff] %vm1864, %v1751
    %1964 = vst.msk [vmem:[%s3 + $0x318] sm:$0xff] %vm1864, %v1752
    %1965 = vst.msk [vmem:[%s3 + $0x320] sm:$0xff] %vm1864, %v1753
    %1966 = vst.msk [vmem:[%s3 + $0x328] sm:$0xff] %vm1864, %v1754
    %1967 = vst.msk [vmem:[%s3 + $0x330] sm:$0xff] %vm1864, %v1755
    %1968 = vst.msk [vmem:[%s3 + $0x338] sm:$0xff] %vm1864, %v1756
    %1969 = vst.msk [vmem:[%s3 + $0x340] sm:$0xff] %vm1864, %v1757
    %1970 = vst.msk [vmem:[%s3 + $0x348] sm:$0xff] %vm1864, %v1758
    %1971 = vst.msk [vmem:[%s3 + $0x350] sm:$0xff] %vm1864, %v1759
    %1972 = vst.msk [vmem:[%s3 + $0x358] sm:$0xff] %vm1864, %v1760
    %1973 = vst.msk [vmem:[%s3 + $0x360] sm:$0xff] %vm1864, %v1761
    %1974 = vst.msk [vmem:[%s3 + $0x368] sm:$0xff] %vm1864, %v1762
    %1975 = vst.msk [vmem:[%s3 + $0x370] sm:$0xff] %vm1864, %v1763
    %1976 = vst.msk [vmem:[%s3 + $0x378] sm:$0xff] %vm1864, %v1764
    %1977 = vst.msk [vmem:[%s3 + $0x380] sm:$0xff] %vm1864, %v1765
    %1978 = vst.msk [vmem:[%s3 + $0x388] sm:$0xff] %vm1864, %v1766
    %1979 = vst.msk [vmem:[%s3 + $0x390] sm:$0xff] %vm1864, %v1767
    %1980 = vst.msk [vmem:[%s3 + $0x398] sm:$0xff] %vm1864, %v1768
    %1981 = vst.msk [vmem:[%s3 + $0x3a0] sm:$0xff] %vm1864, %v1769
    %1982 = vst.msk [vmem:[%s3 + $0x3a8] sm:$0xff] %vm1864, %v1770
    %1983 = vst.msk [vmem:[%s3 + $0x3b0] sm:$0xff] %vm1864, %v1771
    %1984 = vst.msk [vmem:[%s3 + $0x3b8] sm:$0xff] %vm1864, %v1772
    %1985 = vst.msk [vmem:[%s3 + $0x3c0] sm:$0xff] %vm1864, %v1773
    %1986 = vst.msk [vmem:[%s3 + $0x3c8] sm:$0xff] %vm1864, %v1774
    %1987 = vst.msk [vmem:[%s3 + $0x3d0] sm:$0xff] %vm1864, %v1775
    %1988 = vst.msk [vmem:[%s3 + $0x3d8] sm:$0xff] %vm1864, %v1776
    %1989 = vst.msk [vmem:[%s3 + $0x3e0] sm:$0xff] %vm1864, %v1777
    %1990 = vst.msk [vmem:[%s3 + $0x3e8] sm:$0xff] %vm1864, %v1778
    %1991 = vst.msk [vmem:[%s3 + $0x3f0] sm:$0xff] %vm1864, %v1779
    %1992 = vst.msk [vmem:[%s3 + $0x3f8] sm:$0xff] %vm1864, %v1780
    %1993 = vst.msk [vmem:[%s3 + $0x400] sm:$0xff] %vm1864, %v1781
    %1994 = vst.msk [vmem:[%s3 + $0x408] sm:$0xff] %vm1864, %v1782
    %1995 = vst.msk [vmem:[%s3 + $0x410] sm:$0xff] %vm1864, %v1783
    %1996 = vst.msk [vmem:[%s3 + $0x418] sm:$0xff] %vm1864, %v1784
    %1997 = vst.msk [vmem:[%s3 + $0x420] sm:$0xff] %vm1864, %v1785
    %1998 = vst.msk [vmem:[%s3 + $0x428] sm:$0xff] %vm1864, %v1786
    %1999 = vst.msk [vmem:[%s3 + $0x430] sm:$0xff] %vm1864, %v1787
    %2000 = vst.msk [vmem:[%s3 + $0x438] sm:$0xff] %vm1864, %v1788
    %2001 = vst.msk [vmem:[%s3 + $0x440] sm:$0xff] %vm1864, %v1789
    %2002 = vst.msk [vmem:[%s3 + $0x448] sm:$0xff] %vm1864, %v1790
    %2003 = vst.msk [vmem:[%s3 + $0x450] sm:$0xff] %vm1864, %v1791
    %2004 = vst.msk [vmem:[%s3 + $0x458] sm:$0xff] %vm1864, %v1792
    %2005 = vst.msk [vmem:[%s3 + $0x460] sm:$0xff] %vm1864, %v1793
    %2006 = vst.msk [vmem:[%s3 + $0x468] sm:$0xff] %vm1864, %v1794
    %2007 = vst.msk [vmem:[%s3 + $0x470] sm:$0xff] %vm1864, %v1795
    %2008 = vst.msk [vmem:[%s3 + $0x478] sm:$0xff] %vm1864, %v1796
    %2009 = vst.msk [vmem:[%s3 + $0x480] sm:$0xff] %vm1864, %v1797
    %2010 = vst.msk [vmem:[%s3 + $0x488] sm:$0xff] %vm1864, %v1798
    %2011 = vst.msk [vmem:[%s3 + $0x490] sm:$0xff] %vm1864, %v1799
    %2012 = vst.msk [vmem:[%s3 + $0x498] sm:$0xff] %vm1864, %v1800
    %2013 = vst.msk [vmem:[%s3 + $0x4a0] sm:$0xff] %vm1864, %v1801
    %2014 = vst.msk [vmem:[%s3 + $0x4a8] sm:$0xff] %vm1864, %v1802
    %2015 = vst.msk [vmem:[%s3 + $0x4b0] sm:$0xff] %vm1864, %v1803
    %2016 = vst.msk [vmem:[%s3 + $0x4b8] sm:$0xff] %vm1864, %v1804
    %2017 = vst.msk [vmem:[%s3 + $0x4c0] sm:$0xff] %vm1864, %v1805
    %2018 = vst.msk [vmem:[%s3 + $0x4c8] sm:$0xff] %vm1864, %v1806
    %2019 = vst.msk [vmem:[%s3 + $0x4d0] sm:$0xff] %vm1864, %v1807
    %2020 = vst.msk [vmem:[%s3 + $0x4d8] sm:$0xff] %vm1864, %v1808
    %2021 = vst.msk [vmem:[%s3 + $0x4e0] sm:$0xff] %vm1864, %v1809
    %2022 = vst.msk [vmem:[%s3 + $0x4e8] sm:$0xff] %vm1864, %v1810
    %2023 = vst.msk [vmem:[%s3 + $0x4f0] sm:$0xff] %vm1864, %v1811
    %2024 = vst.msk [vmem:[%s3 + $0x4f8] sm:$0xff] %vm1864, %v1812
    %2025 = vst.msk [vmem:[%s3 + $0x500] sm:$0xff] %vm1864, %v1813
    %2026 = vst.msk [vmem:[%s3 + $0x508] sm:$0xff] %vm1864, %v1814
    %2027 = vst.msk [vmem:[%s3 + $0x510] sm:$0xff] %vm1864, %v1815
    %2028 = vst.msk [vmem:[%s3 + $0x518] sm:$0xff] %vm1864, %v1816
    %2029 = vst.msk [vmem:[%s3 + $0x520] sm:$0xff] %vm1864, %v1817
    %2030 = vst.msk [vmem:[%s3 + $0x528] sm:$0xff] %vm1864, %v1818
    %2031 = vst.msk [vmem:[%s3 + $0x530] sm:$0xff] %vm1864, %v1819
    %2032 = vst.msk [vmem:[%s3 + $0x538] sm:$0xff] %vm1864, %v1820
    %2033 = vst.msk [vmem:[%s3 + $0x540] sm:$0xff] %vm1864, %v1821
    %2034 = vst.msk [vmem:[%s3 + $0x548] sm:$0xff] %vm1864, %v1822
    %2035 = vst.msk [vmem:[%s3 + $0x550] sm:$0xff] %vm1864, %v1823
    %2036 = vst.msk [vmem:[%s3 + $0x558] sm:$0xff] %vm1864, %v1824
    %2037 = vst.msk [vmem:[%s3 + $0x560] sm:$0xff] %vm1864, %v1825
    %2038 = vst.msk [vmem:[%s3 + $0x568] sm:$0xff] %vm1864, %v1826
    %2039 = vst.msk [vmem:[%s3 + $0x570] sm:$0xff] %vm1864, %v1827
    %2040 = vst.msk [vmem:[%s3 + $0x578] sm:$0xff] %vm1864, %v1828
    %2041 = vst.msk [vmem:[%s3 + $0x580] sm:$0xff] %vm1864, %v1829
    %2042 = vst.msk [vmem:[%s3 + $0x588] sm:$0xff] %vm1864, %v1830
    %2043 = vst.msk [vmem:[%s3 + $0x590] sm:$0xff] %vm1864, %v1831
    %2044 = vst.msk [vmem:[%s3 + $0x598] sm:$0xff] %vm1864, %v1832
    %2045 = vst.msk [vmem:[%s3 + $0x5a0] sm:$0xff] %vm1864, %v1833
    %2046 = vst.msk [vmem:[%s3 + $0x5a8] sm:$0xff] %vm1864, %v1834
    %2047 = vst.msk [vmem:[%s3 + $0x5b0] sm:$0xff] %vm1864, %v1835
    %2048 = vst.msk [vmem:[%s3 + $0x5b8] sm:$0xff] %vm1864, %v1836
    %2049 = vst.msk [vmem:[%s3 + $0x5c0] sm:$0xff] %vm1864, %v1837
    %2050 = vst.msk [vmem:[%s3 + $0x5c8] sm:$0xff] %vm1864, %v1838
    %2051 = vst.msk [vmem:[%s3 + $0x5d0] sm:$0xff] %vm1864, %v1839
    %2052 = vst.msk [vmem:[%s3 + $0x5d8] sm:$0xff] %vm1864, %v1840
    %2053 = vst.msk [vmem:[%s3 + $0x5e0] sm:$0xff] %vm1864, %v1841
    %2054 = vst.msk [vmem:[%s3 + $0x5e8] sm:$0xff] %vm1864, %v1842
    %2055 = vst.msk [vmem:[%s3 + $0x5f0] sm:$0xff] %vm1864, %v1843
    %2056 = vst.msk [vmem:[%s3 + $0x5f8] sm:$0xff] %vm1864, %v1844
    %2057 = vst.msk [vmem:[%s3 + $0x600] sm:$0xff] %vm1864, %v1845
    %2058 = vst.msk [vmem:[%s3 + $0x608] sm:$0xff] %vm1864, %v1846
    %2059 = vst.msk [vmem:[%s3 + $0x610] sm:$0xff] %vm1864, %v1847
    %2060 = vst.msk [vmem:[%s3 + $0x618] sm:$0xff] %vm1864, %v1848
    %2061 = vst.msk [vmem:[%s3 + $0x620] sm:$0xff] %vm1864, %v1849
    %2062 = vst.msk [vmem:[%s3 + $0x628] sm:$0xff] %vm1864, %v1850
    %2063 = vst.msk [vmem:[%s3 + $0x630] sm:$0xff] %vm1864, %v1851
    %2064 = vst.msk [vmem:[%s3 + $0x638] sm:$0xff] %vm1864, %v1852
    %2065 = vst.msk [vmem:[%s3 + $0x640] sm:$0xff] %vm1864, %v1853
    %2066 = vst.msk [vmem:[%s3 + $0x648] sm:$0xff] %vm1864, %v1854
    %2067 = vst.msk [vmem:[%s3 + $0x650] sm:$0xff] %vm1864, %v1855
    %2068 = vst.msk [vmem:[%s3 + $0x658] sm:$0xff] %vm1864, %v1856
    %2069 = vst.msk [vmem:[%s3 + $0x660] sm:$0xff] %vm1864, %v1857
    %2070 = vst.msk [vmem:[%s3 + $0x668] sm:$0xff] %vm1864, %v1858
    %2071 = vst.msk [vmem:[%s3 + $0x670] sm:$0xff] %vm1864, %v1859
    %2072 = vst.msk [vmem:[%s3 + $0x678] sm:$0xff] %vm1864, %v1860
    %2073 = vst.msk [vmem:[%s3 + $0x680] sm:$0xff] %vm1864, %v1861
    %2074 = vst.msk [vmem:[%s3 + $0x688] sm:$0xff] %vm1864, %v1862
    %vm2075 = vcmask 254976
    %2076 = vst.msk [vmem:[%s3 + $0x690] sm:$0x3] %vm2075, %v1863
    // Predicated region
    $region22: #{vae_forward.9} parent=1 // pred_check
      _
    $region23: #{vae_forward.9} parent=1 // pred_check_branch
      %2078 = sbr.rel (0) target = $region25
    $region24: #{vae_forward.9} parent=1 // pred_region
      _
    $region25: #{vae_forward.9} parent=1 // pred_fallthru
      _
    // Predicated region
    $region26: #{vae_forward.9} parent=1 // pred_check
      _
    $region27: #{vae_forward.9} parent=1 // pred_check_branch
      %2080 = sbr.rel (0) target = $region29
    $region28: #{vae_forward.9} parent=1 // pred_region
      _
    $region29: #{vae_forward.9} parent=1 // pred_fallthru
      _
    %2081 = vsyncpa [#allocation3], 1
    %2082 = vsyncpa [#allocation5], 1

// kernel: vae_forward.10
$region0: #{vae_forward.10}
  #allocation0 [shape = 'u32[]', space=smem, size = 0x4, offset = 0x4, fixed_abs, tag = 'smem constant byte address 0x4 - core index']
  #allocation1 [shape = 'u32[72,128]{1,0:T(1,128)}', space=vmem, size = 0x9000, scoped, tag = 'internal scratch']
  %s0 = inlined_call_operand.vmem [shape: bf16[392,512], index: 0, kind: input, shape index: {}]
  %s1 = inlined_call_operand.vmem [shape: bf16[512,32], index: 1, kind: input, shape index: {}]
  %s2 = inlined_call_operand.vmem [shape: f32[1,32], index: 2, kind: input, shape index: {}]
  %s3 = inlined_call_operand.vmem [shape: f32[392,32], index: 3, kind: output, shape index: {}]
  %s4 = sld [smem:[#allocation0]]
  $region22: #{vae_forward.10} parent=0
    _
  %s6 = ssub.s32 1, %s4
  %s7 = scalar_select 0, %s6, %s4
  // Predicated region
  $region2: #{vae_forward.10} parent=0 // pred_check
    _
  $region3: #{vae_forward.10} parent=0 // pred_check_branch
    %9 = sbr.rel (0) target = $region5
  $region4: #{vae_forward.10} parent=0 // pred_region
    _
  $region5: #{vae_forward.10} parent=0 // pred_fallthru
    _
  // Predicated region
  $region6: #{vae_forward.10} parent=0 // pred_check
    _
  $region7: #{vae_forward.10} parent=0 // pred_check_branch
    %11 = sbr.rel (0) target = $region9
  $region8: #{vae_forward.10} parent=0 // pred_region
    _
  $region9: #{vae_forward.10} parent=0 // pred_fallthru
    _
  // Predicated region
  $region10: #{vae_forward.10} parent=0 // pred_check
    _
  $region11: #{vae_forward.10} parent=0 // pred_check_branch
    %13 = sbr.rel (0) target = $region13
  $region12: #{vae_forward.10} parent=0 // pred_region
    _
  $region13: #{vae_forward.10} parent=0 // pred_fallthru
    _
  %v14 = vld [vmem:[%s0] sm:$0xff]
  %v15 = vld [vmem:[%s0 + $0x8] sm:$0xff]
  %v16 = vld [vmem:[%s0 + $0x10] sm:$0xff]
  %v17 = vld [vmem:[%s0 + $0x18] sm:$0xff]
  %v18 = vld [vmem:[%s0 + $0x20] sm:$0xff]
  %v19 = vld [vmem:[%s0 + $0x28] sm:$0xff]
  %v20 = vld [vmem:[%s0 + $0x30] sm:$0xff]
  %v21 = vld [vmem:[%s0 + $0x38] sm:$0xff]
  %v22 = vld [vmem:[%s0 + $0x40] sm:$0xff]
  %v23 = vld [vmem:[%s0 + $0x48] sm:$0xff]
  %v24 = vld [vmem:[%s0 + $0x50] sm:$0xff]
  %v25 = vld [vmem:[%s0 + $0x58] sm:$0xff]
  %v26 = vld [vmem:[%s0 + $0x60] sm:$0xff]
  %v27 = vld [vmem:[%s0 + $0x68] sm:$0xff]
  %v28 = vld [vmem:[%s0 + $0x70] sm:$0xff]
  %v29 = vld [vmem:[%s0 + $0x78] sm:$0xff]
  %v30 = vld [vmem:[%s0 + $0x80] sm:$0xff]
  %v31 = vld [vmem:[%s0 + $0x88] sm:$0xff]
  %v32 = vld [vmem:[%s0 + $0x90] sm:$0xff]
  %v33 = vld [vmem:[%s0 + $0x98] sm:$0xff]
  %v34 = vld [vmem:[%s0 + $0xa0] sm:$0xff]
  %v35 = vld [vmem:[%s0 + $0xa8] sm:$0xff]
  %v36 = vld [vmem:[%s0 + $0xb0] sm:$0xff]
  %v37 = vld [vmem:[%s0 + $0xb8] sm:$0xff]
  %v38 = vld [vmem:[%s0 + $0xc0] sm:$0xff]
  %v39 = vld [vmem:[%s0 + $0xc8] sm:$0xff]
  %v40 = vld [vmem:[%s0 + $0xd0] sm:$0xff]
  %v41 = vld [vmem:[%s0 + $0xd8] sm:$0xff]
  %v42 = vld [vmem:[%s0 + $0xe0] sm:$0xff]
  %v43 = vld [vmem:[%s0 + $0xe8] sm:$0xff]
  %v44 = vld [vmem:[%s0 + $0xf0] sm:$0xff]
  %v45 = vld [vmem:[%s0 + $0xf8] sm:$0xff]
  %v46 = vld [vmem:[%s0 + $0x100] sm:$0xff]
  %v47 = vld [vmem:[%s0 + $0x108] sm:$0xff]
  %v48 = vld [vmem:[%s0 + $0x110] sm:$0xff]
  %v49 = vld [vmem:[%s0 + $0x118] sm:$0xff]
  %v50 = vld [vmem:[%s0 + $0x120] sm:$0xff]
  %v51 = vld [vmem:[%s0 + $0x128] sm:$0xff]
  %v52 = vld [vmem:[%s0 + $0x130] sm:$0xff]
  %v53 = vld [vmem:[%s0 + $0x138] sm:$0xff]
  %v54 = vld [vmem:[%s0 + $0x140] sm:$0xff]
  %v55 = vld [vmem:[%s0 + $0x148] sm:$0xff]
  %v56 = vld [vmem:[%s0 + $0x150] sm:$0xff]
  %v57 = vld [vmem:[%s0 + $0x158] sm:$0xff]
  %v58 = vld [vmem:[%s0 + $0x160] sm:$0xff]
  %v59 = vld [vmem:[%s0 + $0x168] sm:$0xff]
  %v60 = vld [vmem:[%s0 + $0x170] sm:$0xff]
  %v61 = vld [vmem:[%s0 + $0x178] sm:$0xff]
  %v62 = vld [vmem:[%s0 + $0x180] sm:$0xff]
  %v63 = vld [vmem:[%s0 + $0x188] sm:$0xff]
  %v64 = vld [vmem:[%s0 + $0x190] sm:$0xff]
  %v65 = vld [vmem:[%s0 + $0x198] sm:$0xff]
  %v66 = vld [vmem:[%s0 + $0x1a0] sm:$0xff]
  %v67 = vld [vmem:[%s0 + $0x1a8] sm:$0xff]
  %v68 = vld [vmem:[%s0 + $0x1b0] sm:$0xff]
  %v69 = vld [vmem:[%s0 + $0x1b8] sm:$0xff]
  %v70 = vld [vmem:[%s0 + $0x1c0] sm:$0xff]
  %v71 = vld [vmem:[%s0 + $0x1c8] sm:$0xff]
  %v72 = vld [vmem:[%s0 + $0x1d0] sm:$0xff]
  %v73 = vld [vmem:[%s0 + $0x1d8] sm:$0xff]
  %v74 = vld [vmem:[%s0 + $0x1e0] sm:$0xff]
  %v75 = vld [vmem:[%s0 + $0x1e8] sm:$0xff]
  %v76 = vld [vmem:[%s0 + $0x1f0] sm:$0xff]
  %v77 = vld [vmem:[%s0 + $0x1f8] sm:$0xff]
  %v78 = vld [vmem:[%s0 + $0x200] sm:$0xff]
  %v79 = vld [vmem:[%s0 + $0x208] sm:$0xff]
  %v80 = vld [vmem:[%s0 + $0x210] sm:$0xff]
  %v81 = vld [vmem:[%s0 + $0x218] sm:$0xff]
  %v82 = vld [vmem:[%s0 + $0x220] sm:$0xff]
  %v83 = vld [vmem:[%s0 + $0x228] sm:$0xff]
  %v84 = vld [vmem:[%s0 + $0x230] sm:$0xff]
  %v85 = vld [vmem:[%s0 + $0x238] sm:$0xff]
  %v86 = vld [vmem:[%s0 + $0x240] sm:$0xff]
  %v87 = vld [vmem:[%s0 + $0x248] sm:$0xff]
  %v88 = vld [vmem:[%s0 + $0x250] sm:$0xff]
  %v89 = vld [vmem:[%s0 + $0x258] sm:$0xff]
  %v90 = vld [vmem:[%s0 + $0x260] sm:$0xff]
  %v91 = vld [vmem:[%s0 + $0x268] sm:$0xff]
  %v92 = vld [vmem:[%s0 + $0x270] sm:$0xff]
  %v93 = vld [vmem:[%s0 + $0x278] sm:$0xff]
  %v94 = vld [vmem:[%s0 + $0x280] sm:$0xff]
  %v95 = vld [vmem:[%s0 + $0x288] sm:$0xff]
  %v96 = vld [vmem:[%s0 + $0x290] sm:$0xff]
  %v97 = vld [vmem:[%s0 + $0x298] sm:$0xff]
  %v98 = vld [vmem:[%s0 + $0x2a0] sm:$0xff]
  %v99 = vld [vmem:[%s0 + $0x2a8] sm:$0xff]
  %v100 = vld [vmem:[%s0 + $0x2b0] sm:$0xff]
  %v101 = vld [vmem:[%s0 + $0x2b8] sm:$0xff]
  %v102 = vld [vmem:[%s0 + $0x2c0] sm:$0xff]
  %v103 = vld [vmem:[%s0 + $0x2c8] sm:$0xff]
  %v104 = vld [vmem:[%s0 + $0x2d0] sm:$0xff]
  %v105 = vld [vmem:[%s0 + $0x2d8] sm:$0xff]
  %v106 = vld [vmem:[%s0 + $0x2e0] sm:$0xff]
  %v107 = vld [vmem:[%s0 + $0x2e8] sm:$0xff]
  %v108 = vld [vmem:[%s0 + $0x2f0] sm:$0xff]
  %v109 = vld [vmem:[%s0 + $0x2f8] sm:$0xff]
  %v110 = vld [vmem:[%s0 + $0x300] sm:$0xff]
  %v111 = vld [vmem:[%s0 + $0x308] sm:$0xff]
  %v112 = vld [vmem:[%s1] sm:$0xf]
  %v113 = vld [vmem:[%s1 + $0x4] sm:$0xf]
  %v114 = vld [vmem:[%s1 + $0x8] sm:$0xf]
  %v115 = vld [vmem:[%s1 + $0xc] sm:$0xf]
  %v116 = vld [vmem:[%s1 + $0x10] sm:$0xf]
  %v117 = vld [vmem:[%s1 + $0x14] sm:$0xf]
  %v118 = vld [vmem:[%s1 + $0x18] sm:$0xf]
  %v119 = vld [vmem:[%s1 + $0x1c] sm:$0xf]
  %v120 = vld [vmem:[%s1 + $0x20] sm:$0xf]
  %v121 = vld [vmem:[%s1 + $0x24] sm:$0xf]
  %v122 = vld [vmem:[%s1 + $0x28] sm:$0xf]
  %v123 = vld [vmem:[%s1 + $0x2c] sm:$0xf]
  %v124 = vld [vmem:[%s1 + $0x30] sm:$0xf]
  %v125 = vld [vmem:[%s1 + $0x34] sm:$0xf]
  %v126 = vld [vmem:[%s1 + $0x38] sm:$0xf]
  %v127 = vld [vmem:[%s1 + $0x3c] sm:$0xf]
  %v128 = vld [vmem:[%s1 + $0x40] sm:$0xf]
  %v129 = vld [vmem:[%s1 + $0x44] sm:$0xf]
  %v130 = vld [vmem:[%s1 + $0x48] sm:$0xf]
  %v131 = vld [vmem:[%s1 + $0x4c] sm:$0xf]
  %v132 = vld [vmem:[%s1 + $0x50] sm:$0xf]
  %v133 = vld [vmem:[%s1 + $0x54] sm:$0xf]
  %v134 = vld [vmem:[%s1 + $0x58] sm:$0xf]
  %v135 = vld [vmem:[%s1 + $0x5c] sm:$0xf]
  %v136 = vld [vmem:[%s1 + $0x60] sm:$0xf]
  %v137 = vld [vmem:[%s1 + $0x64] sm:$0xf]
  %v138 = vld [vmem:[%s1 + $0x68] sm:$0xf]
  %v139 = vld [vmem:[%s1 + $0x6c] sm:$0xf]
  %v140 = vld [vmem:[%s1 + $0x70] sm:$0xf]
  %v141 = vld [vmem:[%s1 + $0x74] sm:$0xf]
  %v142 = vld [vmem:[%s1 + $0x78] sm:$0xf]
  %v143 = vld [vmem:[%s1 + $0x7c] sm:$0xf]
  %v144 = vld [vmem:[%s1 + $0x80] sm:$0xf]
  %v145 = vld [vmem:[%s1 + $0x84] sm:$0xf]
  %v146 = vld [vmem:[%s1 + $0x88] sm:$0xf]
  %v147 = vld [vmem:[%s1 + $0x8c] sm:$0xf]
  %v148 = vld [vmem:[%s1 + $0x90] sm:$0xf]
  %v149 = vld [vmem:[%s1 + $0x94] sm:$0xf]
  %v150 = vld [vmem:[%s1 + $0x98] sm:$0xf]
  %v151 = vld [vmem:[%s1 + $0x9c] sm:$0xf]
  %v152 = vld [vmem:[%s1 + $0xa0] sm:$0xf]
  %v153 = vld [vmem:[%s1 + $0xa4] sm:$0xf]
  %v154 = vld [vmem:[%s1 + $0xa8] sm:$0xf]
  %v155 = vld [vmem:[%s1 + $0xac] sm:$0xf]
  %v156 = vld [vmem:[%s1 + $0xb0] sm:$0xf]
  %v157 = vld [vmem:[%s1 + $0xb4] sm:$0xf]
  %v158 = vld [vmem:[%s1 + $0xb8] sm:$0xf]
  %v159 = vld [vmem:[%s1 + $0xbc] sm:$0xf]
  %v160 = vld [vmem:[%s1 + $0xc0] sm:$0xf]
  %v161 = vld [vmem:[%s1 + $0xc4] sm:$0xf]
  %v162 = vld [vmem:[%s1 + $0xc8] sm:$0xf]
  %v163 = vld [vmem:[%s1 + $0xcc] sm:$0xf]
  %v164 = vld [vmem:[%s1 + $0xd0] sm:$0xf]
  %v165 = vld [vmem:[%s1 + $0xd4] sm:$0xf]
  %v166 = vld [vmem:[%s1 + $0xd8] sm:$0xf]
  %v167 = vld [vmem:[%s1 + $0xdc] sm:$0xf]
  %v168 = vld [vmem:[%s1 + $0xe0] sm:$0xf]
  %v169 = vld [vmem:[%s1 + $0xe4] sm:$0xf]
  %v170 = vld [vmem:[%s1 + $0xe8] sm:$0xf]
  %v171 = vld [vmem:[%s1 + $0xec] sm:$0xf]
  %v172 = vld [vmem:[%s1 + $0xf0] sm:$0xf]
  %v173 = vld [vmem:[%s1 + $0xf4] sm:$0xf]
  %v174 = vld [vmem:[%s1 + $0xf8] sm:$0xf]
  %v175 = vld [vmem:[%s1 + $0xfc] sm:$0xf]
  %v176 = vld [vmem:[%s2] sm:$0x1]
  %v178 = vperm.slane %v176, 0
  %v278 = vunpack.c.l.b16 %v14
  %v279 = vunpack.c.h.b16 %v14
  %v280 = vunpack.c.l.b16 %v15
  %v281 = vunpack.c.h.b16 %v15
  %v282 = vunpack.c.l.b16 %v16
  %v283 = vunpack.c.h.b16 %v16
  %v284 = vunpack.c.l.b16 %v17
  %v285 = vunpack.c.h.b16 %v17
  %v286 = vunpack.c.l.b16 %v18
  %v287 = vunpack.c.h.b16 %v18
  %v288 = vunpack.c.l.b16 %v19
  %v289 = vunpack.c.h.b16 %v19
  %v290 = vunpack.c.l.b16 %v20
  %v291 = vunpack.c.h.b16 %v20
  %v292 = vunpack.c.l.b16 %v21
  %v293 = vunpack.c.h.b16 %v21
  %v294 = vunpack.c.l.b16 %v22
  %v295 = vunpack.c.h.b16 %v22
  %v296 = vunpack.c.l.b16 %v23
  %v297 = vunpack.c.h.b16 %v23
  %v298 = vunpack.c.l.b16 %v24
  %v299 = vunpack.c.h.b16 %v24
  %v300 = vunpack.c.l.b16 %v25
  %v301 = vunpack.c.h.b16 %v25
  %v302 = vunpack.c.l.b16 %v26
  %v303 = vunpack.c.h.b16 %v26
  %v304 = vunpack.c.l.b16 %v27
  %v305 = vunpack.c.h.b16 %v27
  %v306 = vunpack.c.l.b16 %v28
  %v307 = vunpack.c.h.b16 %v28
  %v308 = vunpack.c.l.b16 %v29
  %v309 = vunpack.c.h.b16 %v29
  %v310 = vunpack.c.l.b16 %v30
  %v311 = vunpack.c.h.b16 %v30
  %v312 = vunpack.c.l.b16 %v31
  %v313 = vunpack.c.h.b16 %v31
  %v314 = vunpack.c.l.b16 %v32
  %v315 = vunpack.c.h.b16 %v32
  %v316 = vunpack.c.l.b16 %v33
  %v317 = vunpack.c.h.b16 %v33
  %v318 = vunpack.c.l.b16 %v34
  %v319 = vunpack.c.h.b16 %v34
  %v320 = vunpack.c.l.b16 %v35
  %v321 = vunpack.c.h.b16 %v35
  %v322 = vunpack.c.l.b16 %v36
  %v323 = vunpack.c.h.b16 %v36
  %v324 = vunpack.c.l.b16 %v37
  %v325 = vunpack.c.h.b16 %v37
  %v326 = vunpack.c.l.b16 %v38
  %v327 = vunpack.c.h.b16 %v38
  %v328 = vunpack.c.l.b16 %v39
  %v329 = vunpack.c.h.b16 %v39
  %v330 = vunpack.c.l.b16 %v40
  %v331 = vunpack.c.h.b16 %v40
  %v332 = vunpack.c.l.b16 %v41
  %v333 = vunpack.c.h.b16 %v41
  %v334 = vunpack.c.l.b16 %v42
  %v335 = vunpack.c.h.b16 %v42
  %v336 = vunpack.c.l.b16 %v43
  %v337 = vunpack.c.h.b16 %v43
  %v338 = vunpack.c.l.b16 %v44
  %v339 = vunpack.c.h.b16 %v44
  %v340 = vunpack.c.l.b16 %v45
  %v341 = vunpack.c.h.b16 %v45
  %v342 = vunpack.c.l.b16 %v46
  %v343 = vunpack.c.h.b16 %v46
  %v344 = vunpack.c.l.b16 %v47
  %v345 = vunpack.c.h.b16 %v47
  %v346 = vunpack.c.l.b16 %v48
  %v347 = vunpack.c.h.b16 %v48
  %v348 = vunpack.c.l.b16 %v49
  %v349 = vunpack.c.h.b16 %v49
  %v350 = vunpack.c.l.b16 %v50
  %v351 = vunpack.c.h.b16 %v50
  %v352 = vunpack.c.l.b16 %v51
  %v353 = vunpack.c.h.b16 %v51
  %v354 = vunpack.c.l.b16 %v52
  %v355 = vunpack.c.h.b16 %v52
  %v356 = vunpack.c.l.b16 %v53
  %v357 = vunpack.c.h.b16 %v53
  %v358 = vunpack.c.l.b16 %v54
  %v359 = vunpack.c.h.b16 %v54
  %v360 = vunpack.c.l.b16 %v55
  %v361 = vunpack.c.h.b16 %v55
  %v362 = vunpack.c.l.b16 %v56
  %v363 = vunpack.c.h.b16 %v56
  %v364 = vunpack.c.l.b16 %v57
  %v365 = vunpack.c.h.b16 %v57
  %v366 = vunpack.c.l.b16 %v58
  %v367 = vunpack.c.h.b16 %v58
  %v368 = vunpack.c.l.b16 %v59
  %v369 = vunpack.c.h.b16 %v59
  %v370 = vunpack.c.l.b16 %v60
  %v371 = vunpack.c.h.b16 %v60
  %v372 = vunpack.c.l.b16 %v61
  %v373 = vunpack.c.h.b16 %v61
  %v374 = vunpack.c.l.b16 %v62
  %v375 = vunpack.c.h.b16 %v62
  %v376 = vunpack.c.l.b16 %v63
  %v377 = vunpack.c.h.b16 %v63
  %v378 = vunpack.c.l.b16 %v64
  %v379 = vunpack.c.h.b16 %v64
  %v380 = vunpack.c.l.b16 %v65
  %v381 = vunpack.c.h.b16 %v65
  %v382 = vunpack.c.l.b16 %v66
  %v383 = vunpack.c.h.b16 %v66
  %v384 = vunpack.c.l.b16 %v67
  %v385 = vunpack.c.h.b16 %v67
  %v386 = vunpack.c.l.b16 %v68
  %v387 = vunpack.c.h.b16 %v68
  %v388 = vunpack.c.l.b16 %v69
  %v389 = vunpack.c.h.b16 %v69
  %v390 = vunpack.c.l.b16 %v70
  %v391 = vunpack.c.h.b16 %v70
  %v392 = vunpack.c.l.b16 %v71
  %v393 = vunpack.c.h.b16 %v71
  %v394 = vunpack.c.l.b16 %v72
  %v395 = vunpack.c.h.b16 %v72
  %v396 = vunpack.c.l.b16 %v73
  %v397 = vunpack.c.h.b16 %v73
  %v398 = vunpack.c.l.b16 %v74
  %v399 = vunpack.c.h.b16 %v74
  %v400 = vunpack.c.l.b16 %v75
  %v401 = vunpack.c.h.b16 %v75
  %v402 = vunpack.c.l.b16 %v76
  %v403 = vunpack.c.h.b16 %v76
  %v404 = vunpack.c.l.b16 %v77
  %v405 = vunpack.c.h.b16 %v77
  %v406 = vunpack.c.l.b16 %v78
  %v407 = vunpack.c.h.b16 %v78
  %v408 = vunpack.c.l.b16 %v79
  %v409 = vunpack.c.h.b16 %v79
  %v410 = vunpack.c.l.b16 %v80
  %v411 = vunpack.c.h.b16 %v80
  %v412 = vunpack.c.l.b16 %v81
  %v413 = vunpack.c.h.b16 %v81
  %v414 = vunpack.c.l.b16 %v82
  %v415 = vunpack.c.h.b16 %v82
  %v416 = vunpack.c.l.b16 %v83
  %v417 = vunpack.c.h.b16 %v83
  %v418 = vunpack.c.l.b16 %v84
  %v419 = vunpack.c.h.b16 %v84
  %v420 = vunpack.c.l.b16 %v85
  %v421 = vunpack.c.h.b16 %v85
  %v422 = vunpack.c.l.b16 %v86
  %v423 = vunpack.c.h.b16 %v86
  %v424 = vunpack.c.l.b16 %v87
  %v425 = vunpack.c.h.b16 %v87
  %v426 = vunpack.c.l.b16 %v88
  %v427 = vunpack.c.h.b16 %v88
  %v428 = vunpack.c.l.b16 %v89
  %v429 = vunpack.c.h.b16 %v89
  %v430 = vunpack.c.l.b16 %v90
  %v431 = vunpack.c.h.b16 %v90
  %v432 = vunpack.c.l.b16 %v91
  %v433 = vunpack.c.h.b16 %v91
  %v434 = vunpack.c.l.b16 %v92
  %v435 = vunpack.c.h.b16 %v92
  %v436 = vunpack.c.l.b16 %v93
  %v437 = vunpack.c.h.b16 %v93
  %v438 = vunpack.c.l.b16 %v94
  %v439 = vunpack.c.h.b16 %v94
  %v440 = vunpack.c.l.b16 %v95
  %v441 = vunpack.c.h.b16 %v95
  %v442 = vunpack.c.l.b16 %v96
  %v443 = vunpack.c.h.b16 %v96
  %v444 = vunpack.c.l.b16 %v97
  %v445 = vunpack.c.h.b16 %v97
  %v446 = vunpack.c.l.b16 %v98
  %v447 = vunpack.c.h.b16 %v98
  %v448 = vunpack.c.l.b16 %v99
  %v449 = vunpack.c.h.b16 %v99
  %v450 = vunpack.c.l.b16 %v100
  %v451 = vunpack.c.h.b16 %v100
  %v452 = vunpack.c.l.b16 %v101
  %v453 = vunpack.c.h.b16 %v101
  %v454 = vunpack.c.l.b16 %v102
  %v455 = vunpack.c.h.b16 %v102
  %v456 = vunpack.c.l.b16 %v103
  %v457 = vunpack.c.h.b16 %v103
  %v458 = vunpack.c.l.b16 %v104
  %v459 = vunpack.c.h.b16 %v104
  %v460 = vunpack.c.l.b16 %v105
  %v461 = vunpack.c.h.b16 %v105
  %v462 = vunpack.c.l.b16 %v106
  %v463 = vunpack.c.h.b16 %v106
  %v464 = vunpack.c.l.b16 %v107
  %v465 = vunpack.c.h.b16 %v107
  %v466 = vunpack.c.l.b16 %v108
  %v467 = vunpack.c.h.b16 %v108
  %v468 = vunpack.c.l.b16 %v109
  %v469 = vunpack.c.h.b16 %v109
  %v470 = vunpack.c.l.b16 %v110
  %v471 = vunpack.c.h.b16 %v110
  %v472 = vunpack.c.l.b16 %v111
  %v473 = vunpack.c.h.b16 %v111
  %v474 = vpack.c.b16 %v282, %v278
  %v475 = vpack.c.b16 %v283, %v279
  %v476 = vpack.c.b16 %v284, %v280
  %v477 = vpack.c.b16 %v285, %v281
  %v478 = vpack.c.b16 %v290, %v286
  %v479 = vpack.c.b16 %v291, %v287
  %v480 = vpack.c.b16 %v292, %v288
  %v481 = vpack.c.b16 %v293, %v289
  %v482 = vpack.c.b16 %v298, %v294
  %v483 = vpack.c.b16 %v299, %v295
  %v484 = vpack.c.b16 %v300, %v296
  %v485 = vpack.c.b16 %v301, %v297
  %v486 = vpack.c.b16 %v306, %v302
  %v487 = vpack.c.b16 %v307, %v303
  %v488 = vpack.c.b16 %v308, %v304
  %v489 = vpack.c.b16 %v309, %v305
  %v490 = vpack.c.b16 %v314, %v310
  %v491 = vpack.c.b16 %v315, %v311
  %v492 = vpack.c.b16 %v316, %v312
  %v493 = vpack.c.b16 %v317, %v313
  %v494 = vpack.c.b16 %v322, %v318
  %v495 = vpack.c.b16 %v323, %v319
  %v496 = vpack.c.b16 %v324, %v320
  %v497 = vpack.c.b16 %v325, %v321
  %v498 = vpack.c.b16 %v330, %v326
  %v499 = vpack.c.b16 %v331, %v327
  %v500 = vpack.c.b16 %v332, %v328
  %v501 = vpack.c.b16 %v333, %v329
  %v502 = vpack.c.b16 %v338, %v334
  %v503 = vpack.c.b16 %v339, %v335
  %v504 = vpack.c.b16 %v340, %v336
  %v505 = vpack.c.b16 %v341, %v337
  %v506 = vpack.c.b16 %v346, %v342
  %v507 = vpack.c.b16 %v347, %v343
  %v508 = vpack.c.b16 %v348, %v344
  %v509 = vpack.c.b16 %v349, %v345
  %v510 = vpack.c.b16 %v354, %v350
  %v511 = vpack.c.b16 %v355, %v351
  %v512 = vpack.c.b16 %v356, %v352
  %v513 = vpack.c.b16 %v357, %v353
  %v514 = vpack.c.b16 %v362, %v358
  %v515 = vpack.c.b16 %v363, %v359
  %v516 = vpack.c.b16 %v364, %v360
  %v517 = vpack.c.b16 %v365, %v361
  %v518 = vpack.c.b16 %v370, %v366
  %v519 = vpack.c.b16 %v371, %v367
  %v520 = vpack.c.b16 %v372, %v368
  %v521 = vpack.c.b16 %v373, %v369
  %v522 = vpack.c.b16 %v378, %v374
  %v523 = vpack.c.b16 %v379, %v375
  %v524 = vpack.c.b16 %v380, %v376
  %v525 = vpack.c.b16 %v381, %v377
  %v526 = vpack.c.b16 %v386, %v382
  %v527 = vpack.c.b16 %v387, %v383
  %v528 = vpack.c.b16 %v388, %v384
  %v529 = vpack.c.b16 %v389, %v385
  %v530 = vpack.c.b16 %v394, %v390
  %v531 = vpack.c.b16 %v395, %v391
  %v532 = vpack.c.b16 %v396, %v392
  %v533 = vpack.c.b16 %v397, %v393
  %v534 = vpack.c.b16 %v402, %v398
  %v535 = vpack.c.b16 %v403, %v399
  %v536 = vpack.c.b16 %v404, %v400
  %v537 = vpack.c.b16 %v405, %v401
  %v538 = vpack.c.b16 %v410, %v406
  %v539 = vpack.c.b16 %v411, %v407
  %v540 = vpack.c.b16 %v412, %v408
  %v541 = vpack.c.b16 %v413, %v409
  %v542 = vpack.c.b16 %v418, %v414
  %v543 = vpack.c.b16 %v419, %v415
  %v544 = vpack.c.b16 %v420, %v416
  %v545 = vpack.c.b16 %v421, %v417
  %v546 = vpack.c.b16 %v426, %v422
  %v547 = vpack.c.b16 %v427, %v423
  %v548 = vpack.c.b16 %v428, %v424
  %v549 = vpack.c.b16 %v429, %v425
  %v550 = vpack.c.b16 %v434, %v430
  %v551 = vpack.c.b16 %v435, %v431
  %v552 = vpack.c.b16 %v436, %v432
  %v553 = vpack.c.b16 %v437, %v433
  %v554 = vpack.c.b16 %v442, %v438
  %v555 = vpack.c.b16 %v443, %v439
  %v556 = vpack.c.b16 %v444, %v440
  %v557 = vpack.c.b16 %v445, %v441
  %v558 = vpack.c.b16 %v450, %v446
  %v559 = vpack.c.b16 %v451, %v447
  %v560 = vpack.c.b16 %v452, %v448
  %v561 = vpack.c.b16 %v453, %v449
  %v562 = vpack.c.b16 %v458, %v454
  %v563 = vpack.c.b16 %v459, %v455
  %v564 = vpack.c.b16 %v460, %v456
  %v565 = vpack.c.b16 %v461, %v457
  %v566 = vpack.c.b16 %v466, %v462
  %v567 = vpack.c.b16 %v467, %v463
  %v568 = vpack.c.b16 %v468, %v464
  %v569 = vpack.c.b16 %v469, %v465
  %v570 = vpack.c.b16 %v470, %v470
  %v571 = vpack.c.b16 %v471, %v471
  %v572 = vpack.c.b16 %v472, %v472
  %v573 = vpack.c.b16 %v473, %v473
  %v738 = vunpack.c.l.b16 %v112
  %v739 = vunpack.c.l.b16 %v113
  %v740 = vunpack.c.l.b16 %v114
  %v741 = vunpack.c.l.b16 %v115
  %v742 = vunpack.c.l.b16 %v116
  %v743 = vunpack.c.l.b16 %v117
  %v744 = vunpack.c.l.b16 %v118
  %v745 = vunpack.c.l.b16 %v119
  %v746 = vunpack.c.l.b16 %v120
  %v747 = vunpack.c.l.b16 %v121
  %v748 = vunpack.c.l.b16 %v122
  %v749 = vunpack.c.l.b16 %v123
  %v750 = vunpack.c.l.b16 %v124
  %v751 = vunpack.c.l.b16 %v125
  %v752 = vunpack.c.l.b16 %v126
  %v753 = vunpack.c.l.b16 %v127
  %v754 = vunpack.c.l.b16 %v128
  %v755 = vunpack.c.l.b16 %v129
  %v756 = vunpack.c.l.b16 %v130
  %v757 = vunpack.c.l.b16 %v131
  %v758 = vunpack.c.l.b16 %v132
  %v759 = vunpack.c.l.b16 %v133
  %v760 = vunpack.c.l.b16 %v134
  %v761 = vunpack.c.l.b16 %v135
  %v762 = vunpack.c.l.b16 %v136
  %v763 = vunpack.c.l.b16 %v137
  %v764 = vunpack.c.l.b16 %v138
  %v765 = vunpack.c.l.b16 %v139
  %v766 = vunpack.c.l.b16 %v140
  %v767 = vunpack.c.l.b16 %v141
  %v768 = vunpack.c.l.b16 %v142
  %v769 = vunpack.c.l.b16 %v143
  %v770 = vunpack.c.l.b16 %v144
  %v771 = vunpack.c.l.b16 %v145
  %v772 = vunpack.c.l.b16 %v146
  %v773 = vunpack.c.l.b16 %v147
  %v774 = vunpack.c.l.b16 %v148
  %v775 = vunpack.c.l.b16 %v149
  %v776 = vunpack.c.l.b16 %v150
  %v777 = vunpack.c.l.b16 %v151
  %v778 = vunpack.c.l.b16 %v152
  %v779 = vunpack.c.l.b16 %v153
  %v780 = vunpack.c.l.b16 %v154
  %v781 = vunpack.c.l.b16 %v155
  %v782 = vunpack.c.l.b16 %v156
  %v783 = vunpack.c.l.b16 %v157
  %v784 = vunpack.c.l.b16 %v158
  %v785 = vunpack.c.l.b16 %v159
  %v786 = vunpack.c.l.b16 %v160
  %v787 = vunpack.c.l.b16 %v161
  %v788 = vunpack.c.l.b16 %v162
  %v789 = vunpack.c.l.b16 %v163
  %v790 = vunpack.c.l.b16 %v164
  %v791 = vunpack.c.l.b16 %v165
  %v792 = vunpack.c.l.b16 %v166
  %v793 = vunpack.c.l.b16 %v167
  %v794 = vunpack.c.l.b16 %v168
  %v795 = vunpack.c.l.b16 %v169
  %v796 = vunpack.c.l.b16 %v170
  %v797 = vunpack.c.l.b16 %v171
  %v798 = vunpack.c.l.b16 %v172
  %v799 = vunpack.c.l.b16 %v173
  %v800 = vunpack.c.l.b16 %v174
  %v801 = vunpack.c.l.b16 %v175
  %v802 = vpack.c.b16 %v739, %v738
  %v803 = vpack.c.b16 %v741, %v740
  %v804 = vpack.c.b16 %v743, %v742
  %v805 = vpack.c.b16 %v745, %v744
  %v806 = vpack.c.b16 %v747, %v746
  %v807 = vpack.c.b16 %v749, %v748
  %v808 = vpack.c.b16 %v751, %v750
  %v809 = vpack.c.b16 %v753, %v752
  %v810 = vpack.c.b16 %v755, %v754
  %v811 = vpack.c.b16 %v757, %v756
  %v812 = vpack.c.b16 %v759, %v758
  %v813 = vpack.c.b16 %v761, %v760
  %v814 = vpack.c.b16 %v763, %v762
  %v815 = vpack.c.b16 %v765, %v764
  %v816 = vpack.c.b16 %v767, %v766
  %v817 = vpack.c.b16 %v769, %v768
  %v818 = vpack.c.b16 %v771, %v770
  %v819 = vpack.c.b16 %v773, %v772
  %v820 = vpack.c.b16 %v775, %v774
  %v821 = vpack.c.b16 %v777, %v776
  %v822 = vpack.c.b16 %v779, %v778
  %v823 = vpack.c.b16 %v781, %v780
  %v824 = vpack.c.b16 %v783, %v782
  %v825 = vpack.c.b16 %v785, %v784
  %v826 = vpack.c.b16 %v787, %v786
  %v827 = vpack.c.b16 %v789, %v788
  %v828 = vpack.c.b16 %v791, %v790
  %v829 = vpack.c.b16 %v793, %v792
  %v830 = vpack.c.b16 %v795, %v794
  %v831 = vpack.c.b16 %v797, %v796
  %v832 = vpack.c.b16 %v799, %v798
  %v833 = vpack.c.b16 %v801, %v800
  %866 = vmatpush.bf16.msra.mxu0 %v809
  %867 = vmatpush.bf16.msra.mxu0 %v808
  %868 = vmatpush.bf16.msra.mxu0 %v807
  %869 = vmatpush.bf16.msra.mxu0 %v806
  %870 = vmatpush.bf16.msra.mxu0 %v805
  %871 = vmatpush.bf16.msra.mxu0 %v804
  %872 = vmatpush.bf16.msra.mxu0 %v803
  %873 = vmatpush.bf16.msra.mxu0 %v802
  %874 = vmatmul.bf16.gmra.mxu0 %v474
  %v875 = vpop.f32.mrf.mxu0
  %v876 = vadd.f32 %v178, %v875
  %v877 = vpop.f32.mrf.mxu0
  %v878 = vadd.f32 %v178, %v877
  %879 = vmatmul.bf16.gmra.mxu0 %v478
  %v880 = vpop.f32.mrf.mxu0
  %v881 = vadd.f32 %v178, %v880
  %v882 = vpop.f32.mrf.mxu0
  %v883 = vadd.f32 %v178, %v882
  %884 = vmatmul.bf16.gmra.mxu0 %v482
  %v885 = vpop.f32.mrf.mxu0
  %v886 = vadd.f32 %v178, %v885
  %v887 = vpop.f32.mrf.mxu0
  %v888 = vadd.f32 %v178, %v887
  %889 = vmatmul.bf16.gmra.mxu0 %v486
  %v890 = vpop.f32.mrf.mxu0
  %v891 = vadd.f32 %v178, %v890
  %v892 = vpop.f32.mrf.mxu0
  %v893 = vadd.f32 %v178, %v892
  %894 = vmatmul.bf16.gmra.mxu0 %v490
  %v895 = vpop.f32.mrf.mxu0
  %v896 = vadd.f32 %v178, %v895
  %v897 = vpop.f32.mrf.mxu0
  %v898 = vadd.f32 %v178, %v897
  %899 = vmatmul.bf16.gmra.mxu0 %v494
  %v900 = vpop.f32.mrf.mxu0
  %v901 = vadd.f32 %v178, %v900
  %v902 = vpop.f32.mrf.mxu0
  %v903 = vadd.f32 %v178, %v902
  %904 = vmatmul.bf16.gmra.mxu0 %v498
  %v905 = vpop.f32.mrf.mxu0
  %v906 = vadd.f32 %v178, %v905
  %v907 = vpop.f32.mrf.mxu0
  %v908 = vadd.f32 %v178, %v907
  %909 = vmatmul.bf16.gmra.mxu0 %v502
  %v910 = vpop.f32.mrf.mxu0
  %v911 = vadd.f32 %v178, %v910
  %v912 = vpop.f32.mrf.mxu0
  %v913 = vadd.f32 %v178, %v912
  %914 = vmatmul.bf16.gmra.mxu0 %v506
  %v915 = vpop.f32.mrf.mxu0
  %v916 = vadd.f32 %v178, %v915
  %v917 = vpop.f32.mrf.mxu0
  %v918 = vadd.f32 %v178, %v917
  %919 = vmatmul.bf16.gmra.mxu0 %v510
  %v920 = vpop.f32.mrf.mxu0
  %v921 = vadd.f32 %v178, %v920
  %v922 = vpop.f32.mrf.mxu0
  %v923 = vadd.f32 %v178, %v922
  %924 = vmatmul.bf16.gmra.mxu0 %v514
  %v925 = vpop.f32.mrf.mxu0
  %v926 = vadd.f32 %v178, %v925
  %v927 = vpop.f32.mrf.mxu0
  %v928 = vadd.f32 %v178, %v927
  %929 = vmatmul.bf16.gmra.mxu0 %v518
  %v930 = vpop.f32.mrf.mxu0
  %v931 = vadd.f32 %v178, %v930
  %v932 = vpop.f32.mrf.mxu0
  %v933 = vadd.f32 %v178, %v932
  %934 = vmatmul.bf16.gmra.mxu0 %v522
  %v935 = vpop.f32.mrf.mxu0
  %v936 = vadd.f32 %v178, %v935
  %v937 = vpop.f32.mrf.mxu0
  %v938 = vadd.f32 %v178, %v937
  %939 = vmatmul.bf16.gmra.mxu0 %v526
  %v940 = vpop.f32.mrf.mxu0
  %v941 = vadd.f32 %v178, %v940
  %v942 = vpop.f32.mrf.mxu0
  %v943 = vadd.f32 %v178, %v942
  %944 = vmatmul.bf16.gmra.mxu0 %v530
  %v945 = vpop.f32.mrf.mxu0
  %v946 = vadd.f32 %v178, %v945
  %v947 = vpop.f32.mrf.mxu0
  %v948 = vadd.f32 %v178, %v947
  %949 = vmatmul.bf16.gmra.mxu0 %v534
  %v950 = vpop.f32.mrf.mxu0
  %v951 = vadd.f32 %v178, %v950
  %v952 = vpop.f32.mrf.mxu0
  %v953 = vadd.f32 %v178, %v952
  %954 = vmatmul.bf16.gmra.mxu0 %v538
  %v955 = vpop.f32.mrf.mxu0
  %v956 = vadd.f32 %v178, %v955
  %v957 = vpop.f32.mrf.mxu0
  %v958 = vadd.f32 %v178, %v957
  %959 = vmatmul.bf16.gmra.mxu0 %v542
  %v960 = vpop.f32.mrf.mxu0
  %v961 = vadd.f32 %v178, %v960
  %v962 = vpop.f32.mrf.mxu0
  %v963 = vadd.f32 %v178, %v962
  %964 = vmatmul.bf16.gmra.mxu0 %v546
  %v965 = vpop.f32.mrf.mxu0
  %v966 = vadd.f32 %v178, %v965
  %v967 = vpop.f32.mrf.mxu0
  %v968 = vadd.f32 %v178, %v967
  %969 = vmatmul.bf16.gmra.mxu0 %v550
  %v970 = vpop.f32.mrf.mxu0
  %v971 = vadd.f32 %v178, %v970
  %v972 = vpop.f32.mrf.mxu0
  %v973 = vadd.f32 %v178, %v972
  %974 = vmatmul.bf16.gmra.mxu0 %v554
  %v975 = vpop.f32.mrf.mxu0
  %v976 = vadd.f32 %v178, %v975
  %v977 = vpop.f32.mrf.mxu0
  %v978 = vadd.f32 %v178, %v977
  %979 = vmatmul.bf16.gmra.mxu0 %v558
  %v980 = vpop.f32.mrf.mxu0
  %v981 = vadd.f32 %v178, %v980
  %v982 = vpop.f32.mrf.mxu0
  %v983 = vadd.f32 %v178, %v982
  %984 = vmatmul.bf16.gmra.mxu0 %v562
  %v985 = vpop.f32.mrf.mxu0
  %v986 = vadd.f32 %v178, %v985
  %v987 = vpop.f32.mrf.mxu0
  %v988 = vadd.f32 %v178, %v987
  %989 = vmatmul.bf16.gmra.mxu0 %v566
  %v990 = vpop.f32.mrf.mxu0
  %v991 = vadd.f32 %v178, %v990
  %v992 = vpop.f32.mrf.mxu0
  %v993 = vadd.f32 %v178, %v992
  %994 = vmatmul.bf16.gmra.mxu0 %v570
  %v995 = vpop.f32.mrf.mxu0
  %v996 = vadd.f32 %v178, %v995
  %v997 = vpop.f32.mrf.mxu0
  %998 = vdwg.mxu0
  %999 = vmatpush.bf16.msra.mxu0 %v817
  %1000 = vmatpush.bf16.msra.mxu0 %v816
  %1001 = vmatpush.bf16.msra.mxu0 %v815
  %1002 = vmatpush.bf16.msra.mxu0 %v814
  %1003 = vmatpush.bf16.msra.mxu0 %v813
  %1004 = vmatpush.bf16.msra.mxu0 %v812
  %1005 = vmatpush.bf16.msra.mxu0 %v811
  %1006 = vmatpush.bf16.msra.mxu0 %v810
  %1007 = vmatmul.bf16.gmra.mxu0 %v475
  %v1008 = vpop.f32.mrf.mxu0
  %v1009 = vadd.f32 %v876, %v1008
  %v1010 = vpop.f32.mrf.mxu0
  %v1011 = vadd.f32 %v878, %v1010
  %1012 = vmatmul.bf16.gmra.mxu0 %v479
  %v1013 = vpop.f32.mrf.mxu0
  %v1014 = vadd.f32 %v881, %v1013
  %v1015 = vpop.f32.mrf.mxu0
  %v1016 = vadd.f32 %v883, %v1015
  %1017 = vmatmul.bf16.gmra.mxu0 %v483
  %v1018 = vpop.f32.mrf.mxu0
  %v1019 = vadd.f32 %v886, %v1018
  %v1020 = vpop.f32.mrf.mxu0
  %v1021 = vadd.f32 %v888, %v1020
  %1022 = vmatmul.bf16.gmra.mxu0 %v487
  %v1023 = vpop.f32.mrf.mxu0
  %v1024 = vadd.f32 %v891, %v1023
  %v1025 = vpop.f32.mrf.mxu0
  %v1026 = vadd.f32 %v893, %v1025
  %1027 = vmatmul.bf16.gmra.mxu0 %v491
  %v1028 = vpop.f32.mrf.mxu0
  %v1029 = vadd.f32 %v896, %v1028
  %v1030 = vpop.f32.mrf.mxu0
  %v1031 = vadd.f32 %v898, %v1030
  %1032 = vmatmul.bf16.gmra.mxu0 %v495
  %v1033 = vpop.f32.mrf.mxu0
  %v1034 = vadd.f32 %v901, %v1033
  %v1035 = vpop.f32.mrf.mxu0
  %v1036 = vadd.f32 %v903, %v1035
  %1037 = vmatmul.bf16.gmra.mxu0 %v499
  %v1038 = vpop.f32.mrf.mxu0
  %v1039 = vadd.f32 %v906, %v1038
  %v1040 = vpop.f32.mrf.mxu0
  %v1041 = vadd.f32 %v908, %v1040
  %1042 = vmatmul.bf16.gmra.mxu0 %v503
  %v1043 = vpop.f32.mrf.mxu0
  %v1044 = vadd.f32 %v911, %v1043
  %v1045 = vpop.f32.mrf.mxu0
  %v1046 = vadd.f32 %v913, %v1045
  %1047 = vmatmul.bf16.gmra.mxu0 %v507
  %v1048 = vpop.f32.mrf.mxu0
  %v1049 = vadd.f32 %v916, %v1048
  %v1050 = vpop.f32.mrf.mxu0
  %v1051 = vadd.f32 %v918, %v1050
  %1052 = vmatmul.bf16.gmra.mxu0 %v511
  %v1053 = vpop.f32.mrf.mxu0
  %v1054 = vadd.f32 %v921, %v1053
  %v1055 = vpop.f32.mrf.mxu0
  %v1056 = vadd.f32 %v923, %v1055
  %1057 = vmatmul.bf16.gmra.mxu0 %v515
  %v1058 = vpop.f32.mrf.mxu0
  %v1059 = vadd.f32 %v926, %v1058
  %v1060 = vpop.f32.mrf.mxu0
  %v1061 = vadd.f32 %v928, %v1060
  %1062 = vmatmul.bf16.gmra.mxu0 %v519
  %v1063 = vpop.f32.mrf.mxu0
  %v1064 = vadd.f32 %v931, %v1063
  %v1065 = vpop.f32.mrf.mxu0
  %v1066 = vadd.f32 %v933, %v1065
  %1067 = vmatmul.bf16.gmra.mxu0 %v523
  %v1068 = vpop.f32.mrf.mxu0
  %v1069 = vadd.f32 %v936, %v1068
  %v1070 = vpop.f32.mrf.mxu0
  %v1071 = vadd.f32 %v938, %v1070
  %1072 = vmatmul.bf16.gmra.mxu0 %v527
  %v1073 = vpop.f32.mrf.mxu0
  %v1074 = vadd.f32 %v941, %v1073
  %v1075 = vpop.f32.mrf.mxu0
  %v1076 = vadd.f32 %v943, %v1075
  %1077 = vmatmul.bf16.gmra.mxu0 %v531
  %v1078 = vpop.f32.mrf.mxu0
  %v1079 = vadd.f32 %v946, %v1078
  %v1080 = vpop.f32.mrf.mxu0
  %v1081 = vadd.f32 %v948, %v1080
  %1082 = vmatmul.bf16.gmra.mxu0 %v535
  %v1083 = vpop.f32.mrf.mxu0
  %v1084 = vadd.f32 %v951, %v1083
  %v1085 = vpop.f32.mrf.mxu0
  %v1086 = vadd.f32 %v953, %v1085
  %1087 = vmatmul.bf16.gmra.mxu0 %v539
  %v1088 = vpop.f32.mrf.mxu0
  %v1089 = vadd.f32 %v956, %v1088
  %v1090 = vpop.f32.mrf.mxu0
  %v1091 = vadd.f32 %v958, %v1090
  %1092 = vmatmul.bf16.gmra.mxu0 %v543
  %v1093 = vpop.f32.mrf.mxu0
  %v1094 = vadd.f32 %v961, %v1093
  %v1095 = vpop.f32.mrf.mxu0
  %v1096 = vadd.f32 %v963, %v1095
  %1097 = vmatmul.bf16.gmra.mxu0 %v547
  %v1098 = vpop.f32.mrf.mxu0
  %v1099 = vadd.f32 %v966, %v1098
  %v1100 = vpop.f32.mrf.mxu0
  %v1101 = vadd.f32 %v968, %v1100
  %1102 = vmatmul.bf16.gmra.mxu0 %v551
  %v1103 = vpop.f32.mrf.mxu0
  %v1104 = vadd.f32 %v971, %v1103
  %v1105 = vpop.f32.mrf.mxu0
  %v1106 = vadd.f32 %v973, %v1105
  %1107 = vmatmul.bf16.gmra.mxu0 %v555
  %v1108 = vpop.f32.mrf.mxu0
  %v1109 = vadd.f32 %v976, %v1108
  %v1110 = vpop.f32.mrf.mxu0
  %v1111 = vadd.f32 %v978, %v1110
  %1112 = vmatmul.bf16.gmra.mxu0 %v559
  %v1113 = vpop.f32.mrf.mxu0
  %v1114 = vadd.f32 %v981, %v1113
  %v1115 = vpop.f32.mrf.mxu0
  %v1116 = vadd.f32 %v983, %v1115
  %1117 = vmatmul.bf16.gmra.mxu0 %v563
  %v1118 = vpop.f32.mrf.mxu0
  %v1119 = vadd.f32 %v986, %v1118
  %v1120 = vpop.f32.mrf.mxu0
  %v1121 = vadd.f32 %v988, %v1120
  %1122 = vmatmul.bf16.gmra.mxu0 %v567
  %v1123 = vpop.f32.mrf.mxu0
  %v1124 = vadd.f32 %v991, %v1123
  %v1125 = vpop.f32.mrf.mxu0
  %v1126 = vadd.f32 %v993, %v1125
  %1127 = vmatmul.bf16.gmra.mxu0 %v571
  %v1128 = vpop.f32.mrf.mxu0
  %v1129 = vadd.f32 %v996, %v1128
  %v1130 = vpop.f32.mrf.mxu0
  %1131 = vdwg.mxu0
  %1132 = vmatpush.bf16.msra.mxu0 %v825
  %1133 = vmatpush.bf16.msra.mxu0 %v824
  %1134 = vmatpush.bf16.msra.mxu0 %v823
  %1135 = vmatpush.bf16.msra.mxu0 %v822
  %1136 = vmatpush.bf16.msra.mxu0 %v821
  %1137 = vmatpush.bf16.msra.mxu0 %v820
  %1138 = vmatpush.bf16.msra.mxu0 %v819
  %1139 = vmatpush.bf16.msra.mxu0 %v818
  %1140 = vmatmul.bf16.gmra.mxu0 %v476
  %v1141 = vpop.f32.mrf.mxu0
  %v1142 = vadd.f32 %v1009, %v1141
  %v1143 = vpop.f32.mrf.mxu0
  %v1144 = vadd.f32 %v1011, %v1143
  %1145 = vmatmul.bf16.gmra.mxu0 %v480
  %v1146 = vpop.f32.mrf.mxu0
  %v1147 = vadd.f32 %v1014, %v1146
  %v1148 = vpop.f32.mrf.mxu0
  %v1149 = vadd.f32 %v1016, %v1148
  %1150 = vmatmul.bf16.gmra.mxu0 %v484
  %v1151 = vpop.f32.mrf.mxu0
  %v1152 = vadd.f32 %v1019, %v1151
  %v1153 = vpop.f32.mrf.mxu0
  %v1154 = vadd.f32 %v1021, %v1153
  %1155 = vmatmul.bf16.gmra.mxu0 %v488
  %v1156 = vpop.f32.mrf.mxu0
  %v1157 = vadd.f32 %v1024, %v1156
  %v1158 = vpop.f32.mrf.mxu0
  %v1159 = vadd.f32 %v1026, %v1158
  %1160 = vmatmul.bf16.gmra.mxu0 %v492
  %v1161 = vpop.f32.mrf.mxu0
  %v1162 = vadd.f32 %v1029, %v1161
  %v1163 = vpop.f32.mrf.mxu0
  %v1164 = vadd.f32 %v1031, %v1163
  %1165 = vmatmul.bf16.gmra.mxu0 %v496
  %v1166 = vpop.f32.mrf.mxu0
  %v1167 = vadd.f32 %v1034, %v1166
  %v1168 = vpop.f32.mrf.mxu0
  %v1169 = vadd.f32 %v1036, %v1168
  %1170 = vmatmul.bf16.gmra.mxu0 %v500
  %v1171 = vpop.f32.mrf.mxu0
  %v1172 = vadd.f32 %v1039, %v1171
  %v1173 = vpop.f32.mrf.mxu0
  %v1174 = vadd.f32 %v1041, %v1173
  %1175 = vmatmul.bf16.gmra.mxu0 %v504
  %v1176 = vpop.f32.mrf.mxu0
  %v1177 = vadd.f32 %v1044, %v1176
  %v1178 = vpop.f32.mrf.mxu0
  %v1179 = vadd.f32 %v1046, %v1178
  %1180 = vmatmul.bf16.gmra.mxu0 %v508
  %v1181 = vpop.f32.mrf.mxu0
  %v1182 = vadd.f32 %v1049, %v1181
  %v1183 = vpop.f32.mrf.mxu0
  %v1184 = vadd.f32 %v1051, %v1183
  %1185 = vmatmul.bf16.gmra.mxu0 %v512
  %v1186 = vpop.f32.mrf.mxu0
  %v1187 = vadd.f32 %v1054, %v1186
  %v1188 = vpop.f32.mrf.mxu0
  %v1189 = vadd.f32 %v1056, %v1188
  %1190 = vmatmul.bf16.gmra.mxu0 %v516
  %v1191 = vpop.f32.mrf.mxu0
  %v1192 = vadd.f32 %v1059, %v1191
  %v1193 = vpop.f32.mrf.mxu0
  %v1194 = vadd.f32 %v1061, %v1193
  %1195 = vmatmul.bf16.gmra.mxu0 %v520
  %v1196 = vpop.f32.mrf.mxu0
  %v1197 = vadd.f32 %v1064, %v1196
  %v1198 = vpop.f32.mrf.mxu0
  %v1199 = vadd.f32 %v1066, %v1198
  %1200 = vmatmul.bf16.gmra.mxu0 %v524
  %v1201 = vpop.f32.mrf.mxu0
  %v1202 = vadd.f32 %v1069, %v1201
  %v1203 = vpop.f32.mrf.mxu0
  %v1204 = vadd.f32 %v1071, %v1203
  %1205 = vmatmul.bf16.gmra.mxu0 %v528
  %v1206 = vpop.f32.mrf.mxu0
  %v1207 = vadd.f32 %v1074, %v1206
  %v1208 = vpop.f32.mrf.mxu0
  %v1209 = vadd.f32 %v1076, %v1208
  %1210 = vmatmul.bf16.gmra.mxu0 %v532
  %v1211 = vpop.f32.mrf.mxu0
  %v1212 = vadd.f32 %v1079, %v1211
  %v1213 = vpop.f32.mrf.mxu0
  %v1214 = vadd.f32 %v1081, %v1213
  %1215 = vmatmul.bf16.gmra.mxu0 %v536
  %v1216 = vpop.f32.mrf.mxu0
  %v1217 = vadd.f32 %v1084, %v1216
  %v1218 = vpop.f32.mrf.mxu0
  %v1219 = vadd.f32 %v1086, %v1218
  %1220 = vmatmul.bf16.gmra.mxu0 %v540
  %v1221 = vpop.f32.mrf.mxu0
  %v1222 = vadd.f32 %v1089, %v1221
  %v1223 = vpop.f32.mrf.mxu0
  %v1224 = vadd.f32 %v1091, %v1223
  %1225 = vmatmul.bf16.gmra.mxu0 %v544
  %v1226 = vpop.f32.mrf.mxu0
  %v1227 = vadd.f32 %v1094, %v1226
  %v1228 = vpop.f32.mrf.mxu0
  %v1229 = vadd.f32 %v1096, %v1228
  %1230 = vmatmul.bf16.gmra.mxu0 %v548
  %v1231 = vpop.f32.mrf.mxu0
  %v1232 = vadd.f32 %v1099, %v1231
  %v1233 = vpop.f32.mrf.mxu0
  %v1234 = vadd.f32 %v1101, %v1233
  %1235 = vmatmul.bf16.gmra.mxu0 %v552
  %v1236 = vpop.f32.mrf.mxu0
  %v1237 = vadd.f32 %v1104, %v1236
  %v1238 = vpop.f32.mrf.mxu0
  %v1239 = vadd.f32 %v1106, %v1238
  %1240 = vmatmul.bf16.gmra.mxu0 %v556
  %v1241 = vpop.f32.mrf.mxu0
  %v1242 = vadd.f32 %v1109, %v1241
  %v1243 = vpop.f32.mrf.mxu0
  %v1244 = vadd.f32 %v1111, %v1243
  %1245 = vmatmul.bf16.gmra.mxu0 %v560
  %v1246 = vpop.f32.mrf.mxu0
  %v1247 = vadd.f32 %v1114, %v1246
  %v1248 = vpop.f32.mrf.mxu0
  %v1249 = vadd.f32 %v1116, %v1248
  %1250 = vmatmul.bf16.gmra.mxu0 %v564
  %v1251 = vpop.f32.mrf.mxu0
  %v1252 = vadd.f32 %v1119, %v1251
  %v1253 = vpop.f32.mrf.mxu0
  %v1254 = vadd.f32 %v1121, %v1253
  %1255 = vmatmul.bf16.gmra.mxu0 %v568
  %v1256 = vpop.f32.mrf.mxu0
  %v1257 = vadd.f32 %v1124, %v1256
  %v1258 = vpop.f32.mrf.mxu0
  %v1259 = vadd.f32 %v1126, %v1258
  %1260 = vmatmul.bf16.gmra.mxu0 %v572
  %v1261 = vpop.f32.mrf.mxu0
  %v1262 = vadd.f32 %v1129, %v1261
  %v1263 = vpop.f32.mrf.mxu0
  %1264 = vdwg.mxu0
  %1265 = vmatpush.bf16.msra.mxu0 %v833
  %1266 = vmatpush.bf16.msra.mxu0 %v832
  %1267 = vmatpush.bf16.msra.mxu0 %v831
  %1268 = vmatpush.bf16.msra.mxu0 %v830
  %1269 = vmatpush.bf16.msra.mxu0 %v829
  %1270 = vmatpush.bf16.msra.mxu0 %v828
  %1271 = vmatpush.bf16.msra.mxu0 %v827
  %1272 = vmatpush.bf16.msra.mxu0 %v826
  %1273 = vmatmul.bf16.gmra.mxu0 %v477
  %v1274 = vpop.f32.mrf.mxu0
  %v1275 = vadd.f32 %v1142, %v1274
  %v1276 = vpop.f32.mrf.mxu0
  %v1277 = vadd.f32 %v1144, %v1276
  %1278 = vmatmul.bf16.gmra.mxu0 %v481
  %v1279 = vpop.f32.mrf.mxu0
  %v1280 = vadd.f32 %v1147, %v1279
  %v1281 = vpop.f32.mrf.mxu0
  %v1282 = vadd.f32 %v1149, %v1281
  %1283 = vmatmul.bf16.gmra.mxu0 %v485
  %v1284 = vpop.f32.mrf.mxu0
  %v1285 = vadd.f32 %v1152, %v1284
  %v1286 = vpop.f32.mrf.mxu0
  %v1287 = vadd.f32 %v1154, %v1286
  %1288 = vmatmul.bf16.gmra.mxu0 %v489
  %v1289 = vpop.f32.mrf.mxu0
  %v1290 = vadd.f32 %v1157, %v1289
  %v1291 = vpop.f32.mrf.mxu0
  %v1292 = vadd.f32 %v1159, %v1291
  %1293 = vmatmul.bf16.gmra.mxu0 %v493
  %v1294 = vpop.f32.mrf.mxu0
  %v1295 = vadd.f32 %v1162, %v1294
  %v1296 = vpop.f32.mrf.mxu0
  %v1297 = vadd.f32 %v1164, %v1296
  %1298 = vmatmul.bf16.gmra.mxu0 %v497
  %v1299 = vpop.f32.mrf.mxu0
  %v1300 = vadd.f32 %v1167, %v1299
  %v1301 = vpop.f32.mrf.mxu0
  %v1302 = vadd.f32 %v1169, %v1301
  %1303 = vmatmul.bf16.gmra.mxu0 %v501
  %v1304 = vpop.f32.mrf.mxu0
  %v1305 = vadd.f32 %v1172, %v1304
  %v1306 = vpop.f32.mrf.mxu0
  %v1307 = vadd.f32 %v1174, %v1306
  %1308 = vmatmul.bf16.gmra.mxu0 %v505
  %v1309 = vpop.f32.mrf.mxu0
  %v1310 = vadd.f32 %v1177, %v1309
  %v1311 = vpop.f32.mrf.mxu0
  %v1312 = vadd.f32 %v1179, %v1311
  %1313 = vmatmul.bf16.gmra.mxu0 %v509
  %v1314 = vpop.f32.mrf.mxu0
  %v1315 = vadd.f32 %v1182, %v1314
  %v1316 = vpop.f32.mrf.mxu0
  %v1317 = vadd.f32 %v1184, %v1316
  %1318 = vmatmul.bf16.gmra.mxu0 %v513
  %v1319 = vpop.f32.mrf.mxu0
  %v1320 = vadd.f32 %v1187, %v1319
  %v1321 = vpop.f32.mrf.mxu0
  %v1322 = vadd.f32 %v1189, %v1321
  %1323 = vmatmul.bf16.gmra.mxu0 %v517
  %v1324 = vpop.f32.mrf.mxu0
  %v1325 = vadd.f32 %v1192, %v1324
  %v1326 = vpop.f32.mrf.mxu0
  %v1327 = vadd.f32 %v1194, %v1326
  %1328 = vmatmul.bf16.gmra.mxu0 %v521
  %v1329 = vpop.f32.mrf.mxu0
  %v1330 = vadd.f32 %v1197, %v1329
  %v1331 = vpop.f32.mrf.mxu0
  %v1332 = vadd.f32 %v1199, %v1331
  %1333 = vmatmul.bf16.gmra.mxu0 %v525
  %v1334 = vpop.f32.mrf.mxu0
  %v1335 = vadd.f32 %v1202, %v1334
  %v1336 = vpop.f32.mrf.mxu0
  %v1337 = vadd.f32 %v1204, %v1336
  %1338 = vmatmul.bf16.gmra.mxu0 %v529
  %v1339 = vpop.f32.mrf.mxu0
  %v1340 = vadd.f32 %v1207, %v1339
  %v1341 = vpop.f32.mrf.mxu0
  %v1342 = vadd.f32 %v1209, %v1341
  %1343 = vmatmul.bf16.gmra.mxu0 %v533
  %v1344 = vpop.f32.mrf.mxu0
  %v1345 = vadd.f32 %v1212, %v1344
  %v1346 = vpop.f32.mrf.mxu0
  %v1347 = vadd.f32 %v1214, %v1346
  %1348 = vmatmul.bf16.gmra.mxu0 %v537
  %v1349 = vpop.f32.mrf.mxu0
  %v1350 = vadd.f32 %v1217, %v1349
  %v1351 = vpop.f32.mrf.mxu0
  %v1352 = vadd.f32 %v1219, %v1351
  %1353 = vmatmul.bf16.gmra.mxu0 %v541
  %v1354 = vpop.f32.mrf.mxu0
  %v1355 = vadd.f32 %v1222, %v1354
  %v1356 = vpop.f32.mrf.mxu0
  %v1357 = vadd.f32 %v1224, %v1356
  %1358 = vmatmul.bf16.gmra.mxu0 %v545
  %v1359 = vpop.f32.mrf.mxu0
  %v1360 = vadd.f32 %v1227, %v1359
  %v1361 = vpop.f32.mrf.mxu0
  %v1362 = vadd.f32 %v1229, %v1361
  %1363 = vmatmul.bf16.gmra.mxu0 %v549
  %v1364 = vpop.f32.mrf.mxu0
  %v1365 = vadd.f32 %v1232, %v1364
  %v1366 = vpop.f32.mrf.mxu0
  %v1367 = vadd.f32 %v1234, %v1366
  %1368 = vmatmul.bf16.gmra.mxu0 %v553
  %v1369 = vpop.f32.mrf.mxu0
  %v1370 = vadd.f32 %v1237, %v1369
  %v1371 = vpop.f32.mrf.mxu0
  %v1372 = vadd.f32 %v1239, %v1371
  %1373 = vmatmul.bf16.gmra.mxu0 %v557
  %v1374 = vpop.f32.mrf.mxu0
  %v1375 = vadd.f32 %v1242, %v1374
  %v1376 = vpop.f32.mrf.mxu0
  %v1377 = vadd.f32 %v1244, %v1376
  %1378 = vmatmul.bf16.gmra.mxu0 %v561
  %v1379 = vpop.f32.mrf.mxu0
  %v1380 = vadd.f32 %v1247, %v1379
  %v1381 = vpop.f32.mrf.mxu0
  %v1382 = vadd.f32 %v1249, %v1381
  %1383 = vmatmul.bf16.gmra.mxu0 %v565
  %v1384 = vpop.f32.mrf.mxu0
  %v1385 = vadd.f32 %v1252, %v1384
  %v1386 = vpop.f32.mrf.mxu0
  %v1387 = vadd.f32 %v1254, %v1386
  %1388 = vmatmul.bf16.gmra.mxu0 %v569
  %v1389 = vpop.f32.mrf.mxu0
  %v1390 = vadd.f32 %v1257, %v1389
  %v1391 = vpop.f32.mrf.mxu0
  %v1392 = vadd.f32 %v1259, %v1391
  %1393 = vmatmul.bf16.gmra.mxu0 %v573
  %v1394 = vpop.f32.mrf.mxu0
  %v1395 = vadd.f32 %v1262, %v1394
  %v1396 = vpop.f32.mrf.mxu0
  %1397 = vdwg.mxu0
  %v1398 = vmax.f32 %v1275, 0.0
  %v1399 = vmax.f32 %v1277, 0.0
  %v1400 = vmax.f32 %v1280, 0.0
  %v1401 = vmax.f32 %v1282, 0.0
  %v1402 = vmax.f32 %v1285, 0.0
  %v1403 = vmax.f32 %v1287, 0.0
  %v1404 = vmax.f32 %v1290, 0.0
  %v1405 = vmax.f32 %v1292, 0.0
  %v1406 = vmax.f32 %v1295, 0.0
  %v1407 = vmax.f32 %v1297, 0.0
  %v1408 = vmax.f32 %v1300, 0.0
  %v1409 = vmax.f32 %v1302, 0.0
  %v1410 = vmax.f32 %v1305, 0.0
  %v1411 = vmax.f32 %v1307, 0.0
  %v1412 = vmax.f32 %v1310, 0.0
  %v1413 = vmax.f32 %v1312, 0.0
  %v1414 = vmax.f32 %v1315, 0.0
  %v1415 = vmax.f32 %v1317, 0.0
  %v1416 = vmax.f32 %v1320, 0.0
  %v1417 = vmax.f32 %v1322, 0.0
  %v1418 = vmax.f32 %v1325, 0.0
  %v1419 = vmax.f32 %v1327, 0.0
  %v1420 = vmax.f32 %v1330, 0.0
  %v1421 = vmax.f32 %v1332, 0.0
  %v1422 = vmax.f32 %v1335, 0.0
  %v1423 = vmax.f32 %v1337, 0.0
  %v1424 = vmax.f32 %v1340, 0.0
  %v1425 = vmax.f32 %v1342, 0.0
  %v1426 = vmax.f32 %v1345, 0.0
  %v1427 = vmax.f32 %v1347, 0.0
  %v1428 = vmax.f32 %v1350, 0.0
  %v1429 = vmax.f32 %v1352, 0.0
  %v1430 = vmax.f32 %v1355, 0.0
  %v1431 = vmax.f32 %v1357, 0.0
  %v1432 = vmax.f32 %v1360, 0.0
  %v1433 = vmax.f32 %v1362, 0.0
  %v1434 = vmax.f32 %v1365, 0.0
  %v1435 = vmax.f32 %v1367, 0.0
  %v1436 = vmax.f32 %v1370, 0.0
  %v1437 = vmax.f32 %v1372, 0.0
  %v1438 = vmax.f32 %v1375, 0.0
  %v1439 = vmax.f32 %v1377, 0.0
  %v1440 = vmax.f32 %v1380, 0.0
  %v1441 = vmax.f32 %v1382, 0.0
  %v1442 = vmax.f32 %v1385, 0.0
  %v1443 = vmax.f32 %v1387, 0.0
  %v1444 = vmax.f32 %v1390, 0.0
  %v1445 = vmax.f32 %v1392, 0.0
  %v1446 = vmax.f32 %v1395, 0.0
  %vm1447 = vcmask 261120
  %1448 = vst.msk [vmem:[%s3] sm:$0xff] %vm1447, %v1398
  %1449 = vst.msk [vmem:[%s3 + $0x8] sm:$0xff] %vm1447, %v1399
  %1450 = vst.msk [vmem:[%s3 + $0x10] sm:$0xff] %vm1447, %v1400
  %1451 = vst.msk [vmem:[%s3 + $0x18] sm:$0xff] %vm1447, %v1401
  %1452 = vst.msk [vmem:[%s3 + $0x20] sm:$0xff] %vm1447, %v1402
  %1453 = vst.msk [vmem:[%s3 + $0x28] sm:$0xff] %vm1447, %v1403
  %1454 = vst.msk [vmem:[%s3 + $0x30] sm:$0xff] %vm1447, %v1404
  %1455 = vst.msk [vmem:[%s3 + $0x38] sm:$0xff] %vm1447, %v1405
  %1456 = vst.msk [vmem:[%s3 + $0x40] sm:$0xff] %vm1447, %v1406
  %1457 = vst.msk [vmem:[%s3 + $0x48] sm:$0xff] %vm1447, %v1407
  %1458 = vst.msk [vmem:[%s3 + $0x50] sm:$0xff] %vm1447, %v1408
  %1459 = vst.msk [vmem:[%s3 + $0x58] sm:$0xff] %vm1447, %v1409
  %1460 = vst.msk [vmem:[%s3 + $0x60] sm:$0xff] %vm1447, %v1410
  %1461 = vst.msk [vmem:[%s3 + $0x68] sm:$0xff] %vm1447, %v1411
  %1462 = vst.msk [vmem:[%s3 + $0x70] sm:$0xff] %vm1447, %v1412
  %1463 = vst.msk [vmem:[%s3 + $0x78] sm:$0xff] %vm1447, %v1413
  %1464 = vst.msk [vmem:[%s3 + $0x80] sm:$0xff] %vm1447, %v1414
  %1465 = vst.msk [vmem:[%s3 + $0x88] sm:$0xff] %vm1447, %v1415
  %1466 = vst.msk [vmem:[%s3 + $0x90] sm:$0xff] %vm1447, %v1416
  %1467 = vst.msk [vmem:[%s3 + $0x98] sm:$0xff] %vm1447, %v1417
  %1468 = vst.msk [vmem:[%s3 + $0xa0] sm:$0xff] %vm1447, %v1418
  %1469 = vst.msk [vmem:[%s3 + $0xa8] sm:$0xff] %vm1447, %v1419
  %1470 = vst.msk [vmem:[%s3 + $0xb0] sm:$0xff] %vm1447, %v1420
  %1471 = vst.msk [vmem:[%s3 + $0xb8] sm:$0xff] %vm1447, %v1421
  %1472 = vst.msk [vmem:[%s3 + $0xc0] sm:$0xff] %vm1447, %v1422
  %1473 = vst.msk [vmem:[%s3 + $0xc8] sm:$0xff] %vm1447, %v1423
  %1474 = vst.msk [vmem:[%s3 + $0xd0] sm:$0xff] %vm1447, %v1424
  %1475 = vst.msk [vmem:[%s3 + $0xd8] sm:$0xff] %vm1447, %v1425
  %1476 = vst.msk [vmem:[%s3 + $0xe0] sm:$0xff] %vm1447, %v1426
  %1477 = vst.msk [vmem:[%s3 + $0xe8] sm:$0xff] %vm1447, %v1427
  %1478 = vst.msk [vmem:[%s3 + $0xf0] sm:$0xff] %vm1447, %v1428
  %1479 = vst.msk [vmem:[%s3 + $0xf8] sm:$0xff] %vm1447, %v1429
  %1480 = vst.msk [vmem:[%s3 + $0x100] sm:$0xff] %vm1447, %v1430
  %1481 = vst.msk [vmem:[%s3 + $0x108] sm:$0xff] %vm1447, %v1431
  %1482 = vst.msk [vmem:[%s3 + $0x110] sm:$0xff] %vm1447, %v1432
  %1483 = vst.msk [vmem:[%s3 + $0x118] sm:$0xff] %vm1447, %v1433
  %1484 = vst.msk [vmem:[%s3 + $0x120] sm:$0xff] %vm1447, %v1434
  %1485 = vst.msk [vmem:[%s3 + $0x128] sm:$0xff] %vm1447, %v1435
  %1486 = vst.msk [vmem:[%s3 + $0x130] sm:$0xff] %vm1447, %v1436
  %1487 = vst.msk [vmem:[%s3 + $0x138] sm:$0xff] %vm1447, %v1437
  %1488 = vst.msk [vmem:[%s3 + $0x140] sm:$0xff] %vm1447, %v1438
  %1489 = vst.msk [vmem:[%s3 + $0x148] sm:$0xff] %vm1447, %v1439
  %1490 = vst.msk [vmem:[%s3 + $0x150] sm:$0xff] %vm1447, %v1440
  %1491 = vst.msk [vmem:[%s3 + $0x158] sm:$0xff] %vm1447, %v1441
  %1492 = vst.msk [vmem:[%s3 + $0x160] sm:$0xff] %vm1447, %v1442
  %1493 = vst.msk [vmem:[%s3 + $0x168] sm:$0xff] %vm1447, %v1443
  %1494 = vst.msk [vmem:[%s3 + $0x170] sm:$0xff] %vm1447, %v1444
  %1495 = vst.msk [vmem:[%s3 + $0x178] sm:$0xff] %vm1447, %v1445
  %1496 = vst.msk [vmem:[%s3 + $0x180] sm:$0xff] %vm1447, %v1446
  // Predicated region
  $region14: #{vae_forward.10} parent=0 // pred_check
    _
  $region15: #{vae_forward.10} parent=0 // pred_check_branch
    %1498 = sbr.rel (0) target = $region17
  $region16: #{vae_forward.10} parent=0 // pred_region
    _
  $region17: #{vae_forward.10} parent=0 // pred_fallthru
    _
  // Predicated region
  $region18: #{vae_forward.10} parent=0 // pred_check
    _
  $region19: #{vae_forward.10} parent=0 // pred_check_branch
    %1500 = sbr.rel (0) target = $region21
  $region20: #{vae_forward.10} parent=0 // pred_region
    _
  $region21: #{vae_forward.10} parent=0 // pred_fallthru
    _

// kernel: vae_forward.11
$region0: #{vae_forward.11}
  #allocation0 [shape = 'u32[]', space=smem, size = 0x4, offset = 0x4, fixed_abs, tag = 'smem constant byte address 0x4 - core index']
  #allocation1 [shape = 'u32[72,128]{1,0:T(1,128)}', space=vmem, size = 0x9000, scoped, tag = 'internal scratch']
  %s0 = inlined_call_operand.vmem [shape: bf16[98,512], index: 0, kind: input, shape index: {}]
  %s1 = inlined_call_operand.vmem [shape: bf16[512,64], index: 1, kind: input, shape index: {}]
  %s2 = inlined_call_operand.vmem [shape: f32[1,64], index: 2, kind: input, shape index: {}]
  %s3 = inlined_call_operand.vmem [shape: f32[98,64], index: 3, kind: output, shape index: {}]
  %s4 = sld [smem:[#allocation0]]
  $region22: #{vae_forward.11} parent=0
    _
  %s6 = ssub.s32 1, %s4
  %s7 = scalar_select 0, %s6, %s4
  // Predicated region
  $region2: #{vae_forward.11} parent=0 // pred_check
    _
  $region3: #{vae_forward.11} parent=0 // pred_check_branch
    %9 = sbr.rel (0) target = $region5
  $region4: #{vae_forward.11} parent=0 // pred_region
    _
  $region5: #{vae_forward.11} parent=0 // pred_fallthru
    _
  // Predicated region
  $region6: #{vae_forward.11} parent=0 // pred_check
    _
  $region7: #{vae_forward.11} parent=0 // pred_check_branch
    %11 = sbr.rel (0) target = $region9
  $region8: #{vae_forward.11} parent=0 // pred_region
    _
  $region9: #{vae_forward.11} parent=0 // pred_fallthru
    _
  // Predicated region
  $region10: #{vae_forward.11} parent=0 // pred_check
    _
  $region11: #{vae_forward.11} parent=0 // pred_check_branch
    %13 = sbr.rel (0) target = $region13
  $region12: #{vae_forward.11} parent=0 // pred_region
    _
  $region13: #{vae_forward.11} parent=0 // pred_fallthru
    _
  %v14 = vld [vmem:[%s0] sm:$0xff]
  %v15 = vld [vmem:[%s0 + $0x8] sm:$0xff]
  %v16 = vld [vmem:[%s0 + $0x10] sm:$0xff]
  %v17 = vld [vmem:[%s0 + $0x18] sm:$0xff]
  %v18 = vld [vmem:[%s0 + $0x20] sm:$0xff]
  %v19 = vld [vmem:[%s0 + $0x28] sm:$0xff]
  %v20 = vld [vmem:[%s0 + $0x30] sm:$0xff]
  %v21 = vld [vmem:[%s0 + $0x38] sm:$0xff]
  %v22 = vld [vmem:[%s0 + $0x40] sm:$0xff]
  %v23 = vld [vmem:[%s0 + $0x48] sm:$0xff]
  %v24 = vld [vmem:[%s0 + $0x50] sm:$0xff]
  %v25 = vld [vmem:[%s0 + $0x58] sm:$0xff]
  %v26 = vld [vmem:[%s0 + $0x60] sm:$0xff]
  %v27 = vld [vmem:[%s0 + $0x68] sm:$0xff]
  %v28 = vld [vmem:[%s0 + $0x70] sm:$0xff]
  %v29 = vld [vmem:[%s0 + $0x78] sm:$0xff]
  %v30 = vld [vmem:[%s0 + $0x80] sm:$0xff]
  %v31 = vld [vmem:[%s0 + $0x88] sm:$0xff]
  %v32 = vld [vmem:[%s0 + $0x90] sm:$0xff]
  %v33 = vld [vmem:[%s0 + $0x98] sm:$0xff]
  %v34 = vld [vmem:[%s0 + $0xa0] sm:$0xff]
  %v35 = vld [vmem:[%s0 + $0xa8] sm:$0xff]
  %v36 = vld [vmem:[%s0 + $0xb0] sm:$0xff]
  %v37 = vld [vmem:[%s0 + $0xb8] sm:$0xff]
  %v38 = vld [vmem:[%s0 + $0xc0] sm:$0x11]
  %v39 = vld [vmem:[%s0 + $0xc8] sm:$0x11]
  %v40 = vld [vmem:[%s1] sm:$0xf]
  %v41 = vld [vmem:[%s1 + $0x4] sm:$0xf]
  %v42 = vld [vmem:[%s1 + $0x8] sm:$0xf]
  %v43 = vld [vmem:[%s1 + $0xc] sm:$0xf]
  %v44 = vld [vmem:[%s1 + $0x10] sm:$0xf]
  %v45 = vld [vmem:[%s1 + $0x14] sm:$0xf]
  %v46 = vld [vmem:[%s1 + $0x18] sm:$0xf]
  %v47 = vld [vmem:[%s1 + $0x1c] sm:$0xf]
  %v48 = vld [vmem:[%s1 + $0x20] sm:$0xf]
  %v49 = vld [vmem:[%s1 + $0x24] sm:$0xf]
  %v50 = vld [vmem:[%s1 + $0x28] sm:$0xf]
  %v51 = vld [vmem:[%s1 + $0x2c] sm:$0xf]
  %v52 = vld [vmem:[%s1 + $0x30] sm:$0xf]
  %v53 = vld [vmem:[%s1 + $0x34] sm:$0xf]
  %v54 = vld [vmem:[%s1 + $0x38] sm:$0xf]
  %v55 = vld [vmem:[%s1 + $0x3c] sm:$0xf]
  %v56 = vld [vmem:[%s1 + $0x40] sm:$0xf]
  %v57 = vld [vmem:[%s1 + $0x44] sm:$0xf]
  %v58 = vld [vmem:[%s1 + $0x48] sm:$0xf]
  %v59 = vld [vmem:[%s1 + $0x4c] sm:$0xf]
  %v60 = vld [vmem:[%s1 + $0x50] sm:$0xf]
  %v61 = vld [vmem:[%s1 + $0x54] sm:$0xf]
  %v62 = vld [vmem:[%s1 + $0x58] sm:$0xf]
  %v63 = vld [vmem:[%s1 + $0x5c] sm:$0xf]
  %v64 = vld [vmem:[%s1 + $0x60] sm:$0xf]
  %v65 = vld [vmem:[%s1 + $0x64] sm:$0xf]
  %v66 = vld [vmem:[%s1 + $0x68] sm:$0xf]
  %v67 = vld [vmem:[%s1 + $0x6c] sm:$0xf]
  %v68 = vld [vmem:[%s1 + $0x70] sm:$0xf]
  %v69 = vld [vmem:[%s1 + $0x74] sm:$0xf]
  %v70 = vld [vmem:[%s1 + $0x78] sm:$0xf]
  %v71 = vld [vmem:[%s1 + $0x7c] sm:$0xf]
  %v72 = vld [vmem:[%s1 + $0x80] sm:$0xf]
  %v73 = vld [vmem:[%s1 + $0x84] sm:$0xf]
  %v74 = vld [vmem:[%s1 + $0x88] sm:$0xf]
  %v75 = vld [vmem:[%s1 + $0x8c] sm:$0xf]
  %v76 = vld [vmem:[%s1 + $0x90] sm:$0xf]
  %v77 = vld [vmem:[%s1 + $0x94] sm:$0xf]
  %v78 = vld [vmem:[%s1 + $0x98] sm:$0xf]
  %v79 = vld [vmem:[%s1 + $0x9c] sm:$0xf]
  %v80 = vld [vmem:[%s1 + $0xa0] sm:$0xf]
  %v81 = vld [vmem:[%s1 + $0xa4] sm:$0xf]
  %v82 = vld [vmem:[%s1 + $0xa8] sm:$0xf]
  %v83 = vld [vmem:[%s1 + $0xac] sm:$0xf]
  %v84 = vld [vmem:[%s1 + $0xb0] sm:$0xf]
  %v85 = vld [vmem:[%s1 + $0xb4] sm:$0xf]
  %v86 = vld [vmem:[%s1 + $0xb8] sm:$0xf]
  %v87 = vld [vmem:[%s1 + $0xbc] sm:$0xf]
  %v88 = vld [vmem:[%s1 + $0xc0] sm:$0xf]
  %v89 = vld [vmem:[%s1 + $0xc4] sm:$0xf]
  %v90 = vld [vmem:[%s1 + $0xc8] sm:$0xf]
  %v91 = vld [vmem:[%s1 + $0xcc] sm:$0xf]
  %v92 = vld [vmem:[%s1 + $0xd0] sm:$0xf]
  %v93 = vld [vmem:[%s1 + $0xd4] sm:$0xf]
  %v94 = vld [vmem:[%s1 + $0xd8] sm:$0xf]
  %v95 = vld [vmem:[%s1 + $0xdc] sm:$0xf]
  %v96 = vld [vmem:[%s1 + $0xe0] sm:$0xf]
  %v97 = vld [vmem:[%s1 + $0xe4] sm:$0xf]
  %v98 = vld [vmem:[%s1 + $0xe8] sm:$0xf]
  %v99 = vld [vmem:[%s1 + $0xec] sm:$0xf]
  %v100 = vld [vmem:[%s1 + $0xf0] sm:$0xf]
  %v101 = vld [vmem:[%s1 + $0xf4] sm:$0xf]
  %v102 = vld [vmem:[%s1 + $0xf8] sm:$0xf]
  %v103 = vld [vmem:[%s1 + $0xfc] sm:$0xf]
  %v104 = vld [vmem:[%s2] sm:$0x1]
  %v106 = vperm.slane %v104, 0
  %v134 = vunpack.c.l.b16 %v14
  %v135 = vunpack.c.h.b16 %v14
  %v136 = vunpack.c.l.b16 %v15
  %v137 = vunpack.c.h.b16 %v15
  %v138 = vunpack.c.l.b16 %v16
  %v139 = vunpack.c.h.b16 %v16
  %v140 = vunpack.c.l.b16 %v17
  %v141 = vunpack.c.h.b16 %v17
  %v142 = vunpack.c.l.b16 %v18
  %v143 = vunpack.c.h.b16 %v18
  %v144 = vunpack.c.l.b16 %v19
  %v145 = vunpack.c.h.b16 %v19
  %v146 = vunpack.c.l.b16 %v20
  %v147 = vunpack.c.h.b16 %v20
  %v148 = vunpack.c.l.b16 %v21
  %v149 = vunpack.c.h.b16 %v21
  %v150 = vunpack.c.l.b16 %v22
  %v151 = vunpack.c.h.b16 %v22
  %v152 = vunpack.c.l.b16 %v23
  %v153 = vunpack.c.h.b16 %v23
  %v154 = vunpack.c.l.b16 %v24
  %v155 = vunpack.c.h.b16 %v24
  %v156 = vunpack.c.l.b16 %v25
  %v157 = vunpack.c.h.b16 %v25
  %v158 = vunpack.c.l.b16 %v26
  %v159 = vunpack.c.h.b16 %v26
  %v160 = vunpack.c.l.b16 %v27
  %v161 = vunpack.c.h.b16 %v27
  %v162 = vunpack.c.l.b16 %v28
  %v163 = vunpack.c.h.b16 %v28
  %v164 = vunpack.c.l.b16 %v29
  %v165 = vunpack.c.h.b16 %v29
  %v166 = vunpack.c.l.b16 %v30
  %v167 = vunpack.c.h.b16 %v30
  %v168 = vunpack.c.l.b16 %v31
  %v169 = vunpack.c.h.b16 %v31
  %v170 = vunpack.c.l.b16 %v32
  %v171 = vunpack.c.h.b16 %v32
  %v172 = vunpack.c.l.b16 %v33
  %v173 = vunpack.c.h.b16 %v33
  %v174 = vunpack.c.l.b16 %v34
  %v175 = vunpack.c.h.b16 %v34
  %v176 = vunpack.c.l.b16 %v35
  %v177 = vunpack.c.h.b16 %v35
  %v178 = vunpack.c.l.b16 %v36
  %v179 = vunpack.c.h.b16 %v36
  %v180 = vunpack.c.l.b16 %v37
  %v181 = vunpack.c.h.b16 %v37
  %v182 = vunpack.c.l.b16 %v38
  %v183 = vunpack.c.h.b16 %v38
  %v184 = vunpack.c.l.b16 %v39
  %v185 = vunpack.c.h.b16 %v39
  %v186 = vpack.c.b16 %v138, %v134
  %v187 = vpack.c.b16 %v139, %v135
  %v188 = vpack.c.b16 %v140, %v136
  %v189 = vpack.c.b16 %v141, %v137
  %v190 = vpack.c.b16 %v146, %v142
  %v191 = vpack.c.b16 %v147, %v143
  %v192 = vpack.c.b16 %v148, %v144
  %v193 = vpack.c.b16 %v149, %v145
  %v194 = vpack.c.b16 %v154, %v150
  %v195 = vpack.c.b16 %v155, %v151
  %v196 = vpack.c.b16 %v156, %v152
  %v197 = vpack.c.b16 %v157, %v153
  %v198 = vpack.c.b16 %v162, %v158
  %v199 = vpack.c.b16 %v163, %v159
  %v200 = vpack.c.b16 %v164, %v160
  %v201 = vpack.c.b16 %v165, %v161
  %v202 = vpack.c.b16 %v170, %v166
  %v203 = vpack.c.b16 %v171, %v167
  %v204 = vpack.c.b16 %v172, %v168
  %v205 = vpack.c.b16 %v173, %v169
  %v206 = vpack.c.b16 %v178, %v174
  %v207 = vpack.c.b16 %v179, %v175
  %v208 = vpack.c.b16 %v180, %v176
  %v209 = vpack.c.b16 %v181, %v177
  %v210 = vpack.c.b16 %v182, %v182
  %v211 = vpack.c.b16 %v183, %v183
  %v212 = vpack.c.b16 %v184, %v184
  %v213 = vpack.c.b16 %v185, %v185
  %v306 = vunpack.c.l.b16 %v40
  %v307 = vunpack.c.l.b16 %v41
  %v308 = vunpack.c.l.b16 %v42
  %v309 = vunpack.c.l.b16 %v43
  %v310 = vunpack.c.l.b16 %v44
  %v311 = vunpack.c.l.b16 %v45
  %v312 = vunpack.c.l.b16 %v46
  %v313 = vunpack.c.l.b16 %v47
  %v314 = vunpack.c.l.b16 %v48
  %v315 = vunpack.c.l.b16 %v49
  %v316 = vunpack.c.l.b16 %v50
  %v317 = vunpack.c.l.b16 %v51
  %v318 = vunpack.c.l.b16 %v52
  %v319 = vunpack.c.l.b16 %v53
  %v320 = vunpack.c.l.b16 %v54
  %v321 = vunpack.c.l.b16 %v55
  %v322 = vunpack.c.l.b16 %v56
  %v323 = vunpack.c.l.b16 %v57
  %v324 = vunpack.c.l.b16 %v58
  %v325 = vunpack.c.l.b16 %v59
  %v326 = vunpack.c.l.b16 %v60
  %v327 = vunpack.c.l.b16 %v61
  %v328 = vunpack.c.l.b16 %v62
  %v329 = vunpack.c.l.b16 %v63
  %v330 = vunpack.c.l.b16 %v64
  %v331 = vunpack.c.l.b16 %v65
  %v332 = vunpack.c.l.b16 %v66
  %v333 = vunpack.c.l.b16 %v67
  %v334 = vunpack.c.l.b16 %v68
  %v335 = vunpack.c.l.b16 %v69
  %v336 = vunpack.c.l.b16 %v70
  %v337 = vunpack.c.l.b16 %v71
  %v338 = vunpack.c.l.b16 %v72
  %v339 = vunpack.c.l.b16 %v73
  %v340 = vunpack.c.l.b16 %v74
  %v341 = vunpack.c.l.b16 %v75
  %v342 = vunpack.c.l.b16 %v76
  %v343 = vunpack.c.l.b16 %v77
  %v344 = vunpack.c.l.b16 %v78
  %v345 = vunpack.c.l.b16 %v79
  %v346 = vunpack.c.l.b16 %v80
  %v347 = vunpack.c.l.b16 %v81
  %v348 = vunpack.c.l.b16 %v82
  %v349 = vunpack.c.l.b16 %v83
  %v350 = vunpack.c.l.b16 %v84
  %v351 = vunpack.c.l.b16 %v85
  %v352 = vunpack.c.l.b16 %v86
  %v353 = vunpack.c.l.b16 %v87
  %v354 = vunpack.c.l.b16 %v88
  %v355 = vunpack.c.l.b16 %v89
  %v356 = vunpack.c.l.b16 %v90
  %v357 = vunpack.c.l.b16 %v91
  %v358 = vunpack.c.l.b16 %v92
  %v359 = vunpack.c.l.b16 %v93
  %v360 = vunpack.c.l.b16 %v94
  %v361 = vunpack.c.l.b16 %v95
  %v362 = vunpack.c.l.b16 %v96
  %v363 = vunpack.c.l.b16 %v97
  %v364 = vunpack.c.l.b16 %v98
  %v365 = vunpack.c.l.b16 %v99
  %v366 = vunpack.c.l.b16 %v100
  %v367 = vunpack.c.l.b16 %v101
  %v368 = vunpack.c.l.b16 %v102
  %v369 = vunpack.c.l.b16 %v103
  %v370 = vpack.c.b16 %v307, %v306
  %v371 = vpack.c.b16 %v309, %v308
  %v372 = vpack.c.b16 %v311, %v310
  %v373 = vpack.c.b16 %v313, %v312
  %v374 = vpack.c.b16 %v315, %v314
  %v375 = vpack.c.b16 %v317, %v316
  %v376 = vpack.c.b16 %v319, %v318
  %v377 = vpack.c.b16 %v321, %v320
  %v378 = vpack.c.b16 %v323, %v322
  %v379 = vpack.c.b16 %v325, %v324
  %v380 = vpack.c.b16 %v327, %v326
  %v381 = vpack.c.b16 %v329, %v328
  %v382 = vpack.c.b16 %v331, %v330
  %v383 = vpack.c.b16 %v333, %v332
  %v384 = vpack.c.b16 %v335, %v334
  %v385 = vpack.c.b16 %v337, %v336
  %v386 = vpack.c.b16 %v339, %v338
  %v387 = vpack.c.b16 %v341, %v340
  %v388 = vpack.c.b16 %v343, %v342
  %v389 = vpack.c.b16 %v345, %v344
  %v390 = vpack.c.b16 %v347, %v346
  %v391 = vpack.c.b16 %v349, %v348
  %v392 = vpack.c.b16 %v351, %v350
  %v393 = vpack.c.b16 %v353, %v352
  %v394 = vpack.c.b16 %v355, %v354
  %v395 = vpack.c.b16 %v357, %v356
  %v396 = vpack.c.b16 %v359, %v358
  %v397 = vpack.c.b16 %v361, %v360
  %v398 = vpack.c.b16 %v363, %v362
  %v399 = vpack.c.b16 %v365, %v364
  %v400 = vpack.c.b16 %v367, %v366
  %v401 = vpack.c.b16 %v369, %v368
  %434 = vmatpush.bf16.msra.mxu0 %v377
  %435 = vmatpush.bf16.msra.mxu0 %v376
  %436 = vmatpush.bf16.msra.mxu0 %v375
  %437 = vmatpush.bf16.msra.mxu0 %v374
  %438 = vmatpush.bf16.msra.mxu0 %v373
  %439 = vmatpush.bf16.msra.mxu0 %v372
  %440 = vmatpush.bf16.msra.mxu0 %v371
  %441 = vmatpush.bf16.msra.mxu0 %v370
  %442 = vmatmul.bf16.gmra.mxu0 %v186
  %v443 = vpop.f32.mrf.mxu0
  %v444 = vadd.f32 %v106, %v443
  %v445 = vpop.f32.mrf.mxu0
  %v446 = vadd.f32 %v106, %v445
  %447 = vmatmul.bf16.gmra.mxu0 %v190
  %v448 = vpop.f32.mrf.mxu0
  %v449 = vadd.f32 %v106, %v448
  %v450 = vpop.f32.mrf.mxu0
  %v451 = vadd.f32 %v106, %v450
  %452 = vmatmul.bf16.gmra.mxu0 %v194
  %v453 = vpop.f32.mrf.mxu0
  %v454 = vadd.f32 %v106, %v453
  %v455 = vpop.f32.mrf.mxu0
  %v456 = vadd.f32 %v106, %v455
  %457 = vmatmul.bf16.gmra.mxu0 %v198
  %v458 = vpop.f32.mrf.mxu0
  %v459 = vadd.f32 %v106, %v458
  %v460 = vpop.f32.mrf.mxu0
  %v461 = vadd.f32 %v106, %v460
  %462 = vmatmul.bf16.gmra.mxu0 %v202
  %v463 = vpop.f32.mrf.mxu0
  %v464 = vadd.f32 %v106, %v463
  %v465 = vpop.f32.mrf.mxu0
  %v466 = vadd.f32 %v106, %v465
  %467 = vmatmul.bf16.gmra.mxu0 %v206
  %v468 = vpop.f32.mrf.mxu0
  %v469 = vadd.f32 %v106, %v468
  %v470 = vpop.f32.mrf.mxu0
  %v471 = vadd.f32 %v106, %v470
  %472 = vmatmul.bf16.gmra.mxu0 %v210
  %v473 = vpop.f32.mrf.mxu0
  %v474 = vadd.f32 %v106, %v473
  %v475 = vpop.f32.mrf.mxu0
  %476 = vdwg.mxu0
  %477 = vmatpush.bf16.msra.mxu0 %v385
  %478 = vmatpush.bf16.msra.mxu0 %v384
  %479 = vmatpush.bf16.msra.mxu0 %v383
  %480 = vmatpush.bf16.msra.mxu0 %v382
  %481 = vmatpush.bf16.msra.mxu0 %v381
  %482 = vmatpush.bf16.msra.mxu0 %v380
  %483 = vmatpush.bf16.msra.mxu0 %v379
  %484 = vmatpush.bf16.msra.mxu0 %v378
  %485 = vmatmul.bf16.gmra.mxu0 %v187
  %v486 = vpop.f32.mrf.mxu0
  %v487 = vadd.f32 %v444, %v486
  %v488 = vpop.f32.mrf.mxu0
  %v489 = vadd.f32 %v446, %v488
  %490 = vmatmul.bf16.gmra.mxu0 %v191
  %v491 = vpop.f32.mrf.mxu0
  %v492 = vadd.f32 %v449, %v491
  %v493 = vpop.f32.mrf.mxu0
  %v494 = vadd.f32 %v451, %v493
  %495 = vmatmul.bf16.gmra.mxu0 %v195
  %v496 = vpop.f32.mrf.mxu0
  %v497 = vadd.f32 %v454, %v496
  %v498 = vpop.f32.mrf.mxu0
  %v499 = vadd.f32 %v456, %v498
  %500 = vmatmul.bf16.gmra.mxu0 %v199
  %v501 = vpop.f32.mrf.mxu0
  %v502 = vadd.f32 %v459, %v501
  %v503 = vpop.f32.mrf.mxu0
  %v504 = vadd.f32 %v461, %v503
  %505 = vmatmul.bf16.gmra.mxu0 %v203
  %v506 = vpop.f32.mrf.mxu0
  %v507 = vadd.f32 %v464, %v506
  %v508 = vpop.f32.mrf.mxu0
  %v509 = vadd.f32 %v466, %v508
  %510 = vmatmul.bf16.gmra.mxu0 %v207
  %v511 = vpop.f32.mrf.mxu0
  %v512 = vadd.f32 %v469, %v511
  %v513 = vpop.f32.mrf.mxu0
  %v514 = vadd.f32 %v471, %v513
  %515 = vmatmul.bf16.gmra.mxu0 %v211
  %v516 = vpop.f32.mrf.mxu0
  %v517 = vadd.f32 %v474, %v516
  %v518 = vpop.f32.mrf.mxu0
  %519 = vdwg.mxu0
  %520 = vmatpush.bf16.msra.mxu0 %v393
  %521 = vmatpush.bf16.msra.mxu0 %v392
  %522 = vmatpush.bf16.msra.mxu0 %v391
  %523 = vmatpush.bf16.msra.mxu0 %v390
  %524 = vmatpush.bf16.msra.mxu0 %v389
  %525 = vmatpush.bf16.msra.mxu0 %v388
  %526 = vmatpush.bf16.msra.mxu0 %v387
  %527 = vmatpush.bf16.msra.mxu0 %v386
  %528 = vmatmul.bf16.gmra.mxu0 %v188
  %v529 = vpop.f32.mrf.mxu0
  %v530 = vadd.f32 %v487, %v529
  %v531 = vpop.f32.mrf.mxu0
  %v532 = vadd.f32 %v489, %v531
  %533 = vmatmul.bf16.gmra.mxu0 %v192
  %v534 = vpop.f32.mrf.mxu0
  %v535 = vadd.f32 %v492, %v534
  %v536 = vpop.f32.mrf.mxu0
  %v537 = vadd.f32 %v494, %v536
  %538 = vmatmul.bf16.gmra.mxu0 %v196
  %v539 = vpop.f32.mrf.mxu0
  %v540 = vadd.f32 %v497, %v539
  %v541 = vpop.f32.mrf.mxu0
  %v542 = vadd.f32 %v499, %v541
  %543 = vmatmul.bf16.gmra.mxu0 %v200
  %v544 = vpop.f32.mrf.mxu0
  %v545 = vadd.f32 %v502, %v544
  %v546 = vpop.f32.mrf.mxu0
  %v547 = vadd.f32 %v504, %v546
  %548 = vmatmul.bf16.gmra.mxu0 %v204
  %v549 = vpop.f32.mrf.mxu0
  %v550 = vadd.f32 %v507, %v549
  %v551 = vpop.f32.mrf.mxu0
  %v552 = vadd.f32 %v509, %v551
  %553 = vmatmul.bf16.gmra.mxu0 %v208
  %v554 = vpop.f32.mrf.mxu0
  %v555 = vadd.f32 %v512, %v554
  %v556 = vpop.f32.mrf.mxu0
  %v557 = vadd.f32 %v514, %v556
  %558 = vmatmul.bf16.gmra.mxu0 %v212
  %v559 = vpop.f32.mrf.mxu0
  %v560 = vadd.f32 %v517, %v559
  %v561 = vpop.f32.mrf.mxu0
  %562 = vdwg.mxu0
  %563 = vmatpush.bf16.msra.mxu0 %v401
  %564 = vmatpush.bf16.msra.mxu0 %v400
  %565 = vmatpush.bf16.msra.mxu0 %v399
  %566 = vmatpush.bf16.msra.mxu0 %v398
  %567 = vmatpush.bf16.msra.mxu0 %v397
  %568 = vmatpush.bf16.msra.mxu0 %v396
  %569 = vmatpush.bf16.msra.mxu0 %v395
  %570 = vmatpush.bf16.msra.mxu0 %v394
  %571 = vmatmul.bf16.gmra.mxu0 %v189
  %v572 = vpop.f32.mrf.mxu0
  %v573 = vadd.f32 %v530, %v572
  %v574 = vpop.f32.mrf.mxu0
  %v575 = vadd.f32 %v532, %v574
  %576 = vmatmul.bf16.gmra.mxu0 %v193
  %v577 = vpop.f32.mrf.mxu0
  %v578 = vadd.f32 %v535, %v577
  %v579 = vpop.f32.mrf.mxu0
  %v580 = vadd.f32 %v537, %v579
  %581 = vmatmul.bf16.gmra.mxu0 %v197
  %v582 = vpop.f32.mrf.mxu0
  %v583 = vadd.f32 %v540, %v582
  %v584 = vpop.f32.mrf.mxu0
  %v585 = vadd.f32 %v542, %v584
  %586 = vmatmul.bf16.gmra.mxu0 %v201
  %v587 = vpop.f32.mrf.mxu0
  %v588 = vadd.f32 %v545, %v587
  %v589 = vpop.f32.mrf.mxu0
  %v590 = vadd.f32 %v547, %v589
  %591 = vmatmul.bf16.gmra.mxu0 %v205
  %v592 = vpop.f32.mrf.mxu0
  %v593 = vadd.f32 %v550, %v592
  %v594 = vpop.f32.mrf.mxu0
  %v595 = vadd.f32 %v552, %v594
  %596 = vmatmul.bf16.gmra.mxu0 %v209
  %v597 = vpop.f32.mrf.mxu0
  %v598 = vadd.f32 %v555, %v597
  %v599 = vpop.f32.mrf.mxu0
  %v600 = vadd.f32 %v557, %v599
  %601 = vmatmul.bf16.gmra.mxu0 %v213
  %v602 = vpop.f32.mrf.mxu0
  %v603 = vadd.f32 %v560, %v602
  %v604 = vpop.f32.mrf.mxu0
  %605 = vdwg.mxu0
  %vm606 = vcmask 523264
  %607 = vst.msk [vmem:[%s3] sm:$0xff] %vm606, %v573
  %608 = vst.msk [vmem:[%s3 + $0x8] sm:$0xff] %vm606, %v575
  %609 = vst.msk [vmem:[%s3 + $0x10] sm:$0xff] %vm606, %v578
  %610 = vst.msk [vmem:[%s3 + $0x18] sm:$0xff] %vm606, %v580
  %611 = vst.msk [vmem:[%s3 + $0x20] sm:$0xff] %vm606, %v583
  %612 = vst.msk [vmem:[%s3 + $0x28] sm:$0xff] %vm606, %v585
  %613 = vst.msk [vmem:[%s3 + $0x30] sm:$0xff] %vm606, %v588
  %614 = vst.msk [vmem:[%s3 + $0x38] sm:$0xff] %vm606, %v590
  %615 = vst.msk [vmem:[%s3 + $0x40] sm:$0xff] %vm606, %v593
  %616 = vst.msk [vmem:[%s3 + $0x48] sm:$0xff] %vm606, %v595
  %617 = vst.msk [vmem:[%s3 + $0x50] sm:$0xff] %vm606, %v598
  %618 = vst.msk [vmem:[%s3 + $0x58] sm:$0xff] %vm606, %v600
  %vm619 = vcmask 517120
  %620 = vst.msk [vmem:[%s3 + $0x60] sm:$0x3] %vm619, %v603
  // Predicated region
  $region14: #{vae_forward.11} parent=0 // pred_check
    _
  $region15: #{vae_forward.11} parent=0 // pred_check_branch
    %622 = sbr.rel (0) target = $region17
  $region16: #{vae_forward.11} parent=0 // pred_region
    _
  $region17: #{vae_forward.11} parent=0 // pred_fallthru
    _
  // Predicated region
  $region18: #{vae_forward.11} parent=0 // pred_check
    _
  $region19: #{vae_forward.11} parent=0 // pred_check_branch
    %624 = sbr.rel (0) target = $region21
  $region20: #{vae_forward.11} parent=0 // pred_region
    _
  $region21: #{vae_forward.11} parent=0 // pred_fallthru
    _

// kernel: vae_forward.13
$region0: #{vae_forward.13}
  #allocation0 [shape = 'u32[]', space=smem, size = 0x4, offset = 0x4, fixed_abs, tag = 'smem constant byte address 0x4 - core index']
  #allocation1 [shape = 'u32[72,128]{1,0:T(1,128)}', space=vmem, size = 0x9000, scoped, tag = 'internal scratch']
  %s0 = inlined_call_operand.vmem [shape: bf16[2,16], index: 0, kind: input, shape index: {}]
  %s1 = inlined_call_operand.vmem [shape: bf16[16,3136], index: 1, kind: input, shape index: {}]
  %s2 = inlined_call_operand.vmem [shape: f32[1,3136], index: 2, kind: input, shape index: {}]
  %s3 = inlined_call_operand.vmem [shape: f32[2,3136], index: 3, kind: output, shape index: {}]
  %s4 = sld [smem:[#allocation0]]
  $region22: #{vae_forward.13} parent=0
    _
  %s6 = ssub.s32 1, %s4
  %s7 = scalar_select 0, %s6, %s4
  // Predicated region
  $region2: #{vae_forward.13} parent=0 // pred_check
    _
  $region3: #{vae_forward.13} parent=0 // pred_check_branch
    %9 = sbr.rel (0) target = $region5
  $region4: #{vae_forward.13} parent=0 // pred_region
    _
  $region5: #{vae_forward.13} parent=0 // pred_fallthru
    _
  // Predicated region
  $region6: #{vae_forward.13} parent=0 // pred_check
    _
  $region7: #{vae_forward.13} parent=0 // pred_check_branch
    %11 = sbr.rel (0) target = $region9
  $region8: #{vae_forward.13} parent=0 // pred_region
    _
  $region9: #{vae_forward.13} parent=0 // pred_fallthru
    _
  // Predicated region
  $region10: #{vae_forward.13} parent=0 // pred_check
    _
  $region11: #{vae_forward.13} parent=0 // pred_check_branch
    %13 = sbr.rel (0) target = $region13
  $region12: #{vae_forward.13} parent=0 // pred_region
    _
  $region13: #{vae_forward.13} parent=0 // pred_fallthru
    _
  %v15 = vld [vmem:[%s0] sm:$0x1]
  %v16 = vld [vmem:[%s1] sm:$0xff]
  %v17 = vld [vmem:[%s1 + $0x8] sm:$0xff]
  %v18 = vld [vmem:[%s1 + $0x10] sm:$0xff]
  %v19 = vld [vmem:[%s1 + $0x18] sm:$0xff]
  %v20 = vld [vmem:[%s1 + $0x20] sm:$0xff]
  %v21 = vld [vmem:[%s1 + $0x28] sm:$0xff]
  %v22 = vld [vmem:[%s1 + $0x30] sm:$0xff]
  %v23 = vld [vmem:[%s1 + $0x38] sm:$0xff]
  %v24 = vld [vmem:[%s1 + $0x40] sm:$0xff]
  %v25 = vld [vmem:[%s1 + $0x48] sm:$0xff]
  %v26 = vld [vmem:[%s1 + $0x50] sm:$0xff]
  %v27 = vld [vmem:[%s1 + $0x58] sm:$0xff]
  %v28 = vld [vmem:[%s1 + $0x60] sm:$0xf]
  %v29 = vld [vmem:[%s1 + $0x64] sm:$0xff]
  %v30 = vld [vmem:[%s1 + $0x6c] sm:$0xff]
  %v31 = vld [vmem:[%s1 + $0x74] sm:$0xff]
  %v32 = vld [vmem:[%s1 + $0x7c] sm:$0xff]
  %v33 = vld [vmem:[%s1 + $0x84] sm:$0xff]
  %v34 = vld [vmem:[%s1 + $0x8c] sm:$0xff]
  %v35 = vld [vmem:[%s1 + $0x94] sm:$0xff]
  %v36 = vld [vmem:[%s1 + $0x9c] sm:$0xff]
  %v37 = vld [vmem:[%s1 + $0xa4] sm:$0xff]
  %v38 = vld [vmem:[%s1 + $0xac] sm:$0xff]
  %v39 = vld [vmem:[%s1 + $0xb4] sm:$0xff]
  %v40 = vld [vmem:[%s1 + $0xbc] sm:$0xff]
  %v41 = vld [vmem:[%s1 + $0xc4] sm:$0xf]
  %v42 = vld [vmem:[%s2] sm:$0xff]
  %v43 = vld [vmem:[%s2 + $0x8] sm:$0xff]
  %v44 = vld [vmem:[%s2 + $0x10] sm:$0xff]
  %v45 = vld [vmem:[%s2 + $0x18] sm:$0x1]
  %v50 = vperm.slane %v42, 0
  %v51 = vperm.slane %v42, 1
  %v52 = vperm.slane %v42, 2
  %v53 = vperm.slane %v42, 3
  %v54 = vperm.slane %v42, 4
  %v55 = vperm.slane %v42, 5
  %v56 = vperm.slane %v42, 6
  %v57 = vperm.slane %v42, 7
  %v58 = vperm.slane %v43, 0
  %v59 = vperm.slane %v43, 1
  %v60 = vperm.slane %v43, 2
  %v61 = vperm.slane %v43, 3
  %v62 = vperm.slane %v43, 4
  %v63 = vperm.slane %v43, 5
  %v64 = vperm.slane %v43, 6
  %v65 = vperm.slane %v43, 7
  %v66 = vperm.slane %v44, 0
  %v67 = vperm.slane %v44, 1
  %v68 = vperm.slane %v44, 2
  %v69 = vperm.slane %v44, 3
  %v70 = vperm.slane %v44, 4
  %v71 = vperm.slane %v44, 5
  %v72 = vperm.slane %v44, 6
  %v73 = vperm.slane %v44, 7
  %v74 = vperm.slane %v45, 0
  %v126 = vunpack.c.l.b16 %v16
  %v127 = vunpack.c.h.b16 %v16
  %v128 = vunpack.c.l.b16 %v17
  %v129 = vunpack.c.h.b16 %v17
  %v130 = vunpack.c.l.b16 %v18
  %v131 = vunpack.c.h.b16 %v18
  %v132 = vunpack.c.l.b16 %v19
  %v133 = vunpack.c.h.b16 %v19
  %v134 = vunpack.c.l.b16 %v20
  %v135 = vunpack.c.h.b16 %v20
  %v136 = vunpack.c.l.b16 %v21
  %v137 = vunpack.c.h.b16 %v21
  %v138 = vunpack.c.l.b16 %v22
  %v139 = vunpack.c.h.b16 %v22
  %v140 = vunpack.c.l.b16 %v23
  %v141 = vunpack.c.h.b16 %v23
  %v142 = vunpack.c.l.b16 %v24
  %v143 = vunpack.c.h.b16 %v24
  %v144 = vunpack.c.l.b16 %v25
  %v145 = vunpack.c.h.b16 %v25
  %v146 = vunpack.c.l.b16 %v26
  %v147 = vunpack.c.h.b16 %v26
  %v148 = vunpack.c.l.b16 %v27
  %v149 = vunpack.c.h.b16 %v27
  %v150 = vunpack.c.l.b16 %v28
  %v151 = vunpack.c.l.b16 %v29
  %v152 = vunpack.c.h.b16 %v29
  %v153 = vunpack.c.l.b16 %v30
  %v154 = vunpack.c.h.b16 %v30
  %v155 = vunpack.c.l.b16 %v31
  %v156 = vunpack.c.h.b16 %v31
  %v157 = vunpack.c.l.b16 %v32
  %v158 = vunpack.c.h.b16 %v32
  %v159 = vunpack.c.l.b16 %v33
  %v160 = vunpack.c.h.b16 %v33
  %v161 = vunpack.c.l.b16 %v34
  %v162 = vunpack.c.h.b16 %v34
  %v163 = vunpack.c.l.b16 %v35
  %v164 = vunpack.c.h.b16 %v35
  %v165 = vunpack.c.l.b16 %v36
  %v166 = vunpack.c.h.b16 %v36
  %v167 = vunpack.c.l.b16 %v37
  %v168 = vunpack.c.h.b16 %v37
  %v169 = vunpack.c.l.b16 %v38
  %v170 = vunpack.c.h.b16 %v38
  %v171 = vunpack.c.l.b16 %v39
  %v172 = vunpack.c.h.b16 %v39
  %v173 = vunpack.c.l.b16 %v40
  %v174 = vunpack.c.h.b16 %v40
  %v175 = vunpack.c.l.b16 %v41
  %v176 = vpack.c.b16 %v151, %v126
  %v177 = vpack.c.b16 %v152, %v127
  %v178 = vpack.c.b16 %v153, %v128
  %v179 = vpack.c.b16 %v154, %v129
  %v180 = vpack.c.b16 %v155, %v130
  %v181 = vpack.c.b16 %v156, %v131
  %v182 = vpack.c.b16 %v157, %v132
  %v183 = vpack.c.b16 %v158, %v133
  %v184 = vpack.c.b16 %v159, %v134
  %v185 = vpack.c.b16 %v160, %v135
  %v186 = vpack.c.b16 %v161, %v136
  %v187 = vpack.c.b16 %v162, %v137
  %v188 = vpack.c.b16 %v163, %v138
  %v189 = vpack.c.b16 %v164, %v139
  %v190 = vpack.c.b16 %v165, %v140
  %v191 = vpack.c.b16 %v166, %v141
  %v192 = vpack.c.b16 %v167, %v142
  %v193 = vpack.c.b16 %v168, %v143
  %v194 = vpack.c.b16 %v169, %v144
  %v195 = vpack.c.b16 %v170, %v145
  %v196 = vpack.c.b16 %v171, %v146
  %v197 = vpack.c.b16 %v172, %v147
  %v198 = vpack.c.b16 %v173, %v148
  %v199 = vpack.c.b16 %v174, %v149
  %v200 = vpack.c.b16 %v175, %v150
  %vm226 = vcmask 130048
  %v228 = vsel %vm226, %v15, 0
  %230 = vmatpush.bf16.msra.mxu0 0
  %231 = vmatpush.bf16.msra.mxu0 0
  %232 = vmatpush.bf16.msra.mxu0 0
  %233 = vmatpush.bf16.msra.mxu0 0
  %234 = vmatpush.bf16.msra.mxu0 0
  %235 = vmatpush.bf16.msra.mxu0 0
  %236 = vmatpush.bf16.msra.mxu0 0
  %237 = vmatpush.bf16.msra.mxu0 %v176
  %238 = vmatmul.bf16.gmra.mxu0 %v228
  %v239 = vpop.f32.mrf.mxu0
  %v240 = vadd.f32 %v50, %v239
  %v241 = vpop.f32.mrf.mxu0
  %242 = vdwg.mxu0
  %243 = vmatpush.bf16.msra.mxu0 0
  %244 = vmatpush.bf16.msra.mxu0 0
  %245 = vmatpush.bf16.msra.mxu0 0
  %246 = vmatpush.bf16.msra.mxu0 0
  %247 = vmatpush.bf16.msra.mxu0 0
  %248 = vmatpush.bf16.msra.mxu0 0
  %249 = vmatpush.bf16.msra.mxu0 0
  %250 = vmatpush.bf16.msra.mxu0 %v177
  %251 = vmatmul.bf16.gmra.mxu0 %v228
  %v252 = vpop.f32.mrf.mxu0
  %v253 = vadd.f32 %v51, %v252
  %v254 = vpop.f32.mrf.mxu0
  %255 = vdwg.mxu0
  %256 = vmatpush.bf16.msra.mxu0 0
  %257 = vmatpush.bf16.msra.mxu0 0
  %258 = vmatpush.bf16.msra.mxu0 0
  %259 = vmatpush.bf16.msra.mxu0 0
  %260 = vmatpush.bf16.msra.mxu0 0
  %261 = vmatpush.bf16.msra.mxu0 0
  %262 = vmatpush.bf16.msra.mxu0 0
  %263 = vmatpush.bf16.msra.mxu0 %v178
  %264 = vmatmul.bf16.gmra.mxu0 %v228
  %v265 = vpop.f32.mrf.mxu0
  %v266 = vadd.f32 %v52, %v265
  %v267 = vpop.f32.mrf.mxu0
  %268 = vdwg.mxu0
  %269 = vmatpush.bf16.msra.mxu0 0
  %270 = vmatpush.bf16.msra.mxu0 0
  %271 = vmatpush.bf16.msra.mxu0 0
  %272 = vmatpush.bf16.msra.mxu0 0
  %273 = vmatpush.bf16.msra.mxu0 0
  %274 = vmatpush.bf16.msra.mxu0 0
  %275 = vmatpush.bf16.msra.mxu0 0
  %276 = vmatpush.bf16.msra.mxu0 %v179
  %277 = vmatmul.bf16.gmra.mxu0 %v228
  %v278 = vpop.f32.mrf.mxu0
  %v279 = vadd.f32 %v53, %v278
  %v280 = vpop.f32.mrf.mxu0
  %281 = vdwg.mxu0
  %282 = vmatpush.bf16.msra.mxu0 0
  %283 = vmatpush.bf16.msra.mxu0 0
  %284 = vmatpush.bf16.msra.mxu0 0
  %285 = vmatpush.bf16.msra.mxu0 0
  %286 = vmatpush.bf16.msra.mxu0 0
  %287 = vmatpush.bf16.msra.mxu0 0
  %288 = vmatpush.bf16.msra.mxu0 0
  %289 = vmatpush.bf16.msra.mxu0 %v180
  %290 = vmatmul.bf16.gmra.mxu0 %v228
  %v291 = vpop.f32.mrf.mxu0
  %v292 = vadd.f32 %v54, %v291
  %v293 = vpop.f32.mrf.mxu0
  %294 = vdwg.mxu0
  %295 = vmatpush.bf16.msra.mxu0 0
  %296 = vmatpush.bf16.msra.mxu0 0
  %297 = vmatpush.bf16.msra.mxu0 0
  %298 = vmatpush.bf16.msra.mxu0 0
  %299 = vmatpush.bf16.msra.mxu0 0
  %300 = vmatpush.bf16.msra.mxu0 0
  %301 = vmatpush.bf16.msra.mxu0 0
  %302 = vmatpush.bf16.msra.mxu0 %v181
  %303 = vmatmul.bf16.gmra.mxu0 %v228
  %v304 = vpop.f32.mrf.mxu0
  %v305 = vadd.f32 %v55, %v304
  %v306 = vpop.f32.mrf.mxu0
  %307 = vdwg.mxu0
  %308 = vmatpush.bf16.msra.mxu0 0
  %309 = vmatpush.bf16.msra.mxu0 0
  %310 = vmatpush.bf16.msra.mxu0 0
  %311 = vmatpush.bf16.msra.mxu0 0
  %312 = vmatpush.bf16.msra.mxu0 0
  %313 = vmatpush.bf16.msra.mxu0 0
  %314 = vmatpush.bf16.msra.mxu0 0
  %315 = vmatpush.bf16.msra.mxu0 %v182
  %316 = vmatmul.bf16.gmra.mxu0 %v228
  %v317 = vpop.f32.mrf.mxu0
  %v318 = vadd.f32 %v56, %v317
  %v319 = vpop.f32.mrf.mxu0
  %320 = vdwg.mxu0
  %321 = vmatpush.bf16.msra.mxu0 0
  %322 = vmatpush.bf16.msra.mxu0 0
  %323 = vmatpush.bf16.msra.mxu0 0
  %324 = vmatpush.bf16.msra.mxu0 0
  %325 = vmatpush.bf16.msra.mxu0 0
  %326 = vmatpush.bf16.msra.mxu0 0
  %327 = vmatpush.bf16.msra.mxu0 0
  %328 = vmatpush.bf16.msra.mxu0 %v183
  %329 = vmatmul.bf16.gmra.mxu0 %v228
  %v330 = vpop.f32.mrf.mxu0
  %v331 = vadd.f32 %v57, %v330
  %v332 = vpop.f32.mrf.mxu0
  %333 = vdwg.mxu0
  %334 = vmatpush.bf16.msra.mxu0 0
  %335 = vmatpush.bf16.msra.mxu0 0
  %336 = vmatpush.bf16.msra.mxu0 0
  %337 = vmatpush.bf16.msra.mxu0 0
  %338 = vmatpush.bf16.msra.mxu0 0
  %339 = vmatpush.bf16.msra.mxu0 0
  %340 = vmatpush.bf16.msra.mxu0 0
  %341 = vmatpush.bf16.msra.mxu0 %v184
  %342 = vmatmul.bf16.gmra.mxu0 %v228
  %v343 = vpop.f32.mrf.mxu0
  %v344 = vadd.f32 %v58, %v343
  %v345 = vpop.f32.mrf.mxu0
  %346 = vdwg.mxu0
  %347 = vmatpush.bf16.msra.mxu0 0
  %348 = vmatpush.bf16.msra.mxu0 0
  %349 = vmatpush.bf16.msra.mxu0 0
  %350 = vmatpush.bf16.msra.mxu0 0
  %351 = vmatpush.bf16.msra.mxu0 0
  %352 = vmatpush.bf16.msra.mxu0 0
  %353 = vmatpush.bf16.msra.mxu0 0
  %354 = vmatpush.bf16.msra.mxu0 %v185
  %355 = vmatmul.bf16.gmra.mxu0 %v228
  %v356 = vpop.f32.mrf.mxu0
  %v357 = vadd.f32 %v59, %v356
  %v358 = vpop.f32.mrf.mxu0
  %359 = vdwg.mxu0
  %360 = vmatpush.bf16.msra.mxu0 0
  %361 = vmatpush.bf16.msra.mxu0 0
  %362 = vmatpush.bf16.msra.mxu0 0
  %363 = vmatpush.bf16.msra.mxu0 0
  %364 = vmatpush.bf16.msra.mxu0 0
  %365 = vmatpush.bf16.msra.mxu0 0
  %366 = vmatpush.bf16.msra.mxu0 0
  %367 = vmatpush.bf16.msra.mxu0 %v186
  %368 = vmatmul.bf16.gmra.mxu0 %v228
  %v369 = vpop.f32.mrf.mxu0
  %v370 = vadd.f32 %v60, %v369
  %v371 = vpop.f32.mrf.mxu0
  %372 = vdwg.mxu0
  %373 = vmatpush.bf16.msra.mxu0 0
  %374 = vmatpush.bf16.msra.mxu0 0
  %375 = vmatpush.bf16.msra.mxu0 0
  %376 = vmatpush.bf16.msra.mxu0 0
  %377 = vmatpush.bf16.msra.mxu0 0
  %378 = vmatpush.bf16.msra.mxu0 0
  %379 = vmatpush.bf16.msra.mxu0 0
  %380 = vmatpush.bf16.msra.mxu0 %v187
  %381 = vmatmul.bf16.gmra.mxu0 %v228
  %v382 = vpop.f32.mrf.mxu0
  %v383 = vadd.f32 %v61, %v382
  %v384 = vpop.f32.mrf.mxu0
  %385 = vdwg.mxu0
  %386 = vmatpush.bf16.msra.mxu0 0
  %387 = vmatpush.bf16.msra.mxu0 0
  %388 = vmatpush.bf16.msra.mxu0 0
  %389 = vmatpush.bf16.msra.mxu0 0
  %390 = vmatpush.bf16.msra.mxu0 0
  %391 = vmatpush.bf16.msra.mxu0 0
  %392 = vmatpush.bf16.msra.mxu0 0
  %393 = vmatpush.bf16.msra.mxu0 %v188
  %394 = vmatmul.bf16.gmra.mxu0 %v228
  %v395 = vpop.f32.mrf.mxu0
  %v396 = vadd.f32 %v62, %v395
  %v397 = vpop.f32.mrf.mxu0
  %398 = vdwg.mxu0
  %399 = vmatpush.bf16.msra.mxu0 0
  %400 = vmatpush.bf16.msra.mxu0 0
  %401 = vmatpush.bf16.msra.mxu0 0
  %402 = vmatpush.bf16.msra.mxu0 0
  %403 = vmatpush.bf16.msra.mxu0 0
  %404 = vmatpush.bf16.msra.mxu0 0
  %405 = vmatpush.bf16.msra.mxu0 0
  %406 = vmatpush.bf16.msra.mxu0 %v189
  %407 = vmatmul.bf16.gmra.mxu0 %v228
  %v408 = vpop.f32.mrf.mxu0
  %v409 = vadd.f32 %v63, %v408
  %v410 = vpop.f32.mrf.mxu0
  %411 = vdwg.mxu0
  %412 = vmatpush.bf16.msra.mxu0 0
  %413 = vmatpush.bf16.msra.mxu0 0
  %414 = vmatpush.bf16.msra.mxu0 0
  %415 = vmatpush.bf16.msra.mxu0 0
  %416 = vmatpush.bf16.msra.mxu0 0
  %417 = vmatpush.bf16.msra.mxu0 0
  %418 = vmatpush.bf16.msra.mxu0 0
  %419 = vmatpush.bf16.msra.mxu0 %v190
  %420 = vmatmul.bf16.gmra.mxu0 %v228
  %v421 = vpop.f32.mrf.mxu0
  %v422 = vadd.f32 %v64, %v421
  %v423 = vpop.f32.mrf.mxu0
  %424 = vdwg.mxu0
  %425 = vmatpush.bf16.msra.mxu0 0
  %426 = vmatpush.bf16.msra.mxu0 0
  %427 = vmatpush.bf16.msra.mxu0 0
  %428 = vmatpush.bf16.msra.mxu0 0
  %429 = vmatpush.bf16.msra.mxu0 0
  %430 = vmatpush.bf16.msra.mxu0 0
  %431 = vmatpush.bf16.msra.mxu0 0
  %432 = vmatpush.bf16.msra.mxu0 %v191
  %433 = vmatmul.bf16.gmra.mxu0 %v228
  %v434 = vpop.f32.mrf.mxu0
  %v435 = vadd.f32 %v65, %v434
  %v436 = vpop.f32.mrf.mxu0
  %437 = vdwg.mxu0
  %438 = vmatpush.bf16.msra.mxu0 0
  %439 = vmatpush.bf16.msra.mxu0 0
  %440 = vmatpush.bf16.msra.mxu0 0
  %441 = vmatpush.bf16.msra.mxu0 0
  %442 = vmatpush.bf16.msra.mxu0 0
  %443 = vmatpush.bf16.msra.mxu0 0
  %444 = vmatpush.bf16.msra.mxu0 0
  %445 = vmatpush.bf16.msra.mxu0 %v192
  %446 = vmatmul.bf16.gmra.mxu0 %v228
  %v447 = vpop.f32.mrf.mxu0
  %v448 = vadd.f32 %v66, %v447
  %v449 = vpop.f32.mrf.mxu0
  %450 = vdwg.mxu0
  %451 = vmatpush.bf16.msra.mxu0 0
  %452 = vmatpush.bf16.msra.mxu0 0
  %453 = vmatpush.bf16.msra.mxu0 0
  %454 = vmatpush.bf16.msra.mxu0 0
  %455 = vmatpush.bf16.msra.mxu0 0
  %456 = vmatpush.bf16.msra.mxu0 0
  %457 = vmatpush.bf16.msra.mxu0 0
  %458 = vmatpush.bf16.msra.mxu0 %v193
  %459 = vmatmul.bf16.gmra.mxu0 %v228
  %v460 = vpop.f32.mrf.mxu0
  %v461 = vadd.f32 %v67, %v460
  %v462 = vpop.f32.mrf.mxu0
  %463 = vdwg.mxu0
  %464 = vmatpush.bf16.msra.mxu0 0
  %465 = vmatpush.bf16.msra.mxu0 0
  %466 = vmatpush.bf16.msra.mxu0 0
  %467 = vmatpush.bf16.msra.mxu0 0
  %468 = vmatpush.bf16.msra.mxu0 0
  %469 = vmatpush.bf16.msra.mxu0 0
  %470 = vmatpush.bf16.msra.mxu0 0
  %471 = vmatpush.bf16.msra.mxu0 %v194
  %472 = vmatmul.bf16.gmra.mxu0 %v228
  %v473 = vpop.f32.mrf.mxu0
  %v474 = vadd.f32 %v68, %v473
  %v475 = vpop.f32.mrf.mxu0
  %476 = vdwg.mxu0
  %477 = vmatpush.bf16.msra.mxu0 0
  %478 = vmatpush.bf16.msra.mxu0 0
  %479 = vmatpush.bf16.msra.mxu0 0
  %480 = vmatpush.bf16.msra.mxu0 0
  %481 = vmatpush.bf16.msra.mxu0 0
  %482 = vmatpush.bf16.msra.mxu0 0
  %483 = vmatpush.bf16.msra.mxu0 0
  %484 = vmatpush.bf16.msra.mxu0 %v195
  %485 = vmatmul.bf16.gmra.mxu0 %v228
  %v486 = vpop.f32.mrf.mxu0
  %v487 = vadd.f32 %v69, %v486
  %v488 = vpop.f32.mrf.mxu0
  %489 = vdwg.mxu0
  %490 = vmatpush.bf16.msra.mxu0 0
  %491 = vmatpush.bf16.msra.mxu0 0
  %492 = vmatpush.bf16.msra.mxu0 0
  %493 = vmatpush.bf16.msra.mxu0 0
  %494 = vmatpush.bf16.msra.mxu0 0
  %495 = vmatpush.bf16.msra.mxu0 0
  %496 = vmatpush.bf16.msra.mxu0 0
  %497 = vmatpush.bf16.msra.mxu0 %v196
  %498 = vmatmul.bf16.gmra.mxu0 %v228
  %v499 = vpop.f32.mrf.mxu0
  %v500 = vadd.f32 %v70, %v499
  %v501 = vpop.f32.mrf.mxu0
  %502 = vdwg.mxu0
  %503 = vmatpush.bf16.msra.mxu0 0
  %504 = vmatpush.bf16.msra.mxu0 0
  %505 = vmatpush.bf16.msra.mxu0 0
  %506 = vmatpush.bf16.msra.mxu0 0
  %507 = vmatpush.bf16.msra.mxu0 0
  %508 = vmatpush.bf16.msra.mxu0 0
  %509 = vmatpush.bf16.msra.mxu0 0
  %510 = vmatpush.bf16.msra.mxu0 %v197
  %511 = vmatmul.bf16.gmra.mxu0 %v228
  %v512 = vpop.f32.mrf.mxu0
  %v513 = vadd.f32 %v71, %v512
  %v514 = vpop.f32.mrf.mxu0
  %515 = vdwg.mxu0
  %516 = vmatpush.bf16.msra.mxu0 0
  %517 = vmatpush.bf16.msra.mxu0 0
  %518 = vmatpush.bf16.msra.mxu0 0
  %519 = vmatpush.bf16.msra.mxu0 0
  %520 = vmatpush.bf16.msra.mxu0 0
  %521 = vmatpush.bf16.msra.mxu0 0
  %522 = vmatpush.bf16.msra.mxu0 0
  %523 = vmatpush.bf16.msra.mxu0 %v198
  %524 = vmatmul.bf16.gmra.mxu0 %v228
  %v525 = vpop.f32.mrf.mxu0
  %v526 = vadd.f32 %v72, %v525
  %v527 = vpop.f32.mrf.mxu0
  %528 = vdwg.mxu0
  %529 = vmatpush.bf16.msra.mxu0 0
  %530 = vmatpush.bf16.msra.mxu0 0
  %531 = vmatpush.bf16.msra.mxu0 0
  %532 = vmatpush.bf16.msra.mxu0 0
  %533 = vmatpush.bf16.msra.mxu0 0
  %534 = vmatpush.bf16.msra.mxu0 0
  %535 = vmatpush.bf16.msra.mxu0 0
  %536 = vmatpush.bf16.msra.mxu0 %v199
  %537 = vmatmul.bf16.gmra.mxu0 %v228
  %v538 = vpop.f32.mrf.mxu0
  %v539 = vadd.f32 %v73, %v538
  %v540 = vpop.f32.mrf.mxu0
  %541 = vdwg.mxu0
  %542 = vmatpush.bf16.msra.mxu0 0
  %543 = vmatpush.bf16.msra.mxu0 0
  %544 = vmatpush.bf16.msra.mxu0 0
  %545 = vmatpush.bf16.msra.mxu0 0
  %546 = vmatpush.bf16.msra.mxu0 0
  %547 = vmatpush.bf16.msra.mxu0 0
  %548 = vmatpush.bf16.msra.mxu0 0
  %549 = vmatpush.bf16.msra.mxu0 %v200
  %550 = vmatmul.bf16.gmra.mxu0 %v228
  %v551 = vpop.f32.mrf.mxu0
  %v552 = vadd.f32 %v74, %v551
  %v553 = vpop.f32.mrf.mxu0
  %554 = vdwg.mxu0
  %v579 = vrot.slane %v253, 6
  %v580 = vrot.slane %v266, 4
  %v581 = vrot.slane %v279, 2
  %v582 = vrot.slane %v305, 6
  %v583 = vrot.slane %v318, 4
  %v584 = vrot.slane %v331, 2
  %v585 = vrot.slane %v357, 6
  %v586 = vrot.slane %v370, 4
  %v587 = vrot.slane %v383, 2
  %v588 = vrot.slane %v409, 6
  %v589 = vrot.slane %v422, 4
  %v590 = vrot.slane %v435, 2
  %v591 = vrot.slane %v461, 6
  %v592 = vrot.slane %v474, 4
  %v593 = vrot.slane %v487, 2
  %v594 = vrot.slane %v513, 6
  %v595 = vrot.slane %v526, 4
  %v596 = vrot.slane %v539, 2
  %vm597 = vcmask 1041408
  %v598 = vsel %vm597, %v240, %v579
  %vm599 = vcmask 1045508
  %v600 = vsel %vm599, %v580, %v581
  %vm601 = vcmask 1043456
  %v602 = vsel %vm601, %v598, %v600
  %v603 = vsel %vm597, %v292, %v582
  %v604 = vsel %vm599, %v583, %v584
  %v605 = vsel %vm601, %v603, %v604
  %v606 = vsel %vm597, %v344, %v585
  %v607 = vsel %vm599, %v586, %v587
  %v608 = vsel %vm601, %v606, %v607
  %v609 = vsel %vm597, %v396, %v588
  %v610 = vsel %vm599, %v589, %v590
  %v611 = vsel %vm601, %v609, %v610
  %v612 = vsel %vm597, %v448, %v591
  %v613 = vsel %vm599, %v592, %v593
  %v614 = vsel %vm601, %v612, %v613
  %v615 = vsel %vm597, %v500, %v594
  %v616 = vsel %vm599, %v595, %v596
  %v617 = vsel %vm601, %v615, %v616
  %624 = vst [vmem:[%s3] sm:$0xff] %v602
  %625 = vst [vmem:[%s3 + $0x8] sm:$0xff] %v605
  %626 = vst [vmem:[%s3 + $0x10] sm:$0xff] %v608
  %627 = vst [vmem:[%s3 + $0x18] sm:$0xff] %v611
  %628 = vst [vmem:[%s3 + $0x20] sm:$0xff] %v614
  %629 = vst [vmem:[%s3 + $0x28] sm:$0xff] %v617
  %vm630 = vcmask 517120
  %631 = vst.msk [vmem:[%s3 + $0x30] sm:$0x3] %vm630, %v552
  // Predicated region
  $region14: #{vae_forward.13} parent=0 // pred_check
    _
  $region15: #{vae_forward.13} parent=0 // pred_check_branch
    %633 = sbr.rel (0) target = $region17
  $region16: #{vae_forward.13} parent=0 // pred_region
    _
  $region17: #{vae_forward.13} parent=0 // pred_fallthru
    _
  // Predicated region
  $region18: #{vae_forward.13} parent=0 // pred_check
    _
  $region19: #{vae_forward.13} parent=0 // pred_check_branch
    %635 = sbr.rel (0) target = $region21
  $region20: #{vae_forward.13} parent=0 // pred_region
    _
  $region21: #{vae_forward.13} parent=0 // pred_fallthru
    _

// kernel: vae_forward.14
$region0: #{vae_forward.14}
  #allocation0 [shape = 'u32[]', space=smem, size = 0x4, offset = 0x4, fixed_abs, tag = 'smem constant byte address 0x4 - core index']
  #allocation1 [shape = 'u32[72,128]{1,0:T(1,128)}', space=vmem, size = 0x9000, scoped, tag = 'internal scratch']
  %s0 = inlined_call_operand.vmem [shape: bf16[98,64], index: 0, kind: input, shape index: {}]
  %s1 = inlined_call_operand.vmem [shape: bf16[64,512], index: 1, kind: input, shape index: {}]
  %s2 = inlined_call_operand.vmem [shape: f32[98,512], index: 2, kind: output, shape index: {}]
  %s3 = sld [smem:[#allocation0]]
  $region18: #{vae_forward.14} parent=0
    _
  %s5 = ssub.s32 1, %s3
  %s6 = scalar_select 0, %s5, %s3
  // Predicated region
  $region2: #{vae_forward.14} parent=0 // pred_check
    _
  $region3: #{vae_forward.14} parent=0 // pred_check_branch
    %8 = sbr.rel (0) target = $region5
  $region4: #{vae_forward.14} parent=0 // pred_region
    _
  $region5: #{vae_forward.14} parent=0 // pred_fallthru
    _
  // Predicated region
  $region6: #{vae_forward.14} parent=0 // pred_check
    _
  $region7: #{vae_forward.14} parent=0 // pred_check_branch
    %10 = sbr.rel (0) target = $region9
  $region8: #{vae_forward.14} parent=0 // pred_region
    _
  $region9: #{vae_forward.14} parent=0 // pred_fallthru
    _
  %v12 = vld [vmem:[%s0] sm:$0xf]
  %v13 = vld [vmem:[%s0 + $0x4] sm:$0xf]
  %v14 = vld [vmem:[%s0 + $0x8] sm:$0xf]
  %v15 = vld [vmem:[%s0 + $0xc] sm:$0xf]
  %v16 = vld [vmem:[%s0 + $0x10] sm:$0xf]
  %v17 = vld [vmem:[%s0 + $0x14] sm:$0xf]
  %v18 = vld [vmem:[%s0 + $0x18] sm:$0xf]
  %v19 = vld [vmem:[%s0 + $0x1c] sm:$0xf]
  %v20 = vld [vmem:[%s0 + $0x20] sm:$0xf]
  %v21 = vld [vmem:[%s0 + $0x24] sm:$0xf]
  %v22 = vld [vmem:[%s0 + $0x28] sm:$0xf]
  %v23 = vld [vmem:[%s0 + $0x2c] sm:$0xf]
  %v24 = vld [vmem:[%s0 + $0x30] sm:$0x1]
  %v25 = vld [vmem:[%s1] sm:$0xff]
  %v26 = vld [vmem:[%s1 + $0x8] sm:$0xff]
  %v27 = vld [vmem:[%s1 + $0x10] sm:$0xff]
  %v28 = vld [vmem:[%s1 + $0x18] sm:$0xff]
  %v29 = vld [vmem:[%s1 + $0x20] sm:$0xff]
  %v30 = vld [vmem:[%s1 + $0x28] sm:$0xff]
  %v31 = vld [vmem:[%s1 + $0x30] sm:$0xff]
  %v32 = vld [vmem:[%s1 + $0x38] sm:$0xff]
  %v33 = vld [vmem:[%s1 + $0x40] sm:$0xff]
  %v34 = vld [vmem:[%s1 + $0x48] sm:$0xff]
  %v35 = vld [vmem:[%s1 + $0x50] sm:$0xff]
  %v36 = vld [vmem:[%s1 + $0x58] sm:$0xff]
  %v37 = vld [vmem:[%s1 + $0x60] sm:$0xff]
  %v38 = vld [vmem:[%s1 + $0x68] sm:$0xff]
  %v39 = vld [vmem:[%s1 + $0x70] sm:$0xff]
  %v40 = vld [vmem:[%s1 + $0x78] sm:$0xff]
  %v54 = vunpack.c.l.b16 %v12
  %v55 = vunpack.c.l.b16 %v13
  %v56 = vunpack.c.l.b16 %v14
  %v57 = vunpack.c.l.b16 %v15
  %v58 = vunpack.c.l.b16 %v16
  %v59 = vunpack.c.l.b16 %v17
  %v60 = vunpack.c.l.b16 %v18
  %v61 = vunpack.c.l.b16 %v19
  %v62 = vunpack.c.l.b16 %v20
  %v63 = vunpack.c.l.b16 %v21
  %v64 = vunpack.c.l.b16 %v22
  %v65 = vunpack.c.l.b16 %v23
  %v66 = vunpack.c.l.b16 %v24
  %v67 = vpack.c.b16 %v55, %v54
  %v68 = vpack.c.b16 %v57, %v56
  %v69 = vpack.c.b16 %v59, %v58
  %v70 = vpack.c.b16 %v61, %v60
  %v71 = vpack.c.b16 %v63, %v62
  %v72 = vpack.c.b16 %v65, %v64
  %v73 = vpack.c.b16 %v66, %v66
  %v90 = vunpack.c.l.b16 %v25
  %v91 = vunpack.c.h.b16 %v25
  %v92 = vunpack.c.l.b16 %v26
  %v93 = vunpack.c.h.b16 %v26
  %v94 = vunpack.c.l.b16 %v27
  %v95 = vunpack.c.h.b16 %v27
  %v96 = vunpack.c.l.b16 %v28
  %v97 = vunpack.c.h.b16 %v28
  %v98 = vunpack.c.l.b16 %v29
  %v99 = vunpack.c.h.b16 %v29
  %v100 = vunpack.c.l.b16 %v30
  %v101 = vunpack.c.h.b16 %v30
  %v102 = vunpack.c.l.b16 %v31
  %v103 = vunpack.c.h.b16 %v31
  %v104 = vunpack.c.l.b16 %v32
  %v105 = vunpack.c.h.b16 %v32
  %v106 = vunpack.c.l.b16 %v33
  %v107 = vunpack.c.h.b16 %v33
  %v108 = vunpack.c.l.b16 %v34
  %v109 = vunpack.c.h.b16 %v34
  %v110 = vunpack.c.l.b16 %v35
  %v111 = vunpack.c.h.b16 %v35
  %v112 = vunpack.c.l.b16 %v36
  %v113 = vunpack.c.h.b16 %v36
  %v114 = vunpack.c.l.b16 %v37
  %v115 = vunpack.c.h.b16 %v37
  %v116 = vunpack.c.l.b16 %v38
  %v117 = vunpack.c.h.b16 %v38
  %v118 = vunpack.c.l.b16 %v39
  %v119 = vunpack.c.h.b16 %v39
  %v120 = vunpack.c.l.b16 %v40
  %v121 = vunpack.c.h.b16 %v40
  %v122 = vpack.c.b16 %v94, %v90
  %v123 = vpack.c.b16 %v95, %v91
  %v124 = vpack.c.b16 %v96, %v92
  %v125 = vpack.c.b16 %v97, %v93
  %v126 = vpack.c.b16 %v102, %v98
  %v127 = vpack.c.b16 %v103, %v99
  %v128 = vpack.c.b16 %v104, %v100
  %v129 = vpack.c.b16 %v105, %v101
  %v130 = vpack.c.b16 %v110, %v106
  %v131 = vpack.c.b16 %v111, %v107
  %v132 = vpack.c.b16 %v112, %v108
  %v133 = vpack.c.b16 %v113, %v109
  %v134 = vpack.c.b16 %v118, %v114
  %v135 = vpack.c.b16 %v119, %v115
  %v136 = vpack.c.b16 %v120, %v116
  %v137 = vpack.c.b16 %v121, %v117
  %vm154 = vcmask 523264
  %v156 = vsel %vm154, %v67, 0
  %v159 = vsel %vm154, %v68, 0
  %v162 = vsel %vm154, %v69, 0
  %v165 = vsel %vm154, %v70, 0
  %v168 = vsel %vm154, %v71, 0
  %v171 = vsel %vm154, %v72, 0
  %v174 = vsel %vm154, %v73, 0
  %176 = vmatpush.bf16.msra.mxu0 0
  %177 = vmatpush.bf16.msra.mxu0 0
  %178 = vmatpush.bf16.msra.mxu0 0
  %179 = vmatpush.bf16.msra.mxu0 0
  %180 = vmatpush.bf16.msra.mxu0 %v134
  %181 = vmatpush.bf16.msra.mxu0 %v130
  %182 = vmatpush.bf16.msra.mxu0 %v126
  %183 = vmatpush.bf16.msra.mxu0 %v122
  %184 = vmatmul.bf16.gmra.mxu0 %v156
  %v185 = vpop.f32.mrf.mxu0
  %v186 = vadd.f32 0.0, %v185
  %v187 = vpop.f32.mrf.mxu0
  %v188 = vadd.f32 0.0, %v187
  %189 = vmatmul.bf16.gmra.mxu0 %v159
  %v190 = vpop.f32.mrf.mxu0
  %v191 = vadd.f32 0.0, %v190
  %v192 = vpop.f32.mrf.mxu0
  %v193 = vadd.f32 0.0, %v192
  %194 = vmatmul.bf16.gmra.mxu0 %v162
  %v195 = vpop.f32.mrf.mxu0
  %v196 = vadd.f32 0.0, %v195
  %v197 = vpop.f32.mrf.mxu0
  %v198 = vadd.f32 0.0, %v197
  %199 = vmatmul.bf16.gmra.mxu0 %v165
  %v200 = vpop.f32.mrf.mxu0
  %v201 = vadd.f32 0.0, %v200
  %v202 = vpop.f32.mrf.mxu0
  %v203 = vadd.f32 0.0, %v202
  %204 = vmatmul.bf16.gmra.mxu0 %v168
  %v205 = vpop.f32.mrf.mxu0
  %v206 = vadd.f32 0.0, %v205
  %v207 = vpop.f32.mrf.mxu0
  %v208 = vadd.f32 0.0, %v207
  %209 = vmatmul.bf16.gmra.mxu0 %v171
  %v210 = vpop.f32.mrf.mxu0
  %v211 = vadd.f32 0.0, %v210
  %v212 = vpop.f32.mrf.mxu0
  %v213 = vadd.f32 0.0, %v212
  %214 = vmatmul.bf16.gmra.mxu0 %v174
  %v215 = vpop.f32.mrf.mxu0
  %v216 = vadd.f32 0.0, %v215
  %v217 = vpop.f32.mrf.mxu0
  %218 = vdwg.mxu0
  %219 = vmatpush.bf16.msra.mxu0 0
  %220 = vmatpush.bf16.msra.mxu0 0
  %221 = vmatpush.bf16.msra.mxu0 0
  %222 = vmatpush.bf16.msra.mxu0 0
  %223 = vmatpush.bf16.msra.mxu0 %v135
  %224 = vmatpush.bf16.msra.mxu0 %v131
  %225 = vmatpush.bf16.msra.mxu0 %v127
  %226 = vmatpush.bf16.msra.mxu0 %v123
  %227 = vmatmul.bf16.gmra.mxu0 %v156
  %v228 = vpop.f32.mrf.mxu0
  %v229 = vadd.f32 0.0, %v228
  %v230 = vpop.f32.mrf.mxu0
  %v231 = vadd.f32 0.0, %v230
  %232 = vmatmul.bf16.gmra.mxu0 %v159
  %v233 = vpop.f32.mrf.mxu0
  %v234 = vadd.f32 0.0, %v233
  %v235 = vpop.f32.mrf.mxu0
  %v236 = vadd.f32 0.0, %v235
  %237 = vmatmul.bf16.gmra.mxu0 %v162
  %v238 = vpop.f32.mrf.mxu0
  %v239 = vadd.f32 0.0, %v238
  %v240 = vpop.f32.mrf.mxu0
  %v241 = vadd.f32 0.0, %v240
  %242 = vmatmul.bf16.gmra.mxu0 %v165
  %v243 = vpop.f32.mrf.mxu0
  %v244 = vadd.f32 0.0, %v243
  %v245 = vpop.f32.mrf.mxu0
  %v246 = vadd.f32 0.0, %v245
  %247 = vmatmul.bf16.gmra.mxu0 %v168
  %v248 = vpop.f32.mrf.mxu0
  %v249 = vadd.f32 0.0, %v248
  %v250 = vpop.f32.mrf.mxu0
  %v251 = vadd.f32 0.0, %v250
  %252 = vmatmul.bf16.gmra.mxu0 %v171
  %v253 = vpop.f32.mrf.mxu0
  %v254 = vadd.f32 0.0, %v253
  %v255 = vpop.f32.mrf.mxu0
  %v256 = vadd.f32 0.0, %v255
  %257 = vmatmul.bf16.gmra.mxu0 %v174
  %v258 = vpop.f32.mrf.mxu0
  %v259 = vadd.f32 0.0, %v258
  %v260 = vpop.f32.mrf.mxu0
  %261 = vdwg.mxu0
  %262 = vmatpush.bf16.msra.mxu0 0
  %263 = vmatpush.bf16.msra.mxu0 0
  %264 = vmatpush.bf16.msra.mxu0 0
  %265 = vmatpush.bf16.msra.mxu0 0
  %266 = vmatpush.bf16.msra.mxu0 %v136
  %267 = vmatpush.bf16.msra.mxu0 %v132
  %268 = vmatpush.bf16.msra.mxu0 %v128
  %269 = vmatpush.bf16.msra.mxu0 %v124
  %270 = vmatmul.bf16.gmra.mxu0 %v156
  %v271 = vpop.f32.mrf.mxu0
  %v272 = vadd.f32 0.0, %v271
  %v273 = vpop.f32.mrf.mxu0
  %v274 = vadd.f32 0.0, %v273
  %275 = vmatmul.bf16.gmra.mxu0 %v159
  %v276 = vpop.f32.mrf.mxu0
  %v277 = vadd.f32 0.0, %v276
  %v278 = vpop.f32.mrf.mxu0
  %v279 = vadd.f32 0.0, %v278
  %280 = vmatmul.bf16.gmra.mxu0 %v162
  %v281 = vpop.f32.mrf.mxu0
  %v282 = vadd.f32 0.0, %v281
  %v283 = vpop.f32.mrf.mxu0
  %v284 = vadd.f32 0.0, %v283
  %285 = vmatmul.bf16.gmra.mxu0 %v165
  %v286 = vpop.f32.mrf.mxu0
  %v287 = vadd.f32 0.0, %v286
  %v288 = vpop.f32.mrf.mxu0
  %v289 = vadd.f32 0.0, %v288
  %290 = vmatmul.bf16.gmra.mxu0 %v168
  %v291 = vpop.f32.mrf.mxu0
  %v292 = vadd.f32 0.0, %v291
  %v293 = vpop.f32.mrf.mxu0
  %v294 = vadd.f32 0.0, %v293
  %295 = vmatmul.bf16.gmra.mxu0 %v171
  %v296 = vpop.f32.mrf.mxu0
  %v297 = vadd.f32 0.0, %v296
  %v298 = vpop.f32.mrf.mxu0
  %v299 = vadd.f32 0.0, %v298
  %300 = vmatmul.bf16.gmra.mxu0 %v174
  %v301 = vpop.f32.mrf.mxu0
  %v302 = vadd.f32 0.0, %v301
  %v303 = vpop.f32.mrf.mxu0
  %304 = vdwg.mxu0
  %305 = vmatpush.bf16.msra.mxu0 0
  %306 = vmatpush.bf16.msra.mxu0 0
  %307 = vmatpush.bf16.msra.mxu0 0
  %308 = vmatpush.bf16.msra.mxu0 0
  %309 = vmatpush.bf16.msra.mxu0 %v137
  %310 = vmatpush.bf16.msra.mxu0 %v133
  %311 = vmatpush.bf16.msra.mxu0 %v129
  %312 = vmatpush.bf16.msra.mxu0 %v125
  %313 = vmatmul.bf16.gmra.mxu0 %v156
  %v314 = vpop.f32.mrf.mxu0
  %v315 = vadd.f32 0.0, %v314
  %v316 = vpop.f32.mrf.mxu0
  %v317 = vadd.f32 0.0, %v316
  %318 = vmatmul.bf16.gmra.mxu0 %v159
  %v319 = vpop.f32.mrf.mxu0
  %v320 = vadd.f32 0.0, %v319
  %v321 = vpop.f32.mrf.mxu0
  %v322 = vadd.f32 0.0, %v321
  %323 = vmatmul.bf16.gmra.mxu0 %v162
  %v324 = vpop.f32.mrf.mxu0
  %v325 = vadd.f32 0.0, %v324
  %v326 = vpop.f32.mrf.mxu0
  %v327 = vadd.f32 0.0, %v326
  %328 = vmatmul.bf16.gmra.mxu0 %v165
  %v329 = vpop.f32.mrf.mxu0
  %v330 = vadd.f32 0.0, %v329
  %v331 = vpop.f32.mrf.mxu0
  %v332 = vadd.f32 0.0, %v331
  %333 = vmatmul.bf16.gmra.mxu0 %v168
  %v334 = vpop.f32.mrf.mxu0
  %v335 = vadd.f32 0.0, %v334
  %v336 = vpop.f32.mrf.mxu0
  %v337 = vadd.f32 0.0, %v336
  %338 = vmatmul.bf16.gmra.mxu0 %v171
  %v339 = vpop.f32.mrf.mxu0
  %v340 = vadd.f32 0.0, %v339
  %v341 = vpop.f32.mrf.mxu0
  %v342 = vadd.f32 0.0, %v341
  %343 = vmatmul.bf16.gmra.mxu0 %v174
  %v344 = vpop.f32.mrf.mxu0
  %v345 = vadd.f32 0.0, %v344
  %v346 = vpop.f32.mrf.mxu0
  %347 = vdwg.mxu0
  %348 = vst [vmem:[%s2] sm:$0xff] %v186
  %349 = vst [vmem:[%s2 + $0x8] sm:$0xff] %v229
  %350 = vst [vmem:[%s2 + $0x10] sm:$0xff] %v272
  %351 = vst [vmem:[%s2 + $0x18] sm:$0xff] %v315
  %352 = vst [vmem:[%s2 + $0x20] sm:$0xff] %v188
  %353 = vst [vmem:[%s2 + $0x28] sm:$0xff] %v231
  %354 = vst [vmem:[%s2 + $0x30] sm:$0xff] %v274
  %355 = vst [vmem:[%s2 + $0x38] sm:$0xff] %v317
  %356 = vst [vmem:[%s2 + $0x40] sm:$0xff] %v191
  %357 = vst [vmem:[%s2 + $0x48] sm:$0xff] %v234
  %358 = vst [vmem:[%s2 + $0x50] sm:$0xff] %v277
  %359 = vst [vmem:[%s2 + $0x58] sm:$0xff] %v320
  %360 = vst [vmem:[%s2 + $0x60] sm:$0xff] %v193
  %361 = vst [vmem:[%s2 + $0x68] sm:$0xff] %v236
  %362 = vst [vmem:[%s2 + $0x70] sm:$0xff] %v279
  %363 = vst [vmem:[%s2 + $0x78] sm:$0xff] %v322
  %364 = vst [vmem:[%s2 + $0x80] sm:$0xff] %v196
  %365 = vst [vmem:[%s2 + $0x88] sm:$0xff] %v239
  %366 = vst [vmem:[%s2 + $0x90] sm:$0xff] %v282
  %367 = vst [vmem:[%s2 + $0x98] sm:$0xff] %v325
  %368 = vst [vmem:[%s2 + $0xa0] sm:$0xff] %v198
  %369 = vst [vmem:[%s2 + $0xa8] sm:$0xff] %v241
  %370 = vst [vmem:[%s2 + $0xb0] sm:$0xff] %v284
  %371 = vst [vmem:[%s2 + $0xb8] sm:$0xff] %v327
  %372 = vst [vmem:[%s2 + $0xc0] sm:$0xff] %v201
  %373 = vst [vmem:[%s2 + $0xc8] sm:$0xff] %v244
  %374 = vst [vmem:[%s2 + $0xd0] sm:$0xff] %v287
  %375 = vst [vmem:[%s2 + $0xd8] sm:$0xff] %v330
  %376 = vst [vmem:[%s2 + $0xe0] sm:$0xff] %v203
  %377 = vst [vmem:[%s2 + $0xe8] sm:$0xff] %v246
  %378 = vst [vmem:[%s2 + $0xf0] sm:$0xff] %v289
  %379 = vst [vmem:[%s2 + $0xf8] sm:$0xff] %v332
  %380 = vst [vmem:[%s2 + $0x100] sm:$0xff] %v206
  %381 = vst [vmem:[%s2 + $0x108] sm:$0xff] %v249
  %382 = vst [vmem:[%s2 + $0x110] sm:$0xff] %v292
  %383 = vst [vmem:[%s2 + $0x118] sm:$0xff] %v335
  %384 = vst [vmem:[%s2 + $0x120] sm:$0xff] %v208
  %385 = vst [vmem:[%s2 + $0x128] sm:$0xff] %v251
  %386 = vst [vmem:[%s2 + $0x130] sm:$0xff] %v294
  %387 = vst [vmem:[%s2 + $0x138] sm:$0xff] %v337
  %388 = vst [vmem:[%s2 + $0x140] sm:$0xff] %v211
  %389 = vst [vmem:[%s2 + $0x148] sm:$0xff] %v254
  %390 = vst [vmem:[%s2 + $0x150] sm:$0xff] %v297
  %391 = vst [vmem:[%s2 + $0x158] sm:$0xff] %v340
  %392 = vst [vmem:[%s2 + $0x160] sm:$0xff] %v213
  %393 = vst [vmem:[%s2 + $0x168] sm:$0xff] %v256
  %394 = vst [vmem:[%s2 + $0x170] sm:$0xff] %v299
  %395 = vst [vmem:[%s2 + $0x178] sm:$0xff] %v342
  %396 = vst [vmem:[%s2 + $0x180] sm:$0x3] %v216
  %397 = vst [vmem:[%s2 + $0x188] sm:$0x3] %v259
  %398 = vst [vmem:[%s2 + $0x190] sm:$0x3] %v302
  %399 = vst [vmem:[%s2 + $0x198] sm:$0x3] %v345
  // Predicated region
  $region10: #{vae_forward.14} parent=0 // pred_check
    _
  $region11: #{vae_forward.14} parent=0 // pred_check_branch
    %401 = sbr.rel (0) target = $region13
  $region12: #{vae_forward.14} parent=0 // pred_region
    _
  $region13: #{vae_forward.14} parent=0 // pred_fallthru
    _
  // Predicated region
  $region14: #{vae_forward.14} parent=0 // pred_check
    _
  $region15: #{vae_forward.14} parent=0 // pred_check_branch
    %403 = sbr.rel (0) target = $region17
  $region16: #{vae_forward.14} parent=0 // pred_region
    _
  $region17: #{vae_forward.14} parent=0 // pred_fallthru
    _

// kernel: vae_forward.12
$region0: #{vae_forward.12}
  #allocation0 [shape = 'u32[]', space=smem, size = 0x4, offset = 0x4, fixed_abs, tag = 'smem constant byte address 0x4 - core index']
  #allocation1 [shape = 'u32[72,128]{1,0:T(1,128)}', space=vmem, size = 0x9000, scoped, tag = 'internal scratch']
  %s0 = inlined_call_operand.vmem [shape: bf16[2,3136], index: 0, kind: input, shape index: {}]
  %s1 = inlined_call_operand.vmem [shape: bf16[3136,16], index: 1, kind: input, shape index: {}]
  %s2 = inlined_call_operand.vmem [shape: f32[1,16], index: 2, kind: input, shape index: {}]
  %s3 = inlined_call_operand.vmem [shape: bf16[3136,16], index: 3, kind: input, shape index: {}]
  %s4 = inlined_call_operand.vmem [shape: f32[1,16], index: 4, kind: input, shape index: {}]
  %s5 = inlined_call_operand.vmem [shape: f32[2,16], index: 5, kind: input, shape index: {}]
  %s6 = inlined_call_operand.hbm [shape: f32[2,16], index: 6, kind: output, shape index: {0}]
  %s7 = inlined_call_operand.hbm [shape: f32[2,16], index: 7, kind: output, shape index: {1}]
  %s8 = inlined_call_operand.vmem [shape: f32[2,16], index: 8, kind: output, shape index: {2}]
  %9 = xla_tuple %s6, %s7, %s8
  %s10 = sld [smem:[#allocation0]]
  $region50: #{vae_forward.12} parent=0
    _
  %s12 = ssub.s32 1, %s10
  %s13 = scalar_select 0, %s12, %s10
  $region1: #{vae_forward.12} parent=0
    #allocation2 [shape = 'u8[1024]{0}', space=vmem, size = 0x400, scoped, tag = 'output window, operand 0, single buffered']
    #allocation3 [shape = 's32[1]{0}', space=sflag, size = 0x4, scoped, tag = 'scoped memory for vae_forward.12']
    #allocation4 [shape = 'u8[1024]{0}', space=vmem, size = 0x400, scoped, tag = 'output window, operand 1, single buffered']
    #allocation5 [shape = 's32[1]{0}', space=sflag, size = 0x4, scoped, tag = 'scoped memory for vae_forward.12']
    %14 = vsyncpa [#allocation3], 0
    %15 = vsyncpa [#allocation5], 0
    // Predicated region
    $region2: #{vae_forward.12} parent=1 // pred_check
      _
    $region3: #{vae_forward.12} parent=1 // pred_check_branch
      %17 = sbr.rel (0) target = $region5
    $region4: #{vae_forward.12} parent=1 // pred_region
      _
    $region5: #{vae_forward.12} parent=1 // pred_fallthru
      _
    // Predicated region
    $region6: #{vae_forward.12} parent=1 // pred_check
      _
    $region7: #{vae_forward.12} parent=1 // pred_check_branch
      %19 = sbr.rel (0) target = $region9
    $region8: #{vae_forward.12} parent=1 // pred_region
      _
    $region9: #{vae_forward.12} parent=1 // pred_fallthru
      _
    // Predicated region
    $region10: #{vae_forward.12} parent=1 // pred_check
      _
    $region11: #{vae_forward.12} parent=1 // pred_check_branch
      %21 = sbr.rel (0) target = $region13
    $region12: #{vae_forward.12} parent=1 // pred_region
      _
    $region13: #{vae_forward.12} parent=1 // pred_fallthru
      _
    // Predicated region
    $region14: #{vae_forward.12} parent=1 // pred_check
      _
    $region15: #{vae_forward.12} parent=1 // pred_check_branch
      %23 = sbr.rel (0) target = $region17
    $region16: #{vae_forward.12} parent=1 // pred_region
      _
    $region17: #{vae_forward.12} parent=1 // pred_fallthru
      _
    // Predicated region
    $region18: #{vae_forward.12} parent=1 // pred_check
      _
    $region19: #{vae_forward.12} parent=1 // pred_check_branch
      %25 = sbr.rel (0) target = $region21
    $region20: #{vae_forward.12} parent=1 // pred_region
      _
    $region21: #{vae_forward.12} parent=1 // pred_fallthru
      _
    // Predicated region
    $region22: #{vae_forward.12} parent=1 // pred_check
      _
    $region23: #{vae_forward.12} parent=1 // pred_check_branch
      %27 = sbr.rel (0) target = $region25
    $region24: #{vae_forward.12} parent=1 // pred_region
      _
    $region25: #{vae_forward.12} parent=1 // pred_fallthru
      _
    %v29 = vld [vmem:[%s0] sm:$0xff]
    %v30 = vld [vmem:[%s0 + $0x8] sm:$0xff]
    %v31 = vld [vmem:[%s0 + $0x10] sm:$0xff]
    %v32 = vld [vmem:[%s0 + $0x18] sm:$0x1]
    %v33 = vld [vmem:[%s1] sm:$0xf]
    %v34 = vld [vmem:[%s1 + $0x4] sm:$0xf]
    %v35 = vld [vmem:[%s1 + $0x8] sm:$0xf]
    %v36 = vld [vmem:[%s1 + $0xc] sm:$0xf]
    %v37 = vld [vmem:[%s1 + $0x10] sm:$0xf]
    %v38 = vld [vmem:[%s1 + $0x14] sm:$0xf]
    %v39 = vld [vmem:[%s1 + $0x18] sm:$0xf]
    %v40 = vld [vmem:[%s1 + $0x1c] sm:$0xf]
    %v41 = vld [vmem:[%s1 + $0x20] sm:$0xf]
    %v42 = vld [vmem:[%s1 + $0x24] sm:$0xf]
    %v43 = vld [vmem:[%s1 + $0x28] sm:$0xf]
    %v44 = vld [vmem:[%s1 + $0x2c] sm:$0xf]
    %v45 = vld [vmem:[%s1 + $0x30] sm:$0xf]
    %v46 = vld [vmem:[%s1 + $0x34] sm:$0xf]
    %v47 = vld [vmem:[%s1 + $0x38] sm:$0xf]
    %v48 = vld [vmem:[%s1 + $0x3c] sm:$0xf]
    %v49 = vld [vmem:[%s1 + $0x40] sm:$0xf]
    %v50 = vld [vmem:[%s1 + $0x44] sm:$0xf]
    %v51 = vld [vmem:[%s1 + $0x48] sm:$0xf]
    %v52 = vld [vmem:[%s1 + $0x4c] sm:$0xf]
    %v53 = vld [vmem:[%s1 + $0x50] sm:$0xf]
    %v54 = vld [vmem:[%s1 + $0x54] sm:$0xf]
    %v55 = vld [vmem:[%s1 + $0x58] sm:$0xf]
    %v56 = vld [vmem:[%s1 + $0x5c] sm:$0xf]
    %v57 = vld [vmem:[%s1 + $0x60] sm:$0xf]
    %v58 = vld [vmem:[%s1 + $0x64] sm:$0xf]
    %v59 = vld [vmem:[%s1 + $0x68] sm:$0xf]
    %v60 = vld [vmem:[%s1 + $0x6c] sm:$0xf]
    %v61 = vld [vmem:[%s1 + $0x70] sm:$0xf]
    %v62 = vld [vmem:[%s1 + $0x74] sm:$0xf]
    %v63 = vld [vmem:[%s1 + $0x78] sm:$0xf]
    %v64 = vld [vmem:[%s1 + $0x7c] sm:$0xf]
    %v65 = vld [vmem:[%s1 + $0x80] sm:$0xf]
    %v66 = vld [vmem:[%s1 + $0x84] sm:$0xf]
    %v67 = vld [vmem:[%s1 + $0x88] sm:$0xf]
    %v68 = vld [vmem:[%s1 + $0x8c] sm:$0xf]
    %v69 = vld [vmem:[%s1 + $0x90] sm:$0xf]
    %v70 = vld [vmem:[%s1 + $0x94] sm:$0xf]
    %v71 = vld [vmem:[%s1 + $0x98] sm:$0xf]
    %v72 = vld [vmem:[%s1 + $0x9c] sm:$0xf]
    %v73 = vld [vmem:[%s1 + $0xa0] sm:$0xf]
    %v74 = vld [vmem:[%s1 + $0xa4] sm:$0xf]
    %v75 = vld [vmem:[%s1 + $0xa8] sm:$0xf]
    %v76 = vld [vmem:[%s1 + $0xac] sm:$0xf]
    %v77 = vld [vmem:[%s1 + $0xb0] sm:$0xf]
    %v78 = vld [vmem:[%s1 + $0xb4] sm:$0xf]
    %v79 = vld [vmem:[%s1 + $0xb8] sm:$0xf]
    %v80 = vld [vmem:[%s1 + $0xbc] sm:$0xf]
    %v81 = vld [vmem:[%s1 + $0xc0] sm:$0xf]
    %v82 = vld [vmem:[%s1 + $0xc4] sm:$0xf]
    %v83 = vld [vmem:[%s1 + $0xc8] sm:$0xf]
    %v84 = vld [vmem:[%s1 + $0xcc] sm:$0xf]
    %v85 = vld [vmem:[%s1 + $0xd0] sm:$0xf]
    %v86 = vld [vmem:[%s1 + $0xd4] sm:$0xf]
    %v87 = vld [vmem:[%s1 + $0xd8] sm:$0xf]
    %v88 = vld [vmem:[%s1 + $0xdc] sm:$0xf]
    %v89 = vld [vmem:[%s1 + $0xe0] sm:$0xf]
    %v90 = vld [vmem:[%s1 + $0xe4] sm:$0xf]
    %v91 = vld [vmem:[%s1 + $0xe8] sm:$0xf]
    %v92 = vld [vmem:[%s1 + $0xec] sm:$0xf]
    %v93 = vld [vmem:[%s1 + $0xf0] sm:$0xf]
    %v94 = vld [vmem:[%s1 + $0xf4] sm:$0xf]
    %v95 = vld [vmem:[%s1 + $0xf8] sm:$0xf]
    %v96 = vld [vmem:[%s1 + $0xfc] sm:$0xf]
    %v97 = vld [vmem:[%s1 + $0x100] sm:$0xf]
    %v98 = vld [vmem:[%s1 + $0x104] sm:$0xf]
    %v99 = vld [vmem:[%s1 + $0x108] sm:$0xf]
    %v100 = vld [vmem:[%s1 + $0x10c] sm:$0xf]
    %v101 = vld [vmem:[%s1 + $0x110] sm:$0xf]
    %v102 = vld [vmem:[%s1 + $0x114] sm:$0xf]
    %v103 = vld [vmem:[%s1 + $0x118] sm:$0xf]
    %v104 = vld [vmem:[%s1 + $0x11c] sm:$0xf]
    %v105 = vld [vmem:[%s1 + $0x120] sm:$0xf]
    %v106 = vld [vmem:[%s1 + $0x124] sm:$0xf]
    %v107 = vld [vmem:[%s1 + $0x128] sm:$0xf]
    %v108 = vld [vmem:[%s1 + $0x12c] sm:$0xf]
    %v109 = vld [vmem:[%s1 + $0x130] sm:$0xf]
    %v110 = vld [vmem:[%s1 + $0x134] sm:$0xf]
    %v111 = vld [vmem:[%s1 + $0x138] sm:$0xf]
    %v112 = vld [vmem:[%s1 + $0x13c] sm:$0xf]
    %v113 = vld [vmem:[%s1 + $0x140] sm:$0xf]
    %v114 = vld [vmem:[%s1 + $0x144] sm:$0xf]
    %v115 = vld [vmem:[%s1 + $0x148] sm:$0xf]
    %v116 = vld [vmem:[%s1 + $0x14c] sm:$0xf]
    %v117 = vld [vmem:[%s1 + $0x150] sm:$0xf]
    %v118 = vld [vmem:[%s1 + $0x154] sm:$0xf]
    %v119 = vld [vmem:[%s1 + $0x158] sm:$0xf]
    %v120 = vld [vmem:[%s1 + $0x15c] sm:$0xf]
    %v121 = vld [vmem:[%s1 + $0x160] sm:$0xf]
    %v122 = vld [vmem:[%s1 + $0x164] sm:$0xf]
    %v123 = vld [vmem:[%s1 + $0x168] sm:$0xf]
    %v124 = vld [vmem:[%s1 + $0x16c] sm:$0xf]
    %v125 = vld [vmem:[%s1 + $0x170] sm:$0xf]
    %v126 = vld [vmem:[%s1 + $0x174] sm:$0xf]
    %v127 = vld [vmem:[%s1 + $0x178] sm:$0xf]
    %v128 = vld [vmem:[%s1 + $0x17c] sm:$0xf]
    %v129 = vld [vmem:[%s1 + $0x180] sm:$0xf]
    %v130 = vld [vmem:[%s1 + $0x184] sm:$0xf]
    %v131 = vld [vmem:[%s1 + $0x188] sm:$0xf]
    %v132 = vld [vmem:[%s1 + $0x18c] sm:$0xf]
    %v133 = vld [vmem:[%s1 + $0x190] sm:$0xf]
    %v134 = vld [vmem:[%s1 + $0x194] sm:$0xf]
    %v135 = vld [vmem:[%s1 + $0x198] sm:$0xf]
    %v136 = vld [vmem:[%s1 + $0x19c] sm:$0xf]
    %v137 = vld [vmem:[%s1 + $0x1a0] sm:$0xf]
    %v138 = vld [vmem:[%s1 + $0x1a4] sm:$0xf]
    %v139 = vld [vmem:[%s1 + $0x1a8] sm:$0xf]
    %v140 = vld [vmem:[%s1 + $0x1ac] sm:$0xf]
    %v141 = vld [vmem:[%s1 + $0x1b0] sm:$0xf]
    %v142 = vld [vmem:[%s1 + $0x1b4] sm:$0xf]
    %v143 = vld [vmem:[%s1 + $0x1b8] sm:$0xf]
    %v144 = vld [vmem:[%s1 + $0x1bc] sm:$0xf]
    %v145 = vld [vmem:[%s1 + $0x1c0] sm:$0xf]
    %v146 = vld [vmem:[%s1 + $0x1c4] sm:$0xf]
    %v147 = vld [vmem:[%s1 + $0x1c8] sm:$0xf]
    %v148 = vld [vmem:[%s1 + $0x1cc] sm:$0xf]
    %v149 = vld [vmem:[%s1 + $0x1d0] sm:$0xf]
    %v150 = vld [vmem:[%s1 + $0x1d4] sm:$0xf]
    %v151 = vld [vmem:[%s1 + $0x1d8] sm:$0xf]
    %v152 = vld [vmem:[%s1 + $0x1dc] sm:$0xf]
    %v153 = vld [vmem:[%s1 + $0x1e0] sm:$0xf]
    %v154 = vld [vmem:[%s1 + $0x1e4] sm:$0xf]
    %v155 = vld [vmem:[%s1 + $0x1e8] sm:$0xf]
    %v156 = vld [vmem:[%s1 + $0x1ec] sm:$0xf]
    %v157 = vld [vmem:[%s1 + $0x1f0] sm:$0xf]
    %v158 = vld [vmem:[%s1 + $0x1f4] sm:$0xf]
    %v159 = vld [vmem:[%s1 + $0x1f8] sm:$0xf]
    %v160 = vld [vmem:[%s1 + $0x1fc] sm:$0xf]
    %v161 = vld [vmem:[%s1 + $0x200] sm:$0xf]
    %v162 = vld [vmem:[%s1 + $0x204] sm:$0xf]
    %v163 = vld [vmem:[%s1 + $0x208] sm:$0xf]
    %v164 = vld [vmem:[%s1 + $0x20c] sm:$0xf]
    %v165 = vld [vmem:[%s1 + $0x210] sm:$0xf]
    %v166 = vld [vmem:[%s1 + $0x214] sm:$0xf]
    %v167 = vld [vmem:[%s1 + $0x218] sm:$0xf]
    %v168 = vld [vmem:[%s1 + $0x21c] sm:$0xf]
    %v169 = vld [vmem:[%s1 + $0x220] sm:$0xf]
    %v170 = vld [vmem:[%s1 + $0x224] sm:$0xf]
    %v171 = vld [vmem:[%s1 + $0x228] sm:$0xf]
    %v172 = vld [vmem:[%s1 + $0x22c] sm:$0xf]
    %v173 = vld [vmem:[%s1 + $0x230] sm:$0xf]
    %v174 = vld [vmem:[%s1 + $0x234] sm:$0xf]
    %v175 = vld [vmem:[%s1 + $0x238] sm:$0xf]
    %v176 = vld [vmem:[%s1 + $0x23c] sm:$0xf]
    %v177 = vld [vmem:[%s1 + $0x240] sm:$0xf]
    %v178 = vld [vmem:[%s1 + $0x244] sm:$0xf]
    %v179 = vld [vmem:[%s1 + $0x248] sm:$0xf]
    %v180 = vld [vmem:[%s1 + $0x24c] sm:$0xf]
    %v181 = vld [vmem:[%s1 + $0x250] sm:$0xf]
    %v182 = vld [vmem:[%s1 + $0x254] sm:$0xf]
    %v183 = vld [vmem:[%s1 + $0x258] sm:$0xf]
    %v184 = vld [vmem:[%s1 + $0x25c] sm:$0xf]
    %v185 = vld [vmem:[%s1 + $0x260] sm:$0xf]
    %v186 = vld [vmem:[%s1 + $0x264] sm:$0xf]
    %v187 = vld [vmem:[%s1 + $0x268] sm:$0xf]
    %v188 = vld [vmem:[%s1 + $0x26c] sm:$0xf]
    %v189 = vld [vmem:[%s1 + $0x270] sm:$0xf]
    %v190 = vld [vmem:[%s1 + $0x274] sm:$0xf]
    %v191 = vld [vmem:[%s1 + $0x278] sm:$0xf]
    %v192 = vld [vmem:[%s1 + $0x27c] sm:$0xf]
    %v193 = vld [vmem:[%s1 + $0x280] sm:$0xf]
    %v194 = vld [vmem:[%s1 + $0x284] sm:$0xf]
    %v195 = vld [vmem:[%s1 + $0x288] sm:$0xf]
    %v196 = vld [vmem:[%s1 + $0x28c] sm:$0xf]
    %v197 = vld [vmem:[%s1 + $0x290] sm:$0xf]
    %v198 = vld [vmem:[%s1 + $0x294] sm:$0xf]
    %v199 = vld [vmem:[%s1 + $0x298] sm:$0xf]
    %v200 = vld [vmem:[%s1 + $0x29c] sm:$0xf]
    %v201 = vld [vmem:[%s1 + $0x2a0] sm:$0xf]
    %v202 = vld [vmem:[%s1 + $0x2a4] sm:$0xf]
    %v203 = vld [vmem:[%s1 + $0x2a8] sm:$0xf]
    %v204 = vld [vmem:[%s1 + $0x2ac] sm:$0xf]
    %v205 = vld [vmem:[%s1 + $0x2b0] sm:$0xf]
    %v206 = vld [vmem:[%s1 + $0x2b4] sm:$0xf]
    %v207 = vld [vmem:[%s1 + $0x2b8] sm:$0xf]
    %v208 = vld [vmem:[%s1 + $0x2bc] sm:$0xf]
    %v209 = vld [vmem:[%s1 + $0x2c0] sm:$0xf]
    %v210 = vld [vmem:[%s1 + $0x2c4] sm:$0xf]
    %v211 = vld [vmem:[%s1 + $0x2c8] sm:$0xf]
    %v212 = vld [vmem:[%s1 + $0x2cc] sm:$0xf]
    %v213 = vld [vmem:[%s1 + $0x2d0] sm:$0xf]
    %v214 = vld [vmem:[%s1 + $0x2d4] sm:$0xf]
    %v215 = vld [vmem:[%s1 + $0x2d8] sm:$0xf]
    %v216 = vld [vmem:[%s1 + $0x2dc] sm:$0xf]
    %v217 = vld [vmem:[%s1 + $0x2e0] sm:$0xf]
    %v218 = vld [vmem:[%s1 + $0x2e4] sm:$0xf]
    %v219 = vld [vmem:[%s1 + $0x2e8] sm:$0xf]
    %v220 = vld [vmem:[%s1 + $0x2ec] sm:$0xf]
    %v221 = vld [vmem:[%s1 + $0x2f0] sm:$0xf]
    %v222 = vld [vmem:[%s1 + $0x2f4] sm:$0xf]
    %v223 = vld [vmem:[%s1 + $0x2f8] sm:$0xf]
    %v224 = vld [vmem:[%s1 + $0x2fc] sm:$0xf]
    %v225 = vld [vmem:[%s1 + $0x300] sm:$0xf]
    %v226 = vld [vmem:[%s1 + $0x304] sm:$0xf]
    %v227 = vld [vmem:[%s1 + $0x308] sm:$0xf]
    %v228 = vld [vmem:[%s1 + $0x30c] sm:$0xf]
    %v229 = vld [vmem:[%s1 + $0x310] sm:$0xf]
    %v230 = vld [vmem:[%s1 + $0x314] sm:$0xf]
    %v231 = vld [vmem:[%s1 + $0x318] sm:$0xf]
    %v232 = vld [vmem:[%s1 + $0x31c] sm:$0xf]
    %v233 = vld [vmem:[%s1 + $0x320] sm:$0xf]
    %v234 = vld [vmem:[%s1 + $0x324] sm:$0xf]
    %v235 = vld [vmem:[%s1 + $0x328] sm:$0xf]
    %v236 = vld [vmem:[%s1 + $0x32c] sm:$0xf]
    %v237 = vld [vmem:[%s1 + $0x330] sm:$0xf]
    %v238 = vld [vmem:[%s1 + $0x334] sm:$0xf]
    %v239 = vld [vmem:[%s1 + $0x338] sm:$0xf]
    %v240 = vld [vmem:[%s1 + $0x33c] sm:$0xf]
    %v241 = vld [vmem:[%s1 + $0x340] sm:$0xf]
    %v242 = vld [vmem:[%s1 + $0x344] sm:$0xf]
    %v243 = vld [vmem:[%s1 + $0x348] sm:$0xf]
    %v244 = vld [vmem:[%s1 + $0x34c] sm:$0xf]
    %v245 = vld [vmem:[%s1 + $0x350] sm:$0xf]
    %v246 = vld [vmem:[%s1 + $0x354] sm:$0xf]
    %v247 = vld [vmem:[%s1 + $0x358] sm:$0xf]
    %v248 = vld [vmem:[%s1 + $0x35c] sm:$0xf]
    %v249 = vld [vmem:[%s1 + $0x360] sm:$0xf]
    %v250 = vld [vmem:[%s1 + $0x364] sm:$0xf]
    %v251 = vld [vmem:[%s1 + $0x368] sm:$0xf]
    %v252 = vld [vmem:[%s1 + $0x36c] sm:$0xf]
    %v253 = vld [vmem:[%s1 + $0x370] sm:$0xf]
    %v254 = vld [vmem:[%s1 + $0x374] sm:$0xf]
    %v255 = vld [vmem:[%s1 + $0x378] sm:$0xf]
    %v256 = vld [vmem:[%s1 + $0x37c] sm:$0xf]
    %v257 = vld [vmem:[%s1 + $0x380] sm:$0xf]
    %v258 = vld [vmem:[%s1 + $0x384] sm:$0xf]
    %v259 = vld [vmem:[%s1 + $0x388] sm:$0xf]
    %v260 = vld [vmem:[%s1 + $0x38c] sm:$0xf]
    %v261 = vld [vmem:[%s1 + $0x390] sm:$0xf]
    %v262 = vld [vmem:[%s1 + $0x394] sm:$0xf]
    %v263 = vld [vmem:[%s1 + $0x398] sm:$0xf]
    %v264 = vld [vmem:[%s1 + $0x39c] sm:$0xf]
    %v265 = vld [vmem:[%s1 + $0x3a0] sm:$0xf]
    %v266 = vld [vmem:[%s1 + $0x3a4] sm:$0xf]
    %v267 = vld [vmem:[%s1 + $0x3a8] sm:$0xf]
    %v268 = vld [vmem:[%s1 + $0x3ac] sm:$0xf]
    %v269 = vld [vmem:[%s1 + $0x3b0] sm:$0xf]
    %v270 = vld [vmem:[%s1 + $0x3b4] sm:$0xf]
    %v271 = vld [vmem:[%s1 + $0x3b8] sm:$0xf]
    %v272 = vld [vmem:[%s1 + $0x3bc] sm:$0xf]
    %v273 = vld [vmem:[%s1 + $0x3c0] sm:$0xf]
    %v274 = vld [vmem:[%s1 + $0x3c4] sm:$0xf]
    %v275 = vld [vmem:[%s1 + $0x3c8] sm:$0xf]
    %v276 = vld [vmem:[%s1 + $0x3cc] sm:$0xf]
    %v277 = vld [vmem:[%s1 + $0x3d0] sm:$0xf]
    %v278 = vld [vmem:[%s1 + $0x3d4] sm:$0xf]
    %v279 = vld [vmem:[%s1 + $0x3d8] sm:$0xf]
    %v280 = vld [vmem:[%s1 + $0x3dc] sm:$0xf]
    %v281 = vld [vmem:[%s1 + $0x3e0] sm:$0xf]
    %v282 = vld [vmem:[%s1 + $0x3e4] sm:$0xf]
    %v283 = vld [vmem:[%s1 + $0x3e8] sm:$0xf]
    %v284 = vld [vmem:[%s1 + $0x3ec] sm:$0xf]
    %v285 = vld [vmem:[%s1 + $0x3f0] sm:$0xf]
    %v286 = vld [vmem:[%s1 + $0x3f4] sm:$0xf]
    %v287 = vld [vmem:[%s1 + $0x3f8] sm:$0xf]
    %v288 = vld [vmem:[%s1 + $0x3fc] sm:$0xf]
    %v289 = vld [vmem:[%s1 + $0x400] sm:$0xf]
    %v290 = vld [vmem:[%s1 + $0x404] sm:$0xf]
    %v291 = vld [vmem:[%s1 + $0x408] sm:$0xf]
    %v292 = vld [vmem:[%s1 + $0x40c] sm:$0xf]
    %v293 = vld [vmem:[%s1 + $0x410] sm:$0xf]
    %v294 = vld [vmem:[%s1 + $0x414] sm:$0xf]
    %v295 = vld [vmem:[%s1 + $0x418] sm:$0xf]
    %v296 = vld [vmem:[%s1 + $0x41c] sm:$0xf]
    %v297 = vld [vmem:[%s1 + $0x420] sm:$0xf]
    %v298 = vld [vmem:[%s1 + $0x424] sm:$0xf]
    %v299 = vld [vmem:[%s1 + $0x428] sm:$0xf]
    %v300 = vld [vmem:[%s1 + $0x42c] sm:$0xf]
    %v301 = vld [vmem:[%s1 + $0x430] sm:$0xf]
    %v302 = vld [vmem:[%s1 + $0x434] sm:$0xf]
    %v303 = vld [vmem:[%s1 + $0x438] sm:$0xf]
    %v304 = vld [vmem:[%s1 + $0x43c] sm:$0xf]
    %v305 = vld [vmem:[%s1 + $0x440] sm:$0xf]
    %v306 = vld [vmem:[%s1 + $0x444] sm:$0xf]
    %v307 = vld [vmem:[%s1 + $0x448] sm:$0xf]
    %v308 = vld [vmem:[%s1 + $0x44c] sm:$0xf]
    %v309 = vld [vmem:[%s1 + $0x450] sm:$0xf]
    %v310 = vld [vmem:[%s1 + $0x454] sm:$0xf]
    %v311 = vld [vmem:[%s1 + $0x458] sm:$0xf]
    %v312 = vld [vmem:[%s1 + $0x45c] sm:$0xf]
    %v313 = vld [vmem:[%s1 + $0x460] sm:$0xf]
    %v314 = vld [vmem:[%s1 + $0x464] sm:$0xf]
    %v315 = vld [vmem:[%s1 + $0x468] sm:$0xf]
    %v316 = vld [vmem:[%s1 + $0x46c] sm:$0xf]
    %v317 = vld [vmem:[%s1 + $0x470] sm:$0xf]
    %v318 = vld [vmem:[%s1 + $0x474] sm:$0xf]
    %v319 = vld [vmem:[%s1 + $0x478] sm:$0xf]
    %v320 = vld [vmem:[%s1 + $0x47c] sm:$0xf]
    %v321 = vld [vmem:[%s1 + $0x480] sm:$0xf]
    %v322 = vld [vmem:[%s1 + $0x484] sm:$0xf]
    %v323 = vld [vmem:[%s1 + $0x488] sm:$0xf]
    %v324 = vld [vmem:[%s1 + $0x48c] sm:$0xf]
    %v325 = vld [vmem:[%s1 + $0x490] sm:$0xf]
    %v326 = vld [vmem:[%s1 + $0x494] sm:$0xf]
    %v327 = vld [vmem:[%s1 + $0x498] sm:$0xf]
    %v328 = vld [vmem:[%s1 + $0x49c] sm:$0xf]
    %v329 = vld [vmem:[%s1 + $0x4a0] sm:$0xf]
    %v330 = vld [vmem:[%s1 + $0x4a4] sm:$0xf]
    %v331 = vld [vmem:[%s1 + $0x4a8] sm:$0xf]
    %v332 = vld [vmem:[%s1 + $0x4ac] sm:$0xf]
    %v333 = vld [vmem:[%s1 + $0x4b0] sm:$0xf]
    %v334 = vld [vmem:[%s1 + $0x4b4] sm:$0xf]
    %v335 = vld [vmem:[%s1 + $0x4b8] sm:$0xf]
    %v336 = vld [vmem:[%s1 + $0x4bc] sm:$0xf]
    %v337 = vld [vmem:[%s1 + $0x4c0] sm:$0xf]
    %v338 = vld [vmem:[%s1 + $0x4c4] sm:$0xf]
    %v339 = vld [vmem:[%s1 + $0x4c8] sm:$0xf]
    %v340 = vld [vmem:[%s1 + $0x4cc] sm:$0xf]
    %v341 = vld [vmem:[%s1 + $0x4d0] sm:$0xf]
    %v342 = vld [vmem:[%s1 + $0x4d4] sm:$0xf]
    %v343 = vld [vmem:[%s1 + $0x4d8] sm:$0xf]
    %v344 = vld [vmem:[%s1 + $0x4dc] sm:$0xf]
    %v345 = vld [vmem:[%s1 + $0x4e0] sm:$0xf]
    %v346 = vld [vmem:[%s1 + $0x4e4] sm:$0xf]
    %v347 = vld [vmem:[%s1 + $0x4e8] sm:$0xf]
    %v348 = vld [vmem:[%s1 + $0x4ec] sm:$0xf]
    %v349 = vld [vmem:[%s1 + $0x4f0] sm:$0xf]
    %v350 = vld [vmem:[%s1 + $0x4f4] sm:$0xf]
    %v351 = vld [vmem:[%s1 + $0x4f8] sm:$0xf]
    %v352 = vld [vmem:[%s1 + $0x4fc] sm:$0xf]
    %v353 = vld [vmem:[%s1 + $0x500] sm:$0xf]
    %v354 = vld [vmem:[%s1 + $0x504] sm:$0xf]
    %v355 = vld [vmem:[%s1 + $0x508] sm:$0xf]
    %v356 = vld [vmem:[%s1 + $0x50c] sm:$0xf]
    %v357 = vld [vmem:[%s1 + $0x510] sm:$0xf]
    %v358 = vld [vmem:[%s1 + $0x514] sm:$0xf]
    %v359 = vld [vmem:[%s1 + $0x518] sm:$0xf]
    %v360 = vld [vmem:[%s1 + $0x51c] sm:$0xf]
    %v361 = vld [vmem:[%s1 + $0x520] sm:$0xf]
    %v362 = vld [vmem:[%s1 + $0x524] sm:$0xf]
    %v363 = vld [vmem:[%s1 + $0x528] sm:$0xf]
    %v364 = vld [vmem:[%s1 + $0x52c] sm:$0xf]
    %v365 = vld [vmem:[%s1 + $0x530] sm:$0xf]
    %v366 = vld [vmem:[%s1 + $0x534] sm:$0xf]
    %v367 = vld [vmem:[%s1 + $0x538] sm:$0xf]
    %v368 = vld [vmem:[%s1 + $0x53c] sm:$0xf]
    %v369 = vld [vmem:[%s1 + $0x540] sm:$0xf]
    %v370 = vld [vmem:[%s1 + $0x544] sm:$0xf]
    %v371 = vld [vmem:[%s1 + $0x548] sm:$0xf]
    %v372 = vld [vmem:[%s1 + $0x54c] sm:$0xf]
    %v373 = vld [vmem:[%s1 + $0x550] sm:$0xf]
    %v374 = vld [vmem:[%s1 + $0x554] sm:$0xf]
    %v375 = vld [vmem:[%s1 + $0x558] sm:$0xf]
    %v376 = vld [vmem:[%s1 + $0x55c] sm:$0xf]
    %v377 = vld [vmem:[%s1 + $0x560] sm:$0xf]
    %v378 = vld [vmem:[%s1 + $0x564] sm:$0xf]
    %v379 = vld [vmem:[%s1 + $0x568] sm:$0xf]
    %v380 = vld [vmem:[%s1 + $0x56c] sm:$0xf]
    %v381 = vld [vmem:[%s1 + $0x570] sm:$0xf]
    %v382 = vld [vmem:[%s1 + $0x574] sm:$0xf]
    %v383 = vld [vmem:[%s1 + $0x578] sm:$0xf]
    %v384 = vld [vmem:[%s1 + $0x57c] sm:$0xf]
    %v385 = vld [vmem:[%s1 + $0x580] sm:$0xf]
    %v386 = vld [vmem:[%s1 + $0x584] sm:$0xf]
    %v387 = vld [vmem:[%s1 + $0x588] sm:$0xf]
    %v388 = vld [vmem:[%s1 + $0x58c] sm:$0xf]
    %v389 = vld [vmem:[%s1 + $0x590] sm:$0xf]
    %v390 = vld [vmem:[%s1 + $0x594] sm:$0xf]
    %v391 = vld [vmem:[%s1 + $0x598] sm:$0xf]
    %v392 = vld [vmem:[%s1 + $0x59c] sm:$0xf]
    %v393 = vld [vmem:[%s1 + $0x5a0] sm:$0xf]
    %v394 = vld [vmem:[%s1 + $0x5a4] sm:$0xf]
    %v395 = vld [vmem:[%s1 + $0x5a8] sm:$0xf]
    %v396 = vld [vmem:[%s1 + $0x5ac] sm:$0xf]
    %v397 = vld [vmem:[%s1 + $0x5b0] sm:$0xf]
    %v398 = vld [vmem:[%s1 + $0x5b4] sm:$0xf]
    %v399 = vld [vmem:[%s1 + $0x5b8] sm:$0xf]
    %v400 = vld [vmem:[%s1 + $0x5bc] sm:$0xf]
    %v401 = vld [vmem:[%s1 + $0x5c0] sm:$0xf]
    %v402 = vld [vmem:[%s1 + $0x5c4] sm:$0xf]
    %v403 = vld [vmem:[%s1 + $0x5c8] sm:$0xf]
    %v404 = vld [vmem:[%s1 + $0x5cc] sm:$0xf]
    %v405 = vld [vmem:[%s1 + $0x5d0] sm:$0xf]
    %v406 = vld [vmem:[%s1 + $0x5d4] sm:$0xf]
    %v407 = vld [vmem:[%s1 + $0x5d8] sm:$0xf]
    %v408 = vld [vmem:[%s1 + $0x5dc] sm:$0xf]
    %v409 = vld [vmem:[%s1 + $0x5e0] sm:$0xf]
    %v410 = vld [vmem:[%s1 + $0x5e4] sm:$0xf]
    %v411 = vld [vmem:[%s1 + $0x5e8] sm:$0xf]
    %v412 = vld [vmem:[%s1 + $0x5ec] sm:$0xf]
    %v413 = vld [vmem:[%s1 + $0x5f0] sm:$0xf]
    %v414 = vld [vmem:[%s1 + $0x5f4] sm:$0xf]
    %v415 = vld [vmem:[%s1 + $0x5f8] sm:$0xf]
    %v416 = vld [vmem:[%s1 + $0x5fc] sm:$0xf]
    %v417 = vld [vmem:[%s1 + $0x600] sm:$0xf]
    %v418 = vld [vmem:[%s1 + $0x604] sm:$0xf]
    %v419 = vld [vmem:[%s1 + $0x608] sm:$0xf]
    %v420 = vld [vmem:[%s1 + $0x60c] sm:$0xf]
    %v421 = vld [vmem:[%s1 + $0x610] sm:$0xf]
    %v422 = vld [vmem:[%s1 + $0x614] sm:$0xf]
    %v423 = vld [vmem:[%s1 + $0x618] sm:$0xf]
    %v424 = vld [vmem:[%s1 + $0x61c] sm:$0xf]
    %v425 = vld [vmem:[%s2] sm:$0x1]
    %v427 = vperm.slane %v425, 0
    %430 = vst [vmem:[#allocation1] ss:$9 sm:$0xff] %v29
    %v431 = vld [vmem:[#allocation1] sm:$0xff]
    %v432 = vld [vmem:[#allocation1 + $0x9] sm:$0xff]
    %v433 = vld [vmem:[#allocation1 + $0x12] sm:$0xff]
    %v434 = vld [vmem:[#allocation1 + $0x1b] sm:$0xff]
    %v435 = vld [vmem:[#allocation1 + $0x24] sm:$0xff]
    %v436 = vld [vmem:[#allocation1 + $0x2d] sm:$0xff]
    %v437 = vld [vmem:[#allocation1 + $0x36] sm:$0xff]
    %v438 = vld [vmem:[#allocation1 + $0x3f] sm:$0xff]
    %440 = vst [vmem:[#allocation1] ss:$9 sm:$0xff] %v30
    %v441 = vld [vmem:[#allocation1] sm:$0xff]
    %v442 = vld [vmem:[#allocation1 + $0x9] sm:$0xff]
    %v443 = vld [vmem:[#allocation1 + $0x12] sm:$0xff]
    %v444 = vld [vmem:[#allocation1 + $0x1b] sm:$0xff]
    %v445 = vld [vmem:[#allocation1 + $0x24] sm:$0xff]
    %v446 = vld [vmem:[#allocation1 + $0x2d] sm:$0xff]
    %v447 = vld [vmem:[#allocation1 + $0x36] sm:$0xff]
    %v448 = vld [vmem:[#allocation1 + $0x3f] sm:$0xff]
    %450 = vst [vmem:[#allocation1] ss:$9 sm:$0xff] %v31
    %v451 = vld [vmem:[#allocation1] sm:$0xff]
    %v452 = vld [vmem:[#allocation1 + $0x9] sm:$0xff]
    %v453 = vld [vmem:[#allocation1 + $0x12] sm:$0xff]
    %v454 = vld [vmem:[#allocation1 + $0x1b] sm:$0xff]
    %v455 = vld [vmem:[#allocation1 + $0x24] sm:$0xff]
    %v456 = vld [vmem:[#allocation1 + $0x2d] sm:$0xff]
    %v457 = vld [vmem:[#allocation1 + $0x36] sm:$0xff]
    %v458 = vld [vmem:[#allocation1 + $0x3f] sm:$0xff]
    %460 = vst [vmem:[#allocation1] ss:$9 sm:$0xff] %v32
    %v461 = vld [vmem:[#allocation1] sm:$0xff]
    %v878 = vunpack.c.l.b16 %v33
    %v879 = vunpack.c.l.b16 %v34
    %v880 = vunpack.c.l.b16 %v35
    %v881 = vunpack.c.l.b16 %v36
    %v882 = vunpack.c.l.b16 %v37
    %v883 = vunpack.c.l.b16 %v38
    %v884 = vunpack.c.l.b16 %v39
    %v885 = vunpack.c.l.b16 %v40
    %v886 = vunpack.c.l.b16 %v41
    %v887 = vunpack.c.l.b16 %v42
    %v888 = vunpack.c.l.b16 %v43
    %v889 = vunpack.c.l.b16 %v44
    %v890 = vunpack.c.l.b16 %v45
    %v891 = vunpack.c.l.b16 %v46
    %v892 = vunpack.c.l.b16 %v47
    %v893 = vunpack.c.l.b16 %v48
    %v894 = vunpack.c.l.b16 %v49
    %v895 = vunpack.c.l.b16 %v50
    %v896 = vunpack.c.l.b16 %v51
    %v897 = vunpack.c.l.b16 %v52
    %v898 = vunpack.c.l.b16 %v53
    %v899 = vunpack.c.l.b16 %v54
    %v900 = vunpack.c.l.b16 %v55
    %v901 = vunpack.c.l.b16 %v56
    %v902 = vunpack.c.l.b16 %v57
    %v903 = vunpack.c.l.b16 %v58
    %v904 = vunpack.c.l.b16 %v59
    %v905 = vunpack.c.l.b16 %v60
    %v906 = vunpack.c.l.b16 %v61
    %v907 = vunpack.c.l.b16 %v62
    %v908 = vunpack.c.l.b16 %v63
    %v909 = vunpack.c.l.b16 %v64
    %v910 = vunpack.c.l.b16 %v65
    %v911 = vunpack.c.l.b16 %v66
    %v912 = vunpack.c.l.b16 %v67
    %v913 = vunpack.c.l.b16 %v68
    %v914 = vunpack.c.l.b16 %v69
    %v915 = vunpack.c.l.b16 %v70
    %v916 = vunpack.c.l.b16 %v71
    %v917 = vunpack.c.l.b16 %v72
    %v918 = vunpack.c.l.b16 %v73
    %v919 = vunpack.c.l.b16 %v74
    %v920 = vunpack.c.l.b16 %v75
    %v921 = vunpack.c.l.b16 %v76
    %v922 = vunpack.c.l.b16 %v77
    %v923 = vunpack.c.l.b16 %v78
    %v924 = vunpack.c.l.b16 %v79
    %v925 = vunpack.c.l.b16 %v80
    %v926 = vunpack.c.l.b16 %v81
    %v927 = vunpack.c.l.b16 %v82
    %v928 = vunpack.c.l.b16 %v83
    %v929 = vunpack.c.l.b16 %v84
    %v930 = vunpack.c.l.b16 %v85
    %v931 = vunpack.c.l.b16 %v86
    %v932 = vunpack.c.l.b16 %v87
    %v933 = vunpack.c.l.b16 %v88
    %v934 = vunpack.c.l.b16 %v89
    %v935 = vunpack.c.l.b16 %v90
    %v936 = vunpack.c.l.b16 %v91
    %v937 = vunpack.c.l.b16 %v92
    %v938 = vunpack.c.l.b16 %v93
    %v939 = vunpack.c.l.b16 %v94
    %v940 = vunpack.c.l.b16 %v95
    %v941 = vunpack.c.l.b16 %v96
    %v942 = vunpack.c.l.b16 %v97
    %v943 = vunpack.c.l.b16 %v98
    %v944 = vunpack.c.l.b16 %v99
    %v945 = vunpack.c.l.b16 %v100
    %v946 = vunpack.c.l.b16 %v101
    %v947 = vunpack.c.l.b16 %v102
    %v948 = vunpack.c.l.b16 %v103
    %v949 = vunpack.c.l.b16 %v104
    %v950 = vunpack.c.l.b16 %v105
    %v951 = vunpack.c.l.b16 %v106
    %v952 = vunpack.c.l.b16 %v107
    %v953 = vunpack.c.l.b16 %v108
    %v954 = vunpack.c.l.b16 %v109
    %v955 = vunpack.c.l.b16 %v110
    %v956 = vunpack.c.l.b16 %v111
    %v957 = vunpack.c.l.b16 %v112
    %v958 = vunpack.c.l.b16 %v113
    %v959 = vunpack.c.l.b16 %v114
    %v960 = vunpack.c.l.b16 %v115
    %v961 = vunpack.c.l.b16 %v116
    %v962 = vunpack.c.l.b16 %v117
    %v963 = vunpack.c.l.b16 %v118
    %v964 = vunpack.c.l.b16 %v119
    %v965 = vunpack.c.l.b16 %v120
    %v966 = vunpack.c.l.b16 %v121
    %v967 = vunpack.c.l.b16 %v122
    %v968 = vunpack.c.l.b16 %v123
    %v969 = vunpack.c.l.b16 %v124
    %v970 = vunpack.c.l.b16 %v125
    %v971 = vunpack.c.l.b16 %v126
    %v972 = vunpack.c.l.b16 %v127
    %v973 = vunpack.c.l.b16 %v128
    %v974 = vunpack.c.l.b16 %v129
    %v975 = vunpack.c.l.b16 %v130
    %v976 = vunpack.c.l.b16 %v131
    %v977 = vunpack.c.l.b16 %v132
    %v978 = vunpack.c.l.b16 %v133
    %v979 = vunpack.c.l.b16 %v134
    %v980 = vunpack.c.l.b16 %v135
    %v981 = vunpack.c.l.b16 %v136
    %v982 = vunpack.c.l.b16 %v137
    %v983 = vunpack.c.l.b16 %v138
    %v984 = vunpack.c.l.b16 %v139
    %v985 = vunpack.c.l.b16 %v140
    %v986 = vunpack.c.l.b16 %v141
    %v987 = vunpack.c.l.b16 %v142
    %v988 = vunpack.c.l.b16 %v143
    %v989 = vunpack.c.l.b16 %v144
    %v990 = vunpack.c.l.b16 %v145
    %v991 = vunpack.c.l.b16 %v146
    %v992 = vunpack.c.l.b16 %v147
    %v993 = vunpack.c.l.b16 %v148
    %v994 = vunpack.c.l.b16 %v149
    %v995 = vunpack.c.l.b16 %v150
    %v996 = vunpack.c.l.b16 %v151
    %v997 = vunpack.c.l.b16 %v152
    %v998 = vunpack.c.l.b16 %v153
    %v999 = vunpack.c.l.b16 %v154
    %v1000 = vunpack.c.l.b16 %v155
    %v1001 = vunpack.c.l.b16 %v156
    %v1002 = vunpack.c.l.b16 %v157
    %v1003 = vunpack.c.l.b16 %v158
    %v1004 = vunpack.c.l.b16 %v159
    %v1005 = vunpack.c.l.b16 %v160
    %v1006 = vunpack.c.l.b16 %v161
    %v1007 = vunpack.c.l.b16 %v162
    %v1008 = vunpack.c.l.b16 %v163
    %v1009 = vunpack.c.l.b16 %v164
    %v1010 = vunpack.c.l.b16 %v165
    %v1011 = vunpack.c.l.b16 %v166
    %v1012 = vunpack.c.l.b16 %v167
    %v1013 = vunpack.c.l.b16 %v168
    %v1014 = vunpack.c.l.b16 %v169
    %v1015 = vunpack.c.l.b16 %v170
    %v1016 = vunpack.c.l.b16 %v171
    %v1017 = vunpack.c.l.b16 %v172
    %v1018 = vunpack.c.l.b16 %v173
    %v1019 = vunpack.c.l.b16 %v174
    %v1020 = vunpack.c.l.b16 %v175
    %v1021 = vunpack.c.l.b16 %v176
    %v1022 = vunpack.c.l.b16 %v177
    %v1023 = vunpack.c.l.b16 %v178
    %v1024 = vunpack.c.l.b16 %v179
    %v1025 = vunpack.c.l.b16 %v180
    %v1026 = vunpack.c.l.b16 %v181
    %v1027 = vunpack.c.l.b16 %v182
    %v1028 = vunpack.c.l.b16 %v183
    %v1029 = vunpack.c.l.b16 %v184
    %v1030 = vunpack.c.l.b16 %v185
    %v1031 = vunpack.c.l.b16 %v186
    %v1032 = vunpack.c.l.b16 %v187
    %v1033 = vunpack.c.l.b16 %v188
    %v1034 = vunpack.c.l.b16 %v189
    %v1035 = vunpack.c.l.b16 %v190
    %v1036 = vunpack.c.l.b16 %v191
    %v1037 = vunpack.c.l.b16 %v192
    %v1038 = vunpack.c.l.b16 %v193
    %v1039 = vunpack.c.l.b16 %v194
    %v1040 = vunpack.c.l.b16 %v195
    %v1041 = vunpack.c.l.b16 %v196
    %v1042 = vunpack.c.l.b16 %v197
    %v1043 = vunpack.c.l.b16 %v198
    %v1044 = vunpack.c.l.b16 %v199
    %v1045 = vunpack.c.l.b16 %v200
    %v1046 = vunpack.c.l.b16 %v201
    %v1047 = vunpack.c.l.b16 %v202
    %v1048 = vunpack.c.l.b16 %v203
    %v1049 = vunpack.c.l.b16 %v204
    %v1050 = vunpack.c.l.b16 %v205
    %v1051 = vunpack.c.l.b16 %v206
    %v1052 = vunpack.c.l.b16 %v207
    %v1053 = vunpack.c.l.b16 %v208
    %v1054 = vunpack.c.l.b16 %v209
    %v1055 = vunpack.c.l.b16 %v210
    %v1056 = vunpack.c.l.b16 %v211
    %v1057 = vunpack.c.l.b16 %v212
    %v1058 = vunpack.c.l.b16 %v213
    %v1059 = vunpack.c.l.b16 %v214
    %v1060 = vunpack.c.l.b16 %v215
    %v1061 = vunpack.c.l.b16 %v216
    %v1062 = vunpack.c.l.b16 %v217
    %v1063 = vunpack.c.l.b16 %v218
    %v1064 = vunpack.c.l.b16 %v219
    %v1065 = vunpack.c.l.b16 %v220
    %v1066 = vunpack.c.l.b16 %v221
    %v1067 = vunpack.c.l.b16 %v222
    %v1068 = vunpack.c.l.b16 %v223
    %v1069 = vunpack.c.l.b16 %v224
    %v1070 = vunpack.c.l.b16 %v225
    %v1071 = vunpack.c.l.b16 %v226
    %v1072 = vunpack.c.l.b16 %v227
    %v1073 = vunpack.c.l.b16 %v228
    %v1074 = vunpack.c.l.b16 %v229
    %v1075 = vunpack.c.l.b16 %v230
    %v1076 = vunpack.c.l.b16 %v231
    %v1077 = vunpack.c.l.b16 %v232
    %v1078 = vunpack.c.l.b16 %v233
    %v1079 = vunpack.c.l.b16 %v234
    %v1080 = vunpack.c.l.b16 %v235
    %v1081 = vunpack.c.l.b16 %v236
    %v1082 = vunpack.c.l.b16 %v237
    %v1083 = vunpack.c.l.b16 %v238
    %v1084 = vunpack.c.l.b16 %v239
    %v1085 = vunpack.c.l.b16 %v240
    %v1086 = vunpack.c.l.b16 %v241
    %v1087 = vunpack.c.l.b16 %v242
    %v1088 = vunpack.c.l.b16 %v243
    %v1089 = vunpack.c.l.b16 %v244
    %v1090 = vunpack.c.l.b16 %v245
    %v1091 = vunpack.c.l.b16 %v246
    %v1092 = vunpack.c.l.b16 %v247
    %v1093 = vunpack.c.l.b16 %v248
    %v1094 = vunpack.c.l.b16 %v249
    %v1095 = vunpack.c.l.b16 %v250
    %v1096 = vunpack.c.l.b16 %v251
    %v1097 = vunpack.c.l.b16 %v252
    %v1098 = vunpack.c.l.b16 %v253
    %v1099 = vunpack.c.l.b16 %v254
    %v1100 = vunpack.c.l.b16 %v255
    %v1101 = vunpack.c.l.b16 %v256
    %v1102 = vunpack.c.l.b16 %v257
    %v1103 = vunpack.c.l.b16 %v258
    %v1104 = vunpack.c.l.b16 %v259
    %v1105 = vunpack.c.l.b16 %v260
    %v1106 = vunpack.c.l.b16 %v261
    %v1107 = vunpack.c.l.b16 %v262
    %v1108 = vunpack.c.l.b16 %v263
    %v1109 = vunpack.c.l.b16 %v264
    %v1110 = vunpack.c.l.b16 %v265
    %v1111 = vunpack.c.l.b16 %v266
    %v1112 = vunpack.c.l.b16 %v267
    %v1113 = vunpack.c.l.b16 %v268
    %v1114 = vunpack.c.l.b16 %v269
    %v1115 = vunpack.c.l.b16 %v270
    %v1116 = vunpack.c.l.b16 %v271
    %v1117 = vunpack.c.l.b16 %v272
    %v1118 = vunpack.c.l.b16 %v273
    %v1119 = vunpack.c.l.b16 %v274
    %v1120 = vunpack.c.l.b16 %v275
    %v1121 = vunpack.c.l.b16 %v276
    %v1122 = vunpack.c.l.b16 %v277
    %v1123 = vunpack.c.l.b16 %v278
    %v1124 = vunpack.c.l.b16 %v279
    %v1125 = vunpack.c.l.b16 %v280
    %v1126 = vunpack.c.l.b16 %v281
    %v1127 = vunpack.c.l.b16 %v282
    %v1128 = vunpack.c.l.b16 %v283
    %v1129 = vunpack.c.l.b16 %v284
    %v1130 = vunpack.c.l.b16 %v285
    %v1131 = vunpack.c.l.b16 %v286
    %v1132 = vunpack.c.l.b16 %v287
    %v1133 = vunpack.c.l.b16 %v288
    %v1134 = vunpack.c.l.b16 %v289
    %v1135 = vunpack.c.l.b16 %v290
    %v1136 = vunpack.c.l.b16 %v291
    %v1137 = vunpack.c.l.b16 %v292
    %v1138 = vunpack.c.l.b16 %v293
    %v1139 = vunpack.c.l.b16 %v294
    %v1140 = vunpack.c.l.b16 %v295
    %v1141 = vunpack.c.l.b16 %v296
    %v1142 = vunpack.c.l.b16 %v297
    %v1143 = vunpack.c.l.b16 %v298
    %v1144 = vunpack.c.l.b16 %v299
    %v1145 = vunpack.c.l.b16 %v300
    %v1146 = vunpack.c.l.b16 %v301
    %v1147 = vunpack.c.l.b16 %v302
    %v1148 = vunpack.c.l.b16 %v303
    %v1149 = vunpack.c.l.b16 %v304
    %v1150 = vunpack.c.l.b16 %v305
    %v1151 = vunpack.c.l.b16 %v306
    %v1152 = vunpack.c.l.b16 %v307
    %v1153 = vunpack.c.l.b16 %v308
    %v1154 = vunpack.c.l.b16 %v309
    %v1155 = vunpack.c.l.b16 %v310
    %v1156 = vunpack.c.l.b16 %v311
    %v1157 = vunpack.c.l.b16 %v312
    %v1158 = vunpack.c.l.b16 %v313
    %v1159 = vunpack.c.l.b16 %v314
    %v1160 = vunpack.c.l.b16 %v315
    %v1161 = vunpack.c.l.b16 %v316
    %v1162 = vunpack.c.l.b16 %v317
    %v1163 = vunpack.c.l.b16 %v318
    %v1164 = vunpack.c.l.b16 %v319
    %v1165 = vunpack.c.l.b16 %v320
    %v1166 = vunpack.c.l.b16 %v321
    %v1167 = vunpack.c.l.b16 %v322
    %v1168 = vunpack.c.l.b16 %v323
    %v1169 = vunpack.c.l.b16 %v324
    %v1170 = vunpack.c.l.b16 %v325
    %v1171 = vunpack.c.l.b16 %v326
    %v1172 = vunpack.c.l.b16 %v327
    %v1173 = vunpack.c.l.b16 %v328
    %v1174 = vunpack.c.l.b16 %v329
    %v1175 = vunpack.c.l.b16 %v330
    %v1176 = vunpack.c.l.b16 %v331
    %v1177 = vunpack.c.l.b16 %v332
    %v1178 = vunpack.c.l.b16 %v333
    %v1179 = vunpack.c.l.b16 %v334
    %v1180 = vunpack.c.l.b16 %v335
    %v1181 = vunpack.c.l.b16 %v336
    %v1182 = vunpack.c.l.b16 %v337
    %v1183 = vunpack.c.l.b16 %v338
    %v1184 = vunpack.c.l.b16 %v339
    %v1185 = vunpack.c.l.b16 %v340
    %v1186 = vunpack.c.l.b16 %v341
    %v1187 = vunpack.c.l.b16 %v342
    %v1188 = vunpack.c.l.b16 %v343
    %v1189 = vunpack.c.l.b16 %v344
    %v1190 = vunpack.c.l.b16 %v345
    %v1191 = vunpack.c.l.b16 %v346
    %v1192 = vunpack.c.l.b16 %v347
    %v1193 = vunpack.c.l.b16 %v348
    %v1194 = vunpack.c.l.b16 %v349
    %v1195 = vunpack.c.l.b16 %v350
    %v1196 = vunpack.c.l.b16 %v351
    %v1197 = vunpack.c.l.b16 %v352
    %v1198 = vunpack.c.l.b16 %v353
    %v1199 = vunpack.c.l.b16 %v354
    %v1200 = vunpack.c.l.b16 %v355
    %v1201 = vunpack.c.l.b16 %v356
    %v1202 = vunpack.c.l.b16 %v357
    %v1203 = vunpack.c.l.b16 %v358
    %v1204 = vunpack.c.l.b16 %v359
    %v1205 = vunpack.c.l.b16 %v360
    %v1206 = vunpack.c.l.b16 %v361
    %v1207 = vunpack.c.l.b16 %v362
    %v1208 = vunpack.c.l.b16 %v363
    %v1209 = vunpack.c.l.b16 %v364
    %v1210 = vunpack.c.l.b16 %v365
    %v1211 = vunpack.c.l.b16 %v366
    %v1212 = vunpack.c.l.b16 %v367
    %v1213 = vunpack.c.l.b16 %v368
    %v1214 = vunpack.c.l.b16 %v369
    %v1215 = vunpack.c.l.b16 %v370
    %v1216 = vunpack.c.l.b16 %v371
    %v1217 = vunpack.c.l.b16 %v372
    %v1218 = vunpack.c.l.b16 %v373
    %v1219 = vunpack.c.l.b16 %v374
    %v1220 = vunpack.c.l.b16 %v375
    %v1221 = vunpack.c.l.b16 %v376
    %v1222 = vunpack.c.l.b16 %v377
    %v1223 = vunpack.c.l.b16 %v378
    %v1224 = vunpack.c.l.b16 %v379
    %v1225 = vunpack.c.l.b16 %v380
    %v1226 = vunpack.c.l.b16 %v381
    %v1227 = vunpack.c.l.b16 %v382
    %v1228 = vunpack.c.l.b16 %v383
    %v1229 = vunpack.c.l.b16 %v384
    %v1230 = vunpack.c.l.b16 %v385
    %v1231 = vunpack.c.l.b16 %v386
    %v1232 = vunpack.c.l.b16 %v387
    %v1233 = vunpack.c.l.b16 %v388
    %v1234 = vunpack.c.l.b16 %v389
    %v1235 = vunpack.c.l.b16 %v390
    %v1236 = vunpack.c.l.b16 %v391
    %v1237 = vunpack.c.l.b16 %v392
    %v1238 = vunpack.c.l.b16 %v393
    %v1239 = vunpack.c.l.b16 %v394
    %v1240 = vunpack.c.l.b16 %v395
    %v1241 = vunpack.c.l.b16 %v396
    %v1242 = vunpack.c.l.b16 %v397
    %v1243 = vunpack.c.l.b16 %v398
    %v1244 = vunpack.c.l.b16 %v399
    %v1245 = vunpack.c.l.b16 %v400
    %v1246 = vunpack.c.l.b16 %v401
    %v1247 = vunpack.c.l.b16 %v402
    %v1248 = vunpack.c.l.b16 %v403
    %v1249 = vunpack.c.l.b16 %v404
    %v1250 = vunpack.c.l.b16 %v405
    %v1251 = vunpack.c.l.b16 %v406
    %v1252 = vunpack.c.l.b16 %v407
    %v1253 = vunpack.c.l.b16 %v408
    %v1254 = vunpack.c.l.b16 %v409
    %v1255 = vunpack.c.l.b16 %v410
    %v1256 = vunpack.c.l.b16 %v411
    %v1257 = vunpack.c.l.b16 %v412
    %v1258 = vunpack.c.l.b16 %v413
    %v1259 = vunpack.c.l.b16 %v414
    %v1260 = vunpack.c.l.b16 %v415
    %v1261 = vunpack.c.l.b16 %v416
    %v1262 = vunpack.c.l.b16 %v417
    %v1263 = vunpack.c.l.b16 %v418
    %v1264 = vunpack.c.l.b16 %v419
    %v1265 = vunpack.c.l.b16 %v420
    %v1266 = vunpack.c.l.b16 %v421
    %v1267 = vunpack.c.l.b16 %v422
    %v1268 = vunpack.c.l.b16 %v423
    %v1269 = vunpack.c.l.b16 %v424
    %v1270 = vpack.c.b16 %v879, %v878
    %v1271 = vpack.c.b16 %v881, %v880
    %v1272 = vpack.c.b16 %v883, %v882
    %v1273 = vpack.c.b16 %v885, %v884
    %v1274 = vpack.c.b16 %v887, %v886
    %v1275 = vpack.c.b16 %v889, %v888
    %v1276 = vpack.c.b16 %v891, %v890
    %v1277 = vpack.c.b16 %v893, %v892
    %v1278 = vpack.c.b16 %v895, %v894
    %v1279 = vpack.c.b16 %v897, %v896
    %v1280 = vpack.c.b16 %v899, %v898
    %v1281 = vpack.c.b16 %v901, %v900
    %v1282 = vpack.c.b16 %v903, %v902
    %v1283 = vpack.c.b16 %v905, %v904
    %v1284 = vpack.c.b16 %v907, %v906
    %v1285 = vpack.c.b16 %v909, %v908
    %v1286 = vpack.c.b16 %v911, %v910
    %v1287 = vpack.c.b16 %v913, %v912
    %v1288 = vpack.c.b16 %v915, %v914
    %v1289 = vpack.c.b16 %v917, %v916
    %v1290 = vpack.c.b16 %v919, %v918
    %v1291 = vpack.c.b16 %v921, %v920
    %v1292 = vpack.c.b16 %v923, %v922
    %v1293 = vpack.c.b16 %v925, %v924
    %v1294 = vpack.c.b16 %v927, %v926
    %v1295 = vpack.c.b16 %v929, %v928
    %v1296 = vpack.c.b16 %v931, %v930
    %v1297 = vpack.c.b16 %v933, %v932
    %v1298 = vpack.c.b16 %v935, %v934
    %v1299 = vpack.c.b16 %v937, %v936
    %v1300 = vpack.c.b16 %v939, %v938
    %v1301 = vpack.c.b16 %v941, %v940
    %v1302 = vpack.c.b16 %v943, %v942
    %v1303 = vpack.c.b16 %v945, %v944
    %v1304 = vpack.c.b16 %v947, %v946
    %v1305 = vpack.c.b16 %v949, %v948
    %v1306 = vpack.c.b16 %v951, %v950
    %v1307 = vpack.c.b16 %v953, %v952
    %v1308 = vpack.c.b16 %v955, %v954
    %v1309 = vpack.c.b16 %v957, %v956
    %v1310 = vpack.c.b16 %v959, %v958
    %v1311 = vpack.c.b16 %v961, %v960
    %v1312 = vpack.c.b16 %v963, %v962
    %v1313 = vpack.c.b16 %v965, %v964
    %v1314 = vpack.c.b16 %v967, %v966
    %v1315 = vpack.c.b16 %v969, %v968
    %v1316 = vpack.c.b16 %v971, %v970
    %v1317 = vpack.c.b16 %v973, %v972
    %v1318 = vpack.c.b16 %v975, %v974
    %v1319 = vpack.c.b16 %v977, %v976
    %v1320 = vpack.c.b16 %v979, %v978
    %v1321 = vpack.c.b16 %v981, %v980
    %v1322 = vpack.c.b16 %v983, %v982
    %v1323 = vpack.c.b16 %v985, %v984
    %v1324 = vpack.c.b16 %v987, %v986
    %v1325 = vpack.c.b16 %v989, %v988
    %v1326 = vpack.c.b16 %v991, %v990
    %v1327 = vpack.c.b16 %v993, %v992
    %v1328 = vpack.c.b16 %v995, %v994
    %v1329 = vpack.c.b16 %v997, %v996
    %v1330 = vpack.c.b16 %v999, %v998
    %v1331 = vpack.c.b16 %v1001, %v1000
    %v1332 = vpack.c.b16 %v1003, %v1002
    %v1333 = vpack.c.b16 %v1005, %v1004
    %v1334 = vpack.c.b16 %v1007, %v1006
    %v1335 = vpack.c.b16 %v1009, %v1008
    %v1336 = vpack.c.b16 %v1011, %v1010
    %v1337 = vpack.c.b16 %v1013, %v1012
    %v1338 = vpack.c.b16 %v1015, %v1014
    %v1339 = vpack.c.b16 %v1017, %v1016
    %v1340 = vpack.c.b16 %v1019, %v1018
    %v1341 = vpack.c.b16 %v1021, %v1020
    %v1342 = vpack.c.b16 %v1023, %v1022
    %v1343 = vpack.c.b16 %v1025, %v1024
    %v1344 = vpack.c.b16 %v1027, %v1026
    %v1345 = vpack.c.b16 %v1029, %v1028
    %v1346 = vpack.c.b16 %v1031, %v1030
    %v1347 = vpack.c.b16 %v1033, %v1032
    %v1348 = vpack.c.b16 %v1035, %v1034
    %v1349 = vpack.c.b16 %v1037, %v1036
    %v1350 = vpack.c.b16 %v1039, %v1038
    %v1351 = vpack.c.b16 %v1041, %v1040
    %v1352 = vpack.c.b16 %v1043, %v1042
    %v1353 = vpack.c.b16 %v1045, %v1044
    %v1354 = vpack.c.b16 %v1047, %v1046
    %v1355 = vpack.c.b16 %v1049, %v1048
    %v1356 = vpack.c.b16 %v1051, %v1050
    %v1357 = vpack.c.b16 %v1053, %v1052
    %v1358 = vpack.c.b16 %v1055, %v1054
    %v1359 = vpack.c.b16 %v1057, %v1056
    %v1360 = vpack.c.b16 %v1059, %v1058
    %v1361 = vpack.c.b16 %v1061, %v1060
    %v1362 = vpack.c.b16 %v1063, %v1062
    %v1363 = vpack.c.b16 %v1065, %v1064
    %v1364 = vpack.c.b16 %v1067, %v1066
    %v1365 = vpack.c.b16 %v1069, %v1068
    %v1366 = vpack.c.b16 %v1071, %v1070
    %v1367 = vpack.c.b16 %v1073, %v1072
    %v1368 = vpack.c.b16 %v1075, %v1074
    %v1369 = vpack.c.b16 %v1077, %v1076
    %v1370 = vpack.c.b16 %v1079, %v1078
    %v1371 = vpack.c.b16 %v1081, %v1080
    %v1372 = vpack.c.b16 %v1083, %v1082
    %v1373 = vpack.c.b16 %v1085, %v1084
    %v1374 = vpack.c.b16 %v1087, %v1086
    %v1375 = vpack.c.b16 %v1089, %v1088
    %v1376 = vpack.c.b16 %v1091, %v1090
    %v1377 = vpack.c.b16 %v1093, %v1092
    %v1378 = vpack.c.b16 %v1095, %v1094
    %v1379 = vpack.c.b16 %v1097, %v1096
    %v1380 = vpack.c.b16 %v1099, %v1098
    %v1381 = vpack.c.b16 %v1101, %v1100
    %v1382 = vpack.c.b16 %v1103, %v1102
    %v1383 = vpack.c.b16 %v1105, %v1104
    %v1384 = vpack.c.b16 %v1107, %v1106
    %v1385 = vpack.c.b16 %v1109, %v1108
    %v1386 = vpack.c.b16 %v1111, %v1110
    %v1387 = vpack.c.b16 %v1113, %v1112
    %v1388 = vpack.c.b16 %v1115, %v1114
    %v1389 = vpack.c.b16 %v1117, %v1116
    %v1390 = vpack.c.b16 %v1119, %v1118
    %v1391 = vpack.c.b16 %v1121, %v1120
    %v1392 = vpack.c.b16 %v1123, %v1122
    %v1393 = vpack.c.b16 %v1125, %v1124
    %v1394 = vpack.c.b16 %v1127, %v1126
    %v1395 = vpack.c.b16 %v1129, %v1128
    %v1396 = vpack.c.b16 %v1131, %v1130
    %v1397 = vpack.c.b16 %v1133, %v1132
    %v1398 = vpack.c.b16 %v1135, %v1134
    %v1399 = vpack.c.b16 %v1137, %v1136
    %v1400 = vpack.c.b16 %v1139, %v1138
    %v1401 = vpack.c.b16 %v1141, %v1140
    %v1402 = vpack.c.b16 %v1143, %v1142
    %v1403 = vpack.c.b16 %v1145, %v1144
    %v1404 = vpack.c.b16 %v1147, %v1146
    %v1405 = vpack.c.b16 %v1149, %v1148
    %v1406 = vpack.c.b16 %v1151, %v1150
    %v1407 = vpack.c.b16 %v1153, %v1152
    %v1408 = vpack.c.b16 %v1155, %v1154
    %v1409 = vpack.c.b16 %v1157, %v1156
    %v1410 = vpack.c.b16 %v1159, %v1158
    %v1411 = vpack.c.b16 %v1161, %v1160
    %v1412 = vpack.c.b16 %v1163, %v1162
    %v1413 = vpack.c.b16 %v1165, %v1164
    %v1414 = vpack.c.b16 %v1167, %v1166
    %v1415 = vpack.c.b16 %v1169, %v1168
    %v1416 = vpack.c.b16 %v1171, %v1170
    %v1417 = vpack.c.b16 %v1173, %v1172
    %v1418 = vpack.c.b16 %v1175, %v1174
    %v1419 = vpack.c.b16 %v1177, %v1176
    %v1420 = vpack.c.b16 %v1179, %v1178
    %v1421 = vpack.c.b16 %v1181, %v1180
    %v1422 = vpack.c.b16 %v1183, %v1182
    %v1423 = vpack.c.b16 %v1185, %v1184
    %v1424 = vpack.c.b16 %v1187, %v1186
    %v1425 = vpack.c.b16 %v1189, %v1188
    %v1426 = vpack.c.b16 %v1191, %v1190
    %v1427 = vpack.c.b16 %v1193, %v1192
    %v1428 = vpack.c.b16 %v1195, %v1194
    %v1429 = vpack.c.b16 %v1197, %v1196
    %v1430 = vpack.c.b16 %v1199, %v1198
    %v1431 = vpack.c.b16 %v1201, %v1200
    %v1432 = vpack.c.b16 %v1203, %v1202
    %v1433 = vpack.c.b16 %v1205, %v1204
    %v1434 = vpack.c.b16 %v1207, %v1206
    %v1435 = vpack.c.b16 %v1209, %v1208
    %v1436 = vpack.c.b16 %v1211, %v1210
    %v1437 = vpack.c.b16 %v1213, %v1212
    %v1438 = vpack.c.b16 %v1215, %v1214
    %v1439 = vpack.c.b16 %v1217, %v1216
    %v1440 = vpack.c.b16 %v1219, %v1218
    %v1441 = vpack.c.b16 %v1221, %v1220
    %v1442 = vpack.c.b16 %v1223, %v1222
    %v1443 = vpack.c.b16 %v1225, %v1224
    %v1444 = vpack.c.b16 %v1227, %v1226
    %v1445 = vpack.c.b16 %v1229, %v1228
    %v1446 = vpack.c.b16 %v1231, %v1230
    %v1447 = vpack.c.b16 %v1233, %v1232
    %v1448 = vpack.c.b16 %v1235, %v1234
    %v1449 = vpack.c.b16 %v1237, %v1236
    %v1450 = vpack.c.b16 %v1239, %v1238
    %v1451 = vpack.c.b16 %v1241, %v1240
    %v1452 = vpack.c.b16 %v1243, %v1242
    %v1453 = vpack.c.b16 %v1245, %v1244
    %v1454 = vpack.c.b16 %v1247, %v1246
    %v1455 = vpack.c.b16 %v1249, %v1248
    %v1456 = vpack.c.b16 %v1251, %v1250
    %v1457 = vpack.c.b16 %v1253, %v1252
    %v1458 = vpack.c.b16 %v1255, %v1254
    %v1459 = vpack.c.b16 %v1257, %v1256
    %v1460 = vpack.c.b16 %v1259, %v1258
    %v1461 = vpack.c.b16 %v1261, %v1260
    %v1462 = vpack.c.b16 %v1263, %v1262
    %v1463 = vpack.c.b16 %v1265, %v1264
    %v1464 = vpack.c.b16 %v1267, %v1266
    %v1465 = vpack.c.b16 %v1269, %v1268
    %vm1662 = vcmask 523264
    %v1663 = vsel %vm1662, %v461, 0
    %1665 = vmatpush.bf16.msra.mxu0 %v1277
    %1666 = vmatpush.bf16.msra.mxu0 %v1276
    %1667 = vmatpush.bf16.msra.mxu0 %v1275
    %1668 = vmatpush.bf16.msra.mxu0 %v1274
    %1669 = vmatpush.bf16.msra.mxu0 %v1273
    %1670 = vmatpush.bf16.msra.mxu0 %v1272
    %1671 = vmatpush.bf16.msra.mxu0 %v1271
    %1672 = vmatpush.bf16.msra.mxu0 %v1270
    %1673 = vmatmul.bf16.gmra.mxu0 %v431
    %v1674 = vpop.f32.mrf.mxu0
    %v1675 = vadd.f32 %v427, %v1674
    %v1676 = vpop.f32.mrf.mxu0
    %1677 = vdwg.mxu0
    %1678 = vmatpush.bf16.msra.mxu0 %v1285
    %1679 = vmatpush.bf16.msra.mxu0 %v1284
    %1680 = vmatpush.bf16.msra.mxu0 %v1283
    %1681 = vmatpush.bf16.msra.mxu0 %v1282
    %1682 = vmatpush.bf16.msra.mxu0 %v1281
    %1683 = vmatpush.bf16.msra.mxu0 %v1280
    %1684 = vmatpush.bf16.msra.mxu0 %v1279
    %1685 = vmatpush.bf16.msra.mxu0 %v1278
    %1686 = vmatmul.bf16.gmra.mxu0 %v432
    %v1687 = vpop.f32.mrf.mxu0
    %v1688 = vadd.f32 %v1675, %v1687
    %v1689 = vpop.f32.mrf.mxu0
    %1690 = vdwg.mxu0
    %1691 = vmatpush.bf16.msra.mxu0 %v1293
    %1692 = vmatpush.bf16.msra.mxu0 %v1292
    %1693 = vmatpush.bf16.msra.mxu0 %v1291
    %1694 = vmatpush.bf16.msra.mxu0 %v1290
    %1695 = vmatpush.bf16.msra.mxu0 %v1289
    %1696 = vmatpush.bf16.msra.mxu0 %v1288
    %1697 = vmatpush.bf16.msra.mxu0 %v1287
    %1698 = vmatpush.bf16.msra.mxu0 %v1286
    %1699 = vmatmul.bf16.gmra.mxu0 %v433
    %v1700 = vpop.f32.mrf.mxu0
    %v1701 = vadd.f32 %v1688, %v1700
    %v1702 = vpop.f32.mrf.mxu0
    %1703 = vdwg.mxu0
    %1704 = vmatpush.bf16.msra.mxu0 %v1301
    %1705 = vmatpush.bf16.msra.mxu0 %v1300
    %1706 = vmatpush.bf16.msra.mxu0 %v1299
    %1707 = vmatpush.bf16.msra.mxu0 %v1298
    %1708 = vmatpush.bf16.msra.mxu0 %v1297
    %1709 = vmatpush.bf16.msra.mxu0 %v1296
    %1710 = vmatpush.bf16.msra.mxu0 %v1295
    %1711 = vmatpush.bf16.msra.mxu0 %v1294
    %1712 = vmatmul.bf16.gmra.mxu0 %v434
    %v1713 = vpop.f32.mrf.mxu0
    %v1714 = vadd.f32 %v1701, %v1713
    %v1715 = vpop.f32.mrf.mxu0
    %1716 = vdwg.mxu0
    %1717 = vmatpush.bf16.msra.mxu0 %v1309
    %1718 = vmatpush.bf16.msra.mxu0 %v1308
    %1719 = vmatpush.bf16.msra.mxu0 %v1307
    %1720 = vmatpush.bf16.msra.mxu0 %v1306
    %1721 = vmatpush.bf16.msra.mxu0 %v1305
    %1722 = vmatpush.bf16.msra.mxu0 %v1304
    %1723 = vmatpush.bf16.msra.mxu0 %v1303
    %1724 = vmatpush.bf16.msra.mxu0 %v1302
    %1725 = vmatmul.bf16.gmra.mxu0 %v435
    %v1726 = vpop.f32.mrf.mxu0
    %v1727 = vadd.f32 %v1714, %v1726
    %v1728 = vpop.f32.mrf.mxu0
    %1729 = vdwg.mxu0
    %1730 = vmatpush.bf16.msra.mxu0 %v1317
    %1731 = vmatpush.bf16.msra.mxu0 %v1316
    %1732 = vmatpush.bf16.msra.mxu0 %v1315
    %1733 = vmatpush.bf16.msra.mxu0 %v1314
    %1734 = vmatpush.bf16.msra.mxu0 %v1313
    %1735 = vmatpush.bf16.msra.mxu0 %v1312
    %1736 = vmatpush.bf16.msra.mxu0 %v1311
    %1737 = vmatpush.bf16.msra.mxu0 %v1310
    %1738 = vmatmul.bf16.gmra.mxu0 %v436
    %v1739 = vpop.f32.mrf.mxu0
    %v1740 = vadd.f32 %v1727, %v1739
    %v1741 = vpop.f32.mrf.mxu0
    %1742 = vdwg.mxu0
    %1743 = vmatpush.bf16.msra.mxu0 %v1325
    %1744 = vmatpush.bf16.msra.mxu0 %v1324
    %1745 = vmatpush.bf16.msra.mxu0 %v1323
    %1746 = vmatpush.bf16.msra.mxu0 %v1322
    %1747 = vmatpush.bf16.msra.mxu0 %v1321
    %1748 = vmatpush.bf16.msra.mxu0 %v1320
    %1749 = vmatpush.bf16.msra.mxu0 %v1319
    %1750 = vmatpush.bf16.msra.mxu0 %v1318
    %1751 = vmatmul.bf16.gmra.mxu0 %v437
    %v1752 = vpop.f32.mrf.mxu0
    %v1753 = vadd.f32 %v1740, %v1752
    %v1754 = vpop.f32.mrf.mxu0
    %1755 = vdwg.mxu0
    %1756 = vmatpush.bf16.msra.mxu0 %v1333
    %1757 = vmatpush.bf16.msra.mxu0 %v1332
    %1758 = vmatpush.bf16.msra.mxu0 %v1331
    %1759 = vmatpush.bf16.msra.mxu0 %v1330
    %1760 = vmatpush.bf16.msra.mxu0 %v1329
    %1761 = vmatpush.bf16.msra.mxu0 %v1328
    %1762 = vmatpush.bf16.msra.mxu0 %v1327
    %1763 = vmatpush.bf16.msra.mxu0 %v1326
    %1764 = vmatmul.bf16.gmra.mxu0 %v438
    %v1765 = vpop.f32.mrf.mxu0
    %v1766 = vadd.f32 %v1753, %v1765
    %v1767 = vpop.f32.mrf.mxu0
    %1768 = vdwg.mxu0
    %1769 = vmatpush.bf16.msra.mxu0 %v1341
    %1770 = vmatpush.bf16.msra.mxu0 %v1340
    %1771 = vmatpush.bf16.msra.mxu0 %v1339
    %1772 = vmatpush.bf16.msra.mxu0 %v1338
    %1773 = vmatpush.bf16.msra.mxu0 %v1337
    %1774 = vmatpush.bf16.msra.mxu0 %v1336
    %1775 = vmatpush.bf16.msra.mxu0 %v1335
    %1776 = vmatpush.bf16.msra.mxu0 %v1334
    %1777 = vmatmul.bf16.gmra.mxu0 %v441
    %v1778 = vpop.f32.mrf.mxu0
    %v1779 = vadd.f32 %v1766, %v1778
    %v1780 = vpop.f32.mrf.mxu0
    %1781 = vdwg.mxu0
    %1782 = vmatpush.bf16.msra.mxu0 %v1349
    %1783 = vmatpush.bf16.msra.mxu0 %v1348
    %1784 = vmatpush.bf16.msra.mxu0 %v1347
    %1785 = vmatpush.bf16.msra.mxu0 %v1346
    %1786 = vmatpush.bf16.msra.mxu0 %v1345
    %1787 = vmatpush.bf16.msra.mxu0 %v1344
    %1788 = vmatpush.bf16.msra.mxu0 %v1343
    %1789 = vmatpush.bf16.msra.mxu0 %v1342
    %1790 = vmatmul.bf16.gmra.mxu0 %v442
    %v1791 = vpop.f32.mrf.mxu0
    %v1792 = vadd.f32 %v1779, %v1791
    %v1793 = vpop.f32.mrf.mxu0
    %1794 = vdwg.mxu0
    %1795 = vmatpush.bf16.msra.mxu0 %v1357
    %1796 = vmatpush.bf16.msra.mxu0 %v1356
    %1797 = vmatpush.bf16.msra.mxu0 %v1355
    %1798 = vmatpush.bf16.msra.mxu0 %v1354
    %1799 = vmatpush.bf16.msra.mxu0 %v1353
    %1800 = vmatpush.bf16.msra.mxu0 %v1352
    %1801 = vmatpush.bf16.msra.mxu0 %v1351
    %1802 = vmatpush.bf16.msra.mxu0 %v1350
    %1803 = vmatmul.bf16.gmra.mxu0 %v443
    %v1804 = vpop.f32.mrf.mxu0
    %v1805 = vadd.f32 %v1792, %v1804
    %v1806 = vpop.f32.mrf.mxu0
    %1807 = vdwg.mxu0
    %1808 = vmatpush.bf16.msra.mxu0 %v1365
    %1809 = vmatpush.bf16.msra.mxu0 %v1364
    %1810 = vmatpush.bf16.msra.mxu0 %v1363
    %1811 = vmatpush.bf16.msra.mxu0 %v1362
    %1812 = vmatpush.bf16.msra.mxu0 %v1361
    %1813 = vmatpush.bf16.msra.mxu0 %v1360
    %1814 = vmatpush.bf16.msra.mxu0 %v1359
    %1815 = vmatpush.bf16.msra.mxu0 %v1358
    %1816 = vmatmul.bf16.gmra.mxu0 %v444
    %v1817 = vpop.f32.mrf.mxu0
    %v1818 = vadd.f32 %v1805, %v1817
    %v1819 = vpop.f32.mrf.mxu0
    %1820 = vdwg.mxu0
    %1821 = vmatpush.bf16.msra.mxu0 %v1373
    %1822 = vmatpush.bf16.msra.mxu0 %v1372
    %1823 = vmatpush.bf16.msra.mxu0 %v1371
    %1824 = vmatpush.bf16.msra.mxu0 %v1370
    %1825 = vmatpush.bf16.msra.mxu0 %v1369
    %1826 = vmatpush.bf16.msra.mxu0 %v1368
    %1827 = vmatpush.bf16.msra.mxu0 %v1367
    %1828 = vmatpush.bf16.msra.mxu0 %v1366
    %1829 = vmatmul.bf16.gmra.mxu0 %v445
    %v1830 = vpop.f32.mrf.mxu0
    %v1831 = vadd.f32 %v1818, %v1830
    %v1832 = vpop.f32.mrf.mxu0
    %1833 = vdwg.mxu0
    %1834 = vmatpush.bf16.msra.mxu0 %v1381
    %1835 = vmatpush.bf16.msra.mxu0 %v1380
    %1836 = vmatpush.bf16.msra.mxu0 %v1379
    %1837 = vmatpush.bf16.msra.mxu0 %v1378
    %1838 = vmatpush.bf16.msra.mxu0 %v1377
    %1839 = vmatpush.bf16.msra.mxu0 %v1376
    %1840 = vmatpush.bf16.msra.mxu0 %v1375
    %1841 = vmatpush.bf16.msra.mxu0 %v1374
    %1842 = vmatmul.bf16.gmra.mxu0 %v446
    %v1843 = vpop.f32.mrf.mxu0
    %v1844 = vadd.f32 %v1831, %v1843
    %v1845 = vpop.f32.mrf.mxu0
    %1846 = vdwg.mxu0
    %1847 = vmatpush.bf16.msra.mxu0 %v1389
    %1848 = vmatpush.bf16.msra.mxu0 %v1388
    %1849 = vmatpush.bf16.msra.mxu0 %v1387
    %1850 = vmatpush.bf16.msra.mxu0 %v1386
    %1851 = vmatpush.bf16.msra.mxu0 %v1385
    %1852 = vmatpush.bf16.msra.mxu0 %v1384
    %1853 = vmatpush.bf16.msra.mxu0 %v1383
    %1854 = vmatpush.bf16.msra.mxu0 %v1382
    %1855 = vmatmul.bf16.gmra.mxu0 %v447
    %v1856 = vpop.f32.mrf.mxu0
    %v1857 = vadd.f32 %v1844, %v1856
    %v1858 = vpop.f32.mrf.mxu0
    %1859 = vdwg.mxu0
    %1860 = vmatpush.bf16.msra.mxu0 %v1397
    %1861 = vmatpush.bf16.msra.mxu0 %v1396
    %1862 = vmatpush.bf16.msra.mxu0 %v1395
    %1863 = vmatpush.bf16.msra.mxu0 %v1394
    %1864 = vmatpush.bf16.msra.mxu0 %v1393
    %1865 = vmatpush.bf16.msra.mxu0 %v1392
    %1866 = vmatpush.bf16.msra.mxu0 %v1391
    %1867 = vmatpush.bf16.msra.mxu0 %v1390
    %1868 = vmatmul.bf16.gmra.mxu0 %v448
    %v1869 = vpop.f32.mrf.mxu0
    %v1870 = vadd.f32 %v1857, %v1869
    %v1871 = vpop.f32.mrf.mxu0
    %1872 = vdwg.mxu0
    %1873 = vmatpush.bf16.msra.mxu0 %v1405
    %1874 = vmatpush.bf16.msra.mxu0 %v1404
    %1875 = vmatpush.bf16.msra.mxu0 %v1403
    %1876 = vmatpush.bf16.msra.mxu0 %v1402
    %1877 = vmatpush.bf16.msra.mxu0 %v1401
    %1878 = vmatpush.bf16.msra.mxu0 %v1400
    %1879 = vmatpush.bf16.msra.mxu0 %v1399
    %1880 = vmatpush.bf16.msra.mxu0 %v1398
    %1881 = vmatmul.bf16.gmra.mxu0 %v451
    %v1882 = vpop.f32.mrf.mxu0
    %v1883 = vadd.f32 %v1870, %v1882
    %v1884 = vpop.f32.mrf.mxu0
    %1885 = vdwg.mxu0
    %1886 = vmatpush.bf16.msra.mxu0 %v1413
    %1887 = vmatpush.bf16.msra.mxu0 %v1412
    %1888 = vmatpush.bf16.msra.mxu0 %v1411
    %1889 = vmatpush.bf16.msra.mxu0 %v1410
    %1890 = vmatpush.bf16.msra.mxu0 %v1409
    %1891 = vmatpush.bf16.msra.mxu0 %v1408
    %1892 = vmatpush.bf16.msra.mxu0 %v1407
    %1893 = vmatpush.bf16.msra.mxu0 %v1406
    %1894 = vmatmul.bf16.gmra.mxu0 %v452
    %v1895 = vpop.f32.mrf.mxu0
    %v1896 = vadd.f32 %v1883, %v1895
    %v1897 = vpop.f32.mrf.mxu0
    %1898 = vdwg.mxu0
    %1899 = vmatpush.bf16.msra.mxu0 %v1421
    %1900 = vmatpush.bf16.msra.mxu0 %v1420
    %1901 = vmatpush.bf16.msra.mxu0 %v1419
    %1902 = vmatpush.bf16.msra.mxu0 %v1418
    %1903 = vmatpush.bf16.msra.mxu0 %v1417
    %1904 = vmatpush.bf16.msra.mxu0 %v1416
    %1905 = vmatpush.bf16.msra.mxu0 %v1415
    %1906 = vmatpush.bf16.msra.mxu0 %v1414
    %1907 = vmatmul.bf16.gmra.mxu0 %v453
    %v1908 = vpop.f32.mrf.mxu0
    %v1909 = vadd.f32 %v1896, %v1908
    %v1910 = vpop.f32.mrf.mxu0
    %1911 = vdwg.mxu0
    %1912 = vmatpush.bf16.msra.mxu0 %v1429
    %1913 = vmatpush.bf16.msra.mxu0 %v1428
    %1914 = vmatpush.bf16.msra.mxu0 %v1427
    %1915 = vmatpush.bf16.msra.mxu0 %v1426
    %1916 = vmatpush.bf16.msra.mxu0 %v1425
    %1917 = vmatpush.bf16.msra.mxu0 %v1424
    %1918 = vmatpush.bf16.msra.mxu0 %v1423
    %1919 = vmatpush.bf16.msra.mxu0 %v1422
    %1920 = vmatmul.bf16.gmra.mxu0 %v454
    %v1921 = vpop.f32.mrf.mxu0
    %v1922 = vadd.f32 %v1909, %v1921
    %v1923 = vpop.f32.mrf.mxu0
    %1924 = vdwg.mxu0
    %1925 = vmatpush.bf16.msra.mxu0 %v1437
    %1926 = vmatpush.bf16.msra.mxu0 %v1436
    %1927 = vmatpush.bf16.msra.mxu0 %v1435
    %1928 = vmatpush.bf16.msra.mxu0 %v1434
    %1929 = vmatpush.bf16.msra.mxu0 %v1433
    %1930 = vmatpush.bf16.msra.mxu0 %v1432
    %1931 = vmatpush.bf16.msra.mxu0 %v1431
    %1932 = vmatpush.bf16.msra.mxu0 %v1430
    %1933 = vmatmul.bf16.gmra.mxu0 %v455
    %v1934 = vpop.f32.mrf.mxu0
    %v1935 = vadd.f32 %v1922, %v1934
    %v1936 = vpop.f32.mrf.mxu0
    %1937 = vdwg.mxu0
    %1938 = vmatpush.bf16.msra.mxu0 %v1445
    %1939 = vmatpush.bf16.msra.mxu0 %v1444
    %1940 = vmatpush.bf16.msra.mxu0 %v1443
    %1941 = vmatpush.bf16.msra.mxu0 %v1442
    %1942 = vmatpush.bf16.msra.mxu0 %v1441
    %1943 = vmatpush.bf16.msra.mxu0 %v1440
    %1944 = vmatpush.bf16.msra.mxu0 %v1439
    %1945 = vmatpush.bf16.msra.mxu0 %v1438
    %1946 = vmatmul.bf16.gmra.mxu0 %v456
    %v1947 = vpop.f32.mrf.mxu0
    %v1948 = vadd.f32 %v1935, %v1947
    %v1949 = vpop.f32.mrf.mxu0
    %1950 = vdwg.mxu0
    %1951 = vmatpush.bf16.msra.mxu0 %v1453
    %1952 = vmatpush.bf16.msra.mxu0 %v1452
    %1953 = vmatpush.bf16.msra.mxu0 %v1451
    %1954 = vmatpush.bf16.msra.mxu0 %v1450
    %1955 = vmatpush.bf16.msra.mxu0 %v1449
    %1956 = vmatpush.bf16.msra.mxu0 %v1448
    %1957 = vmatpush.bf16.msra.mxu0 %v1447
    %1958 = vmatpush.bf16.msra.mxu0 %v1446
    %1959 = vmatmul.bf16.gmra.mxu0 %v457
    %v1960 = vpop.f32.mrf.mxu0
    %v1961 = vadd.f32 %v1948, %v1960
    %v1962 = vpop.f32.mrf.mxu0
    %1963 = vdwg.mxu0
    %1964 = vmatpush.bf16.msra.mxu0 %v1461
    %1965 = vmatpush.bf16.msra.mxu0 %v1460
    %1966 = vmatpush.bf16.msra.mxu0 %v1459
    %1967 = vmatpush.bf16.msra.mxu0 %v1458
    %1968 = vmatpush.bf16.msra.mxu0 %v1457
    %1969 = vmatpush.bf16.msra.mxu0 %v1456
    %1970 = vmatpush.bf16.msra.mxu0 %v1455
    %1971 = vmatpush.bf16.msra.mxu0 %v1454
    %1972 = vmatmul.bf16.gmra.mxu0 %v458
    %v1973 = vpop.f32.mrf.mxu0
    %v1974 = vadd.f32 %v1961, %v1973
    %v1975 = vpop.f32.mrf.mxu0
    %1976 = vdwg.mxu0
    %1977 = vmatpush.bf16.msra.mxu0 0
    %1978 = vmatpush.bf16.msra.mxu0 0
    %1979 = vmatpush.bf16.msra.mxu0 0
    %1980 = vmatpush.bf16.msra.mxu0 0
    %1981 = vmatpush.bf16.msra.mxu0 %v1465
    %1982 = vmatpush.bf16.msra.mxu0 %v1464
    %1983 = vmatpush.bf16.msra.mxu0 %v1463
    %1984 = vmatpush.bf16.msra.mxu0 %v1462
    %1985 = vmatmul.bf16.gmra.mxu0 %v1663
    %v1986 = vpop.f32.mrf.mxu0
    %v1987 = vadd.f32 %v1974, %v1986
    %v1988 = vpop.f32.mrf.mxu0
    %1989 = vdwg.mxu0
    %v1990 = vld [vmem:[%s3] sm:$0xf]
    %v1991 = vld [vmem:[%s3 + $0x4] sm:$0xf]
    %v1992 = vld [vmem:[%s3 + $0x8] sm:$0xf]
    %v1993 = vld [vmem:[%s3 + $0xc] sm:$0xf]
    %v1994 = vld [vmem:[%s3 + $0x10] sm:$0xf]
    %v1995 = vld [vmem:[%s3 + $0x14] sm:$0xf]
    %v1996 = vld [vmem:[%s3 + $0x18] sm:$0xf]
    %v1997 = vld [vmem:[%s3 + $0x1c] sm:$0xf]
    %v1998 = vld [vmem:[%s3 + $0x20] sm:$0xf]
    %v1999 = vld [vmem:[%s3 + $0x24] sm:$0xf]
    %v2000 = vld [vmem:[%s3 + $0x28] sm:$0xf]
    %v2001 = vld [vmem:[%s3 + $0x2c] sm:$0xf]
    %v2002 = vld [vmem:[%s3 + $0x30] sm:$0xf]
    %v2003 = vld [vmem:[%s3 + $0x34] sm:$0xf]
    %v2004 = vld [vmem:[%s3 + $0x38] sm:$0xf]
    %v2005 = vld [vmem:[%s3 + $0x3c] sm:$0xf]
    %v2006 = vld [vmem:[%s3 + $0x40] sm:$0xf]
    %v2007 = vld [vmem:[%s3 + $0x44] sm:$0xf]
    %v2008 = vld [vmem:[%s3 + $0x48] sm:$0xf]
    %v2009 = vld [vmem:[%s3 + $0x4c] sm:$0xf]
    %v2010 = vld [vmem:[%s3 + $0x50] sm:$0xf]
    %v2011 = vld [vmem:[%s3 + $0x54] sm:$0xf]
    %v2012 = vld [vmem:[%s3 + $0x58] sm:$0xf]
    %v2013 = vld [vmem:[%s3 + $0x5c] sm:$0xf]
    %v2014 = vld [vmem:[%s3 + $0x60] sm:$0xf]
    %v2015 = vld [vmem:[%s3 + $0x64] sm:$0xf]
    %v2016 = vld [vmem:[%s3 + $0x68] sm:$0xf]
    %v2017 = vld [vmem:[%s3 + $0x6c] sm:$0xf]
    %v2018 = vld [vmem:[%s3 + $0x70] sm:$0xf]
    %v2019 = vld [vmem:[%s3 + $0x74] sm:$0xf]
    %v2020 = vld [vmem:[%s3 + $0x78] sm:$0xf]
    %v2021 = vld [vmem:[%s3 + $0x7c] sm:$0xf]
    %v2022 = vld [vmem:[%s3 + $0x80] sm:$0xf]
    %v2023 = vld [vmem:[%s3 + $0x84] sm:$0xf]
    %v2024 = vld [vmem:[%s3 + $0x88] sm:$0xf]
    %v2025 = vld [vmem:[%s3 + $0x8c] sm:$0xf]
    %v2026 = vld [vmem:[%s3 + $0x90] sm:$0xf]
    %v2027 = vld [vmem:[%s3 + $0x94] sm:$0xf]
    %v2028 = vld [vmem:[%s3 + $0x98] sm:$0xf]
    %v2029 = vld [vmem:[%s3 + $0x9c] sm:$0xf]
    %v2030 = vld [vmem:[%s3 + $0xa0] sm:$0xf]
    %v2031 = vld [vmem:[%s3 + $0xa4] sm:$0xf]
    %v2032 = vld [vmem:[%s3 + $0xa8] sm:$0xf]
    %v2033 = vld [vmem:[%s3 + $0xac] sm:$0xf]
    %v2034 = vld [vmem:[%s3 + $0xb0] sm:$0xf]
    %v2035 = vld [vmem:[%s3 + $0xb4] sm:$0xf]
    %v2036 = vld [vmem:[%s3 + $0xb8] sm:$0xf]
    %v2037 = vld [vmem:[%s3 + $0xbc] sm:$0xf]
    %v2038 = vld [vmem:[%s3 + $0xc0] sm:$0xf]
    %v2039 = vld [vmem:[%s3 + $0xc4] sm:$0xf]
    %v2040 = vld [vmem:[%s3 + $0xc8] sm:$0xf]
    %v2041 = vld [vmem:[%s3 + $0xcc] sm:$0xf]
    %v2042 = vld [vmem:[%s3 + $0xd0] sm:$0xf]
    %v2043 = vld [vmem:[%s3 + $0xd4] sm:$0xf]
    %v2044 = vld [vmem:[%s3 + $0xd8] sm:$0xf]
    %v2045 = vld [vmem:[%s3 + $0xdc] sm:$0xf]
    %v2046 = vld [vmem:[%s3 + $0xe0] sm:$0xf]
    %v2047 = vld [vmem:[%s3 + $0xe4] sm:$0xf]
    %v2048 = vld [vmem:[%s3 + $0xe8] sm:$0xf]
    %v2049 = vld [vmem:[%s3 + $0xec] sm:$0xf]
    %v2050 = vld [vmem:[%s3 + $0xf0] sm:$0xf]
    %v2051 = vld [vmem:[%s3 + $0xf4] sm:$0xf]
    %v2052 = vld [vmem:[%s3 + $0xf8] sm:$0xf]
    %v2053 = vld [vmem:[%s3 + $0xfc] sm:$0xf]
    %v2054 = vld [vmem:[%s3 + $0x100] sm:$0xf]
    %v2055 = vld [vmem:[%s3 + $0x104] sm:$0xf]
    %v2056 = vld [vmem:[%s3 + $0x108] sm:$0xf]
    %v2057 = vld [vmem:[%s3 + $0x10c] sm:$0xf]
    %v2058 = vld [vmem:[%s3 + $0x110] sm:$0xf]
    %v2059 = vld [vmem:[%s3 + $0x114] sm:$0xf]
    %v2060 = vld [vmem:[%s3 + $0x118] sm:$0xf]
    %v2061 = vld [vmem:[%s3 + $0x11c] sm:$0xf]
    %v2062 = vld [vmem:[%s3 + $0x120] sm:$0xf]
    %v2063 = vld [vmem:[%s3 + $0x124] sm:$0xf]
    %v2064 = vld [vmem:[%s3 + $0x128] sm:$0xf]
    %v2065 = vld [vmem:[%s3 + $0x12c] sm:$0xf]
    %v2066 = vld [vmem:[%s3 + $0x130] sm:$0xf]
    %v2067 = vld [vmem:[%s3 + $0x134] sm:$0xf]
    %v2068 = vld [vmem:[%s3 + $0x138] sm:$0xf]
    %v2069 = vld [vmem:[%s3 + $0x13c] sm:$0xf]
    %v2070 = vld [vmem:[%s3 + $0x140] sm:$0xf]
    %v2071 = vld [vmem:[%s3 + $0x144] sm:$0xf]
    %v2072 = vld [vmem:[%s3 + $0x148] sm:$0xf]
    %v2073 = vld [vmem:[%s3 + $0x14c] sm:$0xf]
    %v2074 = vld [vmem:[%s3 + $0x150] sm:$0xf]
    %v2075 = vld [vmem:[%s3 + $0x154] sm:$0xf]
    %v2076 = vld [vmem:[%s3 + $0x158] sm:$0xf]
    %v2077 = vld [vmem:[%s3 + $0x15c] sm:$0xf]
    %v2078 = vld [vmem:[%s3 + $0x160] sm:$0xf]
    %v2079 = vld [vmem:[%s3 + $0x164] sm:$0xf]
    %v2080 = vld [vmem:[%s3 + $0x168] sm:$0xf]
    %v2081 = vld [vmem:[%s3 + $0x16c] sm:$0xf]
    %v2082 = vld [vmem:[%s3 + $0x170] sm:$0xf]
    %v2083 = vld [vmem:[%s3 + $0x174] sm:$0xf]
    %v2084 = vld [vmem:[%s3 + $0x178] sm:$0xf]
    %v2085 = vld [vmem:[%s3 + $0x17c] sm:$0xf]
    %v2086 = vld [vmem:[%s3 + $0x180] sm:$0xf]
    %v2087 = vld [vmem:[%s3 + $0x184] sm:$0xf]
    %v2088 = vld [vmem:[%s3 + $0x188] sm:$0xf]
    %v2089 = vld [vmem:[%s3 + $0x18c] sm:$0xf]
    %v2090 = vld [vmem:[%s3 + $0x190] sm:$0xf]
    %v2091 = vld [vmem:[%s3 + $0x194] sm:$0xf]
    %v2092 = vld [vmem:[%s3 + $0x198] sm:$0xf]
    %v2093 = vld [vmem:[%s3 + $0x19c] sm:$0xf]
    %v2094 = vld [vmem:[%s3 + $0x1a0] sm:$0xf]
    %v2095 = vld [vmem:[%s3 + $0x1a4] sm:$0xf]
    %v2096 = vld [vmem:[%s3 + $0x1a8] sm:$0xf]
    %v2097 = vld [vmem:[%s3 + $0x1ac] sm:$0xf]
    %v2098 = vld [vmem:[%s3 + $0x1b0] sm:$0xf]
    %v2099 = vld [vmem:[%s3 + $0x1b4] sm:$0xf]
    %v2100 = vld [vmem:[%s3 + $0x1b8] sm:$0xf]
    %v2101 = vld [vmem:[%s3 + $0x1bc] sm:$0xf]
    %v2102 = vld [vmem:[%s3 + $0x1c0] sm:$0xf]
    %v2103 = vld [vmem:[%s3 + $0x1c4] sm:$0xf]
    %v2104 = vld [vmem:[%s3 + $0x1c8] sm:$0xf]
    %v2105 = vld [vmem:[%s3 + $0x1cc] sm:$0xf]
    %v2106 = vld [vmem:[%s3 + $0x1d0] sm:$0xf]
    %v2107 = vld [vmem:[%s3 + $0x1d4] sm:$0xf]
    %v2108 = vld [vmem:[%s3 + $0x1d8] sm:$0xf]
    %v2109 = vld [vmem:[%s3 + $0x1dc] sm:$0xf]
    %v2110 = vld [vmem:[%s3 + $0x1e0] sm:$0xf]
    %v2111 = vld [vmem:[%s3 + $0x1e4] sm:$0xf]
    %v2112 = vld [vmem:[%s3 + $0x1e8] sm:$0xf]
    %v2113 = vld [vmem:[%s3 + $0x1ec] sm:$0xf]
    %v2114 = vld [vmem:[%s3 + $0x1f0] sm:$0xf]
    %v2115 = vld [vmem:[%s3 + $0x1f4] sm:$0xf]
    %v2116 = vld [vmem:[%s3 + $0x1f8] sm:$0xf]
    %v2117 = vld [vmem:[%s3 + $0x1fc] sm:$0xf]
    %v2118 = vld [vmem:[%s3 + $0x200] sm:$0xf]
    %v2119 = vld [vmem:[%s3 + $0x204] sm:$0xf]
    %v2120 = vld [vmem:[%s3 + $0x208] sm:$0xf]
    %v2121 = vld [vmem:[%s3 + $0x20c] sm:$0xf]
    %v2122 = vld [vmem:[%s3 + $0x210] sm:$0xf]
    %v2123 = vld [vmem:[%s3 + $0x214] sm:$0xf]
    %v2124 = vld [vmem:[%s3 + $0x218] sm:$0xf]
    %v2125 = vld [vmem:[%s3 + $0x21c] sm:$0xf]
    %v2126 = vld [vmem:[%s3 + $0x220] sm:$0xf]
    %v2127 = vld [vmem:[%s3 + $0x224] sm:$0xf]
    %v2128 = vld [vmem:[%s3 + $0x228] sm:$0xf]
    %v2129 = vld [vmem:[%s3 + $0x22c] sm:$0xf]
    %v2130 = vld [vmem:[%s3 + $0x230] sm:$0xf]
    %v2131 = vld [vmem:[%s3 + $0x234] sm:$0xf]
    %v2132 = vld [vmem:[%s3 + $0x238] sm:$0xf]
    %v2133 = vld [vmem:[%s3 + $0x23c] sm:$0xf]
    %v2134 = vld [vmem:[%s3 + $0x240] sm:$0xf]
    %v2135 = vld [vmem:[%s3 + $0x244] sm:$0xf]
    %v2136 = vld [vmem:[%s3 + $0x248] sm:$0xf]
    %v2137 = vld [vmem:[%s3 + $0x24c] sm:$0xf]
    %v2138 = vld [vmem:[%s3 + $0x250] sm:$0xf]
    %v2139 = vld [vmem:[%s3 + $0x254] sm:$0xf]
    %v2140 = vld [vmem:[%s3 + $0x258] sm:$0xf]
    %v2141 = vld [vmem:[%s3 + $0x25c] sm:$0xf]
    %v2142 = vld [vmem:[%s3 + $0x260] sm:$0xf]
    %v2143 = vld [vmem:[%s3 + $0x264] sm:$0xf]
    %v2144 = vld [vmem:[%s3 + $0x268] sm:$0xf]
    %v2145 = vld [vmem:[%s3 + $0x26c] sm:$0xf]
    %v2146 = vld [vmem:[%s3 + $0x270] sm:$0xf]
    %v2147 = vld [vmem:[%s3 + $0x274] sm:$0xf]
    %v2148 = vld [vmem:[%s3 + $0x278] sm:$0xf]
    %v2149 = vld [vmem:[%s3 + $0x27c] sm:$0xf]
    %v2150 = vld [vmem:[%s3 + $0x280] sm:$0xf]
    %v2151 = vld [vmem:[%s3 + $0x284] sm:$0xf]
    %v2152 = vld [vmem:[%s3 + $0x288] sm:$0xf]
    %v2153 = vld [vmem:[%s3 + $0x28c] sm:$0xf]
    %v2154 = vld [vmem:[%s3 + $0x290] sm:$0xf]
    %v2155 = vld [vmem:[%s3 + $0x294] sm:$0xf]
    %v2156 = vld [vmem:[%s3 + $0x298] sm:$0xf]
    %v2157 = vld [vmem:[%s3 + $0x29c] sm:$0xf]
    %v2158 = vld [vmem:[%s3 + $0x2a0] sm:$0xf]
    %v2159 = vld [vmem:[%s3 + $0x2a4] sm:$0xf]
    %v2160 = vld [vmem:[%s3 + $0x2a8] sm:$0xf]
    %v2161 = vld [vmem:[%s3 + $0x2ac] sm:$0xf]
    %v2162 = vld [vmem:[%s3 + $0x2b0] sm:$0xf]
    %v2163 = vld [vmem:[%s3 + $0x2b4] sm:$0xf]
    %v2164 = vld [vmem:[%s3 + $0x2b8] sm:$0xf]
    %v2165 = vld [vmem:[%s3 + $0x2bc] sm:$0xf]
    %v2166 = vld [vmem:[%s3 + $0x2c0] sm:$0xf]
    %v2167 = vld [vmem:[%s3 + $0x2c4] sm:$0xf]
    %v2168 = vld [vmem:[%s3 + $0x2c8] sm:$0xf]
    %v2169 = vld [vmem:[%s3 + $0x2cc] sm:$0xf]
    %v2170 = vld [vmem:[%s3 + $0x2d0] sm:$0xf]
    %v2171 = vld [vmem:[%s3 + $0x2d4] sm:$0xf]
    %v2172 = vld [vmem:[%s3 + $0x2d8] sm:$0xf]
    %v2173 = vld [vmem:[%s3 + $0x2dc] sm:$0xf]
    %v2174 = vld [vmem:[%s3 + $0x2e0] sm:$0xf]
    %v2175 = vld [vmem:[%s3 + $0x2e4] sm:$0xf]
    %v2176 = vld [vmem:[%s3 + $0x2e8] sm:$0xf]
    %v2177 = vld [vmem:[%s3 + $0x2ec] sm:$0xf]
    %v2178 = vld [vmem:[%s3 + $0x2f0] sm:$0xf]
    %v2179 = vld [vmem:[%s3 + $0x2f4] sm:$0xf]
    %v2180 = vld [vmem:[%s3 + $0x2f8] sm:$0xf]
    %v2181 = vld [vmem:[%s3 + $0x2fc] sm:$0xf]
    %v2182 = vld [vmem:[%s3 + $0x300] sm:$0xf]
    %v2183 = vld [vmem:[%s3 + $0x304] sm:$0xf]
    %v2184 = vld [vmem:[%s3 + $0x308] sm:$0xf]
    %v2185 = vld [vmem:[%s3 + $0x30c] sm:$0xf]
    %v2186 = vld [vmem:[%s3 + $0x310] sm:$0xf]
    %v2187 = vld [vmem:[%s3 + $0x314] sm:$0xf]
    %v2188 = vld [vmem:[%s3 + $0x318] sm:$0xf]
    %v2189 = vld [vmem:[%s3 + $0x31c] sm:$0xf]
    %v2190 = vld [vmem:[%s3 + $0x320] sm:$0xf]
    %v2191 = vld [vmem:[%s3 + $0x324] sm:$0xf]
    %v2192 = vld [vmem:[%s3 + $0x328] sm:$0xf]
    %v2193 = vld [vmem:[%s3 + $0x32c] sm:$0xf]
    %v2194 = vld [vmem:[%s3 + $0x330] sm:$0xf]
    %v2195 = vld [vmem:[%s3 + $0x334] sm:$0xf]
    %v2196 = vld [vmem:[%s3 + $0x338] sm:$0xf]
    %v2197 = vld [vmem:[%s3 + $0x33c] sm:$0xf]
    %v2198 = vld [vmem:[%s3 + $0x340] sm:$0xf]
    %v2199 = vld [vmem:[%s3 + $0x344] sm:$0xf]
    %v2200 = vld [vmem:[%s3 + $0x348] sm:$0xf]
    %v2201 = vld [vmem:[%s3 + $0x34c] sm:$0xf]
    %v2202 = vld [vmem:[%s3 + $0x350] sm:$0xf]
    %v2203 = vld [vmem:[%s3 + $0x354] sm:$0xf]
    %v2204 = vld [vmem:[%s3 + $0x358] sm:$0xf]
    %v2205 = vld [vmem:[%s3 + $0x35c] sm:$0xf]
    %v2206 = vld [vmem:[%s3 + $0x360] sm:$0xf]
    %v2207 = vld [vmem:[%s3 + $0x364] sm:$0xf]
    %v2208 = vld [vmem:[%s3 + $0x368] sm:$0xf]
    %v2209 = vld [vmem:[%s3 + $0x36c] sm:$0xf]
    %v2210 = vld [vmem:[%s3 + $0x370] sm:$0xf]
    %v2211 = vld [vmem:[%s3 + $0x374] sm:$0xf]
    %v2212 = vld [vmem:[%s3 + $0x378] sm:$0xf]
    %v2213 = vld [vmem:[%s3 + $0x37c] sm:$0xf]
    %v2214 = vld [vmem:[%s3 + $0x380] sm:$0xf]
    %v2215 = vld [vmem:[%s3 + $0x384] sm:$0xf]
    %v2216 = vld [vmem:[%s3 + $0x388] sm:$0xf]
    %v2217 = vld [vmem:[%s3 + $0x38c] sm:$0xf]
    %v2218 = vld [vmem:[%s3 + $0x390] sm:$0xf]
    %v2219 = vld [vmem:[%s3 + $0x394] sm:$0xf]
    %v2220 = vld [vmem:[%s3 + $0x398] sm:$0xf]
    %v2221 = vld [vmem:[%s3 + $0x39c] sm:$0xf]
    %v2222 = vld [vmem:[%s3 + $0x3a0] sm:$0xf]
    %v2223 = vld [vmem:[%s3 + $0x3a4] sm:$0xf]
    %v2224 = vld [vmem:[%s3 + $0x3a8] sm:$0xf]
    %v2225 = vld [vmem:[%s3 + $0x3ac] sm:$0xf]
    %v2226 = vld [vmem:[%s3 + $0x3b0] sm:$0xf]
    %v2227 = vld [vmem:[%s3 + $0x3b4] sm:$0xf]
    %v2228 = vld [vmem:[%s3 + $0x3b8] sm:$0xf]
    %v2229 = vld [vmem:[%s3 + $0x3bc] sm:$0xf]
    %v2230 = vld [vmem:[%s3 + $0x3c0] sm:$0xf]
    %v2231 = vld [vmem:[%s3 + $0x3c4] sm:$0xf]
    %v2232 = vld [vmem:[%s3 + $0x3c8] sm:$0xf]
    %v2233 = vld [vmem:[%s3 + $0x3cc] sm:$0xf]
    %v2234 = vld [vmem:[%s3 + $0x3d0] sm:$0xf]
    %v2235 = vld [vmem:[%s3 + $0x3d4] sm:$0xf]
    %v2236 = vld [vmem:[%s3 + $0x3d8] sm:$0xf]
    %v2237 = vld [vmem:[%s3 + $0x3dc] sm:$0xf]
    %v2238 = vld [vmem:[%s3 + $0x3e0] sm:$0xf]
    %v2239 = vld [vmem:[%s3 + $0x3e4] sm:$0xf]
    %v2240 = vld [vmem:[%s3 + $0x3e8] sm:$0xf]
    %v2241 = vld [vmem:[%s3 + $0x3ec] sm:$0xf]
    %v2242 = vld [vmem:[%s3 + $0x3f0] sm:$0xf]
    %v2243 = vld [vmem:[%s3 + $0x3f4] sm:$0xf]
    %v2244 = vld [vmem:[%s3 + $0x3f8] sm:$0xf]
    %v2245 = vld [vmem:[%s3 + $0x3fc] sm:$0xf]
    %v2246 = vld [vmem:[%s3 + $0x400] sm:$0xf]
    %v2247 = vld [vmem:[%s3 + $0x404] sm:$0xf]
    %v2248 = vld [vmem:[%s3 + $0x408] sm:$0xf]
    %v2249 = vld [vmem:[%s3 + $0x40c] sm:$0xf]
    %v2250 = vld [vmem:[%s3 + $0x410] sm:$0xf]
    %v2251 = vld [vmem:[%s3 + $0x414] sm:$0xf]
    %v2252 = vld [vmem:[%s3 + $0x418] sm:$0xf]
    %v2253 = vld [vmem:[%s3 + $0x41c] sm:$0xf]
    %v2254 = vld [vmem:[%s3 + $0x420] sm:$0xf]
    %v2255 = vld [vmem:[%s3 + $0x424] sm:$0xf]
    %v2256 = vld [vmem:[%s3 + $0x428] sm:$0xf]
    %v2257 = vld [vmem:[%s3 + $0x42c] sm:$0xf]
    %v2258 = vld [vmem:[%s3 + $0x430] sm:$0xf]
    %v2259 = vld [vmem:[%s3 + $0x434] sm:$0xf]
    %v2260 = vld [vmem:[%s3 + $0x438] sm:$0xf]
    %v2261 = vld [vmem:[%s3 + $0x43c] sm:$0xf]
    %v2262 = vld [vmem:[%s3 + $0x440] sm:$0xf]
    %v2263 = vld [vmem:[%s3 + $0x444] sm:$0xf]
    %v2264 = vld [vmem:[%s3 + $0x448] sm:$0xf]
    %v2265 = vld [vmem:[%s3 + $0x44c] sm:$0xf]
    %v2266 = vld [vmem:[%s3 + $0x450] sm:$0xf]
    %v2267 = vld [vmem:[%s3 + $0x454] sm:$0xf]
    %v2268 = vld [vmem:[%s3 + $0x458] sm:$0xf]
    %v2269 = vld [vmem:[%s3 + $0x45c] sm:$0xf]
    %v2270 = vld [vmem:[%s3 + $0x460] sm:$0xf]
    %v2271 = vld [vmem:[%s3 + $0x464] sm:$0xf]
    %v2272 = vld [vmem:[%s3 + $0x468] sm:$0xf]
    %v2273 = vld [vmem:[%s3 + $0x46c] sm:$0xf]
    %v2274 = vld [vmem:[%s3 + $0x470] sm:$0xf]
    %v2275 = vld [vmem:[%s3 + $0x474] sm:$0xf]
    %v2276 = vld [vmem:[%s3 + $0x478] sm:$0xf]
    %v2277 = vld [vmem:[%s3 + $0x47c] sm:$0xf]
    %v2278 = vld [vmem:[%s3 + $0x480] sm:$0xf]
    %v2279 = vld [vmem:[%s3 + $0x484] sm:$0xf]
    %v2280 = vld [vmem:[%s3 + $0x488] sm:$0xf]
    %v2281 = vld [vmem:[%s3 + $0x48c] sm:$0xf]
    %v2282 = vld [vmem:[%s3 + $0x490] sm:$0xf]
    %v2283 = vld [vmem:[%s3 + $0x494] sm:$0xf]
    %v2284 = vld [vmem:[%s3 + $0x498] sm:$0xf]
    %v2285 = vld [vmem:[%s3 + $0x49c] sm:$0xf]
    %v2286 = vld [vmem:[%s3 + $0x4a0] sm:$0xf]
    %v2287 = vld [vmem:[%s3 + $0x4a4] sm:$0xf]
    %v2288 = vld [vmem:[%s3 + $0x4a8] sm:$0xf]
    %v2289 = vld [vmem:[%s3 + $0x4ac] sm:$0xf]
    %v2290 = vld [vmem:[%s3 + $0x4b0] sm:$0xf]
    %v2291 = vld [vmem:[%s3 + $0x4b4] sm:$0xf]
    %v2292 = vld [vmem:[%s3 + $0x4b8] sm:$0xf]
    %v2293 = vld [vmem:[%s3 + $0x4bc] sm:$0xf]
    %v2294 = vld [vmem:[%s3 + $0x4c0] sm:$0xf]
    %v2295 = vld [vmem:[%s3 + $0x4c4] sm:$0xf]
    %v2296 = vld [vmem:[%s3 + $0x4c8] sm:$0xf]
    %v2297 = vld [vmem:[%s3 + $0x4cc] sm:$0xf]
    %v2298 = vld [vmem:[%s3 + $0x4d0] sm:$0xf]
    %v2299 = vld [vmem:[%s3 + $0x4d4] sm:$0xf]
    %v2300 = vld [vmem:[%s3 + $0x4d8] sm:$0xf]
    %v2301 = vld [vmem:[%s3 + $0x4dc] sm:$0xf]
    %v2302 = vld [vmem:[%s3 + $0x4e0] sm:$0xf]
    %v2303 = vld [vmem:[%s3 + $0x4e4] sm:$0xf]
    %v2304 = vld [vmem:[%s3 + $0x4e8] sm:$0xf]
    %v2305 = vld [vmem:[%s3 + $0x4ec] sm:$0xf]
    %v2306 = vld [vmem:[%s3 + $0x4f0] sm:$0xf]
    %v2307 = vld [vmem:[%s3 + $0x4f4] sm:$0xf]
    %v2308 = vld [vmem:[%s3 + $0x4f8] sm:$0xf]
    %v2309 = vld [vmem:[%s3 + $0x4fc] sm:$0xf]
    %v2310 = vld [vmem:[%s3 + $0x500] sm:$0xf]
    %v2311 = vld [vmem:[%s3 + $0x504] sm:$0xf]
    %v2312 = vld [vmem:[%s3 + $0x508] sm:$0xf]
    %v2313 = vld [vmem:[%s3 + $0x50c] sm:$0xf]
    %v2314 = vld [vmem:[%s3 + $0x510] sm:$0xf]
    %v2315 = vld [vmem:[%s3 + $0x514] sm:$0xf]
    %v2316 = vld [vmem:[%s3 + $0x518] sm:$0xf]
    %v2317 = vld [vmem:[%s3 + $0x51c] sm:$0xf]
    %v2318 = vld [vmem:[%s3 + $0x520] sm:$0xf]
    %v2319 = vld [vmem:[%s3 + $0x524] sm:$0xf]
    %v2320 = vld [vmem:[%s3 + $0x528] sm:$0xf]
    %v2321 = vld [vmem:[%s3 + $0x52c] sm:$0xf]
    %v2322 = vld [vmem:[%s3 + $0x530] sm:$0xf]
    %v2323 = vld [vmem:[%s3 + $0x534] sm:$0xf]
    %v2324 = vld [vmem:[%s3 + $0x538] sm:$0xf]
    %v2325 = vld [vmem:[%s3 + $0x53c] sm:$0xf]
    %v2326 = vld [vmem:[%s3 + $0x540] sm:$0xf]
    %v2327 = vld [vmem:[%s3 + $0x544] sm:$0xf]
    %v2328 = vld [vmem:[%s3 + $0x548] sm:$0xf]
    %v2329 = vld [vmem:[%s3 + $0x54c] sm:$0xf]
    %v2330 = vld [vmem:[%s3 + $0x550] sm:$0xf]
    %v2331 = vld [vmem:[%s3 + $0x554] sm:$0xf]
    %v2332 = vld [vmem:[%s3 + $0x558] sm:$0xf]
    %v2333 = vld [vmem:[%s3 + $0x55c] sm:$0xf]
    %v2334 = vld [vmem:[%s3 + $0x560] sm:$0xf]
    %v2335 = vld [vmem:[%s3 + $0x564] sm:$0xf]
    %v2336 = vld [vmem:[%s3 + $0x568] sm:$0xf]
    %v2337 = vld [vmem:[%s3 + $0x56c] sm:$0xf]
    %v2338 = vld [vmem:[%s3 + $0x570] sm:$0xf]
    %v2339 = vld [vmem:[%s3 + $0x574] sm:$0xf]
    %v2340 = vld [vmem:[%s3 + $0x578] sm:$0xf]
    %v2341 = vld [vmem:[%s3 + $0x57c] sm:$0xf]
    %v2342 = vld [vmem:[%s3 + $0x580] sm:$0xf]
    %v2343 = vld [vmem:[%s3 + $0x584] sm:$0xf]
    %v2344 = vld [vmem:[%s3 + $0x588] sm:$0xf]
    %v2345 = vld [vmem:[%s3 + $0x58c] sm:$0xf]
    %v2346 = vld [vmem:[%s3 + $0x590] sm:$0xf]
    %v2347 = vld [vmem:[%s3 + $0x594] sm:$0xf]
    %v2348 = vld [vmem:[%s3 + $0x598] sm:$0xf]
    %v2349 = vld [vmem:[%s3 + $0x59c] sm:$0xf]
    %v2350 = vld [vmem:[%s3 + $0x5a0] sm:$0xf]
    %v2351 = vld [vmem:[%s3 + $0x5a4] sm:$0xf]
    %v2352 = vld [vmem:[%s3 + $0x5a8] sm:$0xf]
    %v2353 = vld [vmem:[%s3 + $0x5ac] sm:$0xf]
    %v2354 = vld [vmem:[%s3 + $0x5b0] sm:$0xf]
    %v2355 = vld [vmem:[%s3 + $0x5b4] sm:$0xf]
    %v2356 = vld [vmem:[%s3 + $0x5b8] sm:$0xf]
    %v2357 = vld [vmem:[%s3 + $0x5bc] sm:$0xf]
    %v2358 = vld [vmem:[%s3 + $0x5c0] sm:$0xf]
    %v2359 = vld [vmem:[%s3 + $0x5c4] sm:$0xf]
    %v2360 = vld [vmem:[%s3 + $0x5c8] sm:$0xf]
    %v2361 = vld [vmem:[%s3 + $0x5cc] sm:$0xf]
    %v2362 = vld [vmem:[%s3 + $0x5d0] sm:$0xf]
    %v2363 = vld [vmem:[%s3 + $0x5d4] sm:$0xf]
    %v2364 = vld [vmem:[%s3 + $0x5d8] sm:$0xf]
    %v2365 = vld [vmem:[%s3 + $0x5dc] sm:$0xf]
    %v2366 = vld [vmem:[%s3 + $0x5e0] sm:$0xf]
    %v2367 = vld [vmem:[%s3 + $0x5e4] sm:$0xf]
    %v2368 = vld [vmem:[%s3 + $0x5e8] sm:$0xf]
    %v2369 = vld [vmem:[%s3 + $0x5ec] sm:$0xf]
    %v2370 = vld [vmem:[%s3 + $0x5f0] sm:$0xf]
    %v2371 = vld [vmem:[%s3 + $0x5f4] sm:$0xf]
    %v2372 = vld [vmem:[%s3 + $0x5f8] sm:$0xf]
    %v2373 = vld [vmem:[%s3 + $0x5fc] sm:$0xf]
    %v2374 = vld [vmem:[%s3 + $0x600] sm:$0xf]
    %v2375 = vld [vmem:[%s3 + $0x604] sm:$0xf]
    %v2376 = vld [vmem:[%s3 + $0x608] sm:$0xf]
    %v2377 = vld [vmem:[%s3 + $0x60c] sm:$0xf]
    %v2378 = vld [vmem:[%s3 + $0x610] sm:$0xf]
    %v2379 = vld [vmem:[%s3 + $0x614] sm:$0xf]
    %v2380 = vld [vmem:[%s3 + $0x618] sm:$0xf]
    %v2381 = vld [vmem:[%s3 + $0x61c] sm:$0xf]
    %v2382 = vld [vmem:[%s4] sm:$0x1]
    %v2384 = vperm.slane %v2382, 0
    %2386 = vst [vmem:[#allocation1] ss:$9 sm:$0xff] %v29
    %v2387 = vld [vmem:[#allocation1] sm:$0xff]
    %v2388 = vld [vmem:[#allocation1 + $0x9] sm:$0xff]
    %v2389 = vld [vmem:[#allocation1 + $0x12] sm:$0xff]
    %v2390 = vld [vmem:[#allocation1 + $0x1b] sm:$0xff]
    %v2391 = vld [vmem:[#allocation1 + $0x24] sm:$0xff]
    %v2392 = vld [vmem:[#allocation1 + $0x2d] sm:$0xff]
    %v2393 = vld [vmem:[#allocation1 + $0x36] sm:$0xff]
    %v2394 = vld [vmem:[#allocation1 + $0x3f] sm:$0xff]
    %2395 = vst [vmem:[#allocation1] ss:$9 sm:$0xff] %v30
    %v2396 = vld [vmem:[#allocation1] sm:$0xff]
    %v2397 = vld [vmem:[#allocation1 + $0x9] sm:$0xff]
    %v2398 = vld [vmem:[#allocation1 + $0x12] sm:$0xff]
    %v2399 = vld [vmem:[#allocation1 + $0x1b] sm:$0xff]
    %v2400 = vld [vmem:[#allocation1 + $0x24] sm:$0xff]
    %v2401 = vld [vmem:[#allocation1 + $0x2d] sm:$0xff]
    %v2402 = vld [vmem:[#allocation1 + $0x36] sm:$0xff]
    %v2403 = vld [vmem:[#allocation1 + $0x3f] sm:$0xff]
    %2404 = vst [vmem:[#allocation1] ss:$9 sm:$0xff] %v31
    %v2405 = vld [vmem:[#allocation1] sm:$0xff]
    %v2406 = vld [vmem:[#allocation1 + $0x9] sm:$0xff]
    %v2407 = vld [vmem:[#allocation1 + $0x12] sm:$0xff]
    %v2408 = vld [vmem:[#allocation1 + $0x1b] sm:$0xff]
    %v2409 = vld [vmem:[#allocation1 + $0x24] sm:$0xff]
    %v2410 = vld [vmem:[#allocation1 + $0x2d] sm:$0xff]
    %v2411 = vld [vmem:[#allocation1 + $0x36] sm:$0xff]
    %v2412 = vld [vmem:[#allocation1 + $0x3f] sm:$0xff]
    %2413 = vst [vmem:[#allocation1] ss:$9 sm:$0xff] %v32
    %v2414 = vld [vmem:[#allocation1] sm:$0xff]
    %v2831 = vunpack.c.l.b16 %v1990
    %v2832 = vunpack.c.l.b16 %v1991
    %v2833 = vunpack.c.l.b16 %v1992
    %v2834 = vunpack.c.l.b16 %v1993
    %v2835 = vunpack.c.l.b16 %v1994
    %v2836 = vunpack.c.l.b16 %v1995
    %v2837 = vunpack.c.l.b16 %v1996
    %v2838 = vunpack.c.l.b16 %v1997
    %v2839 = vunpack.c.l.b16 %v1998
    %v2840 = vunpack.c.l.b16 %v1999
    %v2841 = vunpack.c.l.b16 %v2000
    %v2842 = vunpack.c.l.b16 %v2001
    %v2843 = vunpack.c.l.b16 %v2002
    %v2844 = vunpack.c.l.b16 %v2003
    %v2845 = vunpack.c.l.b16 %v2004
    %v2846 = vunpack.c.l.b16 %v2005
    %v2847 = vunpack.c.l.b16 %v2006
    %v2848 = vunpack.c.l.b16 %v2007
    %v2849 = vunpack.c.l.b16 %v2008
    %v2850 = vunpack.c.l.b16 %v2009
    %v2851 = vunpack.c.l.b16 %v2010
    %v2852 = vunpack.c.l.b16 %v2011
    %v2853 = vunpack.c.l.b16 %v2012
    %v2854 = vunpack.c.l.b16 %v2013
    %v2855 = vunpack.c.l.b16 %v2014
    %v2856 = vunpack.c.l.b16 %v2015
    %v2857 = vunpack.c.l.b16 %v2016
    %v2858 = vunpack.c.l.b16 %v2017
    %v2859 = vunpack.c.l.b16 %v2018
    %v2860 = vunpack.c.l.b16 %v2019
    %v2861 = vunpack.c.l.b16 %v2020
    %v2862 = vunpack.c.l.b16 %v2021
    %v2863 = vunpack.c.l.b16 %v2022
    %v2864 = vunpack.c.l.b16 %v2023
    %v2865 = vunpack.c.l.b16 %v2024
    %v2866 = vunpack.c.l.b16 %v2025
    %v2867 = vunpack.c.l.b16 %v2026
    %v2868 = vunpack.c.l.b16 %v2027
    %v2869 = vunpack.c.l.b16 %v2028
    %v2870 = vunpack.c.l.b16 %v2029
    %v2871 = vunpack.c.l.b16 %v2030
    %v2872 = vunpack.c.l.b16 %v2031
    %v2873 = vunpack.c.l.b16 %v2032
    %v2874 = vunpack.c.l.b16 %v2033
    %v2875 = vunpack.c.l.b16 %v2034
    %v2876 = vunpack.c.l.b16 %v2035
    %v2877 = vunpack.c.l.b16 %v2036
    %v2878 = vunpack.c.l.b16 %v2037
    %v2879 = vunpack.c.l.b16 %v2038
    %v2880 = vunpack.c.l.b16 %v2039
    %v2881 = vunpack.c.l.b16 %v2040
    %v2882 = vunpack.c.l.b16 %v2041
    %v2883 = vunpack.c.l.b16 %v2042
    %v2884 = vunpack.c.l.b16 %v2043
    %v2885 = vunpack.c.l.b16 %v2044
    %v2886 = vunpack.c.l.b16 %v2045
    %v2887 = vunpack.c.l.b16 %v2046
    %v2888 = vunpack.c.l.b16 %v2047
    %v2889 = vunpack.c.l.b16 %v2048
    %v2890 = vunpack.c.l.b16 %v2049
    %v2891 = vunpack.c.l.b16 %v2050
    %v2892 = vunpack.c.l.b16 %v2051
    %v2893 = vunpack.c.l.b16 %v2052
    %v2894 = vunpack.c.l.b16 %v2053
    %v2895 = vunpack.c.l.b16 %v2054
    %v2896 = vunpack.c.l.b16 %v2055
    %v2897 = vunpack.c.l.b16 %v2056
    %v2898 = vunpack.c.l.b16 %v2057
    %v2899 = vunpack.c.l.b16 %v2058
    %v2900 = vunpack.c.l.b16 %v2059
    %v2901 = vunpack.c.l.b16 %v2060
    %v2902 = vunpack.c.l.b16 %v2061
    %v2903 = vunpack.c.l.b16 %v2062
    %v2904 = vunpack.c.l.b16 %v2063
    %v2905 = vunpack.c.l.b16 %v2064
    %v2906 = vunpack.c.l.b16 %v2065
    %v2907 = vunpack.c.l.b16 %v2066
    %v2908 = vunpack.c.l.b16 %v2067
    %v2909 = vunpack.c.l.b16 %v2068
    %v2910 = vunpack.c.l.b16 %v2069
    %v2911 = vunpack.c.l.b16 %v2070
    %v2912 = vunpack.c.l.b16 %v2071
    %v2913 = vunpack.c.l.b16 %v2072
    %v2914 = vunpack.c.l.b16 %v2073
    %v2915 = vunpack.c.l.b16 %v2074
    %v2916 = vunpack.c.l.b16 %v2075
    %v2917 = vunpack.c.l.b16 %v2076
    %v2918 = vunpack.c.l.b16 %v2077
    %v2919 = vunpack.c.l.b16 %v2078
    %v2920 = vunpack.c.l.b16 %v2079
    %v2921 = vunpack.c.l.b16 %v2080
    %v2922 = vunpack.c.l.b16 %v2081
    %v2923 = vunpack.c.l.b16 %v2082
    %v2924 = vunpack.c.l.b16 %v2083
    %v2925 = vunpack.c.l.b16 %v2084
    %v2926 = vunpack.c.l.b16 %v2085
    %v2927 = vunpack.c.l.b16 %v2086
    %v2928 = vunpack.c.l.b16 %v2087
    %v2929 = vunpack.c.l.b16 %v2088
    %v2930 = vunpack.c.l.b16 %v2089
    %v2931 = vunpack.c.l.b16 %v2090
    %v2932 = vunpack.c.l.b16 %v2091
    %v2933 = vunpack.c.l.b16 %v2092
    %v2934 = vunpack.c.l.b16 %v2093
    %v2935 = vunpack.c.l.b16 %v2094
    %v2936 = vunpack.c.l.b16 %v2095
    %v2937 = vunpack.c.l.b16 %v2096
    %v2938 = vunpack.c.l.b16 %v2097
    %v2939 = vunpack.c.l.b16 %v2098
    %v2940 = vunpack.c.l.b16 %v2099
    %v2941 = vunpack.c.l.b16 %v2100
    %v2942 = vunpack.c.l.b16 %v2101
    %v2943 = vunpack.c.l.b16 %v2102
    %v2944 = vunpack.c.l.b16 %v2103
    %v2945 = vunpack.c.l.b16 %v2104
    %v2946 = vunpack.c.l.b16 %v2105
    %v2947 = vunpack.c.l.b16 %v2106
    %v2948 = vunpack.c.l.b16 %v2107
    %v2949 = vunpack.c.l.b16 %v2108
    %v2950 = vunpack.c.l.b16 %v2109
    %v2951 = vunpack.c.l.b16 %v2110
    %v2952 = vunpack.c.l.b16 %v2111
    %v2953 = vunpack.c.l.b16 %v2112
    %v2954 = vunpack.c.l.b16 %v2113
    %v2955 = vunpack.c.l.b16 %v2114
    %v2956 = vunpack.c.l.b16 %v2115
    %v2957 = vunpack.c.l.b16 %v2116
    %v2958 = vunpack.c.l.b16 %v2117
    %v2959 = vunpack.c.l.b16 %v2118
    %v2960 = vunpack.c.l.b16 %v2119
    %v2961 = vunpack.c.l.b16 %v2120
    %v2962 = vunpack.c.l.b16 %v2121
    %v2963 = vunpack.c.l.b16 %v2122
    %v2964 = vunpack.c.l.b16 %v2123
    %v2965 = vunpack.c.l.b16 %v2124
    %v2966 = vunpack.c.l.b16 %v2125
    %v2967 = vunpack.c.l.b16 %v2126
    %v2968 = vunpack.c.l.b16 %v2127
    %v2969 = vunpack.c.l.b16 %v2128
    %v2970 = vunpack.c.l.b16 %v2129
    %v2971 = vunpack.c.l.b16 %v2130
    %v2972 = vunpack.c.l.b16 %v2131
    %v2973 = vunpack.c.l.b16 %v2132
    %v2974 = vunpack.c.l.b16 %v2133
    %v2975 = vunpack.c.l.b16 %v2134
    %v2976 = vunpack.c.l.b16 %v2135
    %v2977 = vunpack.c.l.b16 %v2136
    %v2978 = vunpack.c.l.b16 %v2137
    %v2979 = vunpack.c.l.b16 %v2138
    %v2980 = vunpack.c.l.b16 %v2139
    %v2981 = vunpack.c.l.b16 %v2140
    %v2982 = vunpack.c.l.b16 %v2141
    %v2983 = vunpack.c.l.b16 %v2142
    %v2984 = vunpack.c.l.b16 %v2143
    %v2985 = vunpack.c.l.b16 %v2144
    %v2986 = vunpack.c.l.b16 %v2145
    %v2987 = vunpack.c.l.b16 %v2146
    %v2988 = vunpack.c.l.b16 %v2147
    %v2989 = vunpack.c.l.b16 %v2148
    %v2990 = vunpack.c.l.b16 %v2149
    %v2991 = vunpack.c.l.b16 %v2150
    %v2992 = vunpack.c.l.b16 %v2151
    %v2993 = vunpack.c.l.b16 %v2152
    %v2994 = vunpack.c.l.b16 %v2153
    %v2995 = vunpack.c.l.b16 %v2154
    %v2996 = vunpack.c.l.b16 %v2155
    %v2997 = vunpack.c.l.b16 %v2156
    %v2998 = vunpack.c.l.b16 %v2157
    %v2999 = vunpack.c.l.b16 %v2158
    %v3000 = vunpack.c.l.b16 %v2159
    %v3001 = vunpack.c.l.b16 %v2160
    %v3002 = vunpack.c.l.b16 %v2161
    %v3003 = vunpack.c.l.b16 %v2162
    %v3004 = vunpack.c.l.b16 %v2163
    %v3005 = vunpack.c.l.b16 %v2164
    %v3006 = vunpack.c.l.b16 %v2165
    %v3007 = vunpack.c.l.b16 %v2166
    %v3008 = vunpack.c.l.b16 %v2167
    %v3009 = vunpack.c.l.b16 %v2168
    %v3010 = vunpack.c.l.b16 %v2169
    %v3011 = vunpack.c.l.b16 %v2170
    %v3012 = vunpack.c.l.b16 %v2171
    %v3013 = vunpack.c.l.b16 %v2172
    %v3014 = vunpack.c.l.b16 %v2173
    %v3015 = vunpack.c.l.b16 %v2174
    %v3016 = vunpack.c.l.b16 %v2175
    %v3017 = vunpack.c.l.b16 %v2176
    %v3018 = vunpack.c.l.b16 %v2177
    %v3019 = vunpack.c.l.b16 %v2178
    %v3020 = vunpack.c.l.b16 %v2179
    %v3021 = vunpack.c.l.b16 %v2180
    %v3022 = vunpack.c.l.b16 %v2181
    %v3023 = vunpack.c.l.b16 %v2182
    %v3024 = vunpack.c.l.b16 %v2183
    %v3025 = vunpack.c.l.b16 %v2184
    %v3026 = vunpack.c.l.b16 %v2185
    %v3027 = vunpack.c.l.b16 %v2186
    %v3028 = vunpack.c.l.b16 %v2187
    %v3029 = vunpack.c.l.b16 %v2188
    %v3030 = vunpack.c.l.b16 %v2189
    %v3031 = vunpack.c.l.b16 %v2190
    %v3032 = vunpack.c.l.b16 %v2191
    %v3033 = vunpack.c.l.b16 %v2192
    %v3034 = vunpack.c.l.b16 %v2193
    %v3035 = vunpack.c.l.b16 %v2194
    %v3036 = vunpack.c.l.b16 %v2195
    %v3037 = vunpack.c.l.b16 %v2196
    %v3038 = vunpack.c.l.b16 %v2197
    %v3039 = vunpack.c.l.b16 %v2198
    %v3040 = vunpack.c.l.b16 %v2199
    %v3041 = vunpack.c.l.b16 %v2200
    %v3042 = vunpack.c.l.b16 %v2201
    %v3043 = vunpack.c.l.b16 %v2202
    %v3044 = vunpack.c.l.b16 %v2203
    %v3045 = vunpack.c.l.b16 %v2204
    %v3046 = vunpack.c.l.b16 %v2205
    %v3047 = vunpack.c.l.b16 %v2206
    %v3048 = vunpack.c.l.b16 %v2207
    %v3049 = vunpack.c.l.b16 %v2208
    %v3050 = vunpack.c.l.b16 %v2209
    %v3051 = vunpack.c.l.b16 %v2210
    %v3052 = vunpack.c.l.b16 %v2211
    %v3053 = vunpack.c.l.b16 %v2212
    %v3054 = vunpack.c.l.b16 %v2213
    %v3055 = vunpack.c.l.b16 %v2214
    %v3056 = vunpack.c.l.b16 %v2215
    %v3057 = vunpack.c.l.b16 %v2216
    %v3058 = vunpack.c.l.b16 %v2217
    %v3059 = vunpack.c.l.b16 %v2218
    %v3060 = vunpack.c.l.b16 %v2219
    %v3061 = vunpack.c.l.b16 %v2220
    %v3062 = vunpack.c.l.b16 %v2221
    %v3063 = vunpack.c.l.b16 %v2222
    %v3064 = vunpack.c.l.b16 %v2223
    %v3065 = vunpack.c.l.b16 %v2224
    %v3066 = vunpack.c.l.b16 %v2225
    %v3067 = vunpack.c.l.b16 %v2226
    %v3068 = vunpack.c.l.b16 %v2227
    %v3069 = vunpack.c.l.b16 %v2228
    %v3070 = vunpack.c.l.b16 %v2229
    %v3071 = vunpack.c.l.b16 %v2230
    %v3072 = vunpack.c.l.b16 %v2231
    %v3073 = vunpack.c.l.b16 %v2232
    %v3074 = vunpack.c.l.b16 %v2233
    %v3075 = vunpack.c.l.b16 %v2234
    %v3076 = vunpack.c.l.b16 %v2235
    %v3077 = vunpack.c.l.b16 %v2236
    %v3078 = vunpack.c.l.b16 %v2237
    %v3079 = vunpack.c.l.b16 %v2238
    %v3080 = vunpack.c.l.b16 %v2239
    %v3081 = vunpack.c.l.b16 %v2240
    %v3082 = vunpack.c.l.b16 %v2241
    %v3083 = vunpack.c.l.b16 %v2242
    %v3084 = vunpack.c.l.b16 %v2243
    %v3085 = vunpack.c.l.b16 %v2244
    %v3086 = vunpack.c.l.b16 %v2245
    %v3087 = vunpack.c.l.b16 %v2246
    %v3088 = vunpack.c.l.b16 %v2247
    %v3089 = vunpack.c.l.b16 %v2248
    %v3090 = vunpack.c.l.b16 %v2249
    %v3091 = vunpack.c.l.b16 %v2250
    %v3092 = vunpack.c.l.b16 %v2251
    %v3093 = vunpack.c.l.b16 %v2252
    %v3094 = vunpack.c.l.b16 %v2253
    %v3095 = vunpack.c.l.b16 %v2254
    %v3096 = vunpack.c.l.b16 %v2255
    %v3097 = vunpack.c.l.b16 %v2256
    %v3098 = vunpack.c.l.b16 %v2257
    %v3099 = vunpack.c.l.b16 %v2258
    %v3100 = vunpack.c.l.b16 %v2259
    %v3101 = vunpack.c.l.b16 %v2260
    %v3102 = vunpack.c.l.b16 %v2261
    %v3103 = vunpack.c.l.b16 %v2262
    %v3104 = vunpack.c.l.b16 %v2263
    %v3105 = vunpack.c.l.b16 %v2264
    %v3106 = vunpack.c.l.b16 %v2265
    %v3107 = vunpack.c.l.b16 %v2266
    %v3108 = vunpack.c.l.b16 %v2267
    %v3109 = vunpack.c.l.b16 %v2268
    %v3110 = vunpack.c.l.b16 %v2269
    %v3111 = vunpack.c.l.b16 %v2270
    %v3112 = vunpack.c.l.b16 %v2271
    %v3113 = vunpack.c.l.b16 %v2272
    %v3114 = vunpack.c.l.b16 %v2273
    %v3115 = vunpack.c.l.b16 %v2274
    %v3116 = vunpack.c.l.b16 %v2275
    %v3117 = vunpack.c.l.b16 %v2276
    %v3118 = vunpack.c.l.b16 %v2277
    %v3119 = vunpack.c.l.b16 %v2278
    %v3120 = vunpack.c.l.b16 %v2279
    %v3121 = vunpack.c.l.b16 %v2280
    %v3122 = vunpack.c.l.b16 %v2281
    %v3123 = vunpack.c.l.b16 %v2282
    %v3124 = vunpack.c.l.b16 %v2283
    %v3125 = vunpack.c.l.b16 %v2284
    %v3126 = vunpack.c.l.b16 %v2285
    %v3127 = vunpack.c.l.b16 %v2286
    %v3128 = vunpack.c.l.b16 %v2287
    %v3129 = vunpack.c.l.b16 %v2288
    %v3130 = vunpack.c.l.b16 %v2289
    %v3131 = vunpack.c.l.b16 %v2290
    %v3132 = vunpack.c.l.b16 %v2291
    %v3133 = vunpack.c.l.b16 %v2292
    %v3134 = vunpack.c.l.b16 %v2293
    %v3135 = vunpack.c.l.b16 %v2294
    %v3136 = vunpack.c.l.b16 %v2295
    %v3137 = vunpack.c.l.b16 %v2296
    %v3138 = vunpack.c.l.b16 %v2297
    %v3139 = vunpack.c.l.b16 %v2298
    %v3140 = vunpack.c.l.b16 %v2299
    %v3141 = vunpack.c.l.b16 %v2300
    %v3142 = vunpack.c.l.b16 %v2301
    %v3143 = vunpack.c.l.b16 %v2302
    %v3144 = vunpack.c.l.b16 %v2303
    %v3145 = vunpack.c.l.b16 %v2304
    %v3146 = vunpack.c.l.b16 %v2305
    %v3147 = vunpack.c.l.b16 %v2306
    %v3148 = vunpack.c.l.b16 %v2307
    %v3149 = vunpack.c.l.b16 %v2308
    %v3150 = vunpack.c.l.b16 %v2309
    %v3151 = vunpack.c.l.b16 %v2310
    %v3152 = vunpack.c.l.b16 %v2311
    %v3153 = vunpack.c.l.b16 %v2312
    %v3154 = vunpack.c.l.b16 %v2313
    %v3155 = vunpack.c.l.b16 %v2314
    %v3156 = vunpack.c.l.b16 %v2315
    %v3157 = vunpack.c.l.b16 %v2316
    %v3158 = vunpack.c.l.b16 %v2317
    %v3159 = vunpack.c.l.b16 %v2318
    %v3160 = vunpack.c.l.b16 %v2319
    %v3161 = vunpack.c.l.b16 %v2320
    %v3162 = vunpack.c.l.b16 %v2321
    %v3163 = vunpack.c.l.b16 %v2322
    %v3164 = vunpack.c.l.b16 %v2323
    %v3165 = vunpack.c.l.b16 %v2324
    %v3166 = vunpack.c.l.b16 %v2325
    %v3167 = vunpack.c.l.b16 %v2326
    %v3168 = vunpack.c.l.b16 %v2327
    %v3169 = vunpack.c.l.b16 %v2328
    %v3170 = vunpack.c.l.b16 %v2329
    %v3171 = vunpack.c.l.b16 %v2330
    %v3172 = vunpack.c.l.b16 %v2331
    %v3173 = vunpack.c.l.b16 %v2332
    %v3174 = vunpack.c.l.b16 %v2333
    %v3175 = vunpack.c.l.b16 %v2334
    %v3176 = vunpack.c.l.b16 %v2335
    %v3177 = vunpack.c.l.b16 %v2336
    %v3178 = vunpack.c.l.b16 %v2337
    %v3179 = vunpack.c.l.b16 %v2338
    %v3180 = vunpack.c.l.b16 %v2339
    %v3181 = vunpack.c.l.b16 %v2340
    %v3182 = vunpack.c.l.b16 %v2341
    %v3183 = vunpack.c.l.b16 %v2342
    %v3184 = vunpack.c.l.b16 %v2343
    %v3185 = vunpack.c.l.b16 %v2344
    %v3186 = vunpack.c.l.b16 %v2345
    %v3187 = vunpack.c.l.b16 %v2346
    %v3188 = vunpack.c.l.b16 %v2347
    %v3189 = vunpack.c.l.b16 %v2348
    %v3190 = vunpack.c.l.b16 %v2349
    %v3191 = vunpack.c.l.b16 %v2350
    %v3192 = vunpack.c.l.b16 %v2351
    %v3193 = vunpack.c.l.b16 %v2352
    %v3194 = vunpack.c.l.b16 %v2353
    %v3195 = vunpack.c.l.b16 %v2354
    %v3196 = vunpack.c.l.b16 %v2355
    %v3197 = vunpack.c.l.b16 %v2356
    %v3198 = vunpack.c.l.b16 %v2357
    %v3199 = vunpack.c.l.b16 %v2358
    %v3200 = vunpack.c.l.b16 %v2359
    %v3201 = vunpack.c.l.b16 %v2360
    %v3202 = vunpack.c.l.b16 %v2361
    %v3203 = vunpack.c.l.b16 %v2362
    %v3204 = vunpack.c.l.b16 %v2363
    %v3205 = vunpack.c.l.b16 %v2364
    %v3206 = vunpack.c.l.b16 %v2365
    %v3207 = vunpack.c.l.b16 %v2366
    %v3208 = vunpack.c.l.b16 %v2367
    %v3209 = vunpack.c.l.b16 %v2368
    %v3210 = vunpack.c.l.b16 %v2369
    %v3211 = vunpack.c.l.b16 %v2370
    %v3212 = vunpack.c.l.b16 %v2371
    %v3213 = vunpack.c.l.b16 %v2372
    %v3214 = vunpack.c.l.b16 %v2373
    %v3215 = vunpack.c.l.b16 %v2374
    %v3216 = vunpack.c.l.b16 %v2375
    %v3217 = vunpack.c.l.b16 %v2376
    %v3218 = vunpack.c.l.b16 %v2377
    %v3219 = vunpack.c.l.b16 %v2378
    %v3220 = vunpack.c.l.b16 %v2379
    %v3221 = vunpack.c.l.b16 %v2380
    %v3222 = vunpack.c.l.b16 %v2381
    %v3223 = vpack.c.b16 %v2832, %v2831
    %v3224 = vpack.c.b16 %v2834, %v2833
    %v3225 = vpack.c.b16 %v2836, %v2835
    %v3226 = vpack.c.b16 %v2838, %v2837
    %v3227 = vpack.c.b16 %v2840, %v2839
    %v3228 = vpack.c.b16 %v2842, %v2841
    %v3229 = vpack.c.b16 %v2844, %v2843
    %v3230 = vpack.c.b16 %v2846, %v2845
    %v3231 = vpack.c.b16 %v2848, %v2847
    %v3232 = vpack.c.b16 %v2850, %v2849
    %v3233 = vpack.c.b16 %v2852, %v2851
    %v3234 = vpack.c.b16 %v2854, %v2853
    %v3235 = vpack.c.b16 %v2856, %v2855
    %v3236 = vpack.c.b16 %v2858, %v2857
    %v3237 = vpack.c.b16 %v2860, %v2859
    %v3238 = vpack.c.b16 %v2862, %v2861
    %v3239 = vpack.c.b16 %v2864, %v2863
    %v3240 = vpack.c.b16 %v2866, %v2865
    %v3241 = vpack.c.b16 %v2868, %v2867
    %v3242 = vpack.c.b16 %v2870, %v2869
    %v3243 = vpack.c.b16 %v2872, %v2871
    %v3244 = vpack.c.b16 %v2874, %v2873
    %v3245 = vpack.c.b16 %v2876, %v2875
    %v3246 = vpack.c.b16 %v2878, %v2877
    %v3247 = vpack.c.b16 %v2880, %v2879
    %v3248 = vpack.c.b16 %v2882, %v2881
    %v3249 = vpack.c.b16 %v2884, %v2883
    %v3250 = vpack.c.b16 %v2886, %v2885
    %v3251 = vpack.c.b16 %v2888, %v2887
    %v3252 = vpack.c.b16 %v2890, %v2889
    %v3253 = vpack.c.b16 %v2892, %v2891
    %v3254 = vpack.c.b16 %v2894, %v2893
    %v3255 = vpack.c.b16 %v2896, %v2895
    %v3256 = vpack.c.b16 %v2898, %v2897
    %v3257 = vpack.c.b16 %v2900, %v2899
    %v3258 = vpack.c.b16 %v2902, %v2901
    %v3259 = vpack.c.b16 %v2904, %v2903
    %v3260 = vpack.c.b16 %v2906, %v2905
    %v3261 = vpack.c.b16 %v2908, %v2907
    %v3262 = vpack.c.b16 %v2910, %v2909
    %v3263 = vpack.c.b16 %v2912, %v2911
    %v3264 = vpack.c.b16 %v2914, %v2913
    %v3265 = vpack.c.b16 %v2916, %v2915
    %v3266 = vpack.c.b16 %v2918, %v2917
    %v3267 = vpack.c.b16 %v2920, %v2919
    %v3268 = vpack.c.b16 %v2922, %v2921
    %v3269 = vpack.c.b16 %v2924, %v2923
    %v3270 = vpack.c.b16 %v2926, %v2925
    %v3271 = vpack.c.b16 %v2928, %v2927
    %v3272 = vpack.c.b16 %v2930, %v2929
    %v3273 = vpack.c.b16 %v2932, %v2931
    %v3274 = vpack.c.b16 %v2934, %v2933
    %v3275 = vpack.c.b16 %v2936, %v2935
    %v3276 = vpack.c.b16 %v2938, %v2937
    %v3277 = vpack.c.b16 %v2940, %v2939
    %v3278 = vpack.c.b16 %v2942, %v2941
    %v3279 = vpack.c.b16 %v2944, %v2943
    %v3280 = vpack.c.b16 %v2946, %v2945
    %v3281 = vpack.c.b16 %v2948, %v2947
    %v3282 = vpack.c.b16 %v2950, %v2949
    %v3283 = vpack.c.b16 %v2952, %v2951
    %v3284 = vpack.c.b16 %v2954, %v2953
    %v3285 = vpack.c.b16 %v2956, %v2955
    %v3286 = vpack.c.b16 %v2958, %v2957
    %v3287 = vpack.c.b16 %v2960, %v2959
    %v3288 = vpack.c.b16 %v2962, %v2961
    %v3289 = vpack.c.b16 %v2964, %v2963
    %v3290 = vpack.c.b16 %v2966, %v2965
    %v3291 = vpack.c.b16 %v2968, %v2967
    %v3292 = vpack.c.b16 %v2970, %v2969
    %v3293 = vpack.c.b16 %v2972, %v2971
    %v3294 = vpack.c.b16 %v2974, %v2973
    %v3295 = vpack.c.b16 %v2976, %v2975
    %v3296 = vpack.c.b16 %v2978, %v2977
    %v3297 = vpack.c.b16 %v2980, %v2979
    %v3298 = vpack.c.b16 %v2982, %v2981
    %v3299 = vpack.c.b16 %v2984, %v2983
    %v3300 = vpack.c.b16 %v2986, %v2985
    %v3301 = vpack.c.b16 %v2988, %v2987
    %v3302 = vpack.c.b16 %v2990, %v2989
    %v3303 = vpack.c.b16 %v2992, %v2991
    %v3304 = vpack.c.b16 %v2994, %v2993
    %v3305 = vpack.c.b16 %v2996, %v2995
    %v3306 = vpack.c.b16 %v2998, %v2997
    %v3307 = vpack.c.b16 %v3000, %v2999
    %v3308 = vpack.c.b16 %v3002, %v3001
    %v3309 = vpack.c.b16 %v3004, %v3003
    %v3310 = vpack.c.b16 %v3006, %v3005
    %v3311 = vpack.c.b16 %v3008, %v3007
    %v3312 = vpack.c.b16 %v3010, %v3009
    %v3313 = vpack.c.b16 %v3012, %v3011
    %v3314 = vpack.c.b16 %v3014, %v3013
    %v3315 = vpack.c.b16 %v3016, %v3015
    %v3316 = vpack.c.b16 %v3018, %v3017
    %v3317 = vpack.c.b16 %v3020, %v3019
    %v3318 = vpack.c.b16 %v3022, %v3021
    %v3319 = vpack.c.b16 %v3024, %v3023
    %v3320 = vpack.c.b16 %v3026, %v3025
    %v3321 = vpack.c.b16 %v3028, %v3027
    %v3322 = vpack.c.b16 %v3030, %v3029
    %v3323 = vpack.c.b16 %v3032, %v3031
    %v3324 = vpack.c.b16 %v3034, %v3033
    %v3325 = vpack.c.b16 %v3036, %v3035
    %v3326 = vpack.c.b16 %v3038, %v3037
    %v3327 = vpack.c.b16 %v3040, %v3039
    %v3328 = vpack.c.b16 %v3042, %v3041
    %v3329 = vpack.c.b16 %v3044, %v3043
    %v3330 = vpack.c.b16 %v3046, %v3045
    %v3331 = vpack.c.b16 %v3048, %v3047
    %v3332 = vpack.c.b16 %v3050, %v3049
    %v3333 = vpack.c.b16 %v3052, %v3051
    %v3334 = vpack.c.b16 %v3054, %v3053
    %v3335 = vpack.c.b16 %v3056, %v3055
    %v3336 = vpack.c.b16 %v3058, %v3057
    %v3337 = vpack.c.b16 %v3060, %v3059
    %v3338 = vpack.c.b16 %v3062, %v3061
    %v3339 = vpack.c.b16 %v3064, %v3063
    %v3340 = vpack.c.b16 %v3066, %v3065
    %v3341 = vpack.c.b16 %v3068, %v3067
    %v3342 = vpack.c.b16 %v3070, %v3069
    %v3343 = vpack.c.b16 %v3072, %v3071
    %v3344 = vpack.c.b16 %v3074, %v3073
    %v3345 = vpack.c.b16 %v3076, %v3075
    %v3346 = vpack.c.b16 %v3078, %v3077
    %v3347 = vpack.c.b16 %v3080, %v3079
    %v3348 = vpack.c.b16 %v3082, %v3081
    %v3349 = vpack.c.b16 %v3084, %v3083
    %v3350 = vpack.c.b16 %v3086, %v3085
    %v3351 = vpack.c.b16 %v3088, %v3087
    %v3352 = vpack.c.b16 %v3090, %v3089
    %v3353 = vpack.c.b16 %v3092, %v3091
    %v3354 = vpack.c.b16 %v3094, %v3093
    %v3355 = vpack.c.b16 %v3096, %v3095
    %v3356 = vpack.c.b16 %v3098, %v3097
    %v3357 = vpack.c.b16 %v3100, %v3099
    %v3358 = vpack.c.b16 %v3102, %v3101
    %v3359 = vpack.c.b16 %v3104, %v3103
    %v3360 = vpack.c.b16 %v3106, %v3105
    %v3361 = vpack.c.b16 %v3108, %v3107
    %v3362 = vpack.c.b16 %v3110, %v3109
    %v3363 = vpack.c.b16 %v3112, %v3111
    %v3364 = vpack.c.b16 %v3114, %v3113
    %v3365 = vpack.c.b16 %v3116, %v3115
    %v3366 = vpack.c.b16 %v3118, %v3117
    %v3367 = vpack.c.b16 %v3120, %v3119
    %v3368 = vpack.c.b16 %v3122, %v3121
    %v3369 = vpack.c.b16 %v3124, %v3123
    %v3370 = vpack.c.b16 %v3126, %v3125
    %v3371 = vpack.c.b16 %v3128, %v3127
    %v3372 = vpack.c.b16 %v3130, %v3129
    %v3373 = vpack.c.b16 %v3132, %v3131
    %v3374 = vpack.c.b16 %v3134, %v3133
    %v3375 = vpack.c.b16 %v3136, %v3135
    %v3376 = vpack.c.b16 %v3138, %v3137
    %v3377 = vpack.c.b16 %v3140, %v3139
    %v3378 = vpack.c.b16 %v3142, %v3141
    %v3379 = vpack.c.b16 %v3144, %v3143
    %v3380 = vpack.c.b16 %v3146, %v3145
    %v3381 = vpack.c.b16 %v3148, %v3147
    %v3382 = vpack.c.b16 %v3150, %v3149
    %v3383 = vpack.c.b16 %v3152, %v3151
    %v3384 = vpack.c.b16 %v3154, %v3153
    %v3385 = vpack.c.b16 %v3156, %v3155
    %v3386 = vpack.c.b16 %v3158, %v3157
    %v3387 = vpack.c.b16 %v3160, %v3159
    %v3388 = vpack.c.b16 %v3162, %v3161
    %v3389 = vpack.c.b16 %v3164, %v3163
    %v3390 = vpack.c.b16 %v3166, %v3165
    %v3391 = vpack.c.b16 %v3168, %v3167
    %v3392 = vpack.c.b16 %v3170, %v3169
    %v3393 = vpack.c.b16 %v3172, %v3171
    %v3394 = vpack.c.b16 %v3174, %v3173
    %v3395 = vpack.c.b16 %v3176, %v3175
    %v3396 = vpack.c.b16 %v3178, %v3177
    %v3397 = vpack.c.b16 %v3180, %v3179
    %v3398 = vpack.c.b16 %v3182, %v3181
    %v3399 = vpack.c.b16 %v3184, %v3183
    %v3400 = vpack.c.b16 %v3186, %v3185
    %v3401 = vpack.c.b16 %v3188, %v3187
    %v3402 = vpack.c.b16 %v3190, %v3189
    %v3403 = vpack.c.b16 %v3192, %v3191
    %v3404 = vpack.c.b16 %v3194, %v3193
    %v3405 = vpack.c.b16 %v3196, %v3195
    %v3406 = vpack.c.b16 %v3198, %v3197
    %v3407 = vpack.c.b16 %v3200, %v3199
    %v3408 = vpack.c.b16 %v3202, %v3201
    %v3409 = vpack.c.b16 %v3204, %v3203
    %v3410 = vpack.c.b16 %v3206, %v3205
    %v3411 = vpack.c.b16 %v3208, %v3207
    %v3412 = vpack.c.b16 %v3210, %v3209
    %v3413 = vpack.c.b16 %v3212, %v3211
    %v3414 = vpack.c.b16 %v3214, %v3213
    %v3415 = vpack.c.b16 %v3216, %v3215
    %v3416 = vpack.c.b16 %v3218, %v3217
    %v3417 = vpack.c.b16 %v3220, %v3219
    %v3418 = vpack.c.b16 %v3222, %v3221
    %v3615 = vsel %vm1662, %v2414, 0
    %3617 = vmatpush.bf16.msra.mxu0 %v3230
    %3618 = vmatpush.bf16.msra.mxu0 %v3229
    %3619 = vmatpush.bf16.msra.mxu0 %v3228
    %3620 = vmatpush.bf16.msra.mxu0 %v3227
    %3621 = vmatpush.bf16.msra.mxu0 %v3226
    %3622 = vmatpush.bf16.msra.mxu0 %v3225
    %3623 = vmatpush.bf16.msra.mxu0 %v3224
    %3624 = vmatpush.bf16.msra.mxu0 %v3223
    %3625 = vmatmul.bf16.gmra.mxu0 %v2387
    %v3626 = vpop.f32.mrf.mxu0
    %v3627 = vadd.f32 %v2384, %v3626
    %v3628 = vpop.f32.mrf.mxu0
    %3629 = vdwg.mxu0
    %3630 = vmatpush.bf16.msra.mxu0 %v3238
    %3631 = vmatpush.bf16.msra.mxu0 %v3237
    %3632 = vmatpush.bf16.msra.mxu0 %v3236
    %3633 = vmatpush.bf16.msra.mxu0 %v3235
    %3634 = vmatpush.bf16.msra.mxu0 %v3234
    %3635 = vmatpush.bf16.msra.mxu0 %v3233
    %3636 = vmatpush.bf16.msra.mxu0 %v3232
    %3637 = vmatpush.bf16.msra.mxu0 %v3231
    %3638 = vmatmul.bf16.gmra.mxu0 %v2388
    %v3639 = vpop.f32.mrf.mxu0
    %v3640 = vadd.f32 %v3627, %v3639
    %v3641 = vpop.f32.mrf.mxu0
    %3642 = vdwg.mxu0
    %3643 = vmatpush.bf16.msra.mxu0 %v3246
    %3644 = vmatpush.bf16.msra.mxu0 %v3245
    %3645 = vmatpush.bf16.msra.mxu0 %v3244
    %3646 = vmatpush.bf16.msra.mxu0 %v3243
    %3647 = vmatpush.bf16.msra.mxu0 %v3242
    %3648 = vmatpush.bf16.msra.mxu0 %v3241
    %3649 = vmatpush.bf16.msra.mxu0 %v3240
    %3650 = vmatpush.bf16.msra.mxu0 %v3239
    %3651 = vmatmul.bf16.gmra.mxu0 %v2389
    %v3652 = vpop.f32.mrf.mxu0
    %v3653 = vadd.f32 %v3640, %v3652
    %v3654 = vpop.f32.mrf.mxu0
    %3655 = vdwg.mxu0
    %3656 = vmatpush.bf16.msra.mxu0 %v3254
    %3657 = vmatpush.bf16.msra.mxu0 %v3253
    %3658 = vmatpush.bf16.msra.mxu0 %v3252
    %3659 = vmatpush.bf16.msra.mxu0 %v3251
    %3660 = vmatpush.bf16.msra.mxu0 %v3250
    %3661 = vmatpush.bf16.msra.mxu0 %v3249
    %3662 = vmatpush.bf16.msra.mxu0 %v3248
    %3663 = vmatpush.bf16.msra.mxu0 %v3247
    %3664 = vmatmul.bf16.gmra.mxu0 %v2390
    %v3665 = vpop.f32.mrf.mxu0
    %v3666 = vadd.f32 %v3653, %v3665
    %v3667 = vpop.f32.mrf.mxu0
    %3668 = vdwg.mxu0
    %3669 = vmatpush.bf16.msra.mxu0 %v3262
    %3670 = vmatpush.bf16.msra.mxu0 %v3261
    %3671 = vmatpush.bf16.msra.mxu0 %v3260
    %3672 = vmatpush.bf16.msra.mxu0 %v3259
    %3673 = vmatpush.bf16.msra.mxu0 %v3258
    %3674 = vmatpush.bf16.msra.mxu0 %v3257
    %3675 = vmatpush.bf16.msra.mxu0 %v3256
    %3676 = vmatpush.bf16.msra.mxu0 %v3255
    %3677 = vmatmul.bf16.gmra.mxu0 %v2391
    %v3678 = vpop.f32.mrf.mxu0
    %v3679 = vadd.f32 %v3666, %v3678
    %v3680 = vpop.f32.mrf.mxu0
    %3681 = vdwg.mxu0
    %3682 = vmatpush.bf16.msra.mxu0 %v3270
    %3683 = vmatpush.bf16.msra.mxu0 %v3269
    %3684 = vmatpush.bf16.msra.mxu0 %v3268
    %3685 = vmatpush.bf16.msra.mxu0 %v3267
    %3686 = vmatpush.bf16.msra.mxu0 %v3266
    %3687 = vmatpush.bf16.msra.mxu0 %v3265
    %3688 = vmatpush.bf16.msra.mxu0 %v3264
    %3689 = vmatpush.bf16.msra.mxu0 %v3263
    %3690 = vmatmul.bf16.gmra.mxu0 %v2392
    %v3691 = vpop.f32.mrf.mxu0
    %v3692 = vadd.f32 %v3679, %v3691
    %v3693 = vpop.f32.mrf.mxu0
    %3694 = vdwg.mxu0
    %3695 = vmatpush.bf16.msra.mxu0 %v3278
    %3696 = vmatpush.bf16.msra.mxu0 %v3277
    %3697 = vmatpush.bf16.msra.mxu0 %v3276
    %3698 = vmatpush.bf16.msra.mxu0 %v3275
    %3699 = vmatpush.bf16.msra.mxu0 %v3274
    %3700 = vmatpush.bf16.msra.mxu0 %v3273
    %3701 = vmatpush.bf16.msra.mxu0 %v3272
    %3702 = vmatpush.bf16.msra.mxu0 %v3271
    %3703 = vmatmul.bf16.gmra.mxu0 %v2393
    %v3704 = vpop.f32.mrf.mxu0
    %v3705 = vadd.f32 %v3692, %v3704
    %v3706 = vpop.f32.mrf.mxu0
    %3707 = vdwg.mxu0
    %3708 = vmatpush.bf16.msra.mxu0 %v3286
    %3709 = vmatpush.bf16.msra.mxu0 %v3285
    %3710 = vmatpush.bf16.msra.mxu0 %v3284
    %3711 = vmatpush.bf16.msra.mxu0 %v3283
    %3712 = vmatpush.bf16.msra.mxu0 %v3282
    %3713 = vmatpush.bf16.msra.mxu0 %v3281
    %3714 = vmatpush.bf16.msra.mxu0 %v3280
    %3715 = vmatpush.bf16.msra.mxu0 %v3279
    %3716 = vmatmul.bf16.gmra.mxu0 %v2394
    %v3717 = vpop.f32.mrf.mxu0
    %v3718 = vadd.f32 %v3705, %v3717
    %v3719 = vpop.f32.mrf.mxu0
    %3720 = vdwg.mxu0
    %3721 = vmatpush.bf16.msra.mxu0 %v3294
    %3722 = vmatpush.bf16.msra.mxu0 %v3293
    %3723 = vmatpush.bf16.msra.mxu0 %v3292
    %3724 = vmatpush.bf16.msra.mxu0 %v3291
    %3725 = vmatpush.bf16.msra.mxu0 %v3290
    %3726 = vmatpush.bf16.msra.mxu0 %v3289
    %3727 = vmatpush.bf16.msra.mxu0 %v3288
    %3728 = vmatpush.bf16.msra.mxu0 %v3287
    %3729 = vmatmul.bf16.gmra.mxu0 %v2396
    %v3730 = vpop.f32.mrf.mxu0
    %v3731 = vadd.f32 %v3718, %v3730
    %v3732 = vpop.f32.mrf.mxu0
    %3733 = vdwg.mxu0
    %3734 = vmatpush.bf16.msra.mxu0 %v3302
    %3735 = vmatpush.bf16.msra.mxu0 %v3301
    %3736 = vmatpush.bf16.msra.mxu0 %v3300
    %3737 = vmatpush.bf16.msra.mxu0 %v3299
    %3738 = vmatpush.bf16.msra.mxu0 %v3298
    %3739 = vmatpush.bf16.msra.mxu0 %v3297
    %3740 = vmatpush.bf16.msra.mxu0 %v3296
    %3741 = vmatpush.bf16.msra.mxu0 %v3295
    %3742 = vmatmul.bf16.gmra.mxu0 %v2397
    %v3743 = vpop.f32.mrf.mxu0
    %v3744 = vadd.f32 %v3731, %v3743
    %v3745 = vpop.f32.mrf.mxu0
    %3746 = vdwg.mxu0
    %3747 = vmatpush.bf16.msra.mxu0 %v3310
    %3748 = vmatpush.bf16.msra.mxu0 %v3309
    %3749 = vmatpush.bf16.msra.mxu0 %v3308
    %3750 = vmatpush.bf16.msra.mxu0 %v3307
    %3751 = vmatpush.bf16.msra.mxu0 %v3306
    %3752 = vmatpush.bf16.msra.mxu0 %v3305
    %3753 = vmatpush.bf16.msra.mxu0 %v3304
    %3754 = vmatpush.bf16.msra.mxu0 %v3303
    %3755 = vmatmul.bf16.gmra.mxu0 %v2398
    %v3756 = vpop.f32.mrf.mxu0
    %v3757 = vadd.f32 %v3744, %v3756
    %v3758 = vpop.f32.mrf.mxu0
    %3759 = vdwg.mxu0
    %3760 = vmatpush.bf16.msra.mxu0 %v3318
    %3761 = vmatpush.bf16.msra.mxu0 %v3317
    %3762 = vmatpush.bf16.msra.mxu0 %v3316
    %3763 = vmatpush.bf16.msra.mxu0 %v3315
    %3764 = vmatpush.bf16.msra.mxu0 %v3314
    %3765 = vmatpush.bf16.msra.mxu0 %v3313
    %3766 = vmatpush.bf16.msra.mxu0 %v3312
    %3767 = vmatpush.bf16.msra.mxu0 %v3311
    %3768 = vmatmul.bf16.gmra.mxu0 %v2399
    %v3769 = vpop.f32.mrf.mxu0
    %v3770 = vadd.f32 %v3757, %v3769
    %v3771 = vpop.f32.mrf.mxu0
    %3772 = vdwg.mxu0
    %3773 = vmatpush.bf16.msra.mxu0 %v3326
    %3774 = vmatpush.bf16.msra.mxu0 %v3325
    %3775 = vmatpush.bf16.msra.mxu0 %v3324
    %3776 = vmatpush.bf16.msra.mxu0 %v3323
    %3777 = vmatpush.bf16.msra.mxu0 %v3322
    %3778 = vmatpush.bf16.msra.mxu0 %v3321
    %3779 = vmatpush.bf16.msra.mxu0 %v3320
    %3780 = vmatpush.bf16.msra.mxu0 %v3319
    %3781 = vmatmul.bf16.gmra.mxu0 %v2400
    %v3782 = vpop.f32.mrf.mxu0
    %v3783 = vadd.f32 %v3770, %v3782
    %v3784 = vpop.f32.mrf.mxu0
    %3785 = vdwg.mxu0
    %3786 = vmatpush.bf16.msra.mxu0 %v3334
    %3787 = vmatpush.bf16.msra.mxu0 %v3333
    %3788 = vmatpush.bf16.msra.mxu0 %v3332
    %3789 = vmatpush.bf16.msra.mxu0 %v3331
    %3790 = vmatpush.bf16.msra.mxu0 %v3330
    %3791 = vmatpush.bf16.msra.mxu0 %v3329
    %3792 = vmatpush.bf16.msra.mxu0 %v3328
    %3793 = vmatpush.bf16.msra.mxu0 %v3327
    %3794 = vmatmul.bf16.gmra.mxu0 %v2401
    %v3795 = vpop.f32.mrf.mxu0
    %v3796 = vadd.f32 %v3783, %v3795
    %v3797 = vpop.f32.mrf.mxu0
    %3798 = vdwg.mxu0
    %3799 = vmatpush.bf16.msra.mxu0 %v3342
    %3800 = vmatpush.bf16.msra.mxu0 %v3341
    %3801 = vmatpush.bf16.msra.mxu0 %v3340
    %3802 = vmatpush.bf16.msra.mxu0 %v3339
    %3803 = vmatpush.bf16.msra.mxu0 %v3338
    %3804 = vmatpush.bf16.msra.mxu0 %v3337
    %3805 = vmatpush.bf16.msra.mxu0 %v3336
    %3806 = vmatpush.bf16.msra.mxu0 %v3335
    %3807 = vmatmul.bf16.gmra.mxu0 %v2402
    %v3808 = vpop.f32.mrf.mxu0
    %v3809 = vadd.f32 %v3796, %v3808
    %v3810 = vpop.f32.mrf.mxu0
    %3811 = vdwg.mxu0
    %3812 = vmatpush.bf16.msra.mxu0 %v3350
    %3813 = vmatpush.bf16.msra.mxu0 %v3349
    %3814 = vmatpush.bf16.msra.mxu0 %v3348
    %3815 = vmatpush.bf16.msra.mxu0 %v3347
    %3816 = vmatpush.bf16.msra.mxu0 %v3346
    %3817 = vmatpush.bf16.msra.mxu0 %v3345
    %3818 = vmatpush.bf16.msra.mxu0 %v3344
    %3819 = vmatpush.bf16.msra.mxu0 %v3343
    %3820 = vmatmul.bf16.gmra.mxu0 %v2403
    %v3821 = vpop.f32.mrf.mxu0
    %v3822 = vadd.f32 %v3809, %v3821
    %v3823 = vpop.f32.mrf.mxu0
    %3824 = vdwg.mxu0
    %3825 = vmatpush.bf16.msra.mxu0 %v3358
    %3826 = vmatpush.bf16.msra.mxu0 %v3357
    %3827 = vmatpush.bf16.msra.mxu0 %v3356
    %3828 = vmatpush.bf16.msra.mxu0 %v3355
    %3829 = vmatpush.bf16.msra.mxu0 %v3354
    %3830 = vmatpush.bf16.msra.mxu0 %v3353
    %3831 = vmatpush.bf16.msra.mxu0 %v3352
    %3832 = vmatpush.bf16.msra.mxu0 %v3351
    %3833 = vmatmul.bf16.gmra.mxu0 %v2405
    %v3834 = vpop.f32.mrf.mxu0
    %v3835 = vadd.f32 %v3822, %v3834
    %v3836 = vpop.f32.mrf.mxu0
    %3837 = vdwg.mxu0
    %3838 = vmatpush.bf16.msra.mxu0 %v3366
    %3839 = vmatpush.bf16.msra.mxu0 %v3365
    %3840 = vmatpush.bf16.msra.mxu0 %v3364
    %3841 = vmatpush.bf16.msra.mxu0 %v3363
    %3842 = vmatpush.bf16.msra.mxu0 %v3362
    %3843 = vmatpush.bf16.msra.mxu0 %v3361
    %3844 = vmatpush.bf16.msra.mxu0 %v3360
    %3845 = vmatpush.bf16.msra.mxu0 %v3359
    %3846 = vmatmul.bf16.gmra.mxu0 %v2406
    %v3847 = vpop.f32.mrf.mxu0
    %v3848 = vadd.f32 %v3835, %v3847
    %v3849 = vpop.f32.mrf.mxu0
    %3850 = vdwg.mxu0
    %3851 = vmatpush.bf16.msra.mxu0 %v3374
    %3852 = vmatpush.bf16.msra.mxu0 %v3373
    %3853 = vmatpush.bf16.msra.mxu0 %v3372
    %3854 = vmatpush.bf16.msra.mxu0 %v3371
    %3855 = vmatpush.bf16.msra.mxu0 %v3370
    %3856 = vmatpush.bf16.msra.mxu0 %v3369
    %3857 = vmatpush.bf16.msra.mxu0 %v3368
    %3858 = vmatpush.bf16.msra.mxu0 %v3367
    %3859 = vmatmul.bf16.gmra.mxu0 %v2407
    %v3860 = vpop.f32.mrf.mxu0
    %v3861 = vadd.f32 %v3848, %v3860
    %v3862 = vpop.f32.mrf.mxu0
    %3863 = vdwg.mxu0
    %3864 = vmatpush.bf16.msra.mxu0 %v3382
    %3865 = vmatpush.bf16.msra.mxu0 %v3381
    %3866 = vmatpush.bf16.msra.mxu0 %v3380
    %3867 = vmatpush.bf16.msra.mxu0 %v3379
    %3868 = vmatpush.bf16.msra.mxu0 %v3378
    %3869 = vmatpush.bf16.msra.mxu0 %v3377
    %3870 = vmatpush.bf16.msra.mxu0 %v3376
    %3871 = vmatpush.bf16.msra.mxu0 %v3375
    %3872 = vmatmul.bf16.gmra.mxu0 %v2408
    %v3873 = vpop.f32.mrf.mxu0
    %v3874 = vadd.f32 %v3861, %v3873
    %v3875 = vpop.f32.mrf.mxu0
    %3876 = vdwg.mxu0
    %3877 = vmatpush.bf16.msra.mxu0 %v3390
    %3878 = vmatpush.bf16.msra.mxu0 %v3389
    %3879 = vmatpush.bf16.msra.mxu0 %v3388
    %3880 = vmatpush.bf16.msra.mxu0 %v3387
    %3881 = vmatpush.bf16.msra.mxu0 %v3386
    %3882 = vmatpush.bf16.msra.mxu0 %v3385
    %3883 = vmatpush.bf16.msra.mxu0 %v3384
    %3884 = vmatpush.bf16.msra.mxu0 %v3383
    %3885 = vmatmul.bf16.gmra.mxu0 %v2409
    %v3886 = vpop.f32.mrf.mxu0
    %v3887 = vadd.f32 %v3874, %v3886
    %v3888 = vpop.f32.mrf.mxu0
    %3889 = vdwg.mxu0
    %3890 = vmatpush.bf16.msra.mxu0 %v3398
    %3891 = vmatpush.bf16.msra.mxu0 %v3397
    %3892 = vmatpush.bf16.msra.mxu0 %v3396
    %3893 = vmatpush.bf16.msra.mxu0 %v3395
    %3894 = vmatpush.bf16.msra.mxu0 %v3394
    %3895 = vmatpush.bf16.msra.mxu0 %v3393
    %3896 = vmatpush.bf16.msra.mxu0 %v3392
    %3897 = vmatpush.bf16.msra.mxu0 %v3391
    %3898 = vmatmul.bf16.gmra.mxu0 %v2410
    %v3899 = vpop.f32.mrf.mxu0
    %v3900 = vadd.f32 %v3887, %v3899
    %v3901 = vpop.f32.mrf.mxu0
    %3902 = vdwg.mxu0
    %3903 = vmatpush.bf16.msra.mxu0 %v3406
    %3904 = vmatpush.bf16.msra.mxu0 %v3405
    %3905 = vmatpush.bf16.msra.mxu0 %v3404
    %3906 = vmatpush.bf16.msra.mxu0 %v3403
    %3907 = vmatpush.bf16.msra.mxu0 %v3402
    %3908 = vmatpush.bf16.msra.mxu0 %v3401
    %3909 = vmatpush.bf16.msra.mxu0 %v3400
    %3910 = vmatpush.bf16.msra.mxu0 %v3399
    %3911 = vmatmul.bf16.gmra.mxu0 %v2411
    %v3912 = vpop.f32.mrf.mxu0
    %v3913 = vadd.f32 %v3900, %v3912
    %v3914 = vpop.f32.mrf.mxu0
    %3915 = vdwg.mxu0
    %3916 = vmatpush.bf16.msra.mxu0 %v3414
    %3917 = vmatpush.bf16.msra.mxu0 %v3413
    %3918 = vmatpush.bf16.msra.mxu0 %v3412
    %3919 = vmatpush.bf16.msra.mxu0 %v3411
    %3920 = vmatpush.bf16.msra.mxu0 %v3410
    %3921 = vmatpush.bf16.msra.mxu0 %v3409
    %3922 = vmatpush.bf16.msra.mxu0 %v3408
    %3923 = vmatpush.bf16.msra.mxu0 %v3407
    %3924 = vmatmul.bf16.gmra.mxu0 %v2412
    %v3925 = vpop.f32.mrf.mxu0
    %v3926 = vadd.f32 %v3913, %v3925
    %v3927 = vpop.f32.mrf.mxu0
    %3928 = vdwg.mxu0
    %3929 = vmatpush.bf16.msra.mxu0 0
    %3930 = vmatpush.bf16.msra.mxu0 0
    %3931 = vmatpush.bf16.msra.mxu0 0
    %3932 = vmatpush.bf16.msra.mxu0 0
    %3933 = vmatpush.bf16.msra.mxu0 %v3418
    %3934 = vmatpush.bf16.msra.mxu0 %v3417
    %3935 = vmatpush.bf16.msra.mxu0 %v3416
    %3936 = vmatpush.bf16.msra.mxu0 %v3415
    %3937 = vmatmul.bf16.gmra.mxu0 %v3615
    %v3938 = vpop.f32.mrf.mxu0
    %v3939 = vadd.f32 %v3926, %v3938
    %v3940 = vpop.f32.mrf.mxu0
    %3941 = vdwg.mxu0
    %vm3942 = vcmask 123904
    %3943 = vst.msk [vmem:[#allocation2] sm:$0x3] %vm3942, %v1987
    %3944 = vst.msk [vmem:[#allocation4] sm:$0x3] %vm3942, %v3939
    %v3945 = vld [vmem:[%s5] sm:$0x3]
    %v3946 = vmul.f32 %v3939, 0.5
    %v3947 = vmul.f32 %v3946, 1.442695
    %v3948 = vpow.pop %v3947
    %v3949 = vmul.f32 %v3945, %v3948
    %v3950 = vadd.f32 %v1987, %v3949
    %3951 = vst.msk [vmem:[%s8] sm:$0x3] %vm3942, %v3950
    // Predicated region
    $region26: #{vae_forward.12} parent=1 // pred_check
      _
    $region27: #{vae_forward.12} parent=1 // pred_check_branch
      %3953 = sbr.rel (0) target = $region29
    $region28: #{vae_forward.12} parent=1 // pred_region
      %3955 = vsyncadd [#allocation3], 0
      %s3957 = sshll.u32 [#allocation2], 4
      %s3958 = int_to_ptr.vmem [resolvable:$true] %s3957
      %s3959 = sshll.u32 %s6, 4
      %s3960 = int_to_ptr.hbm [resolvable:$true] %s3959
      %3962 = dma.vmem_to_hbm [thread:$0]  %s3958, 32, %s3960, [#allocation3]
    $region29: #{vae_forward.12} parent=1 // pred_fallthru
      _
    // Predicated region
    $region30: #{vae_forward.12} parent=1 // pred_check
      _
    $region31: #{vae_forward.12} parent=1 // pred_check_branch
      %3964 = sbr.rel (0) target = $region33
    $region32: #{vae_forward.12} parent=1 // pred_region
      %3966 = vsyncadd [#allocation5], 0
      %s3968 = sshll.u32 [#allocation4], 4
      %s3969 = int_to_ptr.vmem [resolvable:$true] %s3968
      %s3970 = sshll.u32 %s7, 4
      %s3971 = int_to_ptr.hbm [resolvable:$true] %s3970
      %3973 = dma.vmem_to_hbm [thread:$0]  %s3969, 32, %s3971, [#allocation5]
    $region33: #{vae_forward.12} parent=1 // pred_fallthru
      _
    // Predicated region
    $region34: #{vae_forward.12} parent=1 // pred_check
      _
    $region35: #{vae_forward.12} parent=1 // pred_check_branch
      %3975 = sbr.rel (0) target = $region37
    $region36: #{vae_forward.12} parent=1 // pred_region
      _
    $region37: #{vae_forward.12} parent=1 // pred_fallthru
      _
    // Predicated region
    $region38: #{vae_forward.12} parent=1 // pred_check
      _
    $region39: #{vae_forward.12} parent=1 // pred_check_branch
      %3977 = sbr.rel (0) target = $region41
    $region40: #{vae_forward.12} parent=1 // pred_region
      %3979 = dma.done [#allocation3], 32
    $region41: #{vae_forward.12} parent=1 // pred_fallthru
      _
    // Predicated region
    $region42: #{vae_forward.12} parent=1 // pred_check
      _
    $region43: #{vae_forward.12} parent=1 // pred_check_branch
      %3981 = sbr.rel (0) target = $region45
    $region44: #{vae_forward.12} parent=1 // pred_region
      %3983 = dma.done [#allocation5], 32
    $region45: #{vae_forward.12} parent=1 // pred_fallthru
      _
    // Predicated region
    $region46: #{vae_forward.12} parent=1 // pred_check
      _
    $region47: #{vae_forward.12} parent=1 // pred_check_branch
      %3985 = sbr.rel (0) target = $region49
    $region48: #{vae_forward.12} parent=1 // pred_region
      _
    $region49: #{vae_forward.12} parent=1 // pred_fallthru
      _
    %3986 = vsyncpa [#allocation3], 1
    %3987 = vsyncpa [#allocation5], 1

// kernel: vae_forward.15
$region0: #{vae_forward.15}
  #allocation0 [shape = 'u32[]', space=smem, size = 0x4, offset = 0x4, fixed_abs, tag = 'smem constant byte address 0x4 - core index']
  #allocation1 [shape = 'u32[72,128]{1,0:T(1,128)}', space=vmem, size = 0x9000, scoped, tag = 'internal scratch']
  %s0 = inlined_call_operand.vmem [shape: f32[392,32], index: 0, kind: input, shape index: {}]
  %s1 = inlined_call_operand.vmem [shape: f32[1,32], index: 1, kind: input, shape index: {}]
  %s2 = inlined_call_operand.vmem [shape: bf16[32,512], index: 2, kind: input, shape index: {}]
  %s3 = inlined_call_operand.vmem [shape: f32[392,512], index: 3, kind: output, shape index: {}]
  %s4 = sld [smem:[#allocation0]]
  $region22: #{vae_forward.15} parent=0
    _
  %s6 = ssub.s32 1, %s4
  %s7 = scalar_select 0, %s6, %s4
  // Predicated region
  $region2: #{vae_forward.15} parent=0 // pred_check
    _
  $region3: #{vae_forward.15} parent=0 // pred_check_branch
    %9 = sbr.rel (0) target = $region5
  $region4: #{vae_forward.15} parent=0 // pred_region
    _
  $region5: #{vae_forward.15} parent=0 // pred_fallthru
    _
  // Predicated region
  $region6: #{vae_forward.15} parent=0 // pred_check
    _
  $region7: #{vae_forward.15} parent=0 // pred_check_branch
    %11 = sbr.rel (0) target = $region9
  $region8: #{vae_forward.15} parent=0 // pred_region
    _
  $region9: #{vae_forward.15} parent=0 // pred_fallthru
    _
  // Predicated region
  $region10: #{vae_forward.15} parent=0 // pred_check
    _
  $region11: #{vae_forward.15} parent=0 // pred_check_branch
    %13 = sbr.rel (0) target = $region13
  $region12: #{vae_forward.15} parent=0 // pred_region
    _
  $region13: #{vae_forward.15} parent=0 // pred_fallthru
    _
  %v15 = vld [vmem:[%s0] sm:$0xff]
  %v16 = vld [vmem:[%s0 + $0x8] sm:$0xff]
  %v17 = vld [vmem:[%s0 + $0x10] sm:$0xff]
  %v18 = vld [vmem:[%s0 + $0x18] sm:$0xff]
  %v19 = vld [vmem:[%s0 + $0x20] sm:$0xff]
  %v20 = vld [vmem:[%s0 + $0x28] sm:$0xff]
  %v21 = vld [vmem:[%s0 + $0x30] sm:$0xff]
  %v22 = vld [vmem:[%s0 + $0x38] sm:$0xff]
  %v23 = vld [vmem:[%s0 + $0x40] sm:$0xff]
  %v24 = vld [vmem:[%s0 + $0x48] sm:$0xff]
  %v25 = vld [vmem:[%s0 + $0x50] sm:$0xff]
  %v26 = vld [vmem:[%s0 + $0x58] sm:$0xff]
  %v27 = vld [vmem:[%s0 + $0x60] sm:$0xff]
  %v28 = vld [vmem:[%s0 + $0x68] sm:$0xff]
  %v29 = vld [vmem:[%s0 + $0x70] sm:$0xff]
  %v30 = vld [vmem:[%s0 + $0x78] sm:$0xff]
  %v31 = vld [vmem:[%s0 + $0x80] sm:$0xff]
  %v32 = vld [vmem:[%s0 + $0x88] sm:$0xff]
  %v33 = vld [vmem:[%s0 + $0x90] sm:$0xff]
  %v34 = vld [vmem:[%s0 + $0x98] sm:$0xff]
  %v35 = vld [vmem:[%s0 + $0xa0] sm:$0xff]
  %v36 = vld [vmem:[%s0 + $0xa8] sm:$0xff]
  %v37 = vld [vmem:[%s0 + $0xb0] sm:$0xff]
  %v38 = vld [vmem:[%s0 + $0xb8] sm:$0xff]
  %v39 = vld [vmem:[%s0 + $0xc0] sm:$0xff]
  %v40 = vld [vmem:[%s0 + $0xc8] sm:$0xff]
  %v41 = vld [vmem:[%s0 + $0xd0] sm:$0xff]
  %v42 = vld [vmem:[%s0 + $0xd8] sm:$0xff]
  %v43 = vld [vmem:[%s0 + $0xe0] sm:$0xff]
  %v44 = vld [vmem:[%s0 + $0xe8] sm:$0xff]
  %v45 = vld [vmem:[%s0 + $0xf0] sm:$0xff]
  %v46 = vld [vmem:[%s0 + $0xf8] sm:$0xff]
  %v47 = vld [vmem:[%s0 + $0x100] sm:$0xff]
  %v48 = vld [vmem:[%s0 + $0x108] sm:$0xff]
  %v49 = vld [vmem:[%s0 + $0x110] sm:$0xff]
  %v50 = vld [vmem:[%s0 + $0x118] sm:$0xff]
  %v51 = vld [vmem:[%s0 + $0x120] sm:$0xff]
  %v52 = vld [vmem:[%s0 + $0x128] sm:$0xff]
  %v53 = vld [vmem:[%s0 + $0x130] sm:$0xff]
  %v54 = vld [vmem:[%s0 + $0x138] sm:$0xff]
  %v55 = vld [vmem:[%s0 + $0x140] sm:$0xff]
  %v56 = vld [vmem:[%s0 + $0x148] sm:$0xff]
  %v57 = vld [vmem:[%s0 + $0x150] sm:$0xff]
  %v58 = vld [vmem:[%s0 + $0x158] sm:$0xff]
  %v59 = vld [vmem:[%s0 + $0x160] sm:$0xff]
  %v60 = vld [vmem:[%s0 + $0x168] sm:$0xff]
  %v61 = vld [vmem:[%s0 + $0x170] sm:$0xff]
  %v62 = vld [vmem:[%s0 + $0x178] sm:$0xff]
  %v63 = vld [vmem:[%s0 + $0x180] sm:$0xff]
  %v64 = vld [vmem:[%s1] sm:$0x1]
  %v66 = vperm.slane %v64, 0
  %v68 = vadd.f32 %v15, %v66
  %v69 = vadd.f32 %v16, %v66
  %v70 = vadd.f32 %v17, %v66
  %v71 = vadd.f32 %v18, %v66
  %v72 = vadd.f32 %v19, %v66
  %v73 = vadd.f32 %v20, %v66
  %v74 = vadd.f32 %v21, %v66
  %v75 = vadd.f32 %v22, %v66
  %v76 = vadd.f32 %v23, %v66
  %v77 = vadd.f32 %v24, %v66
  %v78 = vadd.f32 %v25, %v66
  %v79 = vadd.f32 %v26, %v66
  %v80 = vadd.f32 %v27, %v66
  %v81 = vadd.f32 %v28, %v66
  %v82 = vadd.f32 %v29, %v66
  %v83 = vadd.f32 %v30, %v66
  %v84 = vadd.f32 %v31, %v66
  %v85 = vadd.f32 %v32, %v66
  %v86 = vadd.f32 %v33, %v66
  %v87 = vadd.f32 %v34, %v66
  %v88 = vadd.f32 %v35, %v66
  %v89 = vadd.f32 %v36, %v66
  %v90 = vadd.f32 %v37, %v66
  %v91 = vadd.f32 %v38, %v66
  %v92 = vadd.f32 %v39, %v66
  %v93 = vadd.f32 %v40, %v66
  %v94 = vadd.f32 %v41, %v66
  %v95 = vadd.f32 %v42, %v66
  %v96 = vadd.f32 %v43, %v66
  %v97 = vadd.f32 %v44, %v66
  %v98 = vadd.f32 %v45, %v66
  %v99 = vadd.f32 %v46, %v66
  %v100 = vadd.f32 %v47, %v66
  %v101 = vadd.f32 %v48, %v66
  %v102 = vadd.f32 %v49, %v66
  %v103 = vadd.f32 %v50, %v66
  %v104 = vadd.f32 %v51, %v66
  %v105 = vadd.f32 %v52, %v66
  %v106 = vadd.f32 %v53, %v66
  %v107 = vadd.f32 %v54, %v66
  %v108 = vadd.f32 %v55, %v66
  %v109 = vadd.f32 %v56, %v66
  %v110 = vadd.f32 %v57, %v66
  %v111 = vadd.f32 %v58, %v66
  %v112 = vadd.f32 %v59, %v66
  %v113 = vadd.f32 %v60, %v66
  %v114 = vadd.f32 %v61, %v66
  %v115 = vadd.f32 %v62, %v66
  %v116 = vadd.f32 %v63, %v66
  %v117 = vmax.f32 %v68, 0.0
  %v118 = vmax.f32 %v69, 0.0
  %v119 = vmax.f32 %v70, 0.0
  %v120 = vmax.f32 %v71, 0.0
  %v121 = vmax.f32 %v72, 0.0
  %v122 = vmax.f32 %v73, 0.0
  %v123 = vmax.f32 %v74, 0.0
  %v124 = vmax.f32 %v75, 0.0
  %v125 = vmax.f32 %v76, 0.0
  %v126 = vmax.f32 %v77, 0.0
  %v127 = vmax.f32 %v78, 0.0
  %v128 = vmax.f32 %v79, 0.0
  %v129 = vmax.f32 %v80, 0.0
  %v130 = vmax.f32 %v81, 0.0
  %v131 = vmax.f32 %v82, 0.0
  %v132 = vmax.f32 %v83, 0.0
  %v133 = vmax.f32 %v84, 0.0
  %v134 = vmax.f32 %v85, 0.0
  %v135 = vmax.f32 %v86, 0.0
  %v136 = vmax.f32 %v87, 0.0
  %v137 = vmax.f32 %v88, 0.0
  %v138 = vmax.f32 %v89, 0.0
  %v139 = vmax.f32 %v90, 0.0
  %v140 = vmax.f32 %v91, 0.0
  %v141 = vmax.f32 %v92, 0.0
  %v142 = vmax.f32 %v93, 0.0
  %v143 = vmax.f32 %v94, 0.0
  %v144 = vmax.f32 %v95, 0.0
  %v145 = vmax.f32 %v96, 0.0
  %v146 = vmax.f32 %v97, 0.0
  %v147 = vmax.f32 %v98, 0.0
  %v148 = vmax.f32 %v99, 0.0
  %v149 = vmax.f32 %v100, 0.0
  %v150 = vmax.f32 %v101, 0.0
  %v151 = vmax.f32 %v102, 0.0
  %v152 = vmax.f32 %v103, 0.0
  %v153 = vmax.f32 %v104, 0.0
  %v154 = vmax.f32 %v105, 0.0
  %v155 = vmax.f32 %v106, 0.0
  %v156 = vmax.f32 %v107, 0.0
  %v157 = vmax.f32 %v108, 0.0
  %v158 = vmax.f32 %v109, 0.0
  %v159 = vmax.f32 %v110, 0.0
  %v160 = vmax.f32 %v111, 0.0
  %v161 = vmax.f32 %v112, 0.0
  %v162 = vmax.f32 %v113, 0.0
  %v163 = vmax.f32 %v114, 0.0
  %v164 = vmax.f32 %v115, 0.0
  %v165 = vmax.f32 %v116, 0.0
  %v166 = vpack.c.bf16 %v118, %v117
  %v167 = vpack.c.bf16 %v120, %v119
  %v168 = vpack.c.bf16 %v122, %v121
  %v169 = vpack.c.bf16 %v124, %v123
  %v170 = vpack.c.bf16 %v126, %v125
  %v171 = vpack.c.bf16 %v128, %v127
  %v172 = vpack.c.bf16 %v130, %v129
  %v173 = vpack.c.bf16 %v132, %v131
  %v174 = vpack.c.bf16 %v134, %v133
  %v175 = vpack.c.bf16 %v136, %v135
  %v176 = vpack.c.bf16 %v138, %v137
  %v177 = vpack.c.bf16 %v140, %v139
  %v178 = vpack.c.bf16 %v142, %v141
  %v179 = vpack.c.bf16 %v144, %v143
  %v180 = vpack.c.bf16 %v146, %v145
  %v181 = vpack.c.bf16 %v148, %v147
  %v182 = vpack.c.bf16 %v150, %v149
  %v183 = vpack.c.bf16 %v152, %v151
  %v184 = vpack.c.bf16 %v154, %v153
  %v185 = vpack.c.bf16 %v156, %v155
  %v186 = vpack.c.bf16 %v158, %v157
  %v187 = vpack.c.bf16 %v160, %v159
  %v188 = vpack.c.bf16 %v162, %v161
  %v189 = vpack.c.bf16 %v164, %v163
  %v190 = vpack.c.bf16 %v165, %v165
  %v191 = vld [vmem:[%s2] sm:$0xff]
  %v192 = vld [vmem:[%s2 + $0x8] sm:$0xff]
  %v193 = vld [vmem:[%s2 + $0x10] sm:$0xff]
  %v194 = vld [vmem:[%s2 + $0x18] sm:$0xff]
  %v195 = vld [vmem:[%s2 + $0x20] sm:$0xff]
  %v196 = vld [vmem:[%s2 + $0x28] sm:$0xff]
  %v197 = vld [vmem:[%s2 + $0x30] sm:$0xff]
  %v198 = vld [vmem:[%s2 + $0x38] sm:$0xff]
  %v207 = vunpack.c.l.b16 %v191
  %v208 = vunpack.c.h.b16 %v191
  %v209 = vunpack.c.l.b16 %v192
  %v210 = vunpack.c.h.b16 %v192
  %v211 = vunpack.c.l.b16 %v193
  %v212 = vunpack.c.h.b16 %v193
  %v213 = vunpack.c.l.b16 %v194
  %v214 = vunpack.c.h.b16 %v194
  %v215 = vunpack.c.l.b16 %v195
  %v216 = vunpack.c.h.b16 %v195
  %v217 = vunpack.c.l.b16 %v196
  %v218 = vunpack.c.h.b16 %v196
  %v219 = vunpack.c.l.b16 %v197
  %v220 = vunpack.c.h.b16 %v197
  %v221 = vunpack.c.l.b16 %v198
  %v222 = vunpack.c.h.b16 %v198
  %v223 = vpack.c.b16 %v211, %v207
  %v224 = vpack.c.b16 %v212, %v208
  %v225 = vpack.c.b16 %v213, %v209
  %v226 = vpack.c.b16 %v214, %v210
  %v227 = vpack.c.b16 %v219, %v215
  %v228 = vpack.c.b16 %v220, %v216
  %v229 = vpack.c.b16 %v221, %v217
  %v230 = vpack.c.b16 %v222, %v218
  %vm239 = vcmask 261120
  %v241 = vsel %vm239, %v166, 0
  %v244 = vsel %vm239, %v167, 0
  %v247 = vsel %vm239, %v168, 0
  %v250 = vsel %vm239, %v169, 0
  %v253 = vsel %vm239, %v170, 0
  %v256 = vsel %vm239, %v171, 0
  %v259 = vsel %vm239, %v172, 0
  %v262 = vsel %vm239, %v173, 0
  %v265 = vsel %vm239, %v174, 0
  %v268 = vsel %vm239, %v175, 0
  %v271 = vsel %vm239, %v176, 0
  %v274 = vsel %vm239, %v177, 0
  %v277 = vsel %vm239, %v178, 0
  %v280 = vsel %vm239, %v179, 0
  %v283 = vsel %vm239, %v180, 0
  %v286 = vsel %vm239, %v181, 0
  %v289 = vsel %vm239, %v182, 0
  %v292 = vsel %vm239, %v183, 0
  %v295 = vsel %vm239, %v184, 0
  %v298 = vsel %vm239, %v185, 0
  %v301 = vsel %vm239, %v186, 0
  %v304 = vsel %vm239, %v187, 0
  %v307 = vsel %vm239, %v188, 0
  %v310 = vsel %vm239, %v189, 0
  %v313 = vsel %vm239, %v190, 0
  %315 = vmatpush.bf16.msra.mxu0 0
  %316 = vmatpush.bf16.msra.mxu0 0
  %317 = vmatpush.bf16.msra.mxu0 0
  %318 = vmatpush.bf16.msra.mxu0 0
  %319 = vmatpush.bf16.msra.mxu0 0
  %320 = vmatpush.bf16.msra.mxu0 0
  %321 = vmatpush.bf16.msra.mxu0 %v227
  %322 = vmatpush.bf16.msra.mxu0 %v223
  %323 = vmatmul.bf16.gmra.mxu0 %v241
  %v324 = vpop.f32.mrf.mxu0
  %v325 = vadd.f32 0.0, %v324
  %v326 = vpop.f32.mrf.mxu0
  %v327 = vadd.f32 0.0, %v326
  %328 = vmatmul.bf16.gmra.mxu0 %v244
  %v329 = vpop.f32.mrf.mxu0
  %v330 = vadd.f32 0.0, %v329
  %v331 = vpop.f32.mrf.mxu0
  %v332 = vadd.f32 0.0, %v331
  %333 = vmatmul.bf16.gmra.mxu0 %v247
  %v334 = vpop.f32.mrf.mxu0
  %v335 = vadd.f32 0.0, %v334
  %v336 = vpop.f32.mrf.mxu0
  %v337 = vadd.f32 0.0, %v336
  %338 = vmatmul.bf16.gmra.mxu0 %v250
  %v339 = vpop.f32.mrf.mxu0
  %v340 = vadd.f32 0.0, %v339
  %v341 = vpop.f32.mrf.mxu0
  %v342 = vadd.f32 0.0, %v341
  %343 = vmatmul.bf16.gmra.mxu0 %v253
  %v344 = vpop.f32.mrf.mxu0
  %v345 = vadd.f32 0.0, %v344
  %v346 = vpop.f32.mrf.mxu0
  %v347 = vadd.f32 0.0, %v346
  %348 = vmatmul.bf16.gmra.mxu0 %v256
  %v349 = vpop.f32.mrf.mxu0
  %v350 = vadd.f32 0.0, %v349
  %v351 = vpop.f32.mrf.mxu0
  %v352 = vadd.f32 0.0, %v351
  %353 = vmatmul.bf16.gmra.mxu0 %v259
  %v354 = vpop.f32.mrf.mxu0
  %v355 = vadd.f32 0.0, %v354
  %v356 = vpop.f32.mrf.mxu0
  %v357 = vadd.f32 0.0, %v356
  %358 = vmatmul.bf16.gmra.mxu0 %v262
  %v359 = vpop.f32.mrf.mxu0
  %v360 = vadd.f32 0.0, %v359
  %v361 = vpop.f32.mrf.mxu0
  %v362 = vadd.f32 0.0, %v361
  %363 = vmatmul.bf16.gmra.mxu0 %v265
  %v364 = vpop.f32.mrf.mxu0
  %v365 = vadd.f32 0.0, %v364
  %v366 = vpop.f32.mrf.mxu0
  %v367 = vadd.f32 0.0, %v366
  %368 = vmatmul.bf16.gmra.mxu0 %v268
  %v369 = vpop.f32.mrf.mxu0
  %v370 = vadd.f32 0.0, %v369
  %v371 = vpop.f32.mrf.mxu0
  %v372 = vadd.f32 0.0, %v371
  %373 = vmatmul.bf16.gmra.mxu0 %v271
  %v374 = vpop.f32.mrf.mxu0
  %v375 = vadd.f32 0.0, %v374
  %v376 = vpop.f32.mrf.mxu0
  %v377 = vadd.f32 0.0, %v376
  %378 = vmatmul.bf16.gmra.mxu0 %v274
  %v379 = vpop.f32.mrf.mxu0
  %v380 = vadd.f32 0.0, %v379
  %v381 = vpop.f32.mrf.mxu0
  %v382 = vadd.f32 0.0, %v381
  %383 = vmatmul.bf16.gmra.mxu0 %v277
  %v384 = vpop.f32.mrf.mxu0
  %v385 = vadd.f32 0.0, %v384
  %v386 = vpop.f32.mrf.mxu0
  %v387 = vadd.f32 0.0, %v386
  %388 = vmatmul.bf16.gmra.mxu0 %v280
  %v389 = vpop.f32.mrf.mxu0
  %v390 = vadd.f32 0.0, %v389
  %v391 = vpop.f32.mrf.mxu0
  %v392 = vadd.f32 0.0, %v391
  %393 = vmatmul.bf16.gmra.mxu0 %v283
  %v394 = vpop.f32.mrf.mxu0
  %v395 = vadd.f32 0.0, %v394
  %v396 = vpop.f32.mrf.mxu0
  %v397 = vadd.f32 0.0, %v396
  %398 = vmatmul.bf16.gmra.mxu0 %v286
  %v399 = vpop.f32.mrf.mxu0
  %v400 = vadd.f32 0.0, %v399
  %v401 = vpop.f32.mrf.mxu0
  %v402 = vadd.f32 0.0, %v401
  %403 = vmatmul.bf16.gmra.mxu0 %v289
  %v404 = vpop.f32.mrf.mxu0
  %v405 = vadd.f32 0.0, %v404
  %v406 = vpop.f32.mrf.mxu0
  %v407 = vadd.f32 0.0, %v406
  %408 = vmatmul.bf16.gmra.mxu0 %v292
  %v409 = vpop.f32.mrf.mxu0
  %v410 = vadd.f32 0.0, %v409
  %v411 = vpop.f32.mrf.mxu0
  %v412 = vadd.f32 0.0, %v411
  %413 = vmatmul.bf16.gmra.mxu0 %v295
  %v414 = vpop.f32.mrf.mxu0
  %v415 = vadd.f32 0.0, %v414
  %v416 = vpop.f32.mrf.mxu0
  %v417 = vadd.f32 0.0, %v416
  %418 = vmatmul.bf16.gmra.mxu0 %v298
  %v419 = vpop.f32.mrf.mxu0
  %v420 = vadd.f32 0.0, %v419
  %v421 = vpop.f32.mrf.mxu0
  %v422 = vadd.f32 0.0, %v421
  %423 = vmatmul.bf16.gmra.mxu0 %v301
  %v424 = vpop.f32.mrf.mxu0
  %v425 = vadd.f32 0.0, %v424
  %v426 = vpop.f32.mrf.mxu0
  %v427 = vadd.f32 0.0, %v426
  %428 = vmatmul.bf16.gmra.mxu0 %v304
  %v429 = vpop.f32.mrf.mxu0
  %v430 = vadd.f32 0.0, %v429
  %v431 = vpop.f32.mrf.mxu0
  %v432 = vadd.f32 0.0, %v431
  %433 = vmatmul.bf16.gmra.mxu0 %v307
  %v434 = vpop.f32.mrf.mxu0
  %v435 = vadd.f32 0.0, %v434
  %v436 = vpop.f32.mrf.mxu0
  %v437 = vadd.f32 0.0, %v436
  %438 = vmatmul.bf16.gmra.mxu0 %v310
  %v439 = vpop.f32.mrf.mxu0
  %v440 = vadd.f32 0.0, %v439
  %v441 = vpop.f32.mrf.mxu0
  %v442 = vadd.f32 0.0, %v441
  %443 = vmatmul.bf16.gmra.mxu0 %v313
  %v444 = vpop.f32.mrf.mxu0
  %v445 = vadd.f32 0.0, %v444
  %v446 = vpop.f32.mrf.mxu0
  %447 = vdwg.mxu0
  %448 = vmatpush.bf16.msra.mxu0 0
  %449 = vmatpush.bf16.msra.mxu0 0
  %450 = vmatpush.bf16.msra.mxu0 0
  %451 = vmatpush.bf16.msra.mxu0 0
  %452 = vmatpush.bf16.msra.mxu0 0
  %453 = vmatpush.bf16.msra.mxu0 0
  %454 = vmatpush.bf16.msra.mxu0 %v228
  %455 = vmatpush.bf16.msra.mxu0 %v224
  %456 = vmatmul.bf16.gmra.mxu0 %v241
  %v457 = vpop.f32.mrf.mxu0
  %v458 = vadd.f32 0.0, %v457
  %v459 = vpop.f32.mrf.mxu0
  %v460 = vadd.f32 0.0, %v459
  %461 = vmatmul.bf16.gmra.mxu0 %v244
  %v462 = vpop.f32.mrf.mxu0
  %v463 = vadd.f32 0.0, %v462
  %v464 = vpop.f32.mrf.mxu0
  %v465 = vadd.f32 0.0, %v464
  %466 = vmatmul.bf16.gmra.mxu0 %v247
  %v467 = vpop.f32.mrf.mxu0
  %v468 = vadd.f32 0.0, %v467
  %v469 = vpop.f32.mrf.mxu0
  %v470 = vadd.f32 0.0, %v469
  %471 = vmatmul.bf16.gmra.mxu0 %v250
  %v472 = vpop.f32.mrf.mxu0
  %v473 = vadd.f32 0.0, %v472
  %v474 = vpop.f32.mrf.mxu0
  %v475 = vadd.f32 0.0, %v474
  %476 = vmatmul.bf16.gmra.mxu0 %v253
  %v477 = vpop.f32.mrf.mxu0
  %v478 = vadd.f32 0.0, %v477
  %v479 = vpop.f32.mrf.mxu0
  %v480 = vadd.f32 0.0, %v479
  %481 = vmatmul.bf16.gmra.mxu0 %v256
  %v482 = vpop.f32.mrf.mxu0
  %v483 = vadd.f32 0.0, %v482
  %v484 = vpop.f32.mrf.mxu0
  %v485 = vadd.f32 0.0, %v484
  %486 = vmatmul.bf16.gmra.mxu0 %v259
  %v487 = vpop.f32.mrf.mxu0
  %v488 = vadd.f32 0.0, %v487
  %v489 = vpop.f32.mrf.mxu0
  %v490 = vadd.f32 0.0, %v489
  %491 = vmatmul.bf16.gmra.mxu0 %v262
  %v492 = vpop.f32.mrf.mxu0
  %v493 = vadd.f32 0.0, %v492
  %v494 = vpop.f32.mrf.mxu0
  %v495 = vadd.f32 0.0, %v494
  %496 = vmatmul.bf16.gmra.mxu0 %v265
  %v497 = vpop.f32.mrf.mxu0
  %v498 = vadd.f32 0.0, %v497
  %v499 = vpop.f32.mrf.mxu0
  %v500 = vadd.f32 0.0, %v499
  %501 = vmatmul.bf16.gmra.mxu0 %v268
  %v502 = vpop.f32.mrf.mxu0
  %v503 = vadd.f32 0.0, %v502
  %v504 = vpop.f32.mrf.mxu0
  %v505 = vadd.f32 0.0, %v504
  %506 = vmatmul.bf16.gmra.mxu0 %v271
  %v507 = vpop.f32.mrf.mxu0
  %v508 = vadd.f32 0.0, %v507
  %v509 = vpop.f32.mrf.mxu0
  %v510 = vadd.f32 0.0, %v509
  %511 = vmatmul.bf16.gmra.mxu0 %v274
  %v512 = vpop.f32.mrf.mxu0
  %v513 = vadd.f32 0.0, %v512
  %v514 = vpop.f32.mrf.mxu0
  %v515 = vadd.f32 0.0, %v514
  %516 = vmatmul.bf16.gmra.mxu0 %v277
  %v517 = vpop.f32.mrf.mxu0
  %v518 = vadd.f32 0.0, %v517
  %v519 = vpop.f32.mrf.mxu0
  %v520 = vadd.f32 0.0, %v519
  %521 = vmatmul.bf16.gmra.mxu0 %v280
  %v522 = vpop.f32.mrf.mxu0
  %v523 = vadd.f32 0.0, %v522
  %v524 = vpop.f32.mrf.mxu0
  %v525 = vadd.f32 0.0, %v524
  %526 = vmatmul.bf16.gmra.mxu0 %v283
  %v527 = vpop.f32.mrf.mxu0
  %v528 = vadd.f32 0.0, %v527
  %v529 = vpop.f32.mrf.mxu0
  %v530 = vadd.f32 0.0, %v529
  %531 = vmatmul.bf16.gmra.mxu0 %v286
  %v532 = vpop.f32.mrf.mxu0
  %v533 = vadd.f32 0.0, %v532
  %v534 = vpop.f32.mrf.mxu0
  %v535 = vadd.f32 0.0, %v534
  %536 = vmatmul.bf16.gmra.mxu0 %v289
  %v537 = vpop.f32.mrf.mxu0
  %v538 = vadd.f32 0.0, %v537
  %v539 = vpop.f32.mrf.mxu0
  %v540 = vadd.f32 0.0, %v539
  %541 = vmatmul.bf16.gmra.mxu0 %v292
  %v542 = vpop.f32.mrf.mxu0
  %v543 = vadd.f32 0.0, %v542
  %v544 = vpop.f32.mrf.mxu0
  %v545 = vadd.f32 0.0, %v544
  %546 = vmatmul.bf16.gmra.mxu0 %v295
  %v547 = vpop.f32.mrf.mxu0
  %v548 = vadd.f32 0.0, %v547
  %v549 = vpop.f32.mrf.mxu0
  %v550 = vadd.f32 0.0, %v549
  %551 = vmatmul.bf16.gmra.mxu0 %v298
  %v552 = vpop.f32.mrf.mxu0
  %v553 = vadd.f32 0.0, %v552
  %v554 = vpop.f32.mrf.mxu0
  %v555 = vadd.f32 0.0, %v554
  %556 = vmatmul.bf16.gmra.mxu0 %v301
  %v557 = vpop.f32.mrf.mxu0
  %v558 = vadd.f32 0.0, %v557
  %v559 = vpop.f32.mrf.mxu0
  %v560 = vadd.f32 0.0, %v559
  %561 = vmatmul.bf16.gmra.mxu0 %v304
  %v562 = vpop.f32.mrf.mxu0
  %v563 = vadd.f32 0.0, %v562
  %v564 = vpop.f32.mrf.mxu0
  %v565 = vadd.f32 0.0, %v564
  %566 = vmatmul.bf16.gmra.mxu0 %v307
  %v567 = vpop.f32.mrf.mxu0
  %v568 = vadd.f32 0.0, %v567
  %v569 = vpop.f32.mrf.mxu0
  %v570 = vadd.f32 0.0, %v569
  %571 = vmatmul.bf16.gmra.mxu0 %v310
  %v572 = vpop.f32.mrf.mxu0
  %v573 = vadd.f32 0.0, %v572
  %v574 = vpop.f32.mrf.mxu0
  %v575 = vadd.f32 0.0, %v574
  %576 = vmatmul.bf16.gmra.mxu0 %v313
  %v577 = vpop.f32.mrf.mxu0
  %v578 = vadd.f32 0.0, %v577
  %v579 = vpop.f32.mrf.mxu0
  %580 = vdwg.mxu0
  %581 = vmatpush.bf16.msra.mxu0 0
  %582 = vmatpush.bf16.msra.mxu0 0
  %583 = vmatpush.bf16.msra.mxu0 0
  %584 = vmatpush.bf16.msra.mxu0 0
  %585 = vmatpush.bf16.msra.mxu0 0
  %586 = vmatpush.bf16.msra.mxu0 0
  %587 = vmatpush.bf16.msra.mxu0 %v229
  %588 = vmatpush.bf16.msra.mxu0 %v225
  %589 = vmatmul.bf16.gmra.mxu0 %v241
  %v590 = vpop.f32.mrf.mxu0
  %v591 = vadd.f32 0.0, %v590
  %v592 = vpop.f32.mrf.mxu0
  %v593 = vadd.f32 0.0, %v592
  %594 = vmatmul.bf16.gmra.mxu0 %v244
  %v595 = vpop.f32.mrf.mxu0
  %v596 = vadd.f32 0.0, %v595
  %v597 = vpop.f32.mrf.mxu0
  %v598 = vadd.f32 0.0, %v597
  %599 = vmatmul.bf16.gmra.mxu0 %v247
  %v600 = vpop.f32.mrf.mxu0
  %v601 = vadd.f32 0.0, %v600
  %v602 = vpop.f32.mrf.mxu0
  %v603 = vadd.f32 0.0, %v602
  %604 = vmatmul.bf16.gmra.mxu0 %v250
  %v605 = vpop.f32.mrf.mxu0
  %v606 = vadd.f32 0.0, %v605
  %v607 = vpop.f32.mrf.mxu0
  %v608 = vadd.f32 0.0, %v607
  %609 = vmatmul.bf16.gmra.mxu0 %v253
  %v610 = vpop.f32.mrf.mxu0
  %v611 = vadd.f32 0.0, %v610
  %v612 = vpop.f32.mrf.mxu0
  %v613 = vadd.f32 0.0, %v612
  %614 = vmatmul.bf16.gmra.mxu0 %v256
  %v615 = vpop.f32.mrf.mxu0
  %v616 = vadd.f32 0.0, %v615
  %v617 = vpop.f32.mrf.mxu0
  %v618 = vadd.f32 0.0, %v617
  %619 = vmatmul.bf16.gmra.mxu0 %v259
  %v620 = vpop.f32.mrf.mxu0
  %v621 = vadd.f32 0.0, %v620
  %v622 = vpop.f32.mrf.mxu0
  %v623 = vadd.f32 0.0, %v622
  %624 = vmatmul.bf16.gmra.mxu0 %v262
  %v625 = vpop.f32.mrf.mxu0
  %v626 = vadd.f32 0.0, %v625
  %v627 = vpop.f32.mrf.mxu0
  %v628 = vadd.f32 0.0, %v627
  %629 = vmatmul.bf16.gmra.mxu0 %v265
  %v630 = vpop.f32.mrf.mxu0
  %v631 = vadd.f32 0.0, %v630
  %v632 = vpop.f32.mrf.mxu0
  %v633 = vadd.f32 0.0, %v632
  %634 = vmatmul.bf16.gmra.mxu0 %v268
  %v635 = vpop.f32.mrf.mxu0
  %v636 = vadd.f32 0.0, %v635
  %v637 = vpop.f32.mrf.mxu0
  %v638 = vadd.f32 0.0, %v637
  %639 = vmatmul.bf16.gmra.mxu0 %v271
  %v640 = vpop.f32.mrf.mxu0
  %v641 = vadd.f32 0.0, %v640
  %v642 = vpop.f32.mrf.mxu0
  %v643 = vadd.f32 0.0, %v642
  %644 = vmatmul.bf16.gmra.mxu0 %v274
  %v645 = vpop.f32.mrf.mxu0
  %v646 = vadd.f32 0.0, %v645
  %v647 = vpop.f32.mrf.mxu0
  %v648 = vadd.f32 0.0, %v647
  %649 = vmatmul.bf16.gmra.mxu0 %v277
  %v650 = vpop.f32.mrf.mxu0
  %v651 = vadd.f32 0.0, %v650
  %v652 = vpop.f32.mrf.mxu0
  %v653 = vadd.f32 0.0, %v652
  %654 = vmatmul.bf16.gmra.mxu0 %v280
  %v655 = vpop.f32.mrf.mxu0
  %v656 = vadd.f32 0.0, %v655
  %v657 = vpop.f32.mrf.mxu0
  %v658 = vadd.f32 0.0, %v657
  %659 = vmatmul.bf16.gmra.mxu0 %v283
  %v660 = vpop.f32.mrf.mxu0
  %v661 = vadd.f32 0.0, %v660
  %v662 = vpop.f32.mrf.mxu0
  %v663 = vadd.f32 0.0, %v662
  %664 = vmatmul.bf16.gmra.mxu0 %v286
  %v665 = vpop.f32.mrf.mxu0
  %v666 = vadd.f32 0.0, %v665
  %v667 = vpop.f32.mrf.mxu0
  %v668 = vadd.f32 0.0, %v667
  %669 = vmatmul.bf16.gmra.mxu0 %v289
  %v670 = vpop.f32.mrf.mxu0
  %v671 = vadd.f32 0.0, %v670
  %v672 = vpop.f32.mrf.mxu0
  %v673 = vadd.f32 0.0, %v672
  %674 = vmatmul.bf16.gmra.mxu0 %v292
  %v675 = vpop.f32.mrf.mxu0
  %v676 = vadd.f32 0.0, %v675
  %v677 = vpop.f32.mrf.mxu0
  %v678 = vadd.f32 0.0, %v677
  %679 = vmatmul.bf16.gmra.mxu0 %v295
  %v680 = vpop.f32.mrf.mxu0
  %v681 = vadd.f32 0.0, %v680
  %v682 = vpop.f32.mrf.mxu0
  %v683 = vadd.f32 0.0, %v682
  %684 = vmatmul.bf16.gmra.mxu0 %v298
  %v685 = vpop.f32.mrf.mxu0
  %v686 = vadd.f32 0.0, %v685
  %v687 = vpop.f32.mrf.mxu0
  %v688 = vadd.f32 0.0, %v687
  %689 = vmatmul.bf16.gmra.mxu0 %v301
  %v690 = vpop.f32.mrf.mxu0
  %v691 = vadd.f32 0.0, %v690
  %v692 = vpop.f32.mrf.mxu0
  %v693 = vadd.f32 0.0, %v692
  %694 = vmatmul.bf16.gmra.mxu0 %v304
  %v695 = vpop.f32.mrf.mxu0
  %v696 = vadd.f32 0.0, %v695
  %v697 = vpop.f32.mrf.mxu0
  %v698 = vadd.f32 0.0, %v697
  %699 = vmatmul.bf16.gmra.mxu0 %v307
  %v700 = vpop.f32.mrf.mxu0
  %v701 = vadd.f32 0.0, %v700
  %v702 = vpop.f32.mrf.mxu0
  %v703 = vadd.f32 0.0, %v702
  %704 = vmatmul.bf16.gmra.mxu0 %v310
  %v705 = vpop.f32.mrf.mxu0
  %v706 = vadd.f32 0.0, %v705
  %v707 = vpop.f32.mrf.mxu0
  %v708 = vadd.f32 0.0, %v707
  %709 = vmatmul.bf16.gmra.mxu0 %v313
  %v710 = vpop.f32.mrf.mxu0
  %v711 = vadd.f32 0.0, %v710
  %v712 = vpop.f32.mrf.mxu0
  %713 = vdwg.mxu0
  %714 = vmatpush.bf16.msra.mxu0 0
  %715 = vmatpush.bf16.msra.mxu0 0
  %716 = vmatpush.bf16.msra.mxu0 0
  %717 = vmatpush.bf16.msra.mxu0 0
  %718 = vmatpush.bf16.msra.mxu0 0
  %719 = vmatpush.bf16.msra.mxu0 0
  %720 = vmatpush.bf16.msra.mxu0 %v230
  %721 = vmatpush.bf16.msra.mxu0 %v226
  %722 = vmatmul.bf16.gmra.mxu0 %v241
  %v723 = vpop.f32.mrf.mxu0
  %v724 = vadd.f32 0.0, %v723
  %v725 = vpop.f32.mrf.mxu0
  %v726 = vadd.f32 0.0, %v725
  %727 = vmatmul.bf16.gmra.mxu0 %v244
  %v728 = vpop.f32.mrf.mxu0
  %v729 = vadd.f32 0.0, %v728
  %v730 = vpop.f32.mrf.mxu0
  %v731 = vadd.f32 0.0, %v730
  %732 = vmatmul.bf16.gmra.mxu0 %v247
  %v733 = vpop.f32.mrf.mxu0
  %v734 = vadd.f32 0.0, %v733
  %v735 = vpop.f32.mrf.mxu0
  %v736 = vadd.f32 0.0, %v735
  %737 = vmatmul.bf16.gmra.mxu0 %v250
  %v738 = vpop.f32.mrf.mxu0
  %v739 = vadd.f32 0.0, %v738
  %v740 = vpop.f32.mrf.mxu0
  %v741 = vadd.f32 0.0, %v740
  %742 = vmatmul.bf16.gmra.mxu0 %v253
  %v743 = vpop.f32.mrf.mxu0
  %v744 = vadd.f32 0.0, %v743
  %v745 = vpop.f32.mrf.mxu0
  %v746 = vadd.f32 0.0, %v745
  %747 = vmatmul.bf16.gmra.mxu0 %v256
  %v748 = vpop.f32.mrf.mxu0
  %v749 = vadd.f32 0.0, %v748
  %v750 = vpop.f32.mrf.mxu0
  %v751 = vadd.f32 0.0, %v750
  %752 = vmatmul.bf16.gmra.mxu0 %v259
  %v753 = vpop.f32.mrf.mxu0
  %v754 = vadd.f32 0.0, %v753
  %v755 = vpop.f32.mrf.mxu0
  %v756 = vadd.f32 0.0, %v755
  %757 = vmatmul.bf16.gmra.mxu0 %v262
  %v758 = vpop.f32.mrf.mxu0
  %v759 = vadd.f32 0.0, %v758
  %v760 = vpop.f32.mrf.mxu0
  %v761 = vadd.f32 0.0, %v760
  %762 = vmatmul.bf16.gmra.mxu0 %v265
  %v763 = vpop.f32.mrf.mxu0
  %v764 = vadd.f32 0.0, %v763
  %v765 = vpop.f32.mrf.mxu0
  %v766 = vadd.f32 0.0, %v765
  %767 = vmatmul.bf16.gmra.mxu0 %v268
  %v768 = vpop.f32.mrf.mxu0
  %v769 = vadd.f32 0.0, %v768
  %v770 = vpop.f32.mrf.mxu0
  %v771 = vadd.f32 0.0, %v770
  %772 = vmatmul.bf16.gmra.mxu0 %v271
  %v773 = vpop.f32.mrf.mxu0
  %v774 = vadd.f32 0.0, %v773
  %v775 = vpop.f32.mrf.mxu0
  %v776 = vadd.f32 0.0, %v775
  %777 = vmatmul.bf16.gmra.mxu0 %v274
  %v778 = vpop.f32.mrf.mxu0
  %v779 = vadd.f32 0.0, %v778
  %v780 = vpop.f32.mrf.mxu0
  %v781 = vadd.f32 0.0, %v780
  %782 = vmatmul.bf16.gmra.mxu0 %v277
  %v783 = vpop.f32.mrf.mxu0
  %v784 = vadd.f32 0.0, %v783
  %v785 = vpop.f32.mrf.mxu0
  %v786 = vadd.f32 0.0, %v785
  %787 = vmatmul.bf16.gmra.mxu0 %v280
  %v788 = vpop.f32.mrf.mxu0
  %v789 = vadd.f32 0.0, %v788
  %v790 = vpop.f32.mrf.mxu0
  %v791 = vadd.f32 0.0, %v790
  %792 = vmatmul.bf16.gmra.mxu0 %v283
  %v793 = vpop.f32.mrf.mxu0
  %v794 = vadd.f32 0.0, %v793
  %v795 = vpop.f32.mrf.mxu0
  %v796 = vadd.f32 0.0, %v795
  %797 = vmatmul.bf16.gmra.mxu0 %v286
  %v798 = vpop.f32.mrf.mxu0
  %v799 = vadd.f32 0.0, %v798
  %v800 = vpop.f32.mrf.mxu0
  %v801 = vadd.f32 0.0, %v800
  %802 = vmatmul.bf16.gmra.mxu0 %v289
  %v803 = vpop.f32.mrf.mxu0
  %v804 = vadd.f32 0.0, %v803
  %v805 = vpop.f32.mrf.mxu0
  %v806 = vadd.f32 0.0, %v805
  %807 = vmatmul.bf16.gmra.mxu0 %v292
  %v808 = vpop.f32.mrf.mxu0
  %v809 = vadd.f32 0.0, %v808
  %v810 = vpop.f32.mrf.mxu0
  %v811 = vadd.f32 0.0, %v810
  %812 = vmatmul.bf16.gmra.mxu0 %v295
  %v813 = vpop.f32.mrf.mxu0
  %v814 = vadd.f32 0.0, %v813
  %v815 = vpop.f32.mrf.mxu0
  %v816 = vadd.f32 0.0, %v815
  %817 = vmatmul.bf16.gmra.mxu0 %v298
  %v818 = vpop.f32.mrf.mxu0
  %v819 = vadd.f32 0.0, %v818
  %v820 = vpop.f32.mrf.mxu0
  %v821 = vadd.f32 0.0, %v820
  %822 = vmatmul.bf16.gmra.mxu0 %v301
  %v823 = vpop.f32.mrf.mxu0
  %v824 = vadd.f32 0.0, %v823
  %v825 = vpop.f32.mrf.mxu0
  %v826 = vadd.f32 0.0, %v825
  %827 = vmatmul.bf16.gmra.mxu0 %v304
  %v828 = vpop.f32.mrf.mxu0
  %v829 = vadd.f32 0.0, %v828
  %v830 = vpop.f32.mrf.mxu0
  %v831 = vadd.f32 0.0, %v830
  %832 = vmatmul.bf16.gmra.mxu0 %v307
  %v833 = vpop.f32.mrf.mxu0
  %v834 = vadd.f32 0.0, %v833
  %v835 = vpop.f32.mrf.mxu0
  %v836 = vadd.f32 0.0, %v835
  %837 = vmatmul.bf16.gmra.mxu0 %v310
  %v838 = vpop.f32.mrf.mxu0
  %v839 = vadd.f32 0.0, %v838
  %v840 = vpop.f32.mrf.mxu0
  %v841 = vadd.f32 0.0, %v840
  %842 = vmatmul.bf16.gmra.mxu0 %v313
  %v843 = vpop.f32.mrf.mxu0
  %v844 = vadd.f32 0.0, %v843
  %v845 = vpop.f32.mrf.mxu0
  %846 = vdwg.mxu0
  %847 = vst [vmem:[%s3] sm:$0xff] %v325
  %848 = vst [vmem:[%s3 + $0x8] sm:$0xff] %v458
  %849 = vst [vmem:[%s3 + $0x10] sm:$0xff] %v591
  %850 = vst [vmem:[%s3 + $0x18] sm:$0xff] %v724
  %851 = vst [vmem:[%s3 + $0x20] sm:$0xff] %v327
  %852 = vst [vmem:[%s3 + $0x28] sm:$0xff] %v460
  %853 = vst [vmem:[%s3 + $0x30] sm:$0xff] %v593
  %854 = vst [vmem:[%s3 + $0x38] sm:$0xff] %v726
  %855 = vst [vmem:[%s3 + $0x40] sm:$0xff] %v330
  %856 = vst [vmem:[%s3 + $0x48] sm:$0xff] %v463
  %857 = vst [vmem:[%s3 + $0x50] sm:$0xff] %v596
  %858 = vst [vmem:[%s3 + $0x58] sm:$0xff] %v729
  %859 = vst [vmem:[%s3 + $0x60] sm:$0xff] %v332
  %860 = vst [vmem:[%s3 + $0x68] sm:$0xff] %v465
  %861 = vst [vmem:[%s3 + $0x70] sm:$0xff] %v598
  %862 = vst [vmem:[%s3 + $0x78] sm:$0xff] %v731
  %863 = vst [vmem:[%s3 + $0x80] sm:$0xff] %v335
  %864 = vst [vmem:[%s3 + $0x88] sm:$0xff] %v468
  %865 = vst [vmem:[%s3 + $0x90] sm:$0xff] %v601
  %866 = vst [vmem:[%s3 + $0x98] sm:$0xff] %v734
  %867 = vst [vmem:[%s3 + $0xa0] sm:$0xff] %v337
  %868 = vst [vmem:[%s3 + $0xa8] sm:$0xff] %v470
  %869 = vst [vmem:[%s3 + $0xb0] sm:$0xff] %v603
  %870 = vst [vmem:[%s3 + $0xb8] sm:$0xff] %v736
  %871 = vst [vmem:[%s3 + $0xc0] sm:$0xff] %v340
  %872 = vst [vmem:[%s3 + $0xc8] sm:$0xff] %v473
  %873 = vst [vmem:[%s3 + $0xd0] sm:$0xff] %v606
  %874 = vst [vmem:[%s3 + $0xd8] sm:$0xff] %v739
  %875 = vst [vmem:[%s3 + $0xe0] sm:$0xff] %v342
  %876 = vst [vmem:[%s3 + $0xe8] sm:$0xff] %v475
  %877 = vst [vmem:[%s3 + $0xf0] sm:$0xff] %v608
  %878 = vst [vmem:[%s3 + $0xf8] sm:$0xff] %v741
  %879 = vst [vmem:[%s3 + $0x100] sm:$0xff] %v345
  %880 = vst [vmem:[%s3 + $0x108] sm:$0xff] %v478
  %881 = vst [vmem:[%s3 + $0x110] sm:$0xff] %v611
  %882 = vst [vmem:[%s3 + $0x118] sm:$0xff] %v744
  %883 = vst [vmem:[%s3 + $0x120] sm:$0xff] %v347
  %884 = vst [vmem:[%s3 + $0x128] sm:$0xff] %v480
  %885 = vst [vmem:[%s3 + $0x130] sm:$0xff] %v613
  %886 = vst [vmem:[%s3 + $0x138] sm:$0xff] %v746
  %887 = vst [vmem:[%s3 + $0x140] sm:$0xff] %v350
  %888 = vst [vmem:[%s3 + $0x148] sm:$0xff] %v483
  %889 = vst [vmem:[%s3 + $0x150] sm:$0xff] %v616
  %890 = vst [vmem:[%s3 + $0x158] sm:$0xff] %v749
  %891 = vst [vmem:[%s3 + $0x160] sm:$0xff] %v352
  %892 = vst [vmem:[%s3 + $0x168] sm:$0xff] %v485
  %893 = vst [vmem:[%s3 + $0x170] sm:$0xff] %v618
  %894 = vst [vmem:[%s3 + $0x178] sm:$0xff] %v751
  %895 = vst [vmem:[%s3 + $0x180] sm:$0xff] %v355
  %896 = vst [vmem:[%s3 + $0x188] sm:$0xff] %v488
  %897 = vst [vmem:[%s3 + $0x190] sm:$0xff] %v621
  %898 = vst [vmem:[%s3 + $0x198] sm:$0xff] %v754
  %899 = vst [vmem:[%s3 + $0x1a0] sm:$0xff] %v357
  %900 = vst [vmem:[%s3 + $0x1a8] sm:$0xff] %v490
  %901 = vst [vmem:[%s3 + $0x1b0] sm:$0xff] %v623
  %902 = vst [vmem:[%s3 + $0x1b8] sm:$0xff] %v756
  %903 = vst [vmem:[%s3 + $0x1c0] sm:$0xff] %v360
  %904 = vst [vmem:[%s3 + $0x1c8] sm:$0xff] %v493
  %905 = vst [vmem:[%s3 + $0x1d0] sm:$0xff] %v626
  %906 = vst [vmem:[%s3 + $0x1d8] sm:$0xff] %v759
  %907 = vst [vmem:[%s3 + $0x1e0] sm:$0xff] %v362
  %908 = vst [vmem:[%s3 + $0x1e8] sm:$0xff] %v495
  %909 = vst [vmem:[%s3 + $0x1f0] sm:$0xff] %v628
  %910 = vst [vmem:[%s3 + $0x1f8] sm:$0xff] %v761
  %911 = vst [vmem:[%s3 + $0x200] sm:$0xff] %v365
  %912 = vst [vmem:[%s3 + $0x208] sm:$0xff] %v498
  %913 = vst [vmem:[%s3 + $0x210] sm:$0xff] %v631
  %914 = vst [vmem:[%s3 + $0x218] sm:$0xff] %v764
  %915 = vst [vmem:[%s3 + $0x220] sm:$0xff] %v367
  %916 = vst [vmem:[%s3 + $0x228] sm:$0xff] %v500
  %917 = vst [vmem:[%s3 + $0x230] sm:$0xff] %v633
  %918 = vst [vmem:[%s3 + $0x238] sm:$0xff] %v766
  %919 = vst [vmem:[%s3 + $0x240] sm:$0xff] %v370
  %920 = vst [vmem:[%s3 + $0x248] sm:$0xff] %v503
  %921 = vst [vmem:[%s3 + $0x250] sm:$0xff] %v636
  %922 = vst [vmem:[%s3 + $0x258] sm:$0xff] %v769
  %923 = vst [vmem:[%s3 + $0x260] sm:$0xff] %v372
  %924 = vst [vmem:[%s3 + $0x268] sm:$0xff] %v505
  %925 = vst [vmem:[%s3 + $0x270] sm:$0xff] %v638
  %926 = vst [vmem:[%s3 + $0x278] sm:$0xff] %v771
  %927 = vst [vmem:[%s3 + $0x280] sm:$0xff] %v375
  %928 = vst [vmem:[%s3 + $0x288] sm:$0xff] %v508
  %929 = vst [vmem:[%s3 + $0x290] sm:$0xff] %v641
  %930 = vst [vmem:[%s3 + $0x298] sm:$0xff] %v774
  %931 = vst [vmem:[%s3 + $0x2a0] sm:$0xff] %v377
  %932 = vst [vmem:[%s3 + $0x2a8] sm:$0xff] %v510
  %933 = vst [vmem:[%s3 + $0x2b0] sm:$0xff] %v643
  %934 = vst [vmem:[%s3 + $0x2b8] sm:$0xff] %v776
  %935 = vst [vmem:[%s3 + $0x2c0] sm:$0xff] %v380
  %936 = vst [vmem:[%s3 + $0x2c8] sm:$0xff] %v513
  %937 = vst [vmem:[%s3 + $0x2d0] sm:$0xff] %v646
  %938 = vst [vmem:[%s3 + $0x2d8] sm:$0xff] %v779
  %939 = vst [vmem:[%s3 + $0x2e0] sm:$0xff] %v382
  %940 = vst [vmem:[%s3 + $0x2e8] sm:$0xff] %v515
  %941 = vst [vmem:[%s3 + $0x2f0] sm:$0xff] %v648
  %942 = vst [vmem:[%s3 + $0x2f8] sm:$0xff] %v781
  %943 = vst [vmem:[%s3 + $0x300] sm:$0xff] %v385
  %944 = vst [vmem:[%s3 + $0x308] sm:$0xff] %v518
  %945 = vst [vmem:[%s3 + $0x310] sm:$0xff] %v651
  %946 = vst [vmem:[%s3 + $0x318] sm:$0xff] %v784
  %947 = vst [vmem:[%s3 + $0x320] sm:$0xff] %v387
  %948 = vst [vmem:[%s3 + $0x328] sm:$0xff] %v520
  %949 = vst [vmem:[%s3 + $0x330] sm:$0xff] %v653
  %950 = vst [vmem:[%s3 + $0x338] sm:$0xff] %v786
  %951 = vst [vmem:[%s3 + $0x340] sm:$0xff] %v390
  %952 = vst [vmem:[%s3 + $0x348] sm:$0xff] %v523
  %953 = vst [vmem:[%s3 + $0x350] sm:$0xff] %v656
  %954 = vst [vmem:[%s3 + $0x358] sm:$0xff] %v789
  %955 = vst [vmem:[%s3 + $0x360] sm:$0xff] %v392
  %956 = vst [vmem:[%s3 + $0x368] sm:$0xff] %v525
  %957 = vst [vmem:[%s3 + $0x370] sm:$0xff] %v658
  %958 = vst [vmem:[%s3 + $0x378] sm:$0xff] %v791
  %959 = vst [vmem:[%s3 + $0x380] sm:$0xff] %v395
  %960 = vst [vmem:[%s3 + $0x388] sm:$0xff] %v528
  %961 = vst [vmem:[%s3 + $0x390] sm:$0xff] %v661
  %962 = vst [vmem:[%s3 + $0x398] sm:$0xff] %v794
  %963 = vst [vmem:[%s3 + $0x3a0] sm:$0xff] %v397
  %964 = vst [vmem:[%s3 + $0x3a8] sm:$0xff] %v530
  %965 = vst [vmem:[%s3 + $0x3b0] sm:$0xff] %v663
  %966 = vst [vmem:[%s3 + $0x3b8] sm:$0xff] %v796
  %967 = vst [vmem:[%s3 + $0x3c0] sm:$0xff] %v400
  %968 = vst [vmem:[%s3 + $0x3c8] sm:$0xff] %v533
  %969 = vst [vmem:[%s3 + $0x3d0] sm:$0xff] %v666
  %970 = vst [vmem:[%s3 + $0x3d8] sm:$0xff] %v799
  %971 = vst [vmem:[%s3 + $0x3e0] sm:$0xff] %v402
  %972 = vst [vmem:[%s3 + $0x3e8] sm:$0xff] %v535
  %973 = vst [vmem:[%s3 + $0x3f0] sm:$0xff] %v668
  %974 = vst [vmem:[%s3 + $0x3f8] sm:$0xff] %v801
  %975 = vst [vmem:[%s3 + $0x400] sm:$0xff] %v405
  %976 = vst [vmem:[%s3 + $0x408] sm:$0xff] %v538
  %977 = vst [vmem:[%s3 + $0x410] sm:$0xff] %v671
  %978 = vst [vmem:[%s3 + $0x418] sm:$0xff] %v804
  %979 = vst [vmem:[%s3 + $0x420] sm:$0xff] %v407
  %980 = vst [vmem:[%s3 + $0x428] sm:$0xff] %v540
  %981 = vst [vmem:[%s3 + $0x430] sm:$0xff] %v673
  %982 = vst [vmem:[%s3 + $0x438] sm:$0xff] %v806
  %983 = vst [vmem:[%s3 + $0x440] sm:$0xff] %v410
  %984 = vst [vmem:[%s3 + $0x448] sm:$0xff] %v543
  %985 = vst [vmem:[%s3 + $0x450] sm:$0xff] %v676
  %986 = vst [vmem:[%s3 + $0x458] sm:$0xff] %v809
  %987 = vst [vmem:[%s3 + $0x460] sm:$0xff] %v412
  %988 = vst [vmem:[%s3 + $0x468] sm:$0xff] %v545
  %989 = vst [vmem:[%s3 + $0x470] sm:$0xff] %v678
  %990 = vst [vmem:[%s3 + $0x478] sm:$0xff] %v811
  %991 = vst [vmem:[%s3 + $0x480] sm:$0xff] %v415
  %992 = vst [vmem:[%s3 + $0x488] sm:$0xff] %v548
  %993 = vst [vmem:[%s3 + $0x490] sm:$0xff] %v681
  %994 = vst [vmem:[%s3 + $0x498] sm:$0xff] %v814
  %995 = vst [vmem:[%s3 + $0x4a0] sm:$0xff] %v417
  %996 = vst [vmem:[%s3 + $0x4a8] sm:$0xff] %v550
  %997 = vst [vmem:[%s3 + $0x4b0] sm:$0xff] %v683
  %998 = vst [vmem:[%s3 + $0x4b8] sm:$0xff] %v816
  %999 = vst [vmem:[%s3 + $0x4c0] sm:$0xff] %v420
  %1000 = vst [vmem:[%s3 + $0x4c8] sm:$0xff] %v553
  %1001 = vst [vmem:[%s3 + $0x4d0] sm:$0xff] %v686
  %1002 = vst [vmem:[%s3 + $0x4d8] sm:$0xff] %v819
  %1003 = vst [vmem:[%s3 + $0x4e0] sm:$0xff] %v422
  %1004 = vst [vmem:[%s3 + $0x4e8] sm:$0xff] %v555
  %1005 = vst [vmem:[%s3 + $0x4f0] sm:$0xff] %v688
  %1006 = vst [vmem:[%s3 + $0x4f8] sm:$0xff] %v821
  %1007 = vst [vmem:[%s3 + $0x500] sm:$0xff] %v425
  %1008 = vst [vmem:[%s3 + $0x508] sm:$0xff] %v558
  %1009 = vst [vmem:[%s3 + $0x510] sm:$0xff] %v691
  %1010 = vst [vmem:[%s3 + $0x518] sm:$0xff] %v824
  %1011 = vst [vmem:[%s3 + $0x520] sm:$0xff] %v427
  %1012 = vst [vmem:[%s3 + $0x528] sm:$0xff] %v560
  %1013 = vst [vmem:[%s3 + $0x530] sm:$0xff] %v693
  %1014 = vst [vmem:[%s3 + $0x538] sm:$0xff] %v826
  %1015 = vst [vmem:[%s3 + $0x540] sm:$0xff] %v430
  %1016 = vst [vmem:[%s3 + $0x548] sm:$0xff] %v563
  %1017 = vst [vmem:[%s3 + $0x550] sm:$0xff] %v696
  %1018 = vst [vmem:[%s3 + $0x558] sm:$0xff] %v829
  %1019 = vst [vmem:[%s3 + $0x560] sm:$0xff] %v432
  %1020 = vst [vmem:[%s3 + $0x568] sm:$0xff] %v565
  %1021 = vst [vmem:[%s3 + $0x570] sm:$0xff] %v698
  %1022 = vst [vmem:[%s3 + $0x578] sm:$0xff] %v831
  %1023 = vst [vmem:[%s3 + $0x580] sm:$0xff] %v435
  %1024 = vst [vmem:[%s3 + $0x588] sm:$0xff] %v568
  %1025 = vst [vmem:[%s3 + $0x590] sm:$0xff] %v701
  %1026 = vst [vmem:[%s3 + $0x598] sm:$0xff] %v834
  %1027 = vst [vmem:[%s3 + $0x5a0] sm:$0xff] %v437
  %1028 = vst [vmem:[%s3 + $0x5a8] sm:$0xff] %v570
  %1029 = vst [vmem:[%s3 + $0x5b0] sm:$0xff] %v703
  %1030 = vst [vmem:[%s3 + $0x5b8] sm:$0xff] %v836
  %1031 = vst [vmem:[%s3 + $0x5c0] sm:$0xff] %v440
  %1032 = vst [vmem:[%s3 + $0x5c8] sm:$0xff] %v573
  %1033 = vst [vmem:[%s3 + $0x5d0] sm:$0xff] %v706
  %1034 = vst [vmem:[%s3 + $0x5d8] sm:$0xff] %v839
  %1035 = vst [vmem:[%s3 + $0x5e0] sm:$0xff] %v442
  %1036 = vst [vmem:[%s3 + $0x5e8] sm:$0xff] %v575
  %1037 = vst [vmem:[%s3 + $0x5f0] sm:$0xff] %v708
  %1038 = vst [vmem:[%s3 + $0x5f8] sm:$0xff] %v841
  %1039 = vst [vmem:[%s3 + $0x600] sm:$0xff] %v445
  %1040 = vst [vmem:[%s3 + $0x608] sm:$0xff] %v578
  %1041 = vst [vmem:[%s3 + $0x610] sm:$0xff] %v711
  %1042 = vst [vmem:[%s3 + $0x618] sm:$0xff] %v844
  // Predicated region
  $region14: #{vae_forward.15} parent=0 // pred_check
    _
  $region15: #{vae_forward.15} parent=0 // pred_check_branch
    %1044 = sbr.rel (0) target = $region17
  $region16: #{vae_forward.15} parent=0 // pred_region
    _
  $region17: #{vae_forward.15} parent=0 // pred_fallthru
    _
  // Predicated region
  $region18: #{vae_forward.15} parent=0 // pred_check
    _
  $region19: #{vae_forward.15} parent=0 // pred_check_branch
    %1046 = sbr.rel (0) target = $region21
  $region20: #{vae_forward.15} parent=0 // pred_region
    _
  $region21: #{vae_forward.15} parent=0 // pred_fallthru
    _

// kernel: vae_forward.16
$region0: #{vae_forward.16}
  #allocation0 [shape = 'u32[]', space=smem, size = 0x4, offset = 0x4, fixed_abs, tag = 'smem constant byte address 0x4 - core index']
  #allocation1 [shape = 'u32[72,128]{1,0:T(1,128)}', space=vmem, size = 0x9000, scoped, tag = 'internal scratch']
  %s0 = inlined_call_operand.vmem [shape: f32[1682,32], index: 0, kind: input, shape index: {}]
  %s1 = inlined_call_operand.vmem [shape: f32[1,32], index: 1, kind: input, shape index: {}]
  %s2 = inlined_call_operand.vmem [shape: bf16[32,16], index: 2, kind: input, shape index: {}]
  %s3 = inlined_call_operand.vmem [shape: f32[1682,16], index: 3, kind: output, shape index: {}]
  %s4 = sld [smem:[#allocation0]]
  $region22: #{vae_forward.16} parent=0
    _
  %s6 = ssub.s32 1, %s4
  %s7 = scalar_select 0, %s6, %s4
  // Predicated region
  $region2: #{vae_forward.16} parent=0 // pred_check
    _
  $region3: #{vae_forward.16} parent=0 // pred_check_branch
    %9 = sbr.rel (0) target = $region5
  $region4: #{vae_forward.16} parent=0 // pred_region
    _
  $region5: #{vae_forward.16} parent=0 // pred_fallthru
    _
  // Predicated region
  $region6: #{vae_forward.16} parent=0 // pred_check
    _
  $region7: #{vae_forward.16} parent=0 // pred_check_branch
    %11 = sbr.rel (0) target = $region9
  $region8: #{vae_forward.16} parent=0 // pred_region
    _
  $region9: #{vae_forward.16} parent=0 // pred_fallthru
    _
  // Predicated region
  $region10: #{vae_forward.16} parent=0 // pred_check
    _
  $region11: #{vae_forward.16} parent=0 // pred_check_branch
    %13 = sbr.rel (0) target = $region13
  $region12: #{vae_forward.16} parent=0 // pred_region
    _
  $region13: #{vae_forward.16} parent=0 // pred_fallthru
    _
  %v15 = vld [vmem:[%s0] sm:$0xff]
  %v16 = vld [vmem:[%s0 + $0x8] sm:$0xff]
  %v17 = vld [vmem:[%s0 + $0x10] sm:$0xff]
  %v18 = vld [vmem:[%s0 + $0x18] sm:$0xff]
  %v19 = vld [vmem:[%s0 + $0x20] sm:$0xff]
  %v20 = vld [vmem:[%s0 + $0x28] sm:$0xff]
  %v21 = vld [vmem:[%s0 + $0x30] sm:$0xff]
  %v22 = vld [vmem:[%s0 + $0x38] sm:$0xff]
  %v23 = vld [vmem:[%s0 + $0x40] sm:$0xff]
  %v24 = vld [vmem:[%s0 + $0x48] sm:$0xff]
  %v25 = vld [vmem:[%s0 + $0x50] sm:$0xff]
  %v26 = vld [vmem:[%s0 + $0x58] sm:$0xff]
  %v27 = vld [vmem:[%s0 + $0x60] sm:$0xff]
  %v28 = vld [vmem:[%s0 + $0x68] sm:$0xff]
  %v29 = vld [vmem:[%s0 + $0x70] sm:$0xff]
  %v30 = vld [vmem:[%s0 + $0x78] sm:$0xff]
  %v31 = vld [vmem:[%s0 + $0x80] sm:$0xff]
  %v32 = vld [vmem:[%s0 + $0x88] sm:$0xff]
  %v33 = vld [vmem:[%s0 + $0x90] sm:$0xff]
  %v34 = vld [vmem:[%s0 + $0x98] sm:$0xff]
  %v35 = vld [vmem:[%s0 + $0xa0] sm:$0xff]
  %v36 = vld [vmem:[%s0 + $0xa8] sm:$0xff]
  %v37 = vld [vmem:[%s0 + $0xb0] sm:$0xff]
  %v38 = vld [vmem:[%s0 + $0xb8] sm:$0xff]
  %v39 = vld [vmem:[%s0 + $0xc0] sm:$0xff]
  %v40 = vld [vmem:[%s0 + $0xc8] sm:$0xff]
  %v41 = vld [vmem:[%s0 + $0xd0] sm:$0xff]
  %v42 = vld [vmem:[%s0 + $0xd8] sm:$0xff]
  %v43 = vld [vmem:[%s0 + $0xe0] sm:$0xff]
  %v44 = vld [vmem:[%s0 + $0xe8] sm:$0xff]
  %v45 = vld [vmem:[%s0 + $0xf0] sm:$0xff]
  %v46 = vld [vmem:[%s0 + $0xf8] sm:$0xff]
  %v47 = vld [vmem:[%s0 + $0x100] sm:$0xff]
  %v48 = vld [vmem:[%s0 + $0x108] sm:$0xff]
  %v49 = vld [vmem:[%s0 + $0x110] sm:$0xff]
  %v50 = vld [vmem:[%s0 + $0x118] sm:$0xff]
  %v51 = vld [vmem:[%s0 + $0x120] sm:$0xff]
  %v52 = vld [vmem:[%s0 + $0x128] sm:$0xff]
  %v53 = vld [vmem:[%s0 + $0x130] sm:$0xff]
  %v54 = vld [vmem:[%s0 + $0x138] sm:$0xff]
  %v55 = vld [vmem:[%s0 + $0x140] sm:$0xff]
  %v56 = vld [vmem:[%s0 + $0x148] sm:$0xff]
  %v57 = vld [vmem:[%s0 + $0x150] sm:$0xff]
  %v58 = vld [vmem:[%s0 + $0x158] sm:$0xff]
  %v59 = vld [vmem:[%s0 + $0x160] sm:$0xff]
  %v60 = vld [vmem:[%s0 + $0x168] sm:$0xff]
  %v61 = vld [vmem:[%s0 + $0x170] sm:$0xff]
  %v62 = vld [vmem:[%s0 + $0x178] sm:$0xff]
  %v63 = vld [vmem:[%s0 + $0x180] sm:$0xff]
  %v64 = vld [vmem:[%s0 + $0x188] sm:$0xff]
  %v65 = vld [vmem:[%s0 + $0x190] sm:$0xff]
  %v66 = vld [vmem:[%s0 + $0x198] sm:$0xff]
  %v67 = vld [vmem:[%s0 + $0x1a0] sm:$0xff]
  %v68 = vld [vmem:[%s0 + $0x1a8] sm:$0xff]
  %v69 = vld [vmem:[%s0 + $0x1b0] sm:$0xff]
  %v70 = vld [vmem:[%s0 + $0x1b8] sm:$0xff]
  %v71 = vld [vmem:[%s0 + $0x1c0] sm:$0xff]
  %v72 = vld [vmem:[%s0 + $0x1c8] sm:$0xff]
  %v73 = vld [vmem:[%s0 + $0x1d0] sm:$0xff]
  %v74 = vld [vmem:[%s0 + $0x1d8] sm:$0xff]
  %v75 = vld [vmem:[%s0 + $0x1e0] sm:$0xff]
  %v76 = vld [vmem:[%s0 + $0x1e8] sm:$0xff]
  %v77 = vld [vmem:[%s0 + $0x1f0] sm:$0xff]
  %v78 = vld [vmem:[%s0 + $0x1f8] sm:$0xff]
  %v79 = vld [vmem:[%s0 + $0x200] sm:$0xff]
  %v80 = vld [vmem:[%s0 + $0x208] sm:$0xff]
  %v81 = vld [vmem:[%s0 + $0x210] sm:$0xff]
  %v82 = vld [vmem:[%s0 + $0x218] sm:$0xff]
  %v83 = vld [vmem:[%s0 + $0x220] sm:$0xff]
  %v84 = vld [vmem:[%s0 + $0x228] sm:$0xff]
  %v85 = vld [vmem:[%s0 + $0x230] sm:$0xff]
  %v86 = vld [vmem:[%s0 + $0x238] sm:$0xff]
  %v87 = vld [vmem:[%s0 + $0x240] sm:$0xff]
  %v88 = vld [vmem:[%s0 + $0x248] sm:$0xff]
  %v89 = vld [vmem:[%s0 + $0x250] sm:$0xff]
  %v90 = vld [vmem:[%s0 + $0x258] sm:$0xff]
  %v91 = vld [vmem:[%s0 + $0x260] sm:$0xff]
  %v92 = vld [vmem:[%s0 + $0x268] sm:$0xff]
  %v93 = vld [vmem:[%s0 + $0x270] sm:$0xff]
  %v94 = vld [vmem:[%s0 + $0x278] sm:$0xff]
  %v95 = vld [vmem:[%s0 + $0x280] sm:$0xff]
  %v96 = vld [vmem:[%s0 + $0x288] sm:$0xff]
  %v97 = vld [vmem:[%s0 + $0x290] sm:$0xff]
  %v98 = vld [vmem:[%s0 + $0x298] sm:$0xff]
  %v99 = vld [vmem:[%s0 + $0x2a0] sm:$0xff]
  %v100 = vld [vmem:[%s0 + $0x2a8] sm:$0xff]
  %v101 = vld [vmem:[%s0 + $0x2b0] sm:$0xff]
  %v102 = vld [vmem:[%s0 + $0x2b8] sm:$0xff]
  %v103 = vld [vmem:[%s0 + $0x2c0] sm:$0xff]
  %v104 = vld [vmem:[%s0 + $0x2c8] sm:$0xff]
  %v105 = vld [vmem:[%s0 + $0x2d0] sm:$0xff]
  %v106 = vld [vmem:[%s0 + $0x2d8] sm:$0xff]
  %v107 = vld [vmem:[%s0 + $0x2e0] sm:$0xff]
  %v108 = vld [vmem:[%s0 + $0x2e8] sm:$0xff]
  %v109 = vld [vmem:[%s0 + $0x2f0] sm:$0xff]
  %v110 = vld [vmem:[%s0 + $0x2f8] sm:$0xff]
  %v111 = vld [vmem:[%s0 + $0x300] sm:$0xff]
  %v112 = vld [vmem:[%s0 + $0x308] sm:$0xff]
  %v113 = vld [vmem:[%s0 + $0x310] sm:$0xff]
  %v114 = vld [vmem:[%s0 + $0x318] sm:$0xff]
  %v115 = vld [vmem:[%s0 + $0x320] sm:$0xff]
  %v116 = vld [vmem:[%s0 + $0x328] sm:$0xff]
  %v117 = vld [vmem:[%s0 + $0x330] sm:$0xff]
  %v118 = vld [vmem:[%s0 + $0x338] sm:$0xff]
  %v119 = vld [vmem:[%s0 + $0x340] sm:$0xff]
  %v120 = vld [vmem:[%s0 + $0x348] sm:$0xff]
  %v121 = vld [vmem:[%s0 + $0x350] sm:$0xff]
  %v122 = vld [vmem:[%s0 + $0x358] sm:$0xff]
  %v123 = vld [vmem:[%s0 + $0x360] sm:$0xff]
  %v124 = vld [vmem:[%s0 + $0x368] sm:$0xff]
  %v125 = vld [vmem:[%s0 + $0x370] sm:$0xff]
  %v126 = vld [vmem:[%s0 + $0x378] sm:$0xff]
  %v127 = vld [vmem:[%s0 + $0x380] sm:$0xff]
  %v128 = vld [vmem:[%s0 + $0x388] sm:$0xff]
  %v129 = vld [vmem:[%s0 + $0x390] sm:$0xff]
  %v130 = vld [vmem:[%s0 + $0x398] sm:$0xff]
  %v131 = vld [vmem:[%s0 + $0x3a0] sm:$0xff]
  %v132 = vld [vmem:[%s0 + $0x3a8] sm:$0xff]
  %v133 = vld [vmem:[%s0 + $0x3b0] sm:$0xff]
  %v134 = vld [vmem:[%s0 + $0x3b8] sm:$0xff]
  %v135 = vld [vmem:[%s0 + $0x3c0] sm:$0xff]
  %v136 = vld [vmem:[%s0 + $0x3c8] sm:$0xff]
  %v137 = vld [vmem:[%s0 + $0x3d0] sm:$0xff]
  %v138 = vld [vmem:[%s0 + $0x3d8] sm:$0xff]
  %v139 = vld [vmem:[%s0 + $0x3e0] sm:$0xff]
  %v140 = vld [vmem:[%s0 + $0x3e8] sm:$0xff]
  %v141 = vld [vmem:[%s0 + $0x3f0] sm:$0xff]
  %v142 = vld [vmem:[%s0 + $0x3f8] sm:$0xff]
  %v143 = vld [vmem:[%s0 + $0x400] sm:$0xff]
  %v144 = vld [vmem:[%s0 + $0x408] sm:$0xff]
  %v145 = vld [vmem:[%s0 + $0x410] sm:$0xff]
  %v146 = vld [vmem:[%s0 + $0x418] sm:$0xff]
  %v147 = vld [vmem:[%s0 + $0x420] sm:$0xff]
  %v148 = vld [vmem:[%s0 + $0x428] sm:$0xff]
  %v149 = vld [vmem:[%s0 + $0x430] sm:$0xff]
  %v150 = vld [vmem:[%s0 + $0x438] sm:$0xff]
  %v151 = vld [vmem:[%s0 + $0x440] sm:$0xff]
  %v152 = vld [vmem:[%s0 + $0x448] sm:$0xff]
  %v153 = vld [vmem:[%s0 + $0x450] sm:$0xff]
  %v154 = vld [vmem:[%s0 + $0x458] sm:$0xff]
  %v155 = vld [vmem:[%s0 + $0x460] sm:$0xff]
  %v156 = vld [vmem:[%s0 + $0x468] sm:$0xff]
  %v157 = vld [vmem:[%s0 + $0x470] sm:$0xff]
  %v158 = vld [vmem:[%s0 + $0x478] sm:$0xff]
  %v159 = vld [vmem:[%s0 + $0x480] sm:$0xff]
  %v160 = vld [vmem:[%s0 + $0x488] sm:$0xff]
  %v161 = vld [vmem:[%s0 + $0x490] sm:$0xff]
  %v162 = vld [vmem:[%s0 + $0x498] sm:$0xff]
  %v163 = vld [vmem:[%s0 + $0x4a0] sm:$0xff]
  %v164 = vld [vmem:[%s0 + $0x4a8] sm:$0xff]
  %v165 = vld [vmem:[%s0 + $0x4b0] sm:$0xff]
  %v166 = vld [vmem:[%s0 + $0x4b8] sm:$0xff]
  %v167 = vld [vmem:[%s0 + $0x4c0] sm:$0xff]
  %v168 = vld [vmem:[%s0 + $0x4c8] sm:$0xff]
  %v169 = vld [vmem:[%s0 + $0x4d0] sm:$0xff]
  %v170 = vld [vmem:[%s0 + $0x4d8] sm:$0xff]
  %v171 = vld [vmem:[%s0 + $0x4e0] sm:$0xff]
  %v172 = vld [vmem:[%s0 + $0x4e8] sm:$0xff]
  %v173 = vld [vmem:[%s0 + $0x4f0] sm:$0xff]
  %v174 = vld [vmem:[%s0 + $0x4f8] sm:$0xff]
  %v175 = vld [vmem:[%s0 + $0x500] sm:$0xff]
  %v176 = vld [vmem:[%s0 + $0x508] sm:$0xff]
  %v177 = vld [vmem:[%s0 + $0x510] sm:$0xff]
  %v178 = vld [vmem:[%s0 + $0x518] sm:$0xff]
  %v179 = vld [vmem:[%s0 + $0x520] sm:$0xff]
  %v180 = vld [vmem:[%s0 + $0x528] sm:$0xff]
  %v181 = vld [vmem:[%s0 + $0x530] sm:$0xff]
  %v182 = vld [vmem:[%s0 + $0x538] sm:$0xff]
  %v183 = vld [vmem:[%s0 + $0x540] sm:$0xff]
  %v184 = vld [vmem:[%s0 + $0x548] sm:$0xff]
  %v185 = vld [vmem:[%s0 + $0x550] sm:$0xff]
  %v186 = vld [vmem:[%s0 + $0x558] sm:$0xff]
  %v187 = vld [vmem:[%s0 + $0x560] sm:$0xff]
  %v188 = vld [vmem:[%s0 + $0x568] sm:$0xff]
  %v189 = vld [vmem:[%s0 + $0x570] sm:$0xff]
  %v190 = vld [vmem:[%s0 + $0x578] sm:$0xff]
  %v191 = vld [vmem:[%s0 + $0x580] sm:$0xff]
  %v192 = vld [vmem:[%s0 + $0x588] sm:$0xff]
  %v193 = vld [vmem:[%s0 + $0x590] sm:$0xff]
  %v194 = vld [vmem:[%s0 + $0x598] sm:$0xff]
  %v195 = vld [vmem:[%s0 + $0x5a0] sm:$0xff]
  %v196 = vld [vmem:[%s0 + $0x5a8] sm:$0xff]
  %v197 = vld [vmem:[%s0 + $0x5b0] sm:$0xff]
  %v198 = vld [vmem:[%s0 + $0x5b8] sm:$0xff]
  %v199 = vld [vmem:[%s0 + $0x5c0] sm:$0xff]
  %v200 = vld [vmem:[%s0 + $0x5c8] sm:$0xff]
  %v201 = vld [vmem:[%s0 + $0x5d0] sm:$0xff]
  %v202 = vld [vmem:[%s0 + $0x5d8] sm:$0xff]
  %v203 = vld [vmem:[%s0 + $0x5e0] sm:$0xff]
  %v204 = vld [vmem:[%s0 + $0x5e8] sm:$0xff]
  %v205 = vld [vmem:[%s0 + $0x5f0] sm:$0xff]
  %v206 = vld [vmem:[%s0 + $0x5f8] sm:$0xff]
  %v207 = vld [vmem:[%s0 + $0x600] sm:$0xff]
  %v208 = vld [vmem:[%s0 + $0x608] sm:$0xff]
  %v209 = vld [vmem:[%s0 + $0x610] sm:$0xff]
  %v210 = vld [vmem:[%s0 + $0x618] sm:$0xff]
  %v211 = vld [vmem:[%s0 + $0x620] sm:$0xff]
  %v212 = vld [vmem:[%s0 + $0x628] sm:$0xff]
  %v213 = vld [vmem:[%s0 + $0x630] sm:$0xff]
  %v214 = vld [vmem:[%s0 + $0x638] sm:$0xff]
  %v215 = vld [vmem:[%s0 + $0x640] sm:$0xff]
  %v216 = vld [vmem:[%s0 + $0x648] sm:$0xff]
  %v217 = vld [vmem:[%s0 + $0x650] sm:$0xff]
  %v218 = vld [vmem:[%s0 + $0x658] sm:$0xff]
  %v219 = vld [vmem:[%s0 + $0x660] sm:$0xff]
  %v220 = vld [vmem:[%s0 + $0x668] sm:$0xff]
  %v221 = vld [vmem:[%s0 + $0x670] sm:$0xff]
  %v222 = vld [vmem:[%s0 + $0x678] sm:$0xff]
  %v223 = vld [vmem:[%s0 + $0x680] sm:$0xff]
  %v224 = vld [vmem:[%s0 + $0x688] sm:$0xff]
  %v225 = vld [vmem:[%s0 + $0x690] sm:$0x3]
  %v226 = vld [vmem:[%s1] sm:$0x1]
  %v228 = vperm.slane %v226, 0
  %v230 = vadd.f32 %v15, %v228
  %v231 = vadd.f32 %v16, %v228
  %v232 = vadd.f32 %v17, %v228
  %v233 = vadd.f32 %v18, %v228
  %v234 = vadd.f32 %v19, %v228
  %v235 = vadd.f32 %v20, %v228
  %v236 = vadd.f32 %v21, %v228
  %v237 = vadd.f32 %v22, %v228
  %v238 = vadd.f32 %v23, %v228
  %v239 = vadd.f32 %v24, %v228
  %v240 = vadd.f32 %v25, %v228
  %v241 = vadd.f32 %v26, %v228
  %v242 = vadd.f32 %v27, %v228
  %v243 = vadd.f32 %v28, %v228
  %v244 = vadd.f32 %v29, %v228
  %v245 = vadd.f32 %v30, %v228
  %v246 = vadd.f32 %v31, %v228
  %v247 = vadd.f32 %v32, %v228
  %v248 = vadd.f32 %v33, %v228
  %v249 = vadd.f32 %v34, %v228
  %v250 = vadd.f32 %v35, %v228
  %v251 = vadd.f32 %v36, %v228
  %v252 = vadd.f32 %v37, %v228
  %v253 = vadd.f32 %v38, %v228
  %v254 = vadd.f32 %v39, %v228
  %v255 = vadd.f32 %v40, %v228
  %v256 = vadd.f32 %v41, %v228
  %v257 = vadd.f32 %v42, %v228
  %v258 = vadd.f32 %v43, %v228
  %v259 = vadd.f32 %v44, %v228
  %v260 = vadd.f32 %v45, %v228
  %v261 = vadd.f32 %v46, %v228
  %v262 = vadd.f32 %v47, %v228
  %v263 = vadd.f32 %v48, %v228
  %v264 = vadd.f32 %v49, %v228
  %v265 = vadd.f32 %v50, %v228
  %v266 = vadd.f32 %v51, %v228
  %v267 = vadd.f32 %v52, %v228
  %v268 = vadd.f32 %v53, %v228
  %v269 = vadd.f32 %v54, %v228
  %v270 = vadd.f32 %v55, %v228
  %v271 = vadd.f32 %v56, %v228
  %v272 = vadd.f32 %v57, %v228
  %v273 = vadd.f32 %v58, %v228
  %v274 = vadd.f32 %v59, %v228
  %v275 = vadd.f32 %v60, %v228
  %v276 = vadd.f32 %v61, %v228
  %v277 = vadd.f32 %v62, %v228
  %v278 = vadd.f32 %v63, %v228
  %v279 = vadd.f32 %v64, %v228
  %v280 = vadd.f32 %v65, %v228
  %v281 = vadd.f32 %v66, %v228
  %v282 = vadd.f32 %v67, %v228
  %v283 = vadd.f32 %v68, %v228
  %v284 = vadd.f32 %v69, %v228
  %v285 = vadd.f32 %v70, %v228
  %v286 = vadd.f32 %v71, %v228
  %v287 = vadd.f32 %v72, %v228
  %v288 = vadd.f32 %v73, %v228
  %v289 = vadd.f32 %v74, %v228
  %v290 = vadd.f32 %v75, %v228
  %v291 = vadd.f32 %v76, %v228
  %v292 = vadd.f32 %v77, %v228
  %v293 = vadd.f32 %v78, %v228
  %v294 = vadd.f32 %v79, %v228
  %v295 = vadd.f32 %v80, %v228
  %v296 = vadd.f32 %v81, %v228
  %v297 = vadd.f32 %v82, %v228
  %v298 = vadd.f32 %v83, %v228
  %v299 = vadd.f32 %v84, %v228
  %v300 = vadd.f32 %v85, %v228
  %v301 = vadd.f32 %v86, %v228
  %v302 = vadd.f32 %v87, %v228
  %v303 = vadd.f32 %v88, %v228
  %v304 = vadd.f32 %v89, %v228
  %v305 = vadd.f32 %v90, %v228
  %v306 = vadd.f32 %v91, %v228
  %v307 = vadd.f32 %v92, %v228
  %v308 = vadd.f32 %v93, %v228
  %v309 = vadd.f32 %v94, %v228
  %v310 = vadd.f32 %v95, %v228
  %v311 = vadd.f32 %v96, %v228
  %v312 = vadd.f32 %v97, %v228
  %v313 = vadd.f32 %v98, %v228
  %v314 = vadd.f32 %v99, %v228
  %v315 = vadd.f32 %v100, %v228
  %v316 = vadd.f32 %v101, %v228
  %v317 = vadd.f32 %v102, %v228
  %v318 = vadd.f32 %v103, %v228
  %v319 = vadd.f32 %v104, %v228
  %v320 = vadd.f32 %v105, %v228
  %v321 = vadd.f32 %v106, %v228
  %v322 = vadd.f32 %v107, %v228
  %v323 = vadd.f32 %v108, %v228
  %v324 = vadd.f32 %v109, %v228
  %v325 = vadd.f32 %v110, %v228
  %v326 = vadd.f32 %v111, %v228
  %v327 = vadd.f32 %v112, %v228
  %v328 = vadd.f32 %v113, %v228
  %v329 = vadd.f32 %v114, %v228
  %v330 = vadd.f32 %v115, %v228
  %v331 = vadd.f32 %v116, %v228
  %v332 = vadd.f32 %v117, %v228
  %v333 = vadd.f32 %v118, %v228
  %v334 = vadd.f32 %v119, %v228
  %v335 = vadd.f32 %v120, %v228
  %v336 = vadd.f32 %v121, %v228
  %v337 = vadd.f32 %v122, %v228
  %v338 = vadd.f32 %v123, %v228
  %v339 = vadd.f32 %v124, %v228
  %v340 = vadd.f32 %v125, %v228
  %v341 = vadd.f32 %v126, %v228
  %v342 = vadd.f32 %v127, %v228
  %v343 = vadd.f32 %v128, %v228
  %v344 = vadd.f32 %v129, %v228
  %v345 = vadd.f32 %v130, %v228
  %v346 = vadd.f32 %v131, %v228
  %v347 = vadd.f32 %v132, %v228
  %v348 = vadd.f32 %v133, %v228
  %v349 = vadd.f32 %v134, %v228
  %v350 = vadd.f32 %v135, %v228
  %v351 = vadd.f32 %v136, %v228
  %v352 = vadd.f32 %v137, %v228
  %v353 = vadd.f32 %v138, %v228
  %v354 = vadd.f32 %v139, %v228
  %v355 = vadd.f32 %v140, %v228
  %v356 = vadd.f32 %v141, %v228
  %v357 = vadd.f32 %v142, %v228
  %v358 = vadd.f32 %v143, %v228
  %v359 = vadd.f32 %v144, %v228
  %v360 = vadd.f32 %v145, %v228
  %v361 = vadd.f32 %v146, %v228
  %v362 = vadd.f32 %v147, %v228
  %v363 = vadd.f32 %v148, %v228
  %v364 = vadd.f32 %v149, %v228
  %v365 = vadd.f32 %v150, %v228
  %v366 = vadd.f32 %v151, %v228
  %v367 = vadd.f32 %v152, %v228
  %v368 = vadd.f32 %v153, %v228
  %v369 = vadd.f32 %v154, %v228
  %v370 = vadd.f32 %v155, %v228
  %v371 = vadd.f32 %v156, %v228
  %v372 = vadd.f32 %v157, %v228
  %v373 = vadd.f32 %v158, %v228
  %v374 = vadd.f32 %v159, %v228
  %v375 = vadd.f32 %v160, %v228
  %v376 = vadd.f32 %v161, %v228
  %v377 = vadd.f32 %v162, %v228
  %v378 = vadd.f32 %v163, %v228
  %v379 = vadd.f32 %v164, %v228
  %v380 = vadd.f32 %v165, %v228
  %v381 = vadd.f32 %v166, %v228
  %v382 = vadd.f32 %v167, %v228
  %v383 = vadd.f32 %v168, %v228
  %v384 = vadd.f32 %v169, %v228
  %v385 = vadd.f32 %v170, %v228
  %v386 = vadd.f32 %v171, %v228
  %v387 = vadd.f32 %v172, %v228
  %v388 = vadd.f32 %v173, %v228
  %v389 = vadd.f32 %v174, %v228
  %v390 = vadd.f32 %v175, %v228
  %v391 = vadd.f32 %v176, %v228
  %v392 = vadd.f32 %v177, %v228
  %v393 = vadd.f32 %v178, %v228
  %v394 = vadd.f32 %v179, %v228
  %v395 = vadd.f32 %v180, %v228
  %v396 = vadd.f32 %v181, %v228
  %v397 = vadd.f32 %v182, %v228
  %v398 = vadd.f32 %v183, %v228
  %v399 = vadd.f32 %v184, %v228
  %v400 = vadd.f32 %v185, %v228
  %v401 = vadd.f32 %v186, %v228
  %v402 = vadd.f32 %v187, %v228
  %v403 = vadd.f32 %v188, %v228
  %v404 = vadd.f32 %v189, %v228
  %v405 = vadd.f32 %v190, %v228
  %v406 = vadd.f32 %v191, %v228
  %v407 = vadd.f32 %v192, %v228
  %v408 = vadd.f32 %v193, %v228
  %v409 = vadd.f32 %v194, %v228
  %v410 = vadd.f32 %v195, %v228
  %v411 = vadd.f32 %v196, %v228
  %v412 = vadd.f32 %v197, %v228
  %v413 = vadd.f32 %v198, %v228
  %v414 = vadd.f32 %v199, %v228
  %v415 = vadd.f32 %v200, %v228
  %v416 = vadd.f32 %v201, %v228
  %v417 = vadd.f32 %v202, %v228
  %v418 = vadd.f32 %v203, %v228
  %v419 = vadd.f32 %v204, %v228
  %v420 = vadd.f32 %v205, %v228
  %v421 = vadd.f32 %v206, %v228
  %v422 = vadd.f32 %v207, %v228
  %v423 = vadd.f32 %v208, %v228
  %v424 = vadd.f32 %v209, %v228
  %v425 = vadd.f32 %v210, %v228
  %v426 = vadd.f32 %v211, %v228
  %v427 = vadd.f32 %v212, %v228
  %v428 = vadd.f32 %v213, %v228
  %v429 = vadd.f32 %v214, %v228
  %v430 = vadd.f32 %v215, %v228
  %v431 = vadd.f32 %v216, %v228
  %v432 = vadd.f32 %v217, %v228
  %v433 = vadd.f32 %v218, %v228
  %v434 = vadd.f32 %v219, %v228
  %v435 = vadd.f32 %v220, %v228
  %v436 = vadd.f32 %v221, %v228
  %v437 = vadd.f32 %v222, %v228
  %v438 = vadd.f32 %v223, %v228
  %v439 = vadd.f32 %v224, %v228
  %v440 = vadd.f32 %v225, %v228
  %v441 = vmax.f32 %v230, 0.0
  %v442 = vmax.f32 %v231, 0.0
  %v443 = vmax.f32 %v232, 0.0
  %v444 = vmax.f32 %v233, 0.0
  %v445 = vmax.f32 %v234, 0.0
  %v446 = vmax.f32 %v235, 0.0
  %v447 = vmax.f32 %v236, 0.0
  %v448 = vmax.f32 %v237, 0.0
  %v449 = vmax.f32 %v238, 0.0
  %v450 = vmax.f32 %v239, 0.0
  %v451 = vmax.f32 %v240, 0.0
  %v452 = vmax.f32 %v241, 0.0
  %v453 = vmax.f32 %v242, 0.0
  %v454 = vmax.f32 %v243, 0.0
  %v455 = vmax.f32 %v244, 0.0
  %v456 = vmax.f32 %v245, 0.0
  %v457 = vmax.f32 %v246, 0.0
  %v458 = vmax.f32 %v247, 0.0
  %v459 = vmax.f32 %v248, 0.0
  %v460 = vmax.f32 %v249, 0.0
  %v461 = vmax.f32 %v250, 0.0
  %v462 = vmax.f32 %v251, 0.0
  %v463 = vmax.f32 %v252, 0.0
  %v464 = vmax.f32 %v253, 0.0
  %v465 = vmax.f32 %v254, 0.0
  %v466 = vmax.f32 %v255, 0.0
  %v467 = vmax.f32 %v256, 0.0
  %v468 = vmax.f32 %v257, 0.0
  %v469 = vmax.f32 %v258, 0.0
  %v470 = vmax.f32 %v259, 0.0
  %v471 = vmax.f32 %v260, 0.0
  %v472 = vmax.f32 %v261, 0.0
  %v473 = vmax.f32 %v262, 0.0
  %v474 = vmax.f32 %v263, 0.0
  %v475 = vmax.f32 %v264, 0.0
  %v476 = vmax.f32 %v265, 0.0
  %v477 = vmax.f32 %v266, 0.0
  %v478 = vmax.f32 %v267, 0.0
  %v479 = vmax.f32 %v268, 0.0
  %v480 = vmax.f32 %v269, 0.0
  %v481 = vmax.f32 %v270, 0.0
  %v482 = vmax.f32 %v271, 0.0
  %v483 = vmax.f32 %v272, 0.0
  %v484 = vmax.f32 %v273, 0.0
  %v485 = vmax.f32 %v274, 0.0
  %v486 = vmax.f32 %v275, 0.0
  %v487 = vmax.f32 %v276, 0.0
  %v488 = vmax.f32 %v277, 0.0
  %v489 = vmax.f32 %v278, 0.0
  %v490 = vmax.f32 %v279, 0.0
  %v491 = vmax.f32 %v280, 0.0
  %v492 = vmax.f32 %v281, 0.0
  %v493 = vmax.f32 %v282, 0.0
  %v494 = vmax.f32 %v283, 0.0
  %v495 = vmax.f32 %v284, 0.0
  %v496 = vmax.f32 %v285, 0.0
  %v497 = vmax.f32 %v286, 0.0
  %v498 = vmax.f32 %v287, 0.0
  %v499 = vmax.f32 %v288, 0.0
  %v500 = vmax.f32 %v289, 0.0
  %v501 = vmax.f32 %v290, 0.0
  %v502 = vmax.f32 %v291, 0.0
  %v503 = vmax.f32 %v292, 0.0
  %v504 = vmax.f32 %v293, 0.0
  %v505 = vmax.f32 %v294, 0.0
  %v506 = vmax.f32 %v295, 0.0
  %v507 = vmax.f32 %v296, 0.0
  %v508 = vmax.f32 %v297, 0.0
  %v509 = vmax.f32 %v298, 0.0
  %v510 = vmax.f32 %v299, 0.0
  %v511 = vmax.f32 %v300, 0.0
  %v512 = vmax.f32 %v301, 0.0
  %v513 = vmax.f32 %v302, 0.0
  %v514 = vmax.f32 %v303, 0.0
  %v515 = vmax.f32 %v304, 0.0
  %v516 = vmax.f32 %v305, 0.0
  %v517 = vmax.f32 %v306, 0.0
  %v518 = vmax.f32 %v307, 0.0
  %v519 = vmax.f32 %v308, 0.0
  %v520 = vmax.f32 %v309, 0.0
  %v521 = vmax.f32 %v310, 0.0
  %v522 = vmax.f32 %v311, 0.0
  %v523 = vmax.f32 %v312, 0.0
  %v524 = vmax.f32 %v313, 0.0
  %v525 = vmax.f32 %v314, 0.0
  %v526 = vmax.f32 %v315, 0.0
  %v527 = vmax.f32 %v316, 0.0
  %v528 = vmax.f32 %v317, 0.0
  %v529 = vmax.f32 %v318, 0.0
  %v530 = vmax.f32 %v319, 0.0
  %v531 = vmax.f32 %v320, 0.0
  %v532 = vmax.f32 %v321, 0.0
  %v533 = vmax.f32 %v322, 0.0
  %v534 = vmax.f32 %v323, 0.0
  %v535 = vmax.f32 %v324, 0.0
  %v536 = vmax.f32 %v325, 0.0
  %v537 = vmax.f32 %v326, 0.0
  %v538 = vmax.f32 %v327, 0.0
  %v539 = vmax.f32 %v328, 0.0
  %v540 = vmax.f32 %v329, 0.0
  %v541 = vmax.f32 %v330, 0.0
  %v542 = vmax.f32 %v331, 0.0
  %v543 = vmax.f32 %v332, 0.0
  %v544 = vmax.f32 %v333, 0.0
  %v545 = vmax.f32 %v334, 0.0
  %v546 = vmax.f32 %v335, 0.0
  %v547 = vmax.f32 %v336, 0.0
  %v548 = vmax.f32 %v337, 0.0
  %v549 = vmax.f32 %v338, 0.0
  %v550 = vmax.f32 %v339, 0.0
  %v551 = vmax.f32 %v340, 0.0
  %v552 = vmax.f32 %v341, 0.0
  %v553 = vmax.f32 %v342, 0.0
  %v554 = vmax.f32 %v343, 0.0
  %v555 = vmax.f32 %v344, 0.0
  %v556 = vmax.f32 %v345, 0.0
  %v557 = vmax.f32 %v346, 0.0
  %v558 = vmax.f32 %v347, 0.0
  %v559 = vmax.f32 %v348, 0.0
  %v560 = vmax.f32 %v349, 0.0
  %v561 = vmax.f32 %v350, 0.0
  %v562 = vmax.f32 %v351, 0.0
  %v563 = vmax.f32 %v352, 0.0
  %v564 = vmax.f32 %v353, 0.0
  %v565 = vmax.f32 %v354, 0.0
  %v566 = vmax.f32 %v355, 0.0
  %v567 = vmax.f32 %v356, 0.0
  %v568 = vmax.f32 %v357, 0.0
  %v569 = vmax.f32 %v358, 0.0
  %v570 = vmax.f32 %v359, 0.0
  %v571 = vmax.f32 %v360, 0.0
  %v572 = vmax.f32 %v361, 0.0
  %v573 = vmax.f32 %v362, 0.0
  %v574 = vmax.f32 %v363, 0.0
  %v575 = vmax.f32 %v364, 0.0
  %v576 = vmax.f32 %v365, 0.0
  %v577 = vmax.f32 %v366, 0.0
  %v578 = vmax.f32 %v367, 0.0
  %v579 = vmax.f32 %v368, 0.0
  %v580 = vmax.f32 %v369, 0.0
  %v581 = vmax.f32 %v370, 0.0
  %v582 = vmax.f32 %v371, 0.0
  %v583 = vmax.f32 %v372, 0.0
  %v584 = vmax.f32 %v373, 0.0
  %v585 = vmax.f32 %v374, 0.0
  %v586 = vmax.f32 %v375, 0.0
  %v587 = vmax.f32 %v376, 0.0
  %v588 = vmax.f32 %v377, 0.0
  %v589 = vmax.f32 %v378, 0.0
  %v590 = vmax.f32 %v379, 0.0
  %v591 = vmax.f32 %v380, 0.0
  %v592 = vmax.f32 %v381, 0.0
  %v593 = vmax.f32 %v382, 0.0
  %v594 = vmax.f32 %v383, 0.0
  %v595 = vmax.f32 %v384, 0.0
  %v596 = vmax.f32 %v385, 0.0
  %v597 = vmax.f32 %v386, 0.0
  %v598 = vmax.f32 %v387, 0.0
  %v599 = vmax.f32 %v388, 0.0
  %v600 = vmax.f32 %v389, 0.0
  %v601 = vmax.f32 %v390, 0.0
  %v602 = vmax.f32 %v391, 0.0
  %v603 = vmax.f32 %v392, 0.0
  %v604 = vmax.f32 %v393, 0.0
  %v605 = vmax.f32 %v394, 0.0
  %v606 = vmax.f32 %v395, 0.0
  %v607 = vmax.f32 %v396, 0.0
  %v608 = vmax.f32 %v397, 0.0
  %v609 = vmax.f32 %v398, 0.0
  %v610 = vmax.f32 %v399, 0.0
  %v611 = vmax.f32 %v400, 0.0
  %v612 = vmax.f32 %v401, 0.0
  %v613 = vmax.f32 %v402, 0.0
  %v614 = vmax.f32 %v403, 0.0
  %v615 = vmax.f32 %v404, 0.0
  %v616 = vmax.f32 %v405, 0.0
  %v617 = vmax.f32 %v406, 0.0
  %v618 = vmax.f32 %v407, 0.0
  %v619 = vmax.f32 %v408, 0.0
  %v620 = vmax.f32 %v409, 0.0
  %v621 = vmax.f32 %v410, 0.0
  %v622 = vmax.f32 %v411, 0.0
  %v623 = vmax.f32 %v412, 0.0
  %v624 = vmax.f32 %v413, 0.0
  %v625 = vmax.f32 %v414, 0.0
  %v626 = vmax.f32 %v415, 0.0
  %v627 = vmax.f32 %v416, 0.0
  %v628 = vmax.f32 %v417, 0.0
  %v629 = vmax.f32 %v418, 0.0
  %v630 = vmax.f32 %v419, 0.0
  %v631 = vmax.f32 %v420, 0.0
  %v632 = vmax.f32 %v421, 0.0
  %v633 = vmax.f32 %v422, 0.0
  %v634 = vmax.f32 %v423, 0.0
  %v635 = vmax.f32 %v424, 0.0
  %v636 = vmax.f32 %v425, 0.0
  %v637 = vmax.f32 %v426, 0.0
  %v638 = vmax.f32 %v427, 0.0
  %v639 = vmax.f32 %v428, 0.0
  %v640 = vmax.f32 %v429, 0.0
  %v641 = vmax.f32 %v430, 0.0
  %v642 = vmax.f32 %v431, 0.0
  %v643 = vmax.f32 %v432, 0.0
  %v644 = vmax.f32 %v433, 0.0
  %v645 = vmax.f32 %v434, 0.0
  %v646 = vmax.f32 %v435, 0.0
  %v647 = vmax.f32 %v436, 0.0
  %v648 = vmax.f32 %v437, 0.0
  %v649 = vmax.f32 %v438, 0.0
  %v650 = vmax.f32 %v439, 0.0
  %v651 = vmax.f32 %v440, 0.0
  %v652 = vpack.c.bf16 %v442, %v441
  %v653 = vpack.c.bf16 %v444, %v443
  %v654 = vpack.c.bf16 %v446, %v445
  %v655 = vpack.c.bf16 %v448, %v447
  %v656 = vpack.c.bf16 %v450, %v449
  %v657 = vpack.c.bf16 %v452, %v451
  %v658 = vpack.c.bf16 %v454, %v453
  %v659 = vpack.c.bf16 %v456, %v455
  %v660 = vpack.c.bf16 %v458, %v457
  %v661 = vpack.c.bf16 %v460, %v459
  %v662 = vpack.c.bf16 %v462, %v461
  %v663 = vpack.c.bf16 %v464, %v463
  %v664 = vpack.c.bf16 %v466, %v465
  %v665 = vpack.c.bf16 %v468, %v467
  %v666 = vpack.c.bf16 %v470, %v469
  %v667 = vpack.c.bf16 %v472, %v471
  %v668 = vpack.c.bf16 %v474, %v473
  %v669 = vpack.c.bf16 %v476, %v475
  %v670 = vpack.c.bf16 %v478, %v477
  %v671 = vpack.c.bf16 %v480, %v479
  %v672 = vpack.c.bf16 %v482, %v481
  %v673 = vpack.c.bf16 %v484, %v483
  %v674 = vpack.c.bf16 %v486, %v485
  %v675 = vpack.c.bf16 %v488, %v487
  %v676 = vpack.c.bf16 %v490, %v489
  %v677 = vpack.c.bf16 %v492, %v491
  %v678 = vpack.c.bf16 %v494, %v493
  %v679 = vpack.c.bf16 %v496, %v495
  %v680 = vpack.c.bf16 %v498, %v497
  %v681 = vpack.c.bf16 %v500, %v499
  %v682 = vpack.c.bf16 %v502, %v501
  %v683 = vpack.c.bf16 %v504, %v503
  %v684 = vpack.c.bf16 %v506, %v505
  %v685 = vpack.c.bf16 %v508, %v507
  %v686 = vpack.c.bf16 %v510, %v509
  %v687 = vpack.c.bf16 %v512, %v511
  %v688 = vpack.c.bf16 %v514, %v513
  %v689 = vpack.c.bf16 %v516, %v515
  %v690 = vpack.c.bf16 %v518, %v517
  %v691 = vpack.c.bf16 %v520, %v519
  %v692 = vpack.c.bf16 %v522, %v521
  %v693 = vpack.c.bf16 %v524, %v523
  %v694 = vpack.c.bf16 %v526, %v525
  %v695 = vpack.c.bf16 %v528, %v527
  %v696 = vpack.c.bf16 %v530, %v529
  %v697 = vpack.c.bf16 %v532, %v531
  %v698 = vpack.c.bf16 %v534, %v533
  %v699 = vpack.c.bf16 %v536, %v535
  %v700 = vpack.c.bf16 %v538, %v537
  %v701 = vpack.c.bf16 %v540, %v539
  %v702 = vpack.c.bf16 %v542, %v541
  %v703 = vpack.c.bf16 %v544, %v543
  %v704 = vpack.c.bf16 %v546, %v545
  %v705 = vpack.c.bf16 %v548, %v547
  %v706 = vpack.c.bf16 %v550, %v549
  %v707 = vpack.c.bf16 %v552, %v551
  %v708 = vpack.c.bf16 %v554, %v553
  %v709 = vpack.c.bf16 %v556, %v555
  %v710 = vpack.c.bf16 %v558, %v557
  %v711 = vpack.c.bf16 %v560, %v559
  %v712 = vpack.c.bf16 %v562, %v561
  %v713 = vpack.c.bf16 %v564, %v563
  %v714 = vpack.c.bf16 %v566, %v565
  %v715 = vpack.c.bf16 %v568, %v567
  %v716 = vpack.c.bf16 %v570, %v569
  %v717 = vpack.c.bf16 %v572, %v571
  %v718 = vpack.c.bf16 %v574, %v573
  %v719 = vpack.c.bf16 %v576, %v575
  %v720 = vpack.c.bf16 %v578, %v577
  %v721 = vpack.c.bf16 %v580, %v579
  %v722 = vpack.c.bf16 %v582, %v581
  %v723 = vpack.c.bf16 %v584, %v583
  %v724 = vpack.c.bf16 %v586, %v585
  %v725 = vpack.c.bf16 %v588, %v587
  %v726 = vpack.c.bf16 %v590, %v589
  %v727 = vpack.c.bf16 %v592, %v591
  %v728 = vpack.c.bf16 %v594, %v593
  %v729 = vpack.c.bf16 %v596, %v595
  %v730 = vpack.c.bf16 %v598, %v597
  %v731 = vpack.c.bf16 %v600, %v599
  %v732 = vpack.c.bf16 %v602, %v601
  %v733 = vpack.c.bf16 %v604, %v603
  %v734 = vpack.c.bf16 %v606, %v605
  %v735 = vpack.c.bf16 %v608, %v607
  %v736 = vpack.c.bf16 %v610, %v609
  %v737 = vpack.c.bf16 %v612, %v611
  %v738 = vpack.c.bf16 %v614, %v613
  %v739 = vpack.c.bf16 %v616, %v615
  %v740 = vpack.c.bf16 %v618, %v617
  %v741 = vpack.c.bf16 %v620, %v619
  %v742 = vpack.c.bf16 %v622, %v621
  %v743 = vpack.c.bf16 %v624, %v623
  %v744 = vpack.c.bf16 %v626, %v625
  %v745 = vpack.c.bf16 %v628, %v627
  %v746 = vpack.c.bf16 %v630, %v629
  %v747 = vpack.c.bf16 %v632, %v631
  %v748 = vpack.c.bf16 %v634, %v633
  %v749 = vpack.c.bf16 %v636, %v635
  %v750 = vpack.c.bf16 %v638, %v637
  %v751 = vpack.c.bf16 %v640, %v639
  %v752 = vpack.c.bf16 %v642, %v641
  %v753 = vpack.c.bf16 %v644, %v643
  %v754 = vpack.c.bf16 %v646, %v645
  %v755 = vpack.c.bf16 %v648, %v647
  %v756 = vpack.c.bf16 %v650, %v649
  %v757 = vpack.c.bf16 %v651, %v651
  %v758 = vld [vmem:[%s2] sm:$0xf]
  %v759 = vld [vmem:[%s2 + $0x4] sm:$0xf]
  %v760 = vld [vmem:[%s2 + $0x8] sm:$0xf]
  %v761 = vld [vmem:[%s2 + $0xc] sm:$0xf]
  %v766 = vunpack.c.l.b16 %v758
  %v767 = vunpack.c.l.b16 %v759
  %v768 = vunpack.c.l.b16 %v760
  %v769 = vunpack.c.l.b16 %v761
  %v770 = vpack.c.b16 %v767, %v766
  %v771 = vpack.c.b16 %v769, %v768
  %vm774 = vcmask 261120
  %v776 = vsel %vm774, %v652, 0
  %v779 = vsel %vm774, %v653, 0
  %v782 = vsel %vm774, %v654, 0
  %v785 = vsel %vm774, %v655, 0
  %v788 = vsel %vm774, %v656, 0
  %v791 = vsel %vm774, %v657, 0
  %v794 = vsel %vm774, %v658, 0
  %v797 = vsel %vm774, %v659, 0
  %v800 = vsel %vm774, %v660, 0
  %v803 = vsel %vm774, %v661, 0
  %v806 = vsel %vm774, %v662, 0
  %v809 = vsel %vm774, %v663, 0
  %v812 = vsel %vm774, %v664, 0
  %v815 = vsel %vm774, %v665, 0
  %v818 = vsel %vm774, %v666, 0
  %v821 = vsel %vm774, %v667, 0
  %v824 = vsel %vm774, %v668, 0
  %v827 = vsel %vm774, %v669, 0
  %v830 = vsel %vm774, %v670, 0
  %v833 = vsel %vm774, %v671, 0
  %v836 = vsel %vm774, %v672, 0
  %v839 = vsel %vm774, %v673, 0
  %v842 = vsel %vm774, %v674, 0
  %v845 = vsel %vm774, %v675, 0
  %v848 = vsel %vm774, %v676, 0
  %v851 = vsel %vm774, %v677, 0
  %v854 = vsel %vm774, %v678, 0
  %v857 = vsel %vm774, %v679, 0
  %v860 = vsel %vm774, %v680, 0
  %v863 = vsel %vm774, %v681, 0
  %v866 = vsel %vm774, %v682, 0
  %v869 = vsel %vm774, %v683, 0
  %v872 = vsel %vm774, %v684, 0
  %v875 = vsel %vm774, %v685, 0
  %v878 = vsel %vm774, %v686, 0
  %v881 = vsel %vm774, %v687, 0
  %v884 = vsel %vm774, %v688, 0
  %v887 = vsel %vm774, %v689, 0
  %v890 = vsel %vm774, %v690, 0
  %v893 = vsel %vm774, %v691, 0
  %v896 = vsel %vm774, %v692, 0
  %v899 = vsel %vm774, %v693, 0
  %v902 = vsel %vm774, %v694, 0
  %v905 = vsel %vm774, %v695, 0
  %v908 = vsel %vm774, %v696, 0
  %v911 = vsel %vm774, %v697, 0
  %v914 = vsel %vm774, %v698, 0
  %v917 = vsel %vm774, %v699, 0
  %v920 = vsel %vm774, %v700, 0
  %v923 = vsel %vm774, %v701, 0
  %v926 = vsel %vm774, %v702, 0
  %v929 = vsel %vm774, %v703, 0
  %v932 = vsel %vm774, %v704, 0
  %v935 = vsel %vm774, %v705, 0
  %v938 = vsel %vm774, %v706, 0
  %v941 = vsel %vm774, %v707, 0
  %v944 = vsel %vm774, %v708, 0
  %v947 = vsel %vm774, %v709, 0
  %v950 = vsel %vm774, %v710, 0
  %v953 = vsel %vm774, %v711, 0
  %v956 = vsel %vm774, %v712, 0
  %v959 = vsel %vm774, %v713, 0
  %v962 = vsel %vm774, %v714, 0
  %v965 = vsel %vm774, %v715, 0
  %v968 = vsel %vm774, %v716, 0
  %v971 = vsel %vm774, %v717, 0
  %v974 = vsel %vm774, %v718, 0
  %v977 = vsel %vm774, %v719, 0
  %v980 = vsel %vm774, %v720, 0
  %v983 = vsel %vm774, %v721, 0
  %v986 = vsel %vm774, %v722, 0
  %v989 = vsel %vm774, %v723, 0
  %v992 = vsel %vm774, %v724, 0
  %v995 = vsel %vm774, %v725, 0
  %v998 = vsel %vm774, %v726, 0
  %v1001 = vsel %vm774, %v727, 0
  %v1004 = vsel %vm774, %v728, 0
  %v1007 = vsel %vm774, %v729, 0
  %v1010 = vsel %vm774, %v730, 0
  %v1013 = vsel %vm774, %v731, 0
  %v1016 = vsel %vm774, %v732, 0
  %v1019 = vsel %vm774, %v733, 0
  %v1022 = vsel %vm774, %v734, 0
  %v1025 = vsel %vm774, %v735, 0
  %v1028 = vsel %vm774, %v736, 0
  %v1031 = vsel %vm774, %v737, 0
  %v1034 = vsel %vm774, %v738, 0
  %v1037 = vsel %vm774, %v739, 0
  %v1040 = vsel %vm774, %v740, 0
  %v1043 = vsel %vm774, %v741, 0
  %v1046 = vsel %vm774, %v742, 0
  %v1049 = vsel %vm774, %v743, 0
  %v1052 = vsel %vm774, %v744, 0
  %v1055 = vsel %vm774, %v745, 0
  %v1058 = vsel %vm774, %v746, 0
  %v1061 = vsel %vm774, %v747, 0
  %v1064 = vsel %vm774, %v748, 0
  %v1067 = vsel %vm774, %v749, 0
  %v1070 = vsel %vm774, %v750, 0
  %v1073 = vsel %vm774, %v751, 0
  %v1076 = vsel %vm774, %v752, 0
  %v1079 = vsel %vm774, %v753, 0
  %v1082 = vsel %vm774, %v754, 0
  %v1085 = vsel %vm774, %v755, 0
  %v1088 = vsel %vm774, %v756, 0
  %v1091 = vsel %vm774, %v757, 0
  %1093 = vmatpush.bf16.msra.mxu0 0
  %1094 = vmatpush.bf16.msra.mxu0 0
  %1095 = vmatpush.bf16.msra.mxu0 0
  %1096 = vmatpush.bf16.msra.mxu0 0
  %1097 = vmatpush.bf16.msra.mxu0 0
  %1098 = vmatpush.bf16.msra.mxu0 0
  %1099 = vmatpush.bf16.msra.mxu0 %v771
  %1100 = vmatpush.bf16.msra.mxu0 %v770
  %1101 = vmatmul.bf16.gmra.mxu0 %v776
  %v1102 = vpop.f32.mrf.mxu0
  %v1103 = vadd.f32 0.0, %v1102
  %v1104 = vpop.f32.mrf.mxu0
  %v1105 = vadd.f32 0.0, %v1104
  %1106 = vmatmul.bf16.gmra.mxu0 %v779
  %v1107 = vpop.f32.mrf.mxu0
  %v1108 = vadd.f32 0.0, %v1107
  %v1109 = vpop.f32.mrf.mxu0
  %v1110 = vadd.f32 0.0, %v1109
  %1111 = vmatmul.bf16.gmra.mxu0 %v782
  %v1112 = vpop.f32.mrf.mxu0
  %v1113 = vadd.f32 0.0, %v1112
  %v1114 = vpop.f32.mrf.mxu0
  %v1115 = vadd.f32 0.0, %v1114
  %1116 = vmatmul.bf16.gmra.mxu0 %v785
  %v1117 = vpop.f32.mrf.mxu0
  %v1118 = vadd.f32 0.0, %v1117
  %v1119 = vpop.f32.mrf.mxu0
  %v1120 = vadd.f32 0.0, %v1119
  %1121 = vmatmul.bf16.gmra.mxu0 %v788
  %v1122 = vpop.f32.mrf.mxu0
  %v1123 = vadd.f32 0.0, %v1122
  %v1124 = vpop.f32.mrf.mxu0
  %v1125 = vadd.f32 0.0, %v1124
  %1126 = vmatmul.bf16.gmra.mxu0 %v791
  %v1127 = vpop.f32.mrf.mxu0
  %v1128 = vadd.f32 0.0, %v1127
  %v1129 = vpop.f32.mrf.mxu0
  %v1130 = vadd.f32 0.0, %v1129
  %1131 = vmatmul.bf16.gmra.mxu0 %v794
  %v1132 = vpop.f32.mrf.mxu0
  %v1133 = vadd.f32 0.0, %v1132
  %v1134 = vpop.f32.mrf.mxu0
  %v1135 = vadd.f32 0.0, %v1134
  %1136 = vmatmul.bf16.gmra.mxu0 %v797
  %v1137 = vpop.f32.mrf.mxu0
  %v1138 = vadd.f32 0.0, %v1137
  %v1139 = vpop.f32.mrf.mxu0
  %v1140 = vadd.f32 0.0, %v1139
  %1141 = vmatmul.bf16.gmra.mxu0 %v800
  %v1142 = vpop.f32.mrf.mxu0
  %v1143 = vadd.f32 0.0, %v1142
  %v1144 = vpop.f32.mrf.mxu0
  %v1145 = vadd.f32 0.0, %v1144
  %1146 = vmatmul.bf16.gmra.mxu0 %v803
  %v1147 = vpop.f32.mrf.mxu0
  %v1148 = vadd.f32 0.0, %v1147
  %v1149 = vpop.f32.mrf.mxu0
  %v1150 = vadd.f32 0.0, %v1149
  %1151 = vmatmul.bf16.gmra.mxu0 %v806
  %v1152 = vpop.f32.mrf.mxu0
  %v1153 = vadd.f32 0.0, %v1152
  %v1154 = vpop.f32.mrf.mxu0
  %v1155 = vadd.f32 0.0, %v1154
  %1156 = vmatmul.bf16.gmra.mxu0 %v809
  %v1157 = vpop.f32.mrf.mxu0
  %v1158 = vadd.f32 0.0, %v1157
  %v1159 = vpop.f32.mrf.mxu0
  %v1160 = vadd.f32 0.0, %v1159
  %1161 = vmatmul.bf16.gmra.mxu0 %v812
  %v1162 = vpop.f32.mrf.mxu0
  %v1163 = vadd.f32 0.0, %v1162
  %v1164 = vpop.f32.mrf.mxu0
  %v1165 = vadd.f32 0.0, %v1164
  %1166 = vmatmul.bf16.gmra.mxu0 %v815
  %v1167 = vpop.f32.mrf.mxu0
  %v1168 = vadd.f32 0.0, %v1167
  %v1169 = vpop.f32.mrf.mxu0
  %v1170 = vadd.f32 0.0, %v1169
  %1171 = vmatmul.bf16.gmra.mxu0 %v818
  %v1172 = vpop.f32.mrf.mxu0
  %v1173 = vadd.f32 0.0, %v1172
  %v1174 = vpop.f32.mrf.mxu0
  %v1175 = vadd.f32 0.0, %v1174
  %1176 = vmatmul.bf16.gmra.mxu0 %v821
  %v1177 = vpop.f32.mrf.mxu0
  %v1178 = vadd.f32 0.0, %v1177
  %v1179 = vpop.f32.mrf.mxu0
  %v1180 = vadd.f32 0.0, %v1179
  %1181 = vmatmul.bf16.gmra.mxu0 %v824
  %v1182 = vpop.f32.mrf.mxu0
  %v1183 = vadd.f32 0.0, %v1182
  %v1184 = vpop.f32.mrf.mxu0
  %v1185 = vadd.f32 0.0, %v1184
  %1186 = vmatmul.bf16.gmra.mxu0 %v827
  %v1187 = vpop.f32.mrf.mxu0
  %v1188 = vadd.f32 0.0, %v1187
  %v1189 = vpop.f32.mrf.mxu0
  %v1190 = vadd.f32 0.0, %v1189
  %1191 = vmatmul.bf16.gmra.mxu0 %v830
  %v1192 = vpop.f32.mrf.mxu0
  %v1193 = vadd.f32 0.0, %v1192
  %v1194 = vpop.f32.mrf.mxu0
  %v1195 = vadd.f32 0.0, %v1194
  %1196 = vmatmul.bf16.gmra.mxu0 %v833
  %v1197 = vpop.f32.mrf.mxu0
  %v1198 = vadd.f32 0.0, %v1197
  %v1199 = vpop.f32.mrf.mxu0
  %v1200 = vadd.f32 0.0, %v1199
  %1201 = vmatmul.bf16.gmra.mxu0 %v836
  %v1202 = vpop.f32.mrf.mxu0
  %v1203 = vadd.f32 0.0, %v1202
  %v1204 = vpop.f32.mrf.mxu0
  %v1205 = vadd.f32 0.0, %v1204
  %1206 = vmatmul.bf16.gmra.mxu0 %v839
  %v1207 = vpop.f32.mrf.mxu0
  %v1208 = vadd.f32 0.0, %v1207
  %v1209 = vpop.f32.mrf.mxu0
  %v1210 = vadd.f32 0.0, %v1209
  %1211 = vmatmul.bf16.gmra.mxu0 %v842
  %v1212 = vpop.f32.mrf.mxu0
  %v1213 = vadd.f32 0.0, %v1212
  %v1214 = vpop.f32.mrf.mxu0
  %v1215 = vadd.f32 0.0, %v1214
  %1216 = vmatmul.bf16.gmra.mxu0 %v845
  %v1217 = vpop.f32.mrf.mxu0
  %v1218 = vadd.f32 0.0, %v1217
  %v1219 = vpop.f32.mrf.mxu0
  %v1220 = vadd.f32 0.0, %v1219
  %1221 = vmatmul.bf16.gmra.mxu0 %v848
  %v1222 = vpop.f32.mrf.mxu0
  %v1223 = vadd.f32 0.0, %v1222
  %v1224 = vpop.f32.mrf.mxu0
  %v1225 = vadd.f32 0.0, %v1224
  %1226 = vmatmul.bf16.gmra.mxu0 %v851
  %v1227 = vpop.f32.mrf.mxu0
  %v1228 = vadd.f32 0.0, %v1227
  %v1229 = vpop.f32.mrf.mxu0
  %v1230 = vadd.f32 0.0, %v1229
  %1231 = vmatmul.bf16.gmra.mxu0 %v854
  %v1232 = vpop.f32.mrf.mxu0
  %v1233 = vadd.f32 0.0, %v1232
  %v1234 = vpop.f32.mrf.mxu0
  %v1235 = vadd.f32 0.0, %v1234
  %1236 = vmatmul.bf16.gmra.mxu0 %v857
  %v1237 = vpop.f32.mrf.mxu0
  %v1238 = vadd.f32 0.0, %v1237
  %v1239 = vpop.f32.mrf.mxu0
  %v1240 = vadd.f32 0.0, %v1239
  %1241 = vmatmul.bf16.gmra.mxu0 %v860
  %v1242 = vpop.f32.mrf.mxu0
  %v1243 = vadd.f32 0.0, %v1242
  %v1244 = vpop.f32.mrf.mxu0
  %v1245 = vadd.f32 0.0, %v1244
  %1246 = vmatmul.bf16.gmra.mxu0 %v863
  %v1247 = vpop.f32.mrf.mxu0
  %v1248 = vadd.f32 0.0, %v1247
  %v1249 = vpop.f32.mrf.mxu0
  %v1250 = vadd.f32 0.0, %v1249
  %1251 = vmatmul.bf16.gmra.mxu0 %v866
  %v1252 = vpop.f32.mrf.mxu0
  %v1253 = vadd.f32 0.0, %v1252
  %v1254 = vpop.f32.mrf.mxu0
  %v1255 = vadd.f32 0.0, %v1254
  %1256 = vmatmul.bf16.gmra.mxu0 %v869
  %v1257 = vpop.f32.mrf.mxu0
  %v1258 = vadd.f32 0.0, %v1257
  %v1259 = vpop.f32.mrf.mxu0
  %v1260 = vadd.f32 0.0, %v1259
  %1261 = vmatmul.bf16.gmra.mxu0 %v872
  %v1262 = vpop.f32.mrf.mxu0
  %v1263 = vadd.f32 0.0, %v1262
  %v1264 = vpop.f32.mrf.mxu0
  %v1265 = vadd.f32 0.0, %v1264
  %1266 = vmatmul.bf16.gmra.mxu0 %v875
  %v1267 = vpop.f32.mrf.mxu0
  %v1268 = vadd.f32 0.0, %v1267
  %v1269 = vpop.f32.mrf.mxu0
  %v1270 = vadd.f32 0.0, %v1269
  %1271 = vmatmul.bf16.gmra.mxu0 %v878
  %v1272 = vpop.f32.mrf.mxu0
  %v1273 = vadd.f32 0.0, %v1272
  %v1274 = vpop.f32.mrf.mxu0
  %v1275 = vadd.f32 0.0, %v1274
  %1276 = vmatmul.bf16.gmra.mxu0 %v881
  %v1277 = vpop.f32.mrf.mxu0
  %v1278 = vadd.f32 0.0, %v1277
  %v1279 = vpop.f32.mrf.mxu0
  %v1280 = vadd.f32 0.0, %v1279
  %1281 = vmatmul.bf16.gmra.mxu0 %v884
  %v1282 = vpop.f32.mrf.mxu0
  %v1283 = vadd.f32 0.0, %v1282
  %v1284 = vpop.f32.mrf.mxu0
  %v1285 = vadd.f32 0.0, %v1284
  %1286 = vmatmul.bf16.gmra.mxu0 %v887
  %v1287 = vpop.f32.mrf.mxu0
  %v1288 = vadd.f32 0.0, %v1287
  %v1289 = vpop.f32.mrf.mxu0
  %v1290 = vadd.f32 0.0, %v1289
  %1291 = vmatmul.bf16.gmra.mxu0 %v890
  %v1292 = vpop.f32.mrf.mxu0
  %v1293 = vadd.f32 0.0, %v1292
  %v1294 = vpop.f32.mrf.mxu0
  %v1295 = vadd.f32 0.0, %v1294
  %1296 = vmatmul.bf16.gmra.mxu0 %v893
  %v1297 = vpop.f32.mrf.mxu0
  %v1298 = vadd.f32 0.0, %v1297
  %v1299 = vpop.f32.mrf.mxu0
  %v1300 = vadd.f32 0.0, %v1299
  %1301 = vmatmul.bf16.gmra.mxu0 %v896
  %v1302 = vpop.f32.mrf.mxu0
  %v1303 = vadd.f32 0.0, %v1302
  %v1304 = vpop.f32.mrf.mxu0
  %v1305 = vadd.f32 0.0, %v1304
  %1306 = vmatmul.bf16.gmra.mxu0 %v899
  %v1307 = vpop.f32.mrf.mxu0
  %v1308 = vadd.f32 0.0, %v1307
  %v1309 = vpop.f32.mrf.mxu0
  %v1310 = vadd.f32 0.0, %v1309
  %1311 = vmatmul.bf16.gmra.mxu0 %v902
  %v1312 = vpop.f32.mrf.mxu0
  %v1313 = vadd.f32 0.0, %v1312
  %v1314 = vpop.f32.mrf.mxu0
  %v1315 = vadd.f32 0.0, %v1314
  %1316 = vmatmul.bf16.gmra.mxu0 %v905
  %v1317 = vpop.f32.mrf.mxu0
  %v1318 = vadd.f32 0.0, %v1317
  %v1319 = vpop.f32.mrf.mxu0
  %v1320 = vadd.f32 0.0, %v1319
  %1321 = vmatmul.bf16.gmra.mxu0 %v908
  %v1322 = vpop.f32.mrf.mxu0
  %v1323 = vadd.f32 0.0, %v1322
  %v1324 = vpop.f32.mrf.mxu0
  %v1325 = vadd.f32 0.0, %v1324
  %1326 = vmatmul.bf16.gmra.mxu0 %v911
  %v1327 = vpop.f32.mrf.mxu0
  %v1328 = vadd.f32 0.0, %v1327
  %v1329 = vpop.f32.mrf.mxu0
  %v1330 = vadd.f32 0.0, %v1329
  %1331 = vmatmul.bf16.gmra.mxu0 %v914
  %v1332 = vpop.f32.mrf.mxu0
  %v1333 = vadd.f32 0.0, %v1332
  %v1334 = vpop.f32.mrf.mxu0
  %v1335 = vadd.f32 0.0, %v1334
  %1336 = vmatmul.bf16.gmra.mxu0 %v917
  %v1337 = vpop.f32.mrf.mxu0
  %v1338 = vadd.f32 0.0, %v1337
  %v1339 = vpop.f32.mrf.mxu0
  %v1340 = vadd.f32 0.0, %v1339
  %1341 = vmatmul.bf16.gmra.mxu0 %v920
  %v1342 = vpop.f32.mrf.mxu0
  %v1343 = vadd.f32 0.0, %v1342
  %v1344 = vpop.f32.mrf.mxu0
  %v1345 = vadd.f32 0.0, %v1344
  %1346 = vmatmul.bf16.gmra.mxu0 %v923
  %v1347 = vpop.f32.mrf.mxu0
  %v1348 = vadd.f32 0.0, %v1347
  %v1349 = vpop.f32.mrf.mxu0
  %v1350 = vadd.f32 0.0, %v1349
  %1351 = vmatmul.bf16.gmra.mxu0 %v926
  %v1352 = vpop.f32.mrf.mxu0
  %v1353 = vadd.f32 0.0, %v1352
  %v1354 = vpop.f32.mrf.mxu0
  %v1355 = vadd.f32 0.0, %v1354
  %1356 = vmatmul.bf16.gmra.mxu0 %v929
  %v1357 = vpop.f32.mrf.mxu0
  %v1358 = vadd.f32 0.0, %v1357
  %v1359 = vpop.f32.mrf.mxu0
  %v1360 = vadd.f32 0.0, %v1359
  %1361 = vmatmul.bf16.gmra.mxu0 %v932
  %v1362 = vpop.f32.mrf.mxu0
  %v1363 = vadd.f32 0.0, %v1362
  %v1364 = vpop.f32.mrf.mxu0
  %v1365 = vadd.f32 0.0, %v1364
  %1366 = vmatmul.bf16.gmra.mxu0 %v935
  %v1367 = vpop.f32.mrf.mxu0
  %v1368 = vadd.f32 0.0, %v1367
  %v1369 = vpop.f32.mrf.mxu0
  %v1370 = vadd.f32 0.0, %v1369
  %1371 = vmatmul.bf16.gmra.mxu0 %v938
  %v1372 = vpop.f32.mrf.mxu0
  %v1373 = vadd.f32 0.0, %v1372
  %v1374 = vpop.f32.mrf.mxu0
  %v1375 = vadd.f32 0.0, %v1374
  %1376 = vmatmul.bf16.gmra.mxu0 %v941
  %v1377 = vpop.f32.mrf.mxu0
  %v1378 = vadd.f32 0.0, %v1377
  %v1379 = vpop.f32.mrf.mxu0
  %v1380 = vadd.f32 0.0, %v1379
  %1381 = vmatmul.bf16.gmra.mxu0 %v944
  %v1382 = vpop.f32.mrf.mxu0
  %v1383 = vadd.f32 0.0, %v1382
  %v1384 = vpop.f32.mrf.mxu0
  %v1385 = vadd.f32 0.0, %v1384
  %1386 = vmatmul.bf16.gmra.mxu0 %v947
  %v1387 = vpop.f32.mrf.mxu0
  %v1388 = vadd.f32 0.0, %v1387
  %v1389 = vpop.f32.mrf.mxu0
  %v1390 = vadd.f32 0.0, %v1389
  %1391 = vmatmul.bf16.gmra.mxu0 %v950
  %v1392 = vpop.f32.mrf.mxu0
  %v1393 = vadd.f32 0.0, %v1392
  %v1394 = vpop.f32.mrf.mxu0
  %v1395 = vadd.f32 0.0, %v1394
  %1396 = vmatmul.bf16.gmra.mxu0 %v953
  %v1397 = vpop.f32.mrf.mxu0
  %v1398 = vadd.f32 0.0, %v1397
  %v1399 = vpop.f32.mrf.mxu0
  %v1400 = vadd.f32 0.0, %v1399
  %1401 = vmatmul.bf16.gmra.mxu0 %v956
  %v1402 = vpop.f32.mrf.mxu0
  %v1403 = vadd.f32 0.0, %v1402
  %v1404 = vpop.f32.mrf.mxu0
  %v1405 = vadd.f32 0.0, %v1404
  %1406 = vmatmul.bf16.gmra.mxu0 %v959
  %v1407 = vpop.f32.mrf.mxu0
  %v1408 = vadd.f32 0.0, %v1407
  %v1409 = vpop.f32.mrf.mxu0
  %v1410 = vadd.f32 0.0, %v1409
  %1411 = vmatmul.bf16.gmra.mxu0 %v962
  %v1412 = vpop.f32.mrf.mxu0
  %v1413 = vadd.f32 0.0, %v1412
  %v1414 = vpop.f32.mrf.mxu0
  %v1415 = vadd.f32 0.0, %v1414
  %1416 = vmatmul.bf16.gmra.mxu0 %v965
  %v1417 = vpop.f32.mrf.mxu0
  %v1418 = vadd.f32 0.0, %v1417
  %v1419 = vpop.f32.mrf.mxu0
  %v1420 = vadd.f32 0.0, %v1419
  %1421 = vmatmul.bf16.gmra.mxu0 %v968
  %v1422 = vpop.f32.mrf.mxu0
  %v1423 = vadd.f32 0.0, %v1422
  %v1424 = vpop.f32.mrf.mxu0
  %v1425 = vadd.f32 0.0, %v1424
  %1426 = vmatmul.bf16.gmra.mxu0 %v971
  %v1427 = vpop.f32.mrf.mxu0
  %v1428 = vadd.f32 0.0, %v1427
  %v1429 = vpop.f32.mrf.mxu0
  %v1430 = vadd.f32 0.0, %v1429
  %1431 = vmatmul.bf16.gmra.mxu0 %v974
  %v1432 = vpop.f32.mrf.mxu0
  %v1433 = vadd.f32 0.0, %v1432
  %v1434 = vpop.f32.mrf.mxu0
  %v1435 = vadd.f32 0.0, %v1434
  %1436 = vmatmul.bf16.gmra.mxu0 %v977
  %v1437 = vpop.f32.mrf.mxu0
  %v1438 = vadd.f32 0.0, %v1437
  %v1439 = vpop.f32.mrf.mxu0
  %v1440 = vadd.f32 0.0, %v1439
  %1441 = vmatmul.bf16.gmra.mxu0 %v980
  %v1442 = vpop.f32.mrf.mxu0
  %v1443 = vadd.f32 0.0, %v1442
  %v1444 = vpop.f32.mrf.mxu0
  %v1445 = vadd.f32 0.0, %v1444
  %1446 = vmatmul.bf16.gmra.mxu0 %v983
  %v1447 = vpop.f32.mrf.mxu0
  %v1448 = vadd.f32 0.0, %v1447
  %v1449 = vpop.f32.mrf.mxu0
  %v1450 = vadd.f32 0.0, %v1449
  %1451 = vmatmul.bf16.gmra.mxu0 %v986
  %v1452 = vpop.f32.mrf.mxu0
  %v1453 = vadd.f32 0.0, %v1452
  %v1454 = vpop.f32.mrf.mxu0
  %v1455 = vadd.f32 0.0, %v1454
  %1456 = vmatmul.bf16.gmra.mxu0 %v989
  %v1457 = vpop.f32.mrf.mxu0
  %v1458 = vadd.f32 0.0, %v1457
  %v1459 = vpop.f32.mrf.mxu0
  %v1460 = vadd.f32 0.0, %v1459
  %1461 = vmatmul.bf16.gmra.mxu0 %v992
  %v1462 = vpop.f32.mrf.mxu0
  %v1463 = vadd.f32 0.0, %v1462
  %v1464 = vpop.f32.mrf.mxu0
  %v1465 = vadd.f32 0.0, %v1464
  %1466 = vmatmul.bf16.gmra.mxu0 %v995
  %v1467 = vpop.f32.mrf.mxu0
  %v1468 = vadd.f32 0.0, %v1467
  %v1469 = vpop.f32.mrf.mxu0
  %v1470 = vadd.f32 0.0, %v1469
  %1471 = vmatmul.bf16.gmra.mxu0 %v998
  %v1472 = vpop.f32.mrf.mxu0
  %v1473 = vadd.f32 0.0, %v1472
  %v1474 = vpop.f32.mrf.mxu0
  %v1475 = vadd.f32 0.0, %v1474
  %1476 = vmatmul.bf16.gmra.mxu0 %v1001
  %v1477 = vpop.f32.mrf.mxu0
  %v1478 = vadd.f32 0.0, %v1477
  %v1479 = vpop.f32.mrf.mxu0
  %v1480 = vadd.f32 0.0, %v1479
  %1481 = vmatmul.bf16.gmra.mxu0 %v1004
  %v1482 = vpop.f32.mrf.mxu0
  %v1483 = vadd.f32 0.0, %v1482
  %v1484 = vpop.f32.mrf.mxu0
  %v1485 = vadd.f32 0.0, %v1484
  %1486 = vmatmul.bf16.gmra.mxu0 %v1007
  %v1487 = vpop.f32.mrf.mxu0
  %v1488 = vadd.f32 0.0, %v1487
  %v1489 = vpop.f32.mrf.mxu0
  %v1490 = vadd.f32 0.0, %v1489
  %1491 = vmatmul.bf16.gmra.mxu0 %v1010
  %v1492 = vpop.f32.mrf.mxu0
  %v1493 = vadd.f32 0.0, %v1492
  %v1494 = vpop.f32.mrf.mxu0
  %v1495 = vadd.f32 0.0, %v1494
  %1496 = vmatmul.bf16.gmra.mxu0 %v1013
  %v1497 = vpop.f32.mrf.mxu0
  %v1498 = vadd.f32 0.0, %v1497
  %v1499 = vpop.f32.mrf.mxu0
  %v1500 = vadd.f32 0.0, %v1499
  %1501 = vmatmul.bf16.gmra.mxu0 %v1016
  %v1502 = vpop.f32.mrf.mxu0
  %v1503 = vadd.f32 0.0, %v1502
  %v1504 = vpop.f32.mrf.mxu0
  %v1505 = vadd.f32 0.0, %v1504
  %1506 = vmatmul.bf16.gmra.mxu0 %v1019
  %v1507 = vpop.f32.mrf.mxu0
  %v1508 = vadd.f32 0.0, %v1507
  %v1509 = vpop.f32.mrf.mxu0
  %v1510 = vadd.f32 0.0, %v1509
  %1511 = vmatmul.bf16.gmra.mxu0 %v1022
  %v1512 = vpop.f32.mrf.mxu0
  %v1513 = vadd.f32 0.0, %v1512
  %v1514 = vpop.f32.mrf.mxu0
  %v1515 = vadd.f32 0.0, %v1514
  %1516 = vmatmul.bf16.gmra.mxu0 %v1025
  %v1517 = vpop.f32.mrf.mxu0
  %v1518 = vadd.f32 0.0, %v1517
  %v1519 = vpop.f32.mrf.mxu0
  %v1520 = vadd.f32 0.0, %v1519
  %1521 = vmatmul.bf16.gmra.mxu0 %v1028
  %v1522 = vpop.f32.mrf.mxu0
  %v1523 = vadd.f32 0.0, %v1522
  %v1524 = vpop.f32.mrf.mxu0
  %v1525 = vadd.f32 0.0, %v1524
  %1526 = vmatmul.bf16.gmra.mxu0 %v1031
  %v1527 = vpop.f32.mrf.mxu0
  %v1528 = vadd.f32 0.0, %v1527
  %v1529 = vpop.f32.mrf.mxu0
  %v1530 = vadd.f32 0.0, %v1529
  %1531 = vmatmul.bf16.gmra.mxu0 %v1034
  %v1532 = vpop.f32.mrf.mxu0
  %v1533 = vadd.f32 0.0, %v1532
  %v1534 = vpop.f32.mrf.mxu0
  %v1535 = vadd.f32 0.0, %v1534
  %1536 = vmatmul.bf16.gmra.mxu0 %v1037
  %v1537 = vpop.f32.mrf.mxu0
  %v1538 = vadd.f32 0.0, %v1537
  %v1539 = vpop.f32.mrf.mxu0
  %v1540 = vadd.f32 0.0, %v1539
  %1541 = vmatmul.bf16.gmra.mxu0 %v1040
  %v1542 = vpop.f32.mrf.mxu0
  %v1543 = vadd.f32 0.0, %v1542
  %v1544 = vpop.f32.mrf.mxu0
  %v1545 = vadd.f32 0.0, %v1544
  %1546 = vmatmul.bf16.gmra.mxu0 %v1043
  %v1547 = vpop.f32.mrf.mxu0
  %v1548 = vadd.f32 0.0, %v1547
  %v1549 = vpop.f32.mrf.mxu0
  %v1550 = vadd.f32 0.0, %v1549
  %1551 = vmatmul.bf16.gmra.mxu0 %v1046
  %v1552 = vpop.f32.mrf.mxu0
  %v1553 = vadd.f32 0.0, %v1552
  %v1554 = vpop.f32.mrf.mxu0
  %v1555 = vadd.f32 0.0, %v1554
  %1556 = vmatmul.bf16.gmra.mxu0 %v1049
  %v1557 = vpop.f32.mrf.mxu0
  %v1558 = vadd.f32 0.0, %v1557
  %v1559 = vpop.f32.mrf.mxu0
  %v1560 = vadd.f32 0.0, %v1559
  %1561 = vmatmul.bf16.gmra.mxu0 %v1052
  %v1562 = vpop.f32.mrf.mxu0
  %v1563 = vadd.f32 0.0, %v1562
  %v1564 = vpop.f32.mrf.mxu0
  %v1565 = vadd.f32 0.0, %v1564
  %1566 = vmatmul.bf16.gmra.mxu0 %v1055
  %v1567 = vpop.f32.mrf.mxu0
  %v1568 = vadd.f32 0.0, %v1567
  %v1569 = vpop.f32.mrf.mxu0
  %v1570 = vadd.f32 0.0, %v1569
  %1571 = vmatmul.bf16.gmra.mxu0 %v1058
  %v1572 = vpop.f32.mrf.mxu0
  %v1573 = vadd.f32 0.0, %v1572
  %v1574 = vpop.f32.mrf.mxu0
  %v1575 = vadd.f32 0.0, %v1574
  %1576 = vmatmul.bf16.gmra.mxu0 %v1061
  %v1577 = vpop.f32.mrf.mxu0
  %v1578 = vadd.f32 0.0, %v1577
  %v1579 = vpop.f32.mrf.mxu0
  %v1580 = vadd.f32 0.0, %v1579
  %1581 = vmatmul.bf16.gmra.mxu0 %v1064
  %v1582 = vpop.f32.mrf.mxu0
  %v1583 = vadd.f32 0.0, %v1582
  %v1584 = vpop.f32.mrf.mxu0
  %v1585 = vadd.f32 0.0, %v1584
  %1586 = vmatmul.bf16.gmra.mxu0 %v1067
  %v1587 = vpop.f32.mrf.mxu0
  %v1588 = vadd.f32 0.0, %v1587
  %v1589 = vpop.f32.mrf.mxu0
  %v1590 = vadd.f32 0.0, %v1589
  %1591 = vmatmul.bf16.gmra.mxu0 %v1070
  %v1592 = vpop.f32.mrf.mxu0
  %v1593 = vadd.f32 0.0, %v1592
  %v1594 = vpop.f32.mrf.mxu0
  %v1595 = vadd.f32 0.0, %v1594
  %1596 = vmatmul.bf16.gmra.mxu0 %v1073
  %v1597 = vpop.f32.mrf.mxu0
  %v1598 = vadd.f32 0.0, %v1597
  %v1599 = vpop.f32.mrf.mxu0
  %v1600 = vadd.f32 0.0, %v1599
  %1601 = vmatmul.bf16.gmra.mxu0 %v1076
  %v1602 = vpop.f32.mrf.mxu0
  %v1603 = vadd.f32 0.0, %v1602
  %v1604 = vpop.f32.mrf.mxu0
  %v1605 = vadd.f32 0.0, %v1604
  %1606 = vmatmul.bf16.gmra.mxu0 %v1079
  %v1607 = vpop.f32.mrf.mxu0
  %v1608 = vadd.f32 0.0, %v1607
  %v1609 = vpop.f32.mrf.mxu0
  %v1610 = vadd.f32 0.0, %v1609
  %1611 = vmatmul.bf16.gmra.mxu0 %v1082
  %v1612 = vpop.f32.mrf.mxu0
  %v1613 = vadd.f32 0.0, %v1612
  %v1614 = vpop.f32.mrf.mxu0
  %v1615 = vadd.f32 0.0, %v1614
  %1616 = vmatmul.bf16.gmra.mxu0 %v1085
  %v1617 = vpop.f32.mrf.mxu0
  %v1618 = vadd.f32 0.0, %v1617
  %v1619 = vpop.f32.mrf.mxu0
  %v1620 = vadd.f32 0.0, %v1619
  %1621 = vmatmul.bf16.gmra.mxu0 %v1088
  %v1622 = vpop.f32.mrf.mxu0
  %v1623 = vadd.f32 0.0, %v1622
  %v1624 = vpop.f32.mrf.mxu0
  %v1625 = vadd.f32 0.0, %v1624
  %1626 = vmatmul.bf16.gmra.mxu0 %v1091
  %v1627 = vpop.f32.mrf.mxu0
  %v1628 = vadd.f32 0.0, %v1627
  %v1629 = vpop.f32.mrf.mxu0
  %1630 = vdwg.mxu0
  %vm1631 = vcmask 130048
  %1632 = vst.msk [vmem:[%s3] sm:$0xff] %vm1631, %v1103
  %1633 = vst.msk [vmem:[%s3 + $0x8] sm:$0xff] %vm1631, %v1105
  %1634 = vst.msk [vmem:[%s3 + $0x10] sm:$0xff] %vm1631, %v1108
  %1635 = vst.msk [vmem:[%s3 + $0x18] sm:$0xff] %vm1631, %v1110
  %1636 = vst.msk [vmem:[%s3 + $0x20] sm:$0xff] %vm1631, %v1113
  %1637 = vst.msk [vmem:[%s3 + $0x28] sm:$0xff] %vm1631, %v1115
  %1638 = vst.msk [vmem:[%s3 + $0x30] sm:$0xff] %vm1631, %v1118
  %1639 = vst.msk [vmem:[%s3 + $0x38] sm:$0xff] %vm1631, %v1120
  %1640 = vst.msk [vmem:[%s3 + $0x40] sm:$0xff] %vm1631, %v1123
  %1641 = vst.msk [vmem:[%s3 + $0x48] sm:$0xff] %vm1631, %v1125
  %1642 = vst.msk [vmem:[%s3 + $0x50] sm:$0xff] %vm1631, %v1128
  %1643 = vst.msk [vmem:[%s3 + $0x58] sm:$0xff] %vm1631, %v1130
  %1644 = vst.msk [vmem:[%s3 + $0x60] sm:$0xff] %vm1631, %v1133
  %1645 = vst.msk [vmem:[%s3 + $0x68] sm:$0xff] %vm1631, %v1135
  %1646 = vst.msk [vmem:[%s3 + $0x70] sm:$0xff] %vm1631, %v1138
  %1647 = vst.msk [vmem:[%s3 + $0x78] sm:$0xff] %vm1631, %v1140
  %1648 = vst.msk [vmem:[%s3 + $0x80] sm:$0xff] %vm1631, %v1143
  %1649 = vst.msk [vmem:[%s3 + $0x88] sm:$0xff] %vm1631, %v1145
  %1650 = vst.msk [vmem:[%s3 + $0x90] sm:$0xff] %vm1631, %v1148
  %1651 = vst.msk [vmem:[%s3 + $0x98] sm:$0xff] %vm1631, %v1150
  %1652 = vst.msk [vmem:[%s3 + $0xa0] sm:$0xff] %vm1631, %v1153
  %1653 = vst.msk [vmem:[%s3 + $0xa8] sm:$0xff] %vm1631, %v1155
  %1654 = vst.msk [vmem:[%s3 + $0xb0] sm:$0xff] %vm1631, %v1158
  %1655 = vst.msk [vmem:[%s3 + $0xb8] sm:$0xff] %vm1631, %v1160
  %1656 = vst.msk [vmem:[%s3 + $0xc0] sm:$0xff] %vm1631, %v1163
  %1657 = vst.msk [vmem:[%s3 + $0xc8] sm:$0xff] %vm1631, %v1165
  %1658 = vst.msk [vmem:[%s3 + $0xd0] sm:$0xff] %vm1631, %v1168
  %1659 = vst.msk [vmem:[%s3 + $0xd8] sm:$0xff] %vm1631, %v1170
  %1660 = vst.msk [vmem:[%s3 + $0xe0] sm:$0xff] %vm1631, %v1173
  %1661 = vst.msk [vmem:[%s3 + $0xe8] sm:$0xff] %vm1631, %v1175
  %1662 = vst.msk [vmem:[%s3 + $0xf0] sm:$0xff] %vm1631, %v1178
  %1663 = vst.msk [vmem:[%s3 + $0xf8] sm:$0xff] %vm1631, %v1180
  %1664 = vst.msk [vmem:[%s3 + $0x100] sm:$0xff] %vm1631, %v1183
  %1665 = vst.msk [vmem:[%s3 + $0x108] sm:$0xff] %vm1631, %v1185
  %1666 = vst.msk [vmem:[%s3 + $0x110] sm:$0xff] %vm1631, %v1188
  %1667 = vst.msk [vmem:[%s3 + $0x118] sm:$0xff] %vm1631, %v1190
  %1668 = vst.msk [vmem:[%s3 + $0x120] sm:$0xff] %vm1631, %v1193
  %1669 = vst.msk [vmem:[%s3 + $0x128] sm:$0xff] %vm1631, %v1195
  %1670 = vst.msk [vmem:[%s3 + $0x130] sm:$0xff] %vm1631, %v1198
  %1671 = vst.msk [vmem:[%s3 + $0x138] sm:$0xff] %vm1631, %v1200
  %1672 = vst.msk [vmem:[%s3 + $0x140] sm:$0xff] %vm1631, %v1203
  %1673 = vst.msk [vmem:[%s3 + $0x148] sm:$0xff] %vm1631, %v1205
  %1674 = vst.msk [vmem:[%s3 + $0x150] sm:$0xff] %vm1631, %v1208
  %1675 = vst.msk [vmem:[%s3 + $0x158] sm:$0xff] %vm1631, %v1210
  %1676 = vst.msk [vmem:[%s3 + $0x160] sm:$0xff] %vm1631, %v1213
  %1677 = vst.msk [vmem:[%s3 + $0x168] sm:$0xff] %vm1631, %v1215
  %1678 = vst.msk [vmem:[%s3 + $0x170] sm:$0xff] %vm1631, %v1218
  %1679 = vst.msk [vmem:[%s3 + $0x178] sm:$0xff] %vm1631, %v1220
  %1680 = vst.msk [vmem:[%s3 + $0x180] sm:$0xff] %vm1631, %v1223
  %1681 = vst.msk [vmem:[%s3 + $0x188] sm:$0xff] %vm1631, %v1225
  %1682 = vst.msk [vmem:[%s3 + $0x190] sm:$0xff] %vm1631, %v1228
  %1683 = vst.msk [vmem:[%s3 + $0x198] sm:$0xff] %vm1631, %v1230
  %1684 = vst.msk [vmem:[%s3 + $0x1a0] sm:$0xff] %vm1631, %v1233
  %1685 = vst.msk [vmem:[%s3 + $0x1a8] sm:$0xff] %vm1631, %v1235
  %1686 = vst.msk [vmem:[%s3 + $0x1b0] sm:$0xff] %vm1631, %v1238
  %1687 = vst.msk [vmem:[%s3 + $0x1b8] sm:$0xff] %vm1631, %v1240
  %1688 = vst.msk [vmem:[%s3 + $0x1c0] sm:$0xff] %vm1631, %v1243
  %1689 = vst.msk [vmem:[%s3 + $0x1c8] sm:$0xff] %vm1631, %v1245
  %1690 = vst.msk [vmem:[%s3 + $0x1d0] sm:$0xff] %vm1631, %v1248
  %1691 = vst.msk [vmem:[%s3 + $0x1d8] sm:$0xff] %vm1631, %v1250
  %1692 = vst.msk [vmem:[%s3 + $0x1e0] sm:$0xff] %vm1631, %v1253
  %1693 = vst.msk [vmem:[%s3 + $0x1e8] sm:$0xff] %vm1631, %v1255
  %1694 = vst.msk [vmem:[%s3 + $0x1f0] sm:$0xff] %vm1631, %v1258
  %1695 = vst.msk [vmem:[%s3 + $0x1f8] sm:$0xff] %vm1631, %v1260
  %1696 = vst.msk [vmem:[%s3 + $0x200] sm:$0xff] %vm1631, %v1263
  %1697 = vst.msk [vmem:[%s3 + $0x208] sm:$0xff] %vm1631, %v1265
  %1698 = vst.msk [vmem:[%s3 + $0x210] sm:$0xff] %vm1631, %v1268
  %1699 = vst.msk [vmem:[%s3 + $0x218] sm:$0xff] %vm1631, %v1270
  %1700 = vst.msk [vmem:[%s3 + $0x220] sm:$0xff] %vm1631, %v1273
  %1701 = vst.msk [vmem:[%s3 + $0x228] sm:$0xff] %vm1631, %v1275
  %1702 = vst.msk [vmem:[%s3 + $0x230] sm:$0xff] %vm1631, %v1278
  %1703 = vst.msk [vmem:[%s3 + $0x238] sm:$0xff] %vm1631, %v1280
  %1704 = vst.msk [vmem:[%s3 + $0x240] sm:$0xff] %vm1631, %v1283
  %1705 = vst.msk [vmem:[%s3 + $0x248] sm:$0xff] %vm1631, %v1285
  %1706 = vst.msk [vmem:[%s3 + $0x250] sm:$0xff] %vm1631, %v1288
  %1707 = vst.msk [vmem:[%s3 + $0x258] sm:$0xff] %vm1631, %v1290
  %1708 = vst.msk [vmem:[%s3 + $0x260] sm:$0xff] %vm1631, %v1293
  %1709 = vst.msk [vmem:[%s3 + $0x268] sm:$0xff] %vm1631, %v1295
  %1710 = vst.msk [vmem:[%s3 + $0x270] sm:$0xff] %vm1631, %v1298
  %1711 = vst.msk [vmem:[%s3 + $0x278] sm:$0xff] %vm1631, %v1300
  %1712 = vst.msk [vmem:[%s3 + $0x280] sm:$0xff] %vm1631, %v1303
  %1713 = vst.msk [vmem:[%s3 + $0x288] sm:$0xff] %vm1631, %v1305
  %1714 = vst.msk [vmem:[%s3 + $0x290] sm:$0xff] %vm1631, %v1308
  %1715 = vst.msk [vmem:[%s3 + $0x298] sm:$0xff] %vm1631, %v1310
  %1716 = vst.msk [vmem:[%s3 + $0x2a0] sm:$0xff] %vm1631, %v1313
  %1717 = vst.msk [vmem:[%s3 + $0x2a8] sm:$0xff] %vm1631, %v1315
  %1718 = vst.msk [vmem:[%s3 + $0x2b0] sm:$0xff] %vm1631, %v1318
  %1719 = vst.msk [vmem:[%s3 + $0x2b8] sm:$0xff] %vm1631, %v1320
  %1720 = vst.msk [vmem:[%s3 + $0x2c0] sm:$0xff] %vm1631, %v1323
  %1721 = vst.msk [vmem:[%s3 + $0x2c8] sm:$0xff] %vm1631, %v1325
  %1722 = vst.msk [vmem:[%s3 + $0x2d0] sm:$0xff] %vm1631, %v1328
  %1723 = vst.msk [vmem:[%s3 + $0x2d8] sm:$0xff] %vm1631, %v1330
  %1724 = vst.msk [vmem:[%s3 + $0x2e0] sm:$0xff] %vm1631, %v1333
  %1725 = vst.msk [vmem:[%s3 + $0x2e8] sm:$0xff] %vm1631, %v1335
  %1726 = vst.msk [vmem:[%s3 + $0x2f0] sm:$0xff] %vm1631, %v1338
  %1727 = vst.msk [vmem:[%s3 + $0x2f8] sm:$0xff] %vm1631, %v1340
  %1728 = vst.msk [vmem:[%s3 + $0x300] sm:$0xff] %vm1631, %v1343
  %1729 = vst.msk [vmem:[%s3 + $0x308] sm:$0xff] %vm1631, %v1345
  %1730 = vst.msk [vmem:[%s3 + $0x310] sm:$0xff] %vm1631, %v1348
  %1731 = vst.msk [vmem:[%s3 + $0x318] sm:$0xff] %vm1631, %v1350
  %1732 = vst.msk [vmem:[%s3 + $0x320] sm:$0xff] %vm1631, %v1353
  %1733 = vst.msk [vmem:[%s3 + $0x328] sm:$0xff] %vm1631, %v1355
  %1734 = vst.msk [vmem:[%s3 + $0x330] sm:$0xff] %vm1631, %v1358
  %1735 = vst.msk [vmem:[%s3 + $0x338] sm:$0xff] %vm1631, %v1360
  %1736 = vst.msk [vmem:[%s3 + $0x340] sm:$0xff] %vm1631, %v1363
  %1737 = vst.msk [vmem:[%s3 + $0x348] sm:$0xff] %vm1631, %v1365
  %1738 = vst.msk [vmem:[%s3 + $0x350] sm:$0xff] %vm1631, %v1368
  %1739 = vst.msk [vmem:[%s3 + $0x358] sm:$0xff] %vm1631, %v1370
  %1740 = vst.msk [vmem:[%s3 + $0x360] sm:$0xff] %vm1631, %v1373
  %1741 = vst.msk [vmem:[%s3 + $0x368] sm:$0xff] %vm1631, %v1375
  %1742 = vst.msk [vmem:[%s3 + $0x370] sm:$0xff] %vm1631, %v1378
  %1743 = vst.msk [vmem:[%s3 + $0x378] sm:$0xff] %vm1631, %v1380
  %1744 = vst.msk [vmem:[%s3 + $0x380] sm:$0xff] %vm1631, %v1383
  %1745 = vst.msk [vmem:[%s3 + $0x388] sm:$0xff] %vm1631, %v1385
  %1746 = vst.msk [vmem:[%s3 + $0x390] sm:$0xff] %vm1631, %v1388
  %1747 = vst.msk [vmem:[%s3 + $0x398] sm:$0xff] %vm1631, %v1390
  %1748 = vst.msk [vmem:[%s3 + $0x3a0] sm:$0xff] %vm1631, %v1393
  %1749 = vst.msk [vmem:[%s3 + $0x3a8] sm:$0xff] %vm1631, %v1395
  %1750 = vst.msk [vmem:[%s3 + $0x3b0] sm:$0xff] %vm1631, %v1398
  %1751 = vst.msk [vmem:[%s3 + $0x3b8] sm:$0xff] %vm1631, %v1400
  %1752 = vst.msk [vmem:[%s3 + $0x3c0] sm:$0xff] %vm1631, %v1403
  %1753 = vst.msk [vmem:[%s3 + $0x3c8] sm:$0xff] %vm1631, %v1405
  %1754 = vst.msk [vmem:[%s3 + $0x3d0] sm:$0xff] %vm1631, %v1408
  %1755 = vst.msk [vmem:[%s3 + $0x3d8] sm:$0xff] %vm1631, %v1410
  %1756 = vst.msk [vmem:[%s3 + $0x3e0] sm:$0xff] %vm1631, %v1413
  %1757 = vst.msk [vmem:[%s3 + $0x3e8] sm:$0xff] %vm1631, %v1415
  %1758 = vst.msk [vmem:[%s3 + $0x3f0] sm:$0xff] %vm1631, %v1418
  %1759 = vst.msk [vmem:[%s3 + $0x3f8] sm:$0xff] %vm1631, %v1420
  %1760 = vst.msk [vmem:[%s3 + $0x400] sm:$0xff] %vm1631, %v1423
  %1761 = vst.msk [vmem:[%s3 + $0x408] sm:$0xff] %vm1631, %v1425
  %1762 = vst.msk [vmem:[%s3 + $0x410] sm:$0xff] %vm1631, %v1428
  %1763 = vst.msk [vmem:[%s3 + $0x418] sm:$0xff] %vm1631, %v1430
  %1764 = vst.msk [vmem:[%s3 + $0x420] sm:$0xff] %vm1631, %v1433
  %1765 = vst.msk [vmem:[%s3 + $0x428] sm:$0xff] %vm1631, %v1435
  %1766 = vst.msk [vmem:[%s3 + $0x430] sm:$0xff] %vm1631, %v1438
  %1767 = vst.msk [vmem:[%s3 + $0x438] sm:$0xff] %vm1631, %v1440
  %1768 = vst.msk [vmem:[%s3 + $0x440] sm:$0xff] %vm1631, %v1443
  %1769 = vst.msk [vmem:[%s3 + $0x448] sm:$0xff] %vm1631, %v1445
  %1770 = vst.msk [vmem:[%s3 + $0x450] sm:$0xff] %vm1631, %v1448
  %1771 = vst.msk [vmem:[%s3 + $0x458] sm:$0xff] %vm1631, %v1450
  %1772 = vst.msk [vmem:[%s3 + $0x460] sm:$0xff] %vm1631, %v1453
  %1773 = vst.msk [vmem:[%s3 + $0x468] sm:$0xff] %vm1631, %v1455
  %1774 = vst.msk [vmem:[%s3 + $0x470] sm:$0xff] %vm1631, %v1458
  %1775 = vst.msk [vmem:[%s3 + $0x478] sm:$0xff] %vm1631, %v1460
  %1776 = vst.msk [vmem:[%s3 + $0x480] sm:$0xff] %vm1631, %v1463
  %1777 = vst.msk [vmem:[%s3 + $0x488] sm:$0xff] %vm1631, %v1465
  %1778 = vst.msk [vmem:[%s3 + $0x490] sm:$0xff] %vm1631, %v1468
  %1779 = vst.msk [vmem:[%s3 + $0x498] sm:$0xff] %vm1631, %v1470
  %1780 = vst.msk [vmem:[%s3 + $0x4a0] sm:$0xff] %vm1631, %v1473
  %1781 = vst.msk [vmem:[%s3 + $0x4a8] sm:$0xff] %vm1631, %v1475
  %1782 = vst.msk [vmem:[%s3 + $0x4b0] sm:$0xff] %vm1631, %v1478
  %1783 = vst.msk [vmem:[%s3 + $0x4b8] sm:$0xff] %vm1631, %v1480
  %1784 = vst.msk [vmem:[%s3 + $0x4c0] sm:$0xff] %vm1631, %v1483
  %1785 = vst.msk [vmem:[%s3 + $0x4c8] sm:$0xff] %vm1631, %v1485
  %1786 = vst.msk [vmem:[%s3 + $0x4d0] sm:$0xff] %vm1631, %v1488
  %1787 = vst.msk [vmem:[%s3 + $0x4d8] sm:$0xff] %vm1631, %v1490
  %1788 = vst.msk [vmem:[%s3 + $0x4e0] sm:$0xff] %vm1631, %v1493
  %1789 = vst.msk [vmem:[%s3 + $0x4e8] sm:$0xff] %vm1631, %v1495
  %1790 = vst.msk [vmem:[%s3 + $0x4f0] sm:$0xff] %vm1631, %v1498
  %1791 = vst.msk [vmem:[%s3 + $0x4f8] sm:$0xff] %vm1631, %v1500
  %1792 = vst.msk [vmem:[%s3 + $0x500] sm:$0xff] %vm1631, %v1503
  %1793 = vst.msk [vmem:[%s3 + $0x508] sm:$0xff] %vm1631, %v1505
  %1794 = vst.msk [vmem:[%s3 + $0x510] sm:$0xff] %vm1631, %v1508
  %1795 = vst.msk [vmem:[%s3 + $0x518] sm:$0xff] %vm1631, %v1510
  %1796 = vst.msk [vmem:[%s3 + $0x520] sm:$0xff] %vm1631, %v1513
  %1797 = vst.msk [vmem:[%s3 + $0x528] sm:$0xff] %vm1631, %v1515
  %1798 = vst.msk [vmem:[%s3 + $0x530] sm:$0xff] %vm1631, %v1518
  %1799 = vst.msk [vmem:[%s3 + $0x538] sm:$0xff] %vm1631, %v1520
  %1800 = vst.msk [vmem:[%s3 + $0x540] sm:$0xff] %vm1631, %v1523
  %1801 = vst.msk [vmem:[%s3 + $0x548] sm:$0xff] %vm1631, %v1525
  %1802 = vst.msk [vmem:[%s3 + $0x550] sm:$0xff] %vm1631, %v1528
  %1803 = vst.msk [vmem:[%s3 + $0x558] sm:$0xff] %vm1631, %v1530
  %1804 = vst.msk [vmem:[%s3 + $0x560] sm:$0xff] %vm1631, %v1533
  %1805 = vst.msk [vmem:[%s3 + $0x568] sm:$0xff] %vm1631, %v1535
  %1806 = vst.msk [vmem:[%s3 + $0x570] sm:$0xff] %vm1631, %v1538
  %1807 = vst.msk [vmem:[%s3 + $0x578] sm:$0xff] %vm1631, %v1540
  %1808 = vst.msk [vmem:[%s3 + $0x580] sm:$0xff] %vm1631, %v1543
  %1809 = vst.msk [vmem:[%s3 + $0x588] sm:$0xff] %vm1631, %v1545
  %1810 = vst.msk [vmem:[%s3 + $0x590] sm:$0xff] %vm1631, %v1548
  %1811 = vst.msk [vmem:[%s3 + $0x598] sm:$0xff] %vm1631, %v1550
  %1812 = vst.msk [vmem:[%s3 + $0x5a0] sm:$0xff] %vm1631, %v1553
  %1813 = vst.msk [vmem:[%s3 + $0x5a8] sm:$0xff] %vm1631, %v1555
  %1814 = vst.msk [vmem:[%s3 + $0x5b0] sm:$0xff] %vm1631, %v1558
  %1815 = vst.msk [vmem:[%s3 + $0x5b8] sm:$0xff] %vm1631, %v1560
  %1816 = vst.msk [vmem:[%s3 + $0x5c0] sm:$0xff] %vm1631, %v1563
  %1817 = vst.msk [vmem:[%s3 + $0x5c8] sm:$0xff] %vm1631, %v1565
  %1818 = vst.msk [vmem:[%s3 + $0x5d0] sm:$0xff] %vm1631, %v1568
  %1819 = vst.msk [vmem:[%s3 + $0x5d8] sm:$0xff] %vm1631, %v1570
  %1820 = vst.msk [vmem:[%s3 + $0x5e0] sm:$0xff] %vm1631, %v1573
  %1821 = vst.msk [vmem:[%s3 + $0x5e8] sm:$0xff] %vm1631, %v1575
  %1822 = vst.msk [vmem:[%s3 + $0x5f0] sm:$0xff] %vm1631, %v1578
  %1823 = vst.msk [vmem:[%s3 + $0x5f8] sm:$0xff] %vm1631, %v1580
  %1824 = vst.msk [vmem:[%s3 + $0x600] sm:$0xff] %vm1631, %v1583
  %1825 = vst.msk [vmem:[%s3 + $0x608] sm:$0xff] %vm1631, %v1585
  %1826 = vst.msk [vmem:[%s3 + $0x610] sm:$0xff] %vm1631, %v1588
  %1827 = vst.msk [vmem:[%s3 + $0x618] sm:$0xff] %vm1631, %v1590
  %1828 = vst.msk [vmem:[%s3 + $0x620] sm:$0xff] %vm1631, %v1593
  %1829 = vst.msk [vmem:[%s3 + $0x628] sm:$0xff] %vm1631, %v1595
  %1830 = vst.msk [vmem:[%s3 + $0x630] sm:$0xff] %vm1631, %v1598
  %1831 = vst.msk [vmem:[%s3 + $0x638] sm:$0xff] %vm1631, %v1600
  %1832 = vst.msk [vmem:[%s3 + $0x640] sm:$0xff] %vm1631, %v1603
  %1833 = vst.msk [vmem:[%s3 + $0x648] sm:$0xff] %vm1631, %v1605
  %1834 = vst.msk [vmem:[%s3 + $0x650] sm:$0xff] %vm1631, %v1608
  %1835 = vst.msk [vmem:[%s3 + $0x658] sm:$0xff] %vm1631, %v1610
  %1836 = vst.msk [vmem:[%s3 + $0x660] sm:$0xff] %vm1631, %v1613
  %1837 = vst.msk [vmem:[%s3 + $0x668] sm:$0xff] %vm1631, %v1615
  %1838 = vst.msk [vmem:[%s3 + $0x670] sm:$0xff] %vm1631, %v1618
  %1839 = vst.msk [vmem:[%s3 + $0x678] sm:$0xff] %vm1631, %v1620
  %1840 = vst.msk [vmem:[%s3 + $0x680] sm:$0xff] %vm1631, %v1623
  %1841 = vst.msk [vmem:[%s3 + $0x688] sm:$0xff] %vm1631, %v1625
  %vm1842 = vcmask 123904
  %1843 = vst.msk [vmem:[%s3 + $0x690] sm:$0x3] %vm1842, %v1628
  // Predicated region
  $region14: #{vae_forward.16} parent=0 // pred_check
    _
  $region15: #{vae_forward.16} parent=0 // pred_check_branch
    %1845 = sbr.rel (0) target = $region17
  $region16: #{vae_forward.16} parent=0 // pred_region
    _
  $region17: #{vae_forward.16} parent=0 // pred_fallthru
    _
  // Predicated region
  $region18: #{vae_forward.16} parent=0 // pred_check
    _
  $region19: #{vae_forward.16} parent=0 // pred_check_branch
    %1847 = sbr.rel (0) target = $region21
  $region20: #{vae_forward.16} parent=0 // pred_region
    _
  $region21: #{vae_forward.16} parent=0 // pred_fallthru
    _

// kernel: vae_forward.17
$region0: #{vae_forward.17}
  #allocation0 [shape = 'u32[]', space=smem, size = 0x4, offset = 0x4, fixed_abs, tag = 'smem constant byte address 0x4 - core index']
  #allocation1 [shape = 'u32[72,128]{1,0:T(1,128)}', space=vmem, size = 0x9000, scoped, tag = 'internal scratch']
  #allocation2 [shape = 'f32[1,1]{1,0:T(1,128)S(1)}', space=vmem, size = 0x200, scoped, tag = 'scoped memory for vae_forward.17']
  %s0 = inlined_call_operand.vmem [shape: f32[2,784], index: 0, kind: input, shape index: {}]
  %s1 = inlined_call_operand.<no memory space> [shape: f32[1,1], index: 1, kind: input, shape index: {}]
  %s2 = inlined_call_operand.vmem [shape: f32[2,784], index: 2, kind: output, shape index: {}]
  %s3 = sld [smem:[#allocation0]]
  $region18: #{vae_forward.17} parent=0
    _
  %s5 = ssub.s32 1, %s3
  %s6 = scalar_select 0, %s5, %s3
  %v7 = vstv %s1
  %8 = vst [vmem:[#allocation2] sm:$0x1] %v7
  // Predicated region
  $region2: #{vae_forward.17} parent=0 // pred_check
    _
  $region3: #{vae_forward.17} parent=0 // pred_check_branch
    %10 = sbr.rel (0) target = $region5
  $region4: #{vae_forward.17} parent=0 // pred_region
    _
  $region5: #{vae_forward.17} parent=0 // pred_fallthru
    _
  // Predicated region
  $region6: #{vae_forward.17} parent=0 // pred_check
    _
  $region7: #{vae_forward.17} parent=0 // pred_check_branch
    %12 = sbr.rel (0) target = $region9
  $region8: #{vae_forward.17} parent=0 // pred_region
    _
  $region9: #{vae_forward.17} parent=0 // pred_fallthru
    _
  %v13 = vld [vmem:[%s0] sm:$0xff]
  %v14 = vld [vmem:[%s0 + $0x8] sm:$0x3f]
  %v15 = vld [vmem:[#allocation2] sm:$0x1]
  %v17 = vperm.slane %v15, 0
  %18 = vset.pattern.permute.xlu0 0
  %19 = vperm.xlu0 %18, %v17
  %v20 = vpop.permute.xlu0 %19
  %v22 = vadd.f32 %v13, %v20
  %v23 = vadd.f32 %v14, %v20
  %v24 = vand.u32 2147483647, %v22
  %v25 = vand.u32 2147483647, %v23
  %v26 = vsub.f32 0.0, %v24
  %v27 = vsub.f32 0.0, %v25
  %v28 = vmul.f32 %v26, 1.442695
  %v29 = vpow.pop %v28
  %v30 = vmul.f32 %v27, 1.442695
  %v31 = vpow.pop %v30
  %vm32 = vcmp.ge.f32.partialorder %v22, 0.0
  %vm33 = vcmp.ge.f32.partialorder %v23, 0.0
  %v34 = vadd.f32 %v29, 1.0
  %v35 = vadd.f32 %v31, 1.0
  %v36 = vrcp.pop %v34
  %v37 = vmul.f32 %v34, %v36
  %v38 = vsub.f32 1.0, %v37
  %v39 = vmul.f32 %v36, %v38
  %v40 = vadd.f32 %v36, %v39
  %vm41 = vweird.f32 %v34
  %vm42 = vweird.f32 %v36
  %vm43 = vmor %vm41, %vm42
  %v44 = vsel %vm43, %v36, %v40
  %v45 = vand.u32 2147483647, %v34
  %vm46 = vcmp.eq.f32.partialorder %v45, 8.507059e+37
  %v47 = vand.u32 %v34, 2147483648
  %v48 = vor.u32 1.1754944e-38, %v47
  %v49 = vsel %vm46, %v48, %v44
  %v50 = vmul.f32 1.0, %v49
  %v51 = vrcp.pop %v35
  %v52 = vmul.f32 %v35, %v51
  %v53 = vsub.f32 1.0, %v52
  %v54 = vmul.f32 %v51, %v53
  %v55 = vadd.f32 %v51, %v54
  %vm56 = vweird.f32 %v35
  %vm57 = vweird.f32 %v51
  %vm58 = vmor %vm56, %vm57
  %v59 = vsel %vm58, %v51, %v55
  %v60 = vand.u32 2147483647, %v35
  %vm61 = vcmp.eq.f32.partialorder %v60, 8.507059e+37
  %v62 = vand.u32 %v35, 2147483648
  %v63 = vor.u32 1.1754944e-38, %v62
  %v64 = vsel %vm61, %v63, %v59
  %v65 = vmul.f32 1.0, %v64
  %v66 = vmul.f32 %v29, %v49
  %v67 = vmul.f32 %v31, %v64
  %v68 = vsel %vm32, %v50, %v66
  %v69 = vsel %vm33, %v65, %v67
  %70 = vst [vmem:[%s2] sm:$0xff] %v68
  %vm71 = vcmask 1041408
  %vm72 = vcmask 1043458
  %vm73 = vmor %vm72, %vm71
  %vm74 = vcmask 128004
  %vm75 = vmor %vm74, %vm73
  %76 = vst.msk [vmem:[%s2 + $0x8] sm:$0x3f] %vm75, %v69
  // Predicated region
  $region10: #{vae_forward.17} parent=0 // pred_check
    _
  $region11: #{vae_forward.17} parent=0 // pred_check_branch
    %78 = sbr.rel (0) target = $region13
  $region12: #{vae_forward.17} parent=0 // pred_region
    _
  $region13: #{vae_forward.17} parent=0 // pred_fallthru
    _
  // Predicated region
  $region14: #{vae_forward.17} parent=0 // pred_check
    _
  $region15: #{vae_forward.17} parent=0 // pred_check_branch
    %80 = sbr.rel (0) target = $region17
  $region16: #{vae_forward.17} parent=0 // pred_region
    _
  $region17: #{vae_forward.17} parent=0 // pred_fallthru
    _

</llo_original>
